<compile_context>
chip_gen: v7x
topology: tpu7x:2x2x1
jax: 0.10.0
libtpu: 0.0.40
codegen_flags: <defaults>
</compile_context>

<pallas_src>
import functools

import jax
import jax.numpy as jnp
from jax import lax
from jax.experimental import pallas as pl
from jax.experimental.pallas import tpu as pltpu

LN_EPS = 1e-5


# ----------------------------- math helpers -----------------------------

def _layernorm(x, gamma, beta):
    mu = jnp.mean(x, axis=-1, keepdims=True)
    var = jnp.mean(jnp.square(x - mu), axis=-1, keepdims=True)
    return (x - mu) * lax.rsqrt(var + LN_EPS) * gamma + beta


def _gelu_exact(x):
    # torch nn.GELU default: exact erf formulation (f32 on VPU/EUP).
    return 0.5 * x * (1.0 + lax.erf(x * (2.0 ** -0.5)))


# ----------------------------- fused Pallas kernel -----------------------------

def fused_transformer_kernel(
        x_ref, lnf_g_ref, lnf_b_ref,
        ln1_g_ref, ln1_b_ref, wqkv_ref, wout_ref, bout_ref,
        ln2_g_ref, ln2_b_ref, w1_ref, b1_ref, w2_ref, b2_ref,
        o_ref,
        *, heads, dim_head, mxu_dtype, approx_recip):
    """One (batch block, layer) grid step of the fused transformer.

    o_ref doubles as the resident x accumulator: its block index is constant
    along the layer (inner, "arbitrary") grid axis, so the block stays in VMEM
    across all layers of a batch block and is flushed to HBM exactly once.
    """
    layer = pl.program_id(1)
    n_layers = pl.num_programs(1)
    Bt, N, D = x_ref.shape
    inner = heads * dim_head

    # Strict-correctness path: full f32 MXU passes. Perf path: default precision.
    prec = lax.Precision.HIGHEST if mxu_dtype == jnp.float32 else None

    # Load x into the resident output block at the first layer of this batch block.
    @pl.when(layer == 0)
    def _():
        o_ref[...] = x_ref[...]

    x = o_ref[...].reshape(Bt * N, D)                        # (Bt*N, D) f32

    # ---------------- PreNorm + multi-head self-attention (+ residual) ----------------
    xn = _layernorm(x, ln1_g_ref[0, 0], ln1_b_ref[0, 0])     # (Bt*N, D) f32

    # Single lane-dense fused QKV matmul; the 1/sqrt(dim_head) scale is folded
    # into the Q columns of wqkv at packing time. Weights arrive in mxu_dtype.
    qkv = jnp.dot(xn.astype(mxu_dtype), wqkv_ref[0],
                  preferred_element_type=jnp.float32, precision=prec)  # (Bt*N, 3*inner)

    def split_heads(t2d):                                    # (Bt*N, inner) -> (Bt*heads, N, dh)
        return (t2d.reshape(Bt, N, heads, dim_head)
                    .transpose(0, 2, 1, 3)
                    .reshape(Bt * heads, N, dim_head))

    q = split_heads(qkv[:, :inner])
    k = split_heads(qkv[:, inner:2 * inner])
    v = split_heads(qkv[:, 2 * inner:])

    scores = jnp.einsum("bqd,bkd->bqk", q.astype(mxu_dtype), k.astype(mxu_dtype),
                        preferred_element_type=jnp.float32, precision=prec)
    m = jnp.max(scores, axis=-1, keepdims=True)
    p = jnp.exp(scores - m)
    denom = jnp.sum(p, axis=-1, keepdims=True)
    # PV with unnormalized p; normalize afterwards (elementwise over N*dh, not N*N).
    ctx = jnp.einsum("bqk,bkd->bqd", p.astype(mxu_dtype), v.astype(mxu_dtype),
                     preferred_element_type=jnp.float32, precision=prec)
    ctx = ctx * pl.reciprocal(denom, approx=approx_recip)    # (Bt*heads, N, dh)

    # Merge heads and apply the output projection as one lane-dense matmul.
    ctx2d = (ctx.reshape(Bt, heads, N, dim_head)
                .transpose(0, 2, 1, 3)
                .reshape(Bt * N, inner))
    attn_out = jnp.dot(ctx2d.astype(mxu_dtype), wout_ref[0],
                       preferred_element_type=jnp.float32, precision=prec) + bout_ref[0, 0]
    x = x + attn_out

    # ---------------- PreNorm + MLP (+ residual) ----------------
    xn2 = _layernorm(x, ln2_g_ref[0, 0], ln2_b_ref[0, 0])
    h1 = jnp.dot(xn2.astype(mxu_dtype), w1_ref[0],
                 preferred_element_type=jnp.float32, precision=prec) + b1_ref[0, 0]
    h1 = _gelu_exact(h1)
    y = jnp.dot(h1.astype(mxu_dtype), w2_ref[0],
                preferred_element_type=jnp.float32, precision=prec) + b2_ref[0, 0]
    x = x + y

    # Keep x resident in the output block; on the last layer fold in the final
    # LayerNorm so HBM is written exactly once per batch block.
    @pl.when(layer < n_layers - 1)
    def _():
        o_ref[...] = x.reshape(Bt, N, D).astype(o_ref.dtype)

    @pl.when(layer == n_layers - 1)
    def _():
        o_ref[...] = _layernorm(x, lnf_g_ref[0], lnf_b_ref[0]) \
            .reshape(Bt, N, D).astype(o_ref.dtype)


# ----------------------------- parameter packing -----------------------------

def _pack_params(params, *, heads, dim_head, weights_dtype):
    """Stack per-layer params on a leading layer axis.

    Matmul weights are stored in `weights_dtype` (bf16 on the perf path) so the
    per-layer weight DMA and its double-buffered VMEM footprint are halved.
    LayerNorm params and biases stay f32 (added to f32 accumulators).
    """
    layers = params["layers"]
    depth = len(layers)
    D = layers[0]["ln1_g"].shape[0]
    H = layers[0]["w1"].shape[1]
    inner = heads * dim_head
    scale = dim_head ** -0.5

    def stack(key):
        return jnp.stack([l[key] for l in layers])

    wqkv = stack("wqkv")                                     # (depth, D, 3*inner)
    # Fold the attention scale into the Q columns.
    wqkv = jnp.concatenate([wqkv[..., :inner] * scale, wqkv[..., inner:]], axis=-1)

    wd = weights_dtype
    return {
        "ln1_g": stack("ln1_g").reshape(depth, 1, D),
        "ln1_b": stack("ln1_b").reshape(depth, 1, D),
        "wqkv": wqkv.astype(wd),                             # (depth, D, 3*inner)
        "wout": stack("wout").astype(wd),                    # (depth, inner, D)
        "bout": stack("bout").reshape(depth, 1, D),
        "ln2_g": stack("ln2_g").reshape(depth, 1, D),
        "ln2_b": stack("ln2_b").reshape(depth, 1, D),
        "w1": stack("w1").astype(wd),                        # (depth, D, H)
        "b1": stack("b1").reshape(depth, 1, H),
        "w2": stack("w2").astype(wd),                        # (depth, H, D)
        "b2": stack("b2").reshape(depth, 1, D),
        "lnf_g": params["ln_f_g"].reshape(1, D),
        "lnf_b": params["ln_f_b"].reshape(1, D),
    }


# ----------------------------- wrapper -----------------------------

@functools.partial(jax.jit,
                   static_argnames=("heads", "dim_head", "mxu_dtype",
                                    "batch_block", "approx_recip"))
def transformer_forward(x, params, *, heads, dim_head,
                        mxu_dtype=jnp.bfloat16, batch_block=None,
                        approx_recip=False):
    B, N, D = x.shape
    Bt = B if batch_block is None else batch_block
    assert B % Bt == 0, "batch_block must divide batch"

    p = _pack_params(params, heads=heads, dim_head=dim_head, weights_dtype=mxu_dtype)
    depth = p["w1"].shape[0]
    H = p["w1"].shape[2]
    inner = heads * dim_head

    kernel = functools.partial(
        fused_transformer_kernel, heads=heads, dim_head=dim_head,
        mxu_dtype=mxu_dtype, approx_recip=approx_recip)

    def layer_spec(block_shape):
        n = len(block_shape)
        return pl.BlockSpec(block_shape, lambda b, l, n=n: (l,) + (0,) * (n - 1))

    # NOTE: the output is used as the resident x accumulator. This relies on
    # the grid order being (batch outer / "parallel", layer inner / "arbitrary")
    # so the output block index is constant along the layer axis. Do NOT swap
    # the grid axes.
    return pl.pallas_call(
        kernel,
        out_shape=jax.ShapeDtypeStruct((B, N, D), x.dtype),
        grid=(B // Bt, depth),
        in_specs=[
            pl.BlockSpec((Bt, N, D), lambda b, l: (b, 0, 0)),     # x
            pl.BlockSpec((1, D), lambda b, l: (0, 0)),            # final LN gamma
            pl.BlockSpec((1, D), lambda b, l: (0, 0)),            # final LN beta
            layer_spec((1, 1, D)),                                # ln1_g
            layer_spec((1, 1, D)),                                # ln1_b
            layer_spec((1, D, 3 * inner)),                        # wqkv (Q pre-scaled)
            layer_spec((1, inner, D)),                            # wout
            layer_spec((1, 1, D)),                                # bout
            layer_spec((1, 1, D)),                                # ln2_g
            layer_spec((1, 1, D)),                                # ln2_b
            layer_spec((1, D, H)),                                # w1
            layer_spec((1, 1, H)),                                # b1
            layer_spec((1, H, D)),                                # w2
            layer_spec((1, 1, D)),                                # b2
        ],
        out_specs=pl.BlockSpec((Bt, N, D), lambda b, l: (b, 0, 0)),
        compiler_params=pltpu.CompilerParams(
            dimension_semantics=("parallel", "arbitrary"),
            # Explicit VMEM plan: <= 64 MiB works on every generation (v7x has
            # 64 MiB physical per TC). Resize per generation at real sizes.
            vmem_limit_bytes=64 * 1024 * 1024),
    )(x, p["lnf_g"], p["lnf_b"], p["ln1_g"], p["ln1_b"], p["wqkv"], p["wout"],
      p["bout"], p["ln2_g"], p["ln2_b"], p["w1"], p["b1"], p["w2"], p["b2"])


# ----------------------------- pure-JAX reference -----------------------------

def _ref_forward(x, params, *, heads, dim_head):
    inner = heads * dim_head
    scale = dim_head ** -0.5
    for layer in params["layers"]:
        xn = _layernorm(x, layer["ln1_g"], layer["ln1_b"])
        qkv = xn @ layer["wqkv"]
        q, k, v = jnp.split(qkv, 3, axis=-1)

        def split_heads(t):
            B, N, _ = t.shape
            return t.reshape(B, N, heads, dim_head).transpose(0, 2, 1, 3)

        q, k, v = map(split_heads, (q, k, v))
        dots = jnp.einsum("bhnd,bhmd->bhnm", q, k) * scale
        attn = jax.nn.softmax(dots, axis=-1)
        out = jnp.einsum("bhnm,bhmd->bhnd", attn, v)
        out = out.transpose(0, 2, 1, 3).reshape(x.shape[0], x.shape[1], inner)
        x = out @ layer["wout"] + layer["bout"] + x

        xn = _layernorm(x, layer["ln2_g"], layer["ln2_b"])
        h = _gelu_exact(xn @ layer["w1"] + layer["b1"])
        x = h @ layer["w2"] + layer["b2"] + x
    return _layernorm(x, params["ln_f_g"], params["ln_f_b"])


# ----------------------------- parameter init -----------------------------

def init_params(key, *, dim, depth, heads, dim_head, mlp_dim):
    inner = heads * dim_head
    layers = []
    for _ in range(depth):
        key, k1, k2, k3, k4 = jax.random.split(key, 5)
        layers.append({
            "ln1_g": jnp.ones((dim,), jnp.float32),
            "ln1_b": jnp.zeros((dim,), jnp.float32),
            "wqkv": 0.02 * jax.random.normal(k1, (dim, 3 * inner), jnp.float32),
            "wout": 0.02 * jax.random.normal(k2, (inner, dim), jnp.float32),
            "bout": jnp.zeros((dim,), jnp.float32),
            "ln2_g": jnp.ones((dim,), jnp.float32),
            "ln2_b": jnp.zeros((dim,), jnp.float32),
            "w1": 0.02 * jax.random.normal(k3, (dim, mlp_dim), jnp.float32),
            "b1": jnp.zeros((mlp_dim,), jnp.float32),
            "w2": 0.02 * jax.random.normal(k4, (mlp_dim, dim), jnp.float32),
            "b2": jnp.zeros((dim,), jnp.float32),
        })
    return {
        "layers": layers,
        "ln_f_g": jnp.ones((dim,), jnp.float32),
        "ln_f_b": jnp.zeros((dim,), jnp.float32),
    }


# ----------------------------- main -----------------------------

if __name__ == "__main__":
    # NOTE: toy shapes — not representative for benchmarking (D=32 last-dim
    # gives masked partial stores; real ViViT has D/inner multiples of 128).
    B, N, D = 2, 8, 32
    DEPTH, HEADS, DIM_HEAD, MLP_DIM = 2, 4, 8, 64

    key = jax.random.PRNGKey(0)
    key, kx = jax.random.split(key)
    x = jax.random.normal(kx, (B, N, D), jnp.float32)
    params = init_params(key, dim=D, depth=DEPTH, heads=HEADS,
                         dim_head=DIM_HEAD, mlp_dim=MLP_DIM)

    ref = _ref_forward(x, params, heads=HEADS, dim_head=DIM_HEAD)

    # Strict-correctness path: f32 weights + precision=HIGHEST dots, exact
    # reciprocal, batch_block=1 (two "parallel" grid steps).
    out_f32 = transformer_forward(x, params, heads=HEADS, dim_head=DIM_HEAD,
                                  mxu_dtype=jnp.float32, batch_block=1,
                                  approx_recip=False)
    out_f32 = jax.block_until_ready(out_f32)
    assert out_f32.shape == (B, N, D)
    assert jnp.allclose(out_f32, ref, atol=1e-3, rtol=1e-3), "f32 mismatch vs reference"

    # Perf path (default): bf16 weights / MXU inputs, f32 accumulate + f32
    # elementwise, whole batch per grid step to amortize weight DMA.
    out_bf16 = transformer_forward(x, params, heads=HEADS, dim_head=DIM_HEAD,
                                   mxu_dtype=jnp.bfloat16, batch_block=B,
                                   approx_recip=False)
    out_bf16 = jax.block_until_ready(out_bf16)
    assert jnp.allclose(out_bf16, ref, atol=5e-2, rtol=5e-2), "bf16 mismatch vs reference"

    print("KERNEL_OK")
</pallas_src>

<mosaic_0001>
module attributes {stable_mosaic.version = 11 : i64} {
  func.func @fused_transformer_kernel(%arg0: i32, %arg1: i32, %arg2: memref<1x8x32xf32, #tpu.memory_space<vmem>>, %arg3: memref<1x32xf32, #tpu.memory_space<vmem>>, %arg4: memref<1x32xf32, #tpu.memory_space<vmem>>, %arg5: memref<1x1x32xf32, #tpu.memory_space<vmem>>, %arg6: memref<1x1x32xf32, #tpu.memory_space<vmem>>, %arg7: memref<1x32x96xf32, #tpu.memory_space<vmem>>, %arg8: memref<1x32x32xf32, #tpu.memory_space<vmem>>, %arg9: memref<1x1x32xf32, #tpu.memory_space<vmem>>, %arg10: memref<1x1x32xf32, #tpu.memory_space<vmem>>, %arg11: memref<1x1x32xf32, #tpu.memory_space<vmem>>, %arg12: memref<1x32x64xf32, #tpu.memory_space<vmem>>, %arg13: memref<1x1x64xf32, #tpu.memory_space<vmem>>, %arg14: memref<1x64x32xf32, #tpu.memory_space<vmem>>, %arg15: memref<1x1x32xf32, #tpu.memory_space<vmem>>, %arg16: memref<1x8x32xf32, #tpu.memory_space<vmem>>) attributes {dimension_semantics = [#tpu.dimension_semantics<parallel>, #tpu.dimension_semantics<arbitrary>], iteration_bounds = array<i64: 2, 2>, scalar_prefetch = 0 : i64, scratch_operands = 0 : i64, tpu.core_type = #tpu.core_type<tc>, window_params = [{transform_indices = @transform_0, window_bounds = array<i64: 1, 8, 32>}, {pipeline_mode = #tpu.pipeline_mode<synchronous>, transform_indices = @transform_1, window_bounds = array<i64: 1, 32>}, {pipeline_mode = #tpu.pipeline_mode<synchronous>, transform_indices = @transform_2, window_bounds = array<i64: 1, 32>}, {transform_indices = @transform_3, window_bounds = array<i64: 1, 1, 32>}, {transform_indices = @transform_4, window_bounds = array<i64: 1, 1, 32>}, {transform_indices = @transform_5, window_bounds = array<i64: 1, 32, 96>}, {transform_indices = @transform_6, window_bounds = array<i64: 1, 32, 32>}, {transform_indices = @transform_7, window_bounds = array<i64: 1, 1, 32>}, {transform_indices = @transform_8, window_bounds = array<i64: 1, 1, 32>}, {transform_indices = @transform_9, window_bounds = array<i64: 1, 1, 32>}, {transform_indices = @transform_10, window_bounds = array<i64: 1, 32, 64>}, {transform_indices = @transform_11, window_bounds = array<i64: 1, 1, 64>}, {transform_indices = @transform_12, window_bounds = array<i64: 1, 64, 32>}, {transform_indices = @transform_13, window_bounds = array<i64: 1, 1, 32>}, {transform_indices = @transform_14, window_bounds = array<i64: 1, 8, 32>}]} {
    %c0_i32 = arith.constant 0 : i32
    %0 = arith.cmpi eq, %arg1, %c0_i32 : i32
    %1 = arith.extui %0 : i1 to i32
    %c0_i32_0 = arith.constant 0 : i32
    %2 = arith.cmpi ne, %1, %c0_i32_0 : i32
    scf.if %2 {
      %c0_59 = arith.constant 0 : index
      %c0_60 = arith.constant 0 : index
      %c0_61 = arith.constant 0 : index
      %131 = vector.load %arg2[%c0_59, %c0_60, %c0_61] : memref<1x8x32xf32, #tpu.memory_space<vmem>>, vector<1x8x32xf32>
      %c0_62 = arith.constant 0 : index
      %c0_63 = arith.constant 0 : index
      %c0_64 = arith.constant 0 : index
      %132 = vector.load %arg16[%c0_62, %c0_63, %c0_64] : memref<1x8x32xf32, #tpu.memory_space<vmem>>, vector<1x8x32xf32>
      tpu.vector_store %arg16[%c0_62, %c0_63, %c0_64], %131 {strides = array<i32>} : memref<1x8x32xf32, #tpu.memory_space<vmem>>, vector<1x8x32xf32>,
    } else {
    }
    %c0 = arith.constant 0 : index
    %c0_1 = arith.constant 0 : index
    %c0_2 = arith.constant 0 : index
    %3 = vector.load %arg16[%c0, %c0_1, %c0_2] : memref<1x8x32xf32, #tpu.memory_space<vmem>>, vector<1x8x32xf32>
    %4 = vector.shape_cast %3 : vector<1x8x32xf32> to vector<8x32xf32>
    %c0_3 = arith.constant 0 : index
    %c0_4 = arith.constant 0 : index
    %c0_5 = arith.constant 0 : index
    %5 = vector.load %arg5[%c0_3, %c0_4, %c0_5] : memref<1x1x32xf32, #tpu.memory_space<vmem>>, vector<1x1x32xf32>
    %6 = vector.shape_cast %5 : vector<1x1x32xf32> to vector<32xf32>
    %c0_6 = arith.constant 0 : index
    %c0_7 = arith.constant 0 : index
    %c0_8 = arith.constant 0 : index
    %7 = vector.load %arg6[%c0_6, %c0_7, %c0_8] : memref<1x1x32xf32, #tpu.memory_space<vmem>>, vector<1x1x32xf32>
    %8 = vector.shape_cast %7 : vector<1x1x32xf32> to vector<32xf32>
    %cst = arith.constant dense<0.000000e+00> : vector<8xf32>
    %9 = vector.multi_reduction <add>, %4, %cst [1] : vector<8x32xf32> to vector<8xf32>
    %10 = vector.shape_cast %9 : vector<8xf32> to vector<8x1xf32>
    %cst_9 = arith.constant 3.200000e+01 : f32
    %11 = vector.broadcast %cst_9 : f32 to vector<8x1xf32>
    %12 = arith.divf %10, %11 : vector<8x1xf32>
    %13 = vector.broadcast %12 : vector<8x1xf32> to vector<8x32xf32>
    %14 = arith.subf %4, %13 : vector<8x32xf32>
    %15 = arith.mulf %14, %14 : vector<8x32xf32>
    %cst_10 = arith.constant dense<0.000000e+00> : vector<8xf32>
    %16 = vector.multi_reduction <add>, %15, %cst_10 [1] : vector<8x32xf32> to vector<8xf32>
    %17 = vector.shape_cast %16 : vector<8xf32> to vector<8x1xf32>
    %cst_11 = arith.constant 3.200000e+01 : f32
    %18 = vector.broadcast %cst_11 : f32 to vector<8x1xf32>
    %19 = arith.divf %17, %18 : vector<8x1xf32>
    %20 = vector.broadcast %12 : vector<8x1xf32> to vector<8x32xf32>
    %21 = arith.subf %4, %20 : vector<8x32xf32>
    %cst_12 = arith.constant 9.99999974E-6 : f32
    %22 = vector.broadcast %cst_12 : f32 to vector<8x1xf32>
    %23 = arith.addf %19, %22 : vector<8x1xf32>
    %24 = math.rsqrt %23 : vector<8x1xf32>
    %25 = vector.broadcast %24 : vector<8x1xf32> to vector<8x32xf32>
    %26 = arith.mulf %21, %25 : vector<8x32xf32>
    %27 = vector.shape_cast %6 : vector<32xf32> to vector<1x32xf32>
    %28 = vector.broadcast %27 : vector<1x32xf32> to vector<8x32xf32>
    %29 = arith.mulf %26, %28 : vector<8x32xf32>
    %30 = vector.shape_cast %8 : vector<32xf32> to vector<1x32xf32>
    %31 = vector.broadcast %30 : vector<1x32xf32> to vector<8x32xf32>
    %32 = arith.addf %29, %31 : vector<8x32xf32>
    %c0_13 = arith.constant 0 : index
    %c0_14 = arith.constant 0 : index
    %c0_15 = arith.constant 0 : index
    %33 = vector.load %arg7[%c0_13, %c0_14, %c0_15] : memref<1x32x96xf32, #tpu.memory_space<vmem>>, vector<1x32x96xf32>
    %34 = vector.shape_cast %33 : vector<1x32x96xf32> to vector<32x96xf32>
    %cst_16 = arith.constant dense<0.000000e+00> : vector<8x96xf32>
    %35 = tpu.matmul %32, %34, %cst_16 {dimension_numbers = #tpu.dot_dimension_numbers<[1], [0], [0], [1], [0, 0, 1, 1], [], []>, precision = #tpu.contract_precision<fp32>} : vector<8x32xf32>, vector<32x96xf32>, vector<8x96xf32> -> vector<8x96xf32>
    %36 = vector.extract_strided_slice %35 {offsets = [0, 0], sizes = [8, 32], strides = [1, 1]} : vector<8x96xf32> to vector<8x32xf32>
    %37 = vector.shape_cast %36 : vector<8x32xf32> to vector<1x8x4x8xf32>
    %38 = tpu.transpose %37, [0, 2, 1, 3] : vector<1x8x4x8xf32> -> vector<1x4x8x8xf32>
    %39 = vector.shape_cast %38 : vector<1x4x8x8xf32> to vector<4x8x8xf32>
    %40 = vector.extract_strided_slice %35 {offsets = [0, 32], sizes = [8, 32], strides = [1, 1]} : vector<8x96xf32> to vector<8x32xf32>
    %41 = vector.shape_cast %40 : vector<8x32xf32> to vector<1x8x4x8xf32>
    %42 = tpu.transpose %41, [0, 2, 1, 3] : vector<1x8x4x8xf32> -> vector<1x4x8x8xf32>
    %43 = vector.shape_cast %42 : vector<1x4x8x8xf32> to vector<4x8x8xf32>
    %44 = vector.extract_strided_slice %35 {offsets = [0, 64], sizes = [8, 32], strides = [1, 1]} : vector<8x96xf32> to vector<8x32xf32>
    %45 = vector.shape_cast %44 : vector<8x32xf32> to vector<1x8x4x8xf32>
    %46 = tpu.transpose %45, [0, 2, 1, 3] : vector<1x8x4x8xf32> -> vector<1x4x8x8xf32>
    %47 = vector.shape_cast %46 : vector<1x4x8x8xf32> to vector<4x8x8xf32>
    "tpu.trace_start"() <{level = 10 : i32, message = "bqd,bkd->bqk"}> : () -> ()
    %cst_17 = arith.constant dense<0.000000e+00> : vector<4x8x8xf32>
    %48 = tpu.matmul %39, %43, %cst_17 {dimension_numbers = #tpu.dot_dimension_numbers<[2], [2], [1], [1], [0, 0, 0, 1, 1, 1], [0], [0]>, precision = #tpu.contract_precision<fp32>} : vector<4x8x8xf32>, vector<4x8x8xf32>, vector<4x8x8xf32> -> vector<4x8x8xf32>
    "tpu.trace_stop"() : () -> ()
    %cst_18 = arith.constant dense<0xFF800000> : vector<4x8xf32>
    %49 = vector.multi_reduction <maximumf>, %48, %cst_18 [2] : vector<4x8x8xf32> to vector<4x8xf32>
    %50 = vector.shape_cast %49 : vector<4x8xf32> to vector<4x8x1xf32>
    %51 = vector.broadcast %50 : vector<4x8x1xf32> to vector<4x8x8xf32>
    %52 = arith.subf %48, %51 : vector<4x8x8xf32>
    %53 = math.exp %52 : vector<4x8x8xf32>
    %cst_19 = arith.constant dense<0.000000e+00> : vector<4x8xf32>
    %54 = vector.multi_reduction <add>, %53, %cst_19 [2] : vector<4x8x8xf32> to vector<4x8xf32>
    %55 = vector.shape_cast %54 : vector<4x8xf32> to vector<4x8x1xf32>
    "tpu.trace_start"() <{level = 10 : i32, message = "bqk,bkd->bqd"}> : () -> ()
    %cst_20 = arith.constant dense<0.000000e+00> : vector<4x8x8xf32>
    %56 = tpu.matmul %53, %47, %cst_20 {dimension_numbers = #tpu.dot_dimension_numbers<[2], [1], [1], [2], [0, 0, 0, 1, 1, 2], [0], [0]>, precision = #tpu.contract_precision<fp32>} : vector<4x8x8xf32>, vector<4x8x8xf32>, vector<4x8x8xf32> -> vector<4x8x8xf32>
    "tpu.trace_stop"() : () -> ()
    %57 = tpu.reciprocal %55 : vector<4x8x1xf32> -> vector<4x8x1xf32>
    %58 = vector.broadcast %57 : vector<4x8x1xf32> to vector<4x8x8xf32>
    %59 = arith.mulf %56, %58 : vector<4x8x8xf32>
    %60 = vector.shape_cast %59 : vector<4x8x8xf32> to vector<1x4x8x8xf32>
    %61 = tpu.transpose %60, [0, 2, 1, 3] : vector<1x4x8x8xf32> -> vector<1x8x4x8xf32>
    %62 = vector.shape_cast %61 : vector<1x8x4x8xf32> to vector<8x32xf32>
    %c0_21 = arith.constant 0 : index
    %c0_22 = arith.constant 0 : index
    %c0_23 = arith.constant 0 : index
    %63 = vector.load %arg8[%c0_21, %c0_22, %c0_23] : memref<1x32x32xf32, #tpu.memory_space<vmem>>, vector<1x32x32xf32>
    %64 = vector.shape_cast %63 : vector<1x32x32xf32> to vector<32x32xf32>
    %cst_24 = arith.constant dense<0.000000e+00> : vector<8x32xf32>
    %65 = tpu.matmul %62, %64, %cst_24 {dimension_numbers = #tpu.dot_dimension_numbers<[1], [0], [0], [1], [0, 0, 1, 1], [], []>, precision = #tpu.contract_precision<fp32>} : vector<8x32xf32>, vector<32x32xf32>, vector<8x32xf32> -> vector<8x32xf32>
    %c0_25 = arith.constant 0 : index
    %c0_26 = arith.constant 0 : index
    %c0_27 = arith.constant 0 : index
    %66 = vector.load %arg9[%c0_25, %c0_26, %c0_27] : memref<1x1x32xf32, #tpu.memory_space<vmem>>, vector<1x1x32xf32>
    %67 = vector.shape_cast %66 : vector<1x1x32xf32> to vector<32xf32>
    %68 = vector.shape_cast %67 : vector<32xf32> to vector<1x32xf32>
    %69 = vector.broadcast %68 : vector<1x32xf32> to vector<8x32xf32>
    %70 = arith.addf %65, %69 : vector<8x32xf32>
    %71 = arith.addf %4, %70 : vector<8x32xf32>
    %c0_28 = arith.constant 0 : index
    %c0_29 = arith.constant 0 : index
    %c0_30 = arith.constant 0 : index
    %72 = vector.load %arg10[%c0_28, %c0_29, %c0_30] : memref<1x1x32xf32, #tpu.memory_space<vmem>>, vector<1x1x32xf32>
    %73 = vector.shape_cast %72 : vector<1x1x32xf32> to vector<32xf32>
    %c0_31 = arith.constant 0 : index
    %c0_32 = arith.constant 0 : index
    %c0_33 = arith.constant 0 : index
    %74 = vector.load %arg11[%c0_31, %c0_32, %c0_33] : memref<1x1x32xf32, #tpu.memory_space<vmem>>, vector<1x1x32xf32>
    %75 = vector.shape_cast %74 : vector<1x1x32xf32> to vector<32xf32>
    %cst_34 = arith.constant dense<0.000000e+00> : vector<8xf32>
    %76 = vector.multi_reduction <add>, %71, %cst_34 [1] : vector<8x32xf32> to vector<8xf32>
    %77 = vector.shape_cast %76 : vector<8xf32> to vector<8x1xf32>
    %cst_35 = arith.constant 3.200000e+01 : f32
    %78 = vector.broadcast %cst_35 : f32 to vector<8x1xf32>
    %79 = arith.divf %77, %78 : vector<8x1xf32>
    %80 = vector.broadcast %79 : vector<8x1xf32> to vector<8x32xf32>
    %81 = arith.subf %71, %80 : vector<8x32xf32>
    %82 = arith.mulf %81, %81 : vector<8x32xf32>
    %cst_36 = arith.constant dense<0.000000e+00> : vector<8xf32>
    %83 = vector.multi_reduction <add>, %82, %cst_36 [1] : vector<8x32xf32> to vector<8xf32>
    %84 = vector.shape_cast %83 : vector<8xf32> to vector<8x1xf32>
    %cst_37 = arith.constant 3.200000e+01 : f32
    %85 = vector.broadcast %cst_37 : f32 to vector<8x1xf32>
    %86 = arith.divf %84, %85 : vector<8x1xf32>
    %87 = vector.broadcast %79 : vector<8x1xf32> to vector<8x32xf32>
    %88 = arith.subf %71, %87 : vector<8x32xf32>
    %cst_38 = arith.constant 9.99999974E-6 : f32
    %89 = vector.broadcast %cst_38 : f32 to vector<8x1xf32>
    %90 = arith.addf %86, %89 : vector<8x1xf32>
    %91 = math.rsqrt %90 : vector<8x1xf32>
    %92 = vector.broadcast %91 : vector<8x1xf32> to vector<8x32xf32>
    %93 = arith.mulf %88, %92 : vector<8x32xf32>
    %94 = vector.shape_cast %73 : vector<32xf32> to vector<1x32xf32>
    %95 = vector.broadcast %94 : vector<1x32xf32> to vector<8x32xf32>
    %96 = arith.mulf %93, %95 : vector<8x32xf32>
    %97 = vector.shape_cast %75 : vector<32xf32> to vector<1x32xf32>
    %98 = vector.broadcast %97 : vector<1x32xf32> to vector<8x32xf32>
    %99 = arith.addf %96, %98 : vector<8x32xf32>
    %c0_39 = arith.constant 0 : index
    %c0_40 = arith.constant 0 : index
    %c0_41 = arith.constant 0 : index
    %100 = vector.load %arg12[%c0_39, %c0_40, %c0_41] : memref<1x32x64xf32, #tpu.memory_space<vmem>>, vector<1x32x64xf32>
    %101 = vector.shape_cast %100 : vector<1x32x64xf32> to vector<32x64xf32>
    %cst_42 = arith.constant dense<0.000000e+00> : vector<8x64xf32>
    %102 = tpu.matmul %99, %101, %cst_42 {dimension_numbers = #tpu.dot_dimension_numbers<[1], [0], [0], [1], [0, 0, 1, 1], [], []>, precision = #tpu.contract_precision<fp32>} : vector<8x32xf32>, vector<32x64xf32>, vector<8x64xf32> -> vector<8x64xf32>
    %c0_43 = arith.constant 0 : index
    %c0_44 = arith.constant 0 : index
    %c0_45 = arith.constant 0 : index
    %103 = vector.load %arg13[%c0_43, %c0_44, %c0_45] : memref<1x1x64xf32, #tpu.memory_space<vmem>>, vector<1x1x64xf32>
    %104 = vector.shape_cast %103 : vector<1x1x64xf32> to vector<64xf32>
    %105 = vector.shape_cast %104 : vector<64xf32> to vector<1x64xf32>
    %106 = vector.broadcast %105 : vector<1x64xf32> to vector<8x64xf32>
    %107 = arith.addf %102, %106 : vector<8x64xf32>
    %cst_46 = arith.constant 5.000000e-01 : f32
    %108 = vector.broadcast %cst_46 : f32 to vector<8x64xf32>
    %109 = arith.mulf %108, %107 : vector<8x64xf32>
    %cst_47 = arith.constant 0.707106769 : f32
    %110 = vector.broadcast %cst_47 : f32 to vector<8x64xf32>
    %111 = arith.mulf %107, %110 : vector<8x64xf32>
    %112 = math.erf %111 : vector<8x64xf32>
    %cst_48 = arith.constant 1.000000e+00 : f32
    %113 = vector.broadcast %cst_48 : f32 to vector<8x64xf32>
    %114 = arith.addf %113, %112 : vector<8x64xf32>
    %115 = arith.mulf %109, %114 : vector<8x64xf32>
    %c0_49 = arith.constant 0 : index
    %c0_50 = arith.constant 0 : index
    %c0_51 = arith.constant 0 : index
    %116 = vector.load %arg14[%c0_49, %c0_50, %c0_51] : memref<1x64x32xf32, #tpu.memory_space<vmem>>, vector<1x64x32xf32>
    %117 = vector.shape_cast %116 : vector<1x64x32xf32> to vector<64x32xf32>
    %cst_52 = arith.constant dense<0.000000e+00> : vector<8x32xf32>
    %118 = tpu.matmul %115, %117, %cst_52 {dimension_numbers = #tpu.dot_dimension_numbers<[1], [0], [0], [1], [0, 0, 1, 1], [], []>, precision = #tpu.contract_precision<fp32>} : vector<8x64xf32>, vector<64x32xf32>, vector<8x32xf32> -> vector<8x32xf32>
    %c0_53 = arith.constant 0 : index
    %c0_54 = arith.constant 0 : index
    %c0_55 = arith.constant 0 : index
    %119 = vector.load %arg15[%c0_53, %c0_54, %c0_55] : memref<1x1x32xf32, #tpu.memory_space<vmem>>, vector<1x1x32xf32>
    %120 = vector.shape_cast %119 : vector<1x1x32xf32> to vector<32xf32>
    %121 = vector.shape_cast %120 : vector<32xf32> to vector<1x32xf32>
    %122 = vector.broadcast %121 : vector<1x32xf32> to vector<8x32xf32>
    %123 = arith.addf %118, %122 : vector<8x32xf32>
    %124 = arith.addf %71, %123 : vector<8x32xf32>
    %c1_i32 = arith.constant 1 : i32
    %125 = arith.cmpi slt, %arg1, %c1_i32 : i32
    %126 = arith.extui %125 : i1 to i32
    %c0_i32_56 = arith.constant 0 : i32
    %127 = arith.cmpi ne, %126, %c0_i32_56 : i32
    scf.if %127 {
      %131 = vector.shape_cast %124 : vector<8x32xf32> to vector<1x8x32xf32>
      %c0_59 = arith.constant 0 : index
      %c0_60 = arith.constant 0 : index
      %c0_61 = arith.constant 0 : index
      %132 = vector.load %arg16[%c0_59, %c0_60, %c0_61] : memref<1x8x32xf32, #tpu.memory_space<vmem>>, vector<1x8x32xf32>
      tpu.vector_store %arg16[%c0_59, %c0_60, %c0_61], %131 {strides = array<i32>} : memref<1x8x32xf32, #tpu.memory_space<vmem>>, vector<1x8x32xf32>,
    } else {
    }
    %c1_i32_57 = arith.constant 1 : i32
    %128 = arith.cmpi eq, %arg1, %c1_i32_57 : i32
    %129 = arith.extui %128 : i1 to i32
    %c0_i32_58 = arith.constant 0 : i32
    %130 = arith.cmpi ne, %129, %c0_i32_58 : i32
    scf.if %130 {
      %c0_59 = arith.constant 0 : index
      %c0_60 = arith.constant 0 : index
      %131 = vector.load %arg3[%c0_59, %c0_60] : memref<1x32xf32, #tpu.memory_space<vmem>>, vector<1x32xf32>
      %132 = vector.shape_cast %131 : vector<1x32xf32> to vector<32xf32>
      %c0_61 = arith.constant 0 : index
      %c0_62 = arith.constant 0 : index
      %133 = vector.load %arg4[%c0_61, %c0_62] : memref<1x32xf32, #tpu.memory_space<vmem>>, vector<1x32xf32>
      %134 = vector.shape_cast %133 : vector<1x32xf32> to vector<32xf32>
      %cst_63 = arith.constant dense<0.000000e+00> : vector<8xf32>
      %135 = vector.multi_reduction <add>, %124, %cst_63 [1] : vector<8x32xf32> to vector<8xf32>
      %136 = vector.shape_cast %135 : vector<8xf32> to vector<8x1xf32>
      %cst_64 = arith.constant 3.200000e+01 : f32
      %137 = vector.broadcast %cst_64 : f32 to vector<8x1xf32>
      %138 = arith.divf %136, %137 : vector<8x1xf32>
      %139 = vector.broadcast %138 : vector<8x1xf32> to vector<8x32xf32>
      %140 = arith.subf %124, %139 : vector<8x32xf32>
      %141 = arith.mulf %140, %140 : vector<8x32xf32>
      %cst_65 = arith.constant dense<0.000000e+00> : vector<8xf32>
      %142 = vector.multi_reduction <add>, %141, %cst_65 [1] : vector<8x32xf32> to vector<8xf32>
      %143 = vector.shape_cast %142 : vector<8xf32> to vector<8x1xf32>
      %cst_66 = arith.constant 3.200000e+01 : f32
      %144 = vector.broadcast %cst_66 : f32 to vector<8x1xf32>
      %145 = arith.divf %143, %144 : vector<8x1xf32>
      %146 = vector.broadcast %138 : vector<8x1xf32> to vector<8x32xf32>
      %147 = arith.subf %124, %146 : vector<8x32xf32>
      %cst_67 = arith.constant 9.99999974E-6 : f32
      %148 = vector.broadcast %cst_67 : f32 to vector<8x1xf32>
      %149 = arith.addf %145, %148 : vector<8x1xf32>
      %150 = math.rsqrt %149 : vector<8x1xf32>
      %151 = vector.broadcast %150 : vector<8x1xf32> to vector<8x32xf32>
      %152 = arith.mulf %147, %151 : vector<8x32xf32>
      %153 = vector.shape_cast %132 : vector<32xf32> to vector<1x32xf32>
      %154 = vector.broadcast %153 : vector<1x32xf32> to vector<8x32xf32>
      %155 = arith.mulf %152, %154 : vector<8x32xf32>
      %156 = vector.shape_cast %134 : vector<32xf32> to vector<1x32xf32>
      %157 = vector.broadcast %156 : vector<1x32xf32> to vector<8x32xf32>
      %158 = arith.addf %155, %157 : vector<8x32xf32>
      %159 = vector.shape_cast %158 : vector<8x32xf32> to vector<1x8x32xf32>
      %c0_68 = arith.constant 0 : index
      %c0_69 = arith.constant 0 : index
      %c0_70 = arith.constant 0 : index
      %160 = vector.load %arg16[%c0_68, %c0_69, %c0_70] : memref<1x8x32xf32, #tpu.memory_space<vmem>>, vector<1x8x32xf32>
      tpu.vector_store %arg16[%c0_68, %c0_69, %c0_70], %159 {strides = array<i32>} : memref<1x8x32xf32, #tpu.memory_space<vmem>>, vector<1x8x32xf32>,
    } else {
    }
    return
  }
  func.func @transform_0(%arg0: i32, %arg1: i32) -> (i32, i32, i32) {
    %c0_i32 = arith.constant 0 : i32
    %c0_i32_0 = arith.constant 0 : i32
    %c0_i32_1 = arith.constant 0 : i32
    return %arg0, %c0_i32, %c0_i32_0 : i32, i32, i32
  }
  func.func @transform_1(%arg0: i32, %arg1: i32) -> (i32, i32) {
    %c0_i32 = arith.constant 0 : i32
    %c0_i32_0 = arith.constant 0 : i32
    %c0_i32_1 = arith.constant 0 : i32
    return %c0_i32, %c0_i32_0 : i32, i32
  }
  func.func @transform_2(%arg0: i32, %arg1: i32) -> (i32, i32) {
    %c0_i32 = arith.constant 0 : i32
    %c0_i32_0 = arith.constant 0 : i32
    %c0_i32_1 = arith.constant 0 : i32
    return %c0_i32, %c0_i32_0 : i32, i32
  }
  func.func @transform_3(%arg0: i32, %arg1: i32) -> (i32, i32, i32) {
    %c0_i32 = arith.constant 0 : i32
    %c0_i32_0 = arith.constant 0 : i32
    %c0_i32_1 = arith.constant 0 : i32
    return %arg1, %c0_i32, %c0_i32_0 : i32, i32, i32
  }
  func.func @transform_4(%arg0: i32, %arg1: i32) -> (i32, i32, i32) {
    %c0_i32 = arith.constant 0 : i32
    %c0_i32_0 = arith.constant 0 : i32
    %c0_i32_1 = arith.constant 0 : i32
    return %arg1, %c0_i32, %c0_i32_0 : i32, i32, i32
  }
  func.func @transform_5(%arg0: i32, %arg1: i32) -> (i32, i32, i32) {
    %c0_i32 = arith.constant 0 : i32
    %c0_i32_0 = arith.constant 0 : i32
    %c0_i32_1 = arith.constant 0 : i32
    return %arg1, %c0_i32, %c0_i32_0 : i32, i32, i32
  }
  func.func @transform_6(%arg0: i32, %arg1: i32) -> (i32, i32, i32) {
    %c0_i32 = arith.constant 0 : i32
    %c0_i32_0 = arith.constant 0 : i32
    %c0_i32_1 = arith.constant 0 : i32
    return %arg1, %c0_i32, %c0_i32_0 : i32, i32, i32
  }
  func.func @transform_7(%arg0: i32, %arg1: i32) -> (i32, i32, i32) {
    %c0_i32 = arith.constant 0 : i32
    %c0_i32_0 = arith.constant 0 : i32
    %c0_i32_1 = arith.constant 0 : i32
    return %arg1, %c0_i32, %c0_i32_0 : i32, i32, i32
  }
  func.func @transform_8(%arg0: i32, %arg1: i32) -> (i32, i32, i32) {
    %c0_i32 = arith.constant 0 : i32
    %c0_i32_0 = arith.constant 0 : i32
    %c0_i32_1 = arith.constant 0 : i32
    return %arg1, %c0_i32, %c0_i32_0 : i32, i32, i32
  }
  func.func @transform_9(%arg0: i32, %arg1: i32) -> (i32, i32, i32) {
    %c0_i32 = arith.constant 0 : i32
    %c0_i32_0 = arith.constant 0 : i32
    %c0_i32_1 = arith.constant 0 : i32
    return %arg1, %c0_i32, %c0_i32_0 : i32, i32, i32
  }
  func.func @transform_10(%arg0: i32, %arg1: i32) -> (i32, i32, i32) {
    %c0_i32 = arith.constant 0 : i32
    %c0_i32_0 = arith.constant 0 : i32
    %c0_i32_1 = arith.constant 0 : i32
    return %arg1, %c0_i32, %c0_i32_0 : i32, i32, i32
  }
  func.func @transform_11(%arg0: i32, %arg1: i32) -> (i32, i32, i32) {
    %c0_i32 = arith.constant 0 : i32
    %c0_i32_0 = arith.constant 0 : i32
    %c0_i32_1 = arith.constant 0 : i32
    return %arg1, %c0_i32, %c0_i32_0 : i32, i32, i32
  }
  func.func @transform_12(%arg0: i32, %arg1: i32) -> (i32, i32, i32) {
    %c0_i32 = arith.constant 0 : i32
    %c0_i32_0 = arith.constant 0 : i32
    %c0_i32_1 = arith.constant 0 : i32
    return %arg1, %c0_i32, %c0_i32_0 : i32, i32, i32
  }
  func.func @transform_13(%arg0: i32, %arg1: i32) -> (i32, i32, i32) {
    %c0_i32 = arith.constant 0 : i32
    %c0_i32_0 = arith.constant 0 : i32
    %c0_i32_1 = arith.constant 0 : i32
    return %arg1, %c0_i32, %c0_i32_0 : i32, i32, i32
  }
  func.func @transform_14(%arg0: i32, %arg1: i32) -> (i32, i32, i32) {
    %c0_i32 = arith.constant 0 : i32
    %c0_i32_0 = arith.constant 0 : i32
    %c0_i32_1 = arith.constant 0 : i32
    return %arg0, %c0_i32, %c0_i32_0 : i32, i32, i32
  }
}

</mosaic_0001>

<llo_original>
// kernel: transformer_forward.1
$region0: #{transformer_forward.1}
  #allocation0 [shape = 'u32[]', space=smem, size = 0x4, offset = 0x4, fixed_abs, tag = 'smem constant byte address 0x4 - core index']
  #allocation1 [shape = 'u32[144,128]{1,0:T(1,128)}', space=vmem, size = 0x12000, scoped, tag = 'internal scratch']
  %s0 = inlined_call_operand.hbm [shape: f32[2,8,32], index: 0, kind: input, shape index: {}]
  %s1 = inlined_call_operand.hbm [shape: f32[1,32], index: 1, kind: input, shape index: {}]
  %s2 = inlined_call_operand.hbm [shape: f32[1,32], index: 2, kind: input, shape index: {}]
  %s3 = inlined_call_operand.hbm [shape: f32[2,1,32], index: 3, kind: input, shape index: {}]
  %s4 = inlined_call_operand.hbm [shape: f32[2,1,32], index: 4, kind: input, shape index: {}]
  %s5 = inlined_call_operand.hbm [shape: f32[2,32,96], index: 5, kind: input, shape index: {}]
  %s6 = inlined_call_operand.hbm [shape: f32[2,32,32], index: 6, kind: input, shape index: {}]
  %s7 = inlined_call_operand.hbm [shape: f32[2,1,32], index: 7, kind: input, shape index: {}]
  %s8 = inlined_call_operand.hbm [shape: f32[2,1,32], index: 8, kind: input, shape index: {}]
  %s9 = inlined_call_operand.hbm [shape: f32[2,1,32], index: 9, kind: input, shape index: {}]
  %s10 = inlined_call_operand.hbm [shape: f32[2,32,64], index: 10, kind: input, shape index: {}]
  %s11 = inlined_call_operand.hbm [shape: f32[2,1,64], index: 11, kind: input, shape index: {}]
  %s12 = inlined_call_operand.hbm [shape: f32[2,64,32], index: 12, kind: input, shape index: {}]
  %s13 = inlined_call_operand.hbm [shape: f32[2,1,32], index: 13, kind: input, shape index: {}]
  %s14 = inlined_call_operand.hbm [shape: f32[2,8,32], index: 14, kind: output, shape index: {}]
  %s15 = sld [smem:[#allocation0]]
  $region157: #{transformer_forward.1} parent=0
    _
  %s17 = ssub.s32 1, %s15
  %s18 = scalar_select 0, %s17, %s15
  $region1: #{transformer_forward.1} parent=0
    #allocation2 [shape = 'u8[8192]{0}', space=vmem, size = 0x2000, scoped, tag = 'input window, operand 0']
    #allocation3 [shape = 's32[2]{0}', space=sflag, size = 0x8, scoped, tag = 'scoped memory for transformer_forward.1']
    #allocation4 [shape = 's32[2]{0}', space=sflag, size = 0x8, scoped, tag = 'scoped memory for transformer_forward.1']
    #allocation5 [shape = 'u8[512]{0}', space=vmem, size = 0x400, scoped, tag = 'input window, operand 1, single buffered']
    #allocation6 [shape = 's32[1]{0}', space=sflag, size = 0x4, scoped, tag = 'scoped memory for transformer_forward.1']
    #allocation7 [shape = 'u8[512]{0}', space=vmem, size = 0x400, scoped, tag = 'input window, operand 2, single buffered']
    #allocation8 [shape = 'u8[1024]{0}', space=vmem, size = 0x400, scoped, tag = 'input window, operand 3']
    #allocation9 [shape = 's32[2]{0}', space=sflag, size = 0x8, scoped, tag = 'scoped memory for transformer_forward.1']
    #allocation10 [shape = 'u8[1024]{0}', space=vmem, size = 0x400, scoped, tag = 'input window, operand 4']
    #allocation11 [shape = 'u8[32768]{0}', space=vmem, size = 0x8000, scoped, tag = 'input window, operand 5']
    #allocation12 [shape = 's32[2]{0}', space=sflag, size = 0x8, scoped, tag = 'scoped memory for transformer_forward.1']
    #allocation13 [shape = 'u8[32768]{0}', space=vmem, size = 0x8000, scoped, tag = 'input window, operand 6']
    #allocation14 [shape = 'u8[1024]{0}', space=vmem, size = 0x400, scoped, tag = 'input window, operand 7']
    #allocation15 [shape = 's32[2]{0}', space=sflag, size = 0x8, scoped, tag = 'scoped memory for transformer_forward.1']
    #allocation16 [shape = 'u8[1024]{0}', space=vmem, size = 0x400, scoped, tag = 'input window, operand 8']
    #allocation17 [shape = 'u8[1024]{0}', space=vmem, size = 0x400, scoped, tag = 'input window, operand 9']
    #allocation18 [shape = 's32[2]{0}', space=sflag, size = 0x8, scoped, tag = 'scoped memory for transformer_forward.1']
    #allocation19 [shape = 'u8[32768]{0}', space=vmem, size = 0x8000, scoped, tag = 'input window, operand 10']
    #allocation20 [shape = 'u8[1024]{0}', space=vmem, size = 0x400, scoped, tag = 'input window, operand 11']
    #allocation21 [shape = 's32[2]{0}', space=sflag, size = 0x8, scoped, tag = 'scoped memory for transformer_forward.1']
    #allocation22 [shape = 'u8[65536]{0}', space=vmem, size = 0x10000, scoped, tag = 'input window, operand 12']
    #allocation23 [shape = 'u8[1024]{0}', space=vmem, size = 0x400, scoped, tag = 'input window, operand 13']
    #allocation24 [shape = 's32[2]{0}', space=sflag, size = 0x8, scoped, tag = 'scoped memory for transformer_forward.1']
    #allocation25 [shape = 'u8[8192]{0}', space=vmem, size = 0x2000, scoped, tag = 'output window, operand 0']
    %19 = vsyncpa [#allocation3], 0
    %s20 = scalar_lea.sflag [#allocation3], 1
    %21 = vsyncpa %s20, 0
    %22 = vsyncpa [#allocation6], 0
    %23 = vsyncpa [#allocation9], 0
    %s24 = scalar_lea.sflag [#allocation9], 1
    %25 = vsyncpa %s24, 0
    %26 = vsyncpa [#allocation12], 0
    %s27 = scalar_lea.sflag [#allocation12], 1
    %28 = vsyncpa %s27, 0
    %29 = vsyncpa [#allocation15], 0
    %s30 = scalar_lea.sflag [#allocation15], 1
    %31 = vsyncpa %s30, 0
    %32 = vsyncpa [#allocation18], 0
    %s33 = scalar_lea.sflag [#allocation18], 1
    %34 = vsyncpa %s33, 0
    %35 = vsyncpa [#allocation21], 0
    %s36 = scalar_lea.sflag [#allocation21], 1
    %37 = vsyncpa %s36, 0
    %38 = vsyncpa [#allocation24], 0
    %s39 = scalar_lea.sflag [#allocation24], 1
    %40 = vsyncpa %s39, 0
    %41 = vsyncpa [#allocation4], 0
    %s42 = scalar_lea.sflag [#allocation4], 1
    %43 = vsyncpa %s42, 0
    loop: start=0, step=1, limit=6
    $region2: #{transformer_forward.1} parent=1 // loop_pre_header
      _
    $region3: #{transformer_forward.1} parent=1 // loop_header
      %s45 = sphi 0, %s49
      %p46 = scmp.ge.s32.totalorder %s45, 6
      %s52 = sphi 0, %s64
      %s53 = sphi 0, %s60
      %s54 = sphi 0, %s52
      %s55 = sphi 0, %s53
      %s56 = sphi 0, %s54
      %s57 = sphi 0, %s55
      %s67 = sphi 0, %s69
      %s70 = sphi 0, %s67
      %s71 = sphi 0, %s70
      %s87 = sphi 0, %s71
      %s91 = sphi 0, %s91
      %s93 = sphi 0, %s91
      %s94 = sphi 0, %s93
      %s108 = sphi 0, %s94
      %s112 = sphi 0, %s112
      %s114 = sphi 0, %s112
      %s115 = sphi 0, %s114
      %s129 = sphi 0, %s115
      %s135 = sphi 0, %s137
      %s138 = sphi 0, %s135
      %s139 = sphi 0, %s138
      %s155 = sphi 0, %s139
      %s161 = sphi 0, %s163
      %s164 = sphi 0, %s161
      %s165 = sphi 0, %s164
      %s181 = sphi 0, %s165
      %s187 = sphi 0, %s189
      %s190 = sphi 0, %s187
      %s191 = sphi 0, %s190
      %s207 = sphi 0, %s191
      %s213 = sphi 0, %s215
      %s216 = sphi 0, %s213
      %s217 = sphi 0, %s216
      %s233 = sphi 0, %s217
      %s239 = sphi 0, %s241
      %s242 = sphi 0, %s239
      %s243 = sphi 0, %s242
      %s259 = sphi 0, %s243
      %s265 = sphi 0, %s267
      %s268 = sphi 0, %s265
      %s269 = sphi 0, %s268
      %s285 = sphi 0, %s269
      %s291 = sphi 0, %s293
      %s294 = sphi 0, %s291
      %s295 = sphi 0, %s294
      %s311 = sphi 0, %s295
      %s317 = sphi 0, %s319
      %s320 = sphi 0, %s317
      %s321 = sphi 0, %s320
      %s337 = sphi 0, %s321
      %s343 = sphi 0, %s345
      %s346 = sphi 0, %s343
      %s347 = sphi 0, %s346
      %s363 = sphi 0, %s347
      %s369 = sphi 0, %s371
      %s372 = sphi 0, %s369
      %s373 = sphi 0, %s372
      %s389 = sphi 0, %s373
      %s395 = sphi 0, %s397
      %s398 = sphi 0, %s395
      %s399 = sphi 0, %s398
      %s415 = sphi 0, %s399
      %s421 = sphi 0, %s423
      %s424 = sphi 0, %s421
      %s425 = sphi 0, %s424
      %s441 = sphi 0, %s425
    $region4: #{transformer_forward.1} parent=1 // loop_header_branch
      %48 = sbr.rel (%p46) target = $region8
    $region5: #{transformer_forward.1} parent=1 // loop_body
      %s50 = ssub.s32 %s45, 1
      %s51 = ssub.s32 %s45, 2
      %s58 = sadd.s32 1, %s53
      %p59 = scmp.ge.s32.totalorder %s58, 2
      %s60 = scalar_select %p59, 0, %s58
      %s61 = sadd.s32 1, %s52
      %s62 = scalar_select %p59, %s61, %s52
      %p63 = scmp.ge.s32.totalorder %s62, 2
      %s64 = scalar_select %p63, 0, %s62
      %s65 = ssub.s32 %s52, %s64
      %p66 = scmp.eq.s32.totalorder %s65, 0
      %s68 = sadd.s32 %s67, 1
      %s69 = scalar_select %p66, %s67, %s68
      %p72 = pneg %p66
      %p73 = scmp.eq.s32.totalorder %s45, 3
      %p74 = por %p72, %p73
      %p75 = scmp.ne.s32.totalorder %s67, %s70
      %p76 = scmp.eq.s32.totalorder %s45, 0
      %p77 = por %p75, %p76
      %p78 = scmp.ne.s32.totalorder %s67, %s70
      %p79 = scmp.eq.s32.totalorder %s50, 3
      %p80 = por %p78, %p79
      %p81 = scmp.ne.s32.totalorder %s70, %s71
      %p82 = scmp.eq.s32.totalorder %s50, 0
      %p83 = por %p81, %p82
      %p84 = scmp.ne.s32.totalorder %s70, %s71
      %p85 = scmp.eq.s32.totalorder %s51, 3
      %p86 = por %p84, %p85
      %p88 = scmp.ne.s32.totalorder %s71, %s87
      %p89 = scmp.eq.s32.totalorder %s51, 0
      %p90 = por %p88, %p89
      %s92 = sadd.s32 %s91, 1
      %p95 = scmp.eq.s32.totalorder %s45, 3
      %p96 = scmp.ne.s32.totalorder %s91, %s93
      %p97 = scmp.eq.s32.totalorder %s45, 0
      %p98 = por %p96, %p97
      %p99 = scmp.ne.s32.totalorder %s91, %s93
      %p100 = scmp.eq.s32.totalorder %s50, 3
      %p101 = por %p99, %p100
      %p102 = scmp.ne.s32.totalorder %s93, %s94
      %p103 = scmp.eq.s32.totalorder %s50, 0
      %p104 = por %p102, %p103
      %p105 = scmp.ne.s32.totalorder %s93, %s94
      %p106 = scmp.eq.s32.totalorder %s51, 3
      %p107 = por %p105, %p106
      %p109 = scmp.ne.s32.totalorder %s94, %s108
      %p110 = scmp.eq.s32.totalorder %s51, 0
      %p111 = por %p109, %p110
      %s113 = sadd.s32 %s112, 1
      %p116 = scmp.eq.s32.totalorder %s45, 3
      %p117 = scmp.ne.s32.totalorder %s112, %s114
      %p118 = scmp.eq.s32.totalorder %s45, 0
      %p119 = por %p117, %p118
      %p120 = scmp.ne.s32.totalorder %s112, %s114
      %p121 = scmp.eq.s32.totalorder %s50, 3
      %p122 = por %p120, %p121
      %p123 = scmp.ne.s32.totalorder %s114, %s115
      %p124 = scmp.eq.s32.totalorder %s50, 0
      %p125 = por %p123, %p124
      %p126 = scmp.ne.s32.totalorder %s114, %s115
      %p127 = scmp.eq.s32.totalorder %s51, 3
      %p128 = por %p126, %p127
      %p130 = scmp.ne.s32.totalorder %s115, %s129
      %p131 = scmp.eq.s32.totalorder %s51, 0
      %p132 = por %p130, %p131
      %s133 = ssub.s32 %s53, %s60
      %p134 = scmp.eq.s32.totalorder %s133, 0
      %s136 = sadd.s32 %s135, 1
      %s137 = scalar_select %p134, %s135, %s136
      %p140 = pneg %p134
      %p141 = scmp.eq.s32.totalorder %s45, 3
      %p142 = por %p140, %p141
      %p143 = scmp.ne.s32.totalorder %s135, %s138
      %p144 = scmp.eq.s32.totalorder %s45, 0
      %p145 = por %p143, %p144
      %p146 = scmp.ne.s32.totalorder %s135, %s138
      %p147 = scmp.eq.s32.totalorder %s50, 3
      %p148 = por %p146, %p147
      %p149 = scmp.ne.s32.totalorder %s138, %s139
      %p150 = scmp.eq.s32.totalorder %s50, 0
      %p151 = por %p149, %p150
      %p152 = scmp.ne.s32.totalorder %s138, %s139
      %p153 = scmp.eq.s32.totalorder %s51, 3
      %p154 = por %p152, %p153
      %p156 = scmp.ne.s32.totalorder %s139, %s155
      %p157 = scmp.eq.s32.totalorder %s51, 0
      %p158 = por %p156, %p157
      %s159 = ssub.s32 %s53, %s60
      %p160 = scmp.eq.s32.totalorder %s159, 0
      %s162 = sadd.s32 %s161, 1
      %s163 = scalar_select %p160, %s161, %s162
      %p166 = pneg %p160
      %p167 = scmp.eq.s32.totalorder %s45, 3
      %p168 = por %p166, %p167
      %p169 = scmp.ne.s32.totalorder %s161, %s164
      %p170 = scmp.eq.s32.totalorder %s45, 0
      %p171 = por %p169, %p170
      %p172 = scmp.ne.s32.totalorder %s161, %s164
      %p173 = scmp.eq.s32.totalorder %s50, 3
      %p174 = por %p172, %p173
      %p175 = scmp.ne.s32.totalorder %s164, %s165
      %p176 = scmp.eq.s32.totalorder %s50, 0
      %p177 = por %p175, %p176
      %p178 = scmp.ne.s32.totalorder %s164, %s165
      %p179 = scmp.eq.s32.totalorder %s51, 3
      %p180 = por %p178, %p179
      %p182 = scmp.ne.s32.totalorder %s165, %s181
      %p183 = scmp.eq.s32.totalorder %s51, 0
      %p184 = por %p182, %p183
      %s185 = ssub.s32 %s53, %s60
      %p186 = scmp.eq.s32.totalorder %s185, 0
      %s188 = sadd.s32 %s187, 1
      %s189 = scalar_select %p186, %s187, %s188
      %p192 = pneg %p186
      %p193 = scmp.eq.s32.totalorder %s45, 3
      %p194 = por %p192, %p193
      %p195 = scmp.ne.s32.totalorder %s187, %s190
      %p196 = scmp.eq.s32.totalorder %s45, 0
      %p197 = por %p195, %p196
      %p198 = scmp.ne.s32.totalorder %s187, %s190
      %p199 = scmp.eq.s32.totalorder %s50, 3
      %p200 = por %p198, %p199
      %p201 = scmp.ne.s32.totalorder %s190, %s191
      %p202 = scmp.eq.s32.totalorder %s50, 0
      %p203 = por %p201, %p202
      %p204 = scmp.ne.s32.totalorder %s190, %s191
      %p205 = scmp.eq.s32.totalorder %s51, 3
      %p206 = por %p204, %p205
      %p208 = scmp.ne.s32.totalorder %s191, %s207
      %p209 = scmp.eq.s32.totalorder %s51, 0
      %p210 = por %p208, %p209
      %s211 = ssub.s32 %s53, %s60
      %p212 = scmp.eq.s32.totalorder %s211, 0
      %s214 = sadd.s32 %s213, 1
      %s215 = scalar_select %p212, %s213, %s214
      %p218 = pneg %p212
      %p219 = scmp.eq.s32.totalorder %s45, 3
      %p220 = por %p218, %p219
      %p221 = scmp.ne.s32.totalorder %s213, %s216
      %p222 = scmp.eq.s32.totalorder %s45, 0
      %p223 = por %p221, %p222
      %p224 = scmp.ne.s32.totalorder %s213, %s216
      %p225 = scmp.eq.s32.totalorder %s50, 3
      %p226 = por %p224, %p225
      %p227 = scmp.ne.s32.totalorder %s216, %s217
      %p228 = scmp.eq.s32.totalorder %s50, 0
      %p229 = por %p227, %p228
      %p230 = scmp.ne.s32.totalorder %s216, %s217
      %p231 = scmp.eq.s32.totalorder %s51, 3
      %p232 = por %p230, %p231
      %p234 = scmp.ne.s32.totalorder %s217, %s233
      %p235 = scmp.eq.s32.totalorder %s51, 0
      %p236 = por %p234, %p235
      %s237 = ssub.s32 %s53, %s60
      %p238 = scmp.eq.s32.totalorder %s237, 0
      %s240 = sadd.s32 %s239, 1
      %s241 = scalar_select %p238, %s239, %s240
      %p244 = pneg %p238
      %p245 = scmp.eq.s32.totalorder %s45, 3
      %p246 = por %p244, %p245
      %p247 = scmp.ne.s32.totalorder %s239, %s242
      %p248 = scmp.eq.s32.totalorder %s45, 0
      %p249 = por %p247, %p248
      %p250 = scmp.ne.s32.totalorder %s239, %s242
      %p251 = scmp.eq.s32.totalorder %s50, 3
      %p252 = por %p250, %p251
      %p253 = scmp.ne.s32.totalorder %s242, %s243
      %p254 = scmp.eq.s32.totalorder %s50, 0
      %p255 = por %p253, %p254
      %p256 = scmp.ne.s32.totalorder %s242, %s243
      %p257 = scmp.eq.s32.totalorder %s51, 3
      %p258 = por %p256, %p257
      %p260 = scmp.ne.s32.totalorder %s243, %s259
      %p261 = scmp.eq.s32.totalorder %s51, 0
      %p262 = por %p260, %p261
      %s263 = ssub.s32 %s53, %s60
      %p264 = scmp.eq.s32.totalorder %s263, 0
      %s266 = sadd.s32 %s265, 1
      %s267 = scalar_select %p264, %s265, %s266
      %p270 = pneg %p264
      %p271 = scmp.eq.s32.totalorder %s45, 3
      %p272 = por %p270, %p271
      %p273 = scmp.ne.s32.totalorder %s265, %s268
      %p274 = scmp.eq.s32.totalorder %s45, 0
      %p275 = por %p273, %p274
      %p276 = scmp.ne.s32.totalorder %s265, %s268
      %p277 = scmp.eq.s32.totalorder %s50, 3
      %p278 = por %p276, %p277
      %p279 = scmp.ne.s32.totalorder %s268, %s269
      %p280 = scmp.eq.s32.totalorder %s50, 0
      %p281 = por %p279, %p280
      %p282 = scmp.ne.s32.totalorder %s268, %s269
      %p283 = scmp.eq.s32.totalorder %s51, 3
      %p284 = por %p282, %p283
      %p286 = scmp.ne.s32.totalorder %s269, %s285
      %p287 = scmp.eq.s32.totalorder %s51, 0
      %p288 = por %p286, %p287
      %s289 = ssub.s32 %s53, %s60
      %p290 = scmp.eq.s32.totalorder %s289, 0
      %s292 = sadd.s32 %s291, 1
      %s293 = scalar_select %p290, %s291, %s292
      %p296 = pneg %p290
      %p297 = scmp.eq.s32.totalorder %s45, 3
      %p298 = por %p296, %p297
      %p299 = scmp.ne.s32.totalorder %s291, %s294
      %p300 = scmp.eq.s32.totalorder %s45, 0
      %p301 = por %p299, %p300
      %p302 = scmp.ne.s32.totalorder %s291, %s294
      %p303 = scmp.eq.s32.totalorder %s50, 3
      %p304 = por %p302, %p303
      %p305 = scmp.ne.s32.totalorder %s294, %s295
      %p306 = scmp.eq.s32.totalorder %s50, 0
      %p307 = por %p305, %p306
      %p308 = scmp.ne.s32.totalorder %s294, %s295
      %p309 = scmp.eq.s32.totalorder %s51, 3
      %p310 = por %p308, %p309
      %p312 = scmp.ne.s32.totalorder %s295, %s311
      %p313 = scmp.eq.s32.totalorder %s51, 0
      %p314 = por %p312, %p313
      %s315 = ssub.s32 %s53, %s60
      %p316 = scmp.eq.s32.totalorder %s315, 0
      %s318 = sadd.s32 %s317, 1
      %s319 = scalar_select %p316, %s317, %s318
      %p322 = pneg %p316
      %p323 = scmp.eq.s32.totalorder %s45, 3
      %p324 = por %p322, %p323
      %p325 = scmp.ne.s32.totalorder %s317, %s320
      %p326 = scmp.eq.s32.totalorder %s45, 0
      %p327 = por %p325, %p326
      %p328 = scmp.ne.s32.totalorder %s317, %s320
      %p329 = scmp.eq.s32.totalorder %s50, 3
      %p330 = por %p328, %p329
      %p331 = scmp.ne.s32.totalorder %s320, %s321
      %p332 = scmp.eq.s32.totalorder %s50, 0
      %p333 = por %p331, %p332
      %p334 = scmp.ne.s32.totalorder %s320, %s321
      %p335 = scmp.eq.s32.totalorder %s51, 3
      %p336 = por %p334, %p335
      %p338 = scmp.ne.s32.totalorder %s321, %s337
      %p339 = scmp.eq.s32.totalorder %s51, 0
      %p340 = por %p338, %p339
      %s341 = ssub.s32 %s53, %s60
      %p342 = scmp.eq.s32.totalorder %s341, 0
      %s344 = sadd.s32 %s343, 1
      %s345 = scalar_select %p342, %s343, %s344
      %p348 = pneg %p342
      %p349 = scmp.eq.s32.totalorder %s45, 3
      %p350 = por %p348, %p349
      %p351 = scmp.ne.s32.totalorder %s343, %s346
      %p352 = scmp.eq.s32.totalorder %s45, 0
      %p353 = por %p351, %p352
      %p354 = scmp.ne.s32.totalorder %s343, %s346
      %p355 = scmp.eq.s32.totalorder %s50, 3
      %p356 = por %p354, %p355
      %p357 = scmp.ne.s32.totalorder %s346, %s347
      %p358 = scmp.eq.s32.totalorder %s50, 0
      %p359 = por %p357, %p358
      %p360 = scmp.ne.s32.totalorder %s346, %s347
      %p361 = scmp.eq.s32.totalorder %s51, 3
      %p362 = por %p360, %p361
      %p364 = scmp.ne.s32.totalorder %s347, %s363
      %p365 = scmp.eq.s32.totalorder %s51, 0
      %p366 = por %p364, %p365
      %s367 = ssub.s32 %s53, %s60
      %p368 = scmp.eq.s32.totalorder %s367, 0
      %s370 = sadd.s32 %s369, 1
      %s371 = scalar_select %p368, %s369, %s370
      %p374 = pneg %p368
      %p375 = scmp.eq.s32.totalorder %s45, 3
      %p376 = por %p374, %p375
      %p377 = scmp.ne.s32.totalorder %s369, %s372
      %p378 = scmp.eq.s32.totalorder %s45, 0
      %p379 = por %p377, %p378
      %p380 = scmp.ne.s32.totalorder %s369, %s372
      %p381 = scmp.eq.s32.totalorder %s50, 3
      %p382 = por %p380, %p381
      %p383 = scmp.ne.s32.totalorder %s372, %s373
      %p384 = scmp.eq.s32.totalorder %s50, 0
      %p385 = por %p383, %p384
      %p386 = scmp.ne.s32.totalorder %s372, %s373
      %p387 = scmp.eq.s32.totalorder %s51, 3
      %p388 = por %p386, %p387
      %p390 = scmp.ne.s32.totalorder %s373, %s389
      %p391 = scmp.eq.s32.totalorder %s51, 0
      %p392 = por %p390, %p391
      %s393 = ssub.s32 %s53, %s60
      %p394 = scmp.eq.s32.totalorder %s393, 0
      %s396 = sadd.s32 %s395, 1
      %s397 = scalar_select %p394, %s395, %s396
      %p400 = pneg %p394
      %p401 = scmp.eq.s32.totalorder %s45, 3
      %p402 = por %p400, %p401
      %p403 = scmp.ne.s32.totalorder %s395, %s398
      %p404 = scmp.eq.s32.totalorder %s45, 0
      %p405 = por %p403, %p404
      %p406 = scmp.ne.s32.totalorder %s395, %s398
      %p407 = scmp.eq.s32.totalorder %s50, 3
      %p408 = por %p406, %p407
      %p409 = scmp.ne.s32.totalorder %s398, %s399
      %p410 = scmp.eq.s32.totalorder %s50, 0
      %p411 = por %p409, %p410
      %p412 = scmp.ne.s32.totalorder %s398, %s399
      %p413 = scmp.eq.s32.totalorder %s51, 3
      %p414 = por %p412, %p413
      %p416 = scmp.ne.s32.totalorder %s399, %s415
      %p417 = scmp.eq.s32.totalorder %s51, 0
      %p418 = por %p416, %p417
      %s419 = ssub.s32 %s52, %s64
      %p420 = scmp.eq.s32.totalorder %s419, 0
      %s422 = sadd.s32 %s421, 1
      %s423 = scalar_select %p420, %s421, %s422
      %p426 = pneg %p420
      %p427 = scmp.eq.s32.totalorder %s45, 3
      %p428 = por %p426, %p427
      %p429 = scmp.ne.s32.totalorder %s421, %s424
      %p430 = scmp.eq.s32.totalorder %s45, 0
      %p431 = por %p429, %p430
      %p432 = scmp.ne.s32.totalorder %s421, %s424
      %p433 = scmp.eq.s32.totalorder %s50, 3
      %p434 = por %p432, %p433
      %p435 = scmp.ne.s32.totalorder %s424, %s425
      %p436 = scmp.eq.s32.totalorder %s50, 0
      %p437 = por %p435, %p436
      %p438 = scmp.ne.s32.totalorder %s424, %s425
      %p439 = scmp.eq.s32.totalorder %s51, 3
      %p440 = por %p438, %p439
      %p442 = scmp.ne.s32.totalorder %s425, %s441
      %p443 = scmp.eq.s32.totalorder %s51, 0
      %p444 = por %p442, %p443
      %p445 = scmp.le.s32.totalorder 1, %s45
      %p446 = scmp.lt.s32.totalorder %s45, 5
      %p447 = pnand %p445, %p446
      %p448 = pneg %p447
      // Predicated region
      $region9: #{transformer_forward.1} parent=5 // pred_check
        _
      $region10: #{transformer_forward.1} parent=5 // pred_check_branch
        %450 = sbr.rel (%p447) target = $region12
      $region11: #{transformer_forward.1} parent=5 // pred_region
        %s451 = ssub.s32 %s45, 1
        // Predicated region
        $region13: #{transformer_forward.1} parent=11 // pred_check
          %p452 = pneg %p104
        $region14: #{transformer_forward.1} parent=11 // pred_check_branch
          %454 = sbr.rel (%p452) target = $region16
        $region15: #{transformer_forward.1} parent=11 // pred_region
          %s456 = ssub.s32 16, 16
          %457 = vsyncadd [#allocation6], %s456
          %s459 = sshll.u32 [#allocation5], 4
          %s460 = int_to_ptr.vmem [resolvable:$true] %s459
          %462 = dma.hbm_to_vmem [thread:$0]  %s1, 16, %s460, [#allocation6]
        $region16: #{transformer_forward.1} parent=11 // pred_fallthru
          _
        // Predicated region
        $region17: #{transformer_forward.1} parent=11 // pred_check
          %p463 = pneg %p125
        $region18: #{transformer_forward.1} parent=11 // pred_check_branch
          %465 = sbr.rel (%p463) target = $region20
        $region19: #{transformer_forward.1} parent=11 // pred_region
          %s467 = ssub.s32 16, 16
          %468 = vsyncadd [#allocation6], %s467
          %s470 = sshll.u32 [#allocation7], 4
          %s471 = int_to_ptr.vmem [resolvable:$true] %s470
          %473 = dma.hbm_to_vmem [thread:$0]  %s2, 16, %s471, [#allocation6]
        $region20: #{transformer_forward.1} parent=11 // pred_fallthru
          _
      $region12: #{transformer_forward.1} parent=5 // pred_fallthru
        _
      %p474 = scmp.lt.s32.totalorder %s45, 4
      // Predicated region
      $region21: #{transformer_forward.1} parent=5 // pred_check
        %p475 = pneg %p474
      $region22: #{transformer_forward.1} parent=5 // pred_check_branch
        %477 = sbr.rel (%p475) target = $region24
      $region23: #{transformer_forward.1} parent=5 // pred_region
        // Predicated region
        $region25: #{transformer_forward.1} parent=23 // pred_check
          %p478 = pneg %p77
        $region26: #{transformer_forward.1} parent=23 // pred_check_branch
          %480 = sbr.rel (%p478) target = $region28
        $region27: #{transformer_forward.1} parent=23 // pred_region
          %s481 = sand.u32 %s67, 1
          %s482 = scalar_lea.sflag [#allocation3], %s481
          %s483 = sand.u32 %s67, 1
          %s484 = smul.addr %s483, 8
          %s485 = scalar_lea.vmem [#allocation2], %s484
          %s487 = ssub.s32 128, 128
          %488 = vsyncadd %s482, %s487
          %s489 = smul.addr %s52, 128
          %s490 = scalar_lea.hbm %s0, %s489
          %s492 = sshll.u32 %s485, 4
          %s493 = int_to_ptr.vmem [resolvable:$true] %s492
          %495 = dma.hbm_to_vmem [thread:$0]  %s490, 128, %s493, %s482
        $region28: #{transformer_forward.1} parent=23 // pred_fallthru
          _
        // Predicated region
        $region29: #{transformer_forward.1} parent=23 // pred_check
          %p496 = pneg %p145
        $region30: #{transformer_forward.1} parent=23 // pred_check_branch
          %498 = sbr.rel (%p496) target = $region32
        $region31: #{transformer_forward.1} parent=23 // pred_region
          %s499 = sand.u32 %s45, 1
          %s500 = scalar_lea.sflag [#allocation9], %s499
          %s501 = sand.u32 %s135, 1
          %s502 = scalar_lea.vmem [#allocation8], %s501
          %s504 = ssub.s32 16, 16
          %505 = vsyncadd %s500, %s504
          %s506 = smul.addr %s53, 16
          %s507 = scalar_lea.hbm %s3, %s506
          %s509 = sshll.u32 %s502, 4
          %s510 = int_to_ptr.vmem [resolvable:$true] %s509
          %512 = dma.hbm_to_vmem [thread:$0]  %s507, 16, %s510, %s500
        $region32: #{transformer_forward.1} parent=23 // pred_fallthru
          _
        // Predicated region
        $region33: #{transformer_forward.1} parent=23 // pred_check
          %p513 = pneg %p171
        $region34: #{transformer_forward.1} parent=23 // pred_check_branch
          %515 = sbr.rel (%p513) target = $region36
        $region35: #{transformer_forward.1} parent=23 // pred_region
          %s516 = sand.u32 %s45, 1
          %s517 = scalar_lea.sflag [#allocation9], %s516
          %s518 = sand.u32 %s161, 1
          %s519 = scalar_lea.vmem [#allocation10], %s518
          %s521 = ssub.s32 16, 16
          %522 = vsyncadd %s517, %s521
          %s523 = smul.addr %s53, 16
          %s524 = scalar_lea.hbm %s4, %s523
          %s526 = sshll.u32 %s519, 4
          %s527 = int_to_ptr.vmem [resolvable:$true] %s526
          %529 = dma.hbm_to_vmem [thread:$0]  %s524, 16, %s527, %s517
        $region36: #{transformer_forward.1} parent=23 // pred_fallthru
          _
        // Predicated region
        $region37: #{transformer_forward.1} parent=23 // pred_check
          %p530 = pneg %p197
        $region38: #{transformer_forward.1} parent=23 // pred_check_branch
          %532 = sbr.rel (%p530) target = $region40
        $region39: #{transformer_forward.1} parent=23 // pred_region
          %s533 = sand.u32 %s45, 1
          %s534 = scalar_lea.sflag [#allocation12], %s533
          %s535 = sand.u32 %s187, 1
          %s536 = smul.addr %s535, 32
          %s537 = scalar_lea.vmem [#allocation11], %s536
          %s539 = ssub.s32 512, 512
          %540 = vsyncadd %s534, %s539
          %s541 = smul.addr %s53, 4
          %s542 = smul.addr %s541, 128
          %s543 = scalar_lea.hbm %s5, %s542
          %s544 = sshll.u32 %s537, 4
          %s545 = int_to_ptr.vmem [resolvable:$true] %s544
          %550 = dma.hbm_to_vmem [thread:$0]  %s543, 512, %s545, %s534, 128, 128, 8
        $region40: #{transformer_forward.1} parent=23 // pred_fallthru
          _
        // Predicated region
        $region41: #{transformer_forward.1} parent=23 // pred_check
          %p551 = pneg %p223
        $region42: #{transformer_forward.1} parent=23 // pred_check_branch
          %553 = sbr.rel (%p551) target = $region44
        $region43: #{transformer_forward.1} parent=23 // pred_region
          %s554 = sand.u32 %s45, 1
          %s555 = scalar_lea.sflag [#allocation12], %s554
          %s556 = sand.u32 %s213, 1
          %s557 = smul.addr %s556, 32
          %s558 = scalar_lea.vmem [#allocation13], %s557
          %s560 = ssub.s32 512, 512
          %561 = vsyncadd %s555, %s560
          %s562 = smul.addr %s53, 4
          %s563 = smul.addr %s562, 128
          %s564 = scalar_lea.hbm %s6, %s563
          %s565 = sshll.u32 %s558, 4
          %s566 = int_to_ptr.vmem [resolvable:$true] %s565
          %571 = dma.hbm_to_vmem [thread:$0]  %s564, 512, %s566, %s555, 128, 128, 8
        $region44: #{transformer_forward.1} parent=23 // pred_fallthru
          _
        // Predicated region
        $region45: #{transformer_forward.1} parent=23 // pred_check
          %p572 = pneg %p249
        $region46: #{transformer_forward.1} parent=23 // pred_check_branch
          %574 = sbr.rel (%p572) target = $region48
        $region47: #{transformer_forward.1} parent=23 // pred_region
          %s575 = sand.u32 %s45, 1
          %s576 = scalar_lea.sflag [#allocation15], %s575
          %s577 = sand.u32 %s239, 1
          %s578 = scalar_lea.vmem [#allocation14], %s577
          %s580 = ssub.s32 16, 16
          %581 = vsyncadd %s576, %s580
          %s582 = smul.addr %s53, 16
          %s583 = scalar_lea.hbm %s7, %s582
          %s585 = sshll.u32 %s578, 4
          %s586 = int_to_ptr.vmem [resolvable:$true] %s585
          %588 = dma.hbm_to_vmem [thread:$0]  %s583, 16, %s586, %s576
        $region48: #{transformer_forward.1} parent=23 // pred_fallthru
          _
        // Predicated region
        $region49: #{transformer_forward.1} parent=23 // pred_check
          %p589 = pneg %p275
        $region50: #{transformer_forward.1} parent=23 // pred_check_branch
          %591 = sbr.rel (%p589) target = $region52
        $region51: #{transformer_forward.1} parent=23 // pred_region
          %s592 = sand.u32 %s45, 1
          %s593 = scalar_lea.sflag [#allocation15], %s592
          %s594 = sand.u32 %s265, 1
          %s595 = scalar_lea.vmem [#allocation16], %s594
          %s597 = ssub.s32 16, 16
          %598 = vsyncadd %s593, %s597
          %s599 = smul.addr %s53, 16
          %s600 = scalar_lea.hbm %s8, %s599
          %s602 = sshll.u32 %s595, 4
          %s603 = int_to_ptr.vmem [resolvable:$true] %s602
          %605 = dma.hbm_to_vmem [thread:$0]  %s600, 16, %s603, %s593
        $region52: #{transformer_forward.1} parent=23 // pred_fallthru
          _
        // Predicated region
        $region53: #{transformer_forward.1} parent=23 // pred_check
          %p606 = pneg %p301
        $region54: #{transformer_forward.1} parent=23 // pred_check_branch
          %608 = sbr.rel (%p606) target = $region56
        $region55: #{transformer_forward.1} parent=23 // pred_region
          %s609 = sand.u32 %s45, 1
          %s610 = scalar_lea.sflag [#allocation18], %s609
          %s611 = sand.u32 %s291, 1
          %s612 = scalar_lea.vmem [#allocation17], %s611
          %s614 = ssub.s32 16, 16
          %615 = vsyncadd %s610, %s614
          %s616 = smul.addr %s53, 16
          %s617 = scalar_lea.hbm %s9, %s616
          %s619 = sshll.u32 %s612, 4
          %s620 = int_to_ptr.vmem [resolvable:$true] %s619
          %622 = dma.hbm_to_vmem [thread:$0]  %s617, 16, %s620, %s610
        $region56: #{transformer_forward.1} parent=23 // pred_fallthru
          _
        // Predicated region
        $region57: #{transformer_forward.1} parent=23 // pred_check
          %p623 = pneg %p327
        $region58: #{transformer_forward.1} parent=23 // pred_check_branch
          %625 = sbr.rel (%p623) target = $region60
        $region59: #{transformer_forward.1} parent=23 // pred_region
          %s626 = sand.u32 %s45, 1
          %s627 = scalar_lea.sflag [#allocation18], %s626
          %s628 = sand.u32 %s317, 1
          %s629 = smul.addr %s628, 32
          %s630 = scalar_lea.vmem [#allocation19], %s629
          %s632 = ssub.s32 512, 512
          %633 = vsyncadd %s627, %s632
          %s634 = smul.addr %s53, 4
          %s635 = smul.addr %s634, 128
          %s636 = scalar_lea.hbm %s10, %s635
          %s637 = sshll.u32 %s630, 4
          %s638 = int_to_ptr.vmem [resolvable:$true] %s637
          %643 = dma.hbm_to_vmem [thread:$0]  %s636, 512, %s638, %s627, 128, 128, 8
        $region60: #{transformer_forward.1} parent=23 // pred_fallthru
          _
        // Predicated region
        $region61: #{transformer_forward.1} parent=23 // pred_check
          %p644 = pneg %p353
        $region62: #{transformer_forward.1} parent=23 // pred_check_branch
          %646 = sbr.rel (%p644) target = $region64
        $region63: #{transformer_forward.1} parent=23 // pred_region
          %s647 = sand.u32 %s45, 1
          %s648 = scalar_lea.sflag [#allocation21], %s647
          %s649 = sand.u32 %s343, 1
          %s650 = scalar_lea.vmem [#allocation20], %s649
          %s652 = ssub.s32 16, 16
          %653 = vsyncadd %s648, %s652
          %s654 = smul.addr %s53, 16
          %s655 = scalar_lea.hbm %s11, %s654
          %s657 = sshll.u32 %s650, 4
          %s658 = int_to_ptr.vmem [resolvable:$true] %s657
          %660 = dma.hbm_to_vmem [thread:$0]  %s655, 16, %s658, %s648
        $region64: #{transformer_forward.1} parent=23 // pred_fallthru
          _
        // Predicated region
        $region65: #{transformer_forward.1} parent=23 // pred_check
          %p661 = pneg %p379
        $region66: #{transformer_forward.1} parent=23 // pred_check_branch
          %663 = sbr.rel (%p661) target = $region68
        $region67: #{transformer_forward.1} parent=23 // pred_region
          %s664 = sand.u32 %s45, 1
          %s665 = scalar_lea.sflag [#allocation21], %s664
          %s666 = sand.u32 %s369, 1
          %s667 = smul.addr %s666, 64
          %s668 = scalar_lea.vmem [#allocation22], %s667
          %s670 = ssub.s32 1024, 1024
          %671 = vsyncadd %s665, %s670
          %s672 = smul.addr %s53, 8
          %s673 = smul.addr %s672, 128
          %s674 = scalar_lea.hbm %s12, %s673
          %s675 = sshll.u32 %s668, 4
          %s676 = int_to_ptr.vmem [resolvable:$true] %s675
          %681 = dma.hbm_to_vmem [thread:$0]  %s674, 1024, %s676, %s665, 128, 128, 8
        $region68: #{transformer_forward.1} parent=23 // pred_fallthru
          _
        // Predicated region
        $region69: #{transformer_forward.1} parent=23 // pred_check
          %p682 = pneg %p405
        $region70: #{transformer_forward.1} parent=23 // pred_check_branch
          %684 = sbr.rel (%p682) target = $region72
        $region71: #{transformer_forward.1} parent=23 // pred_region
          %s685 = sand.u32 %s395, 1
          %s686 = scalar_lea.sflag [#allocation24], %s685
          %s687 = sand.u32 %s395, 1
          %s688 = scalar_lea.vmem [#allocation23], %s687
          %s690 = ssub.s32 16, 16
          %691 = vsyncadd %s686, %s690
          %s692 = smul.addr %s53, 16
          %s693 = scalar_lea.hbm %s13, %s692
          %s695 = sshll.u32 %s688, 4
          %s696 = int_to_ptr.vmem [resolvable:$true] %s695
          %698 = dma.hbm_to_vmem [thread:$0]  %s693, 16, %s696, %s686
        $region72: #{transformer_forward.1} parent=23 // pred_fallthru
          _
      $region24: #{transformer_forward.1} parent=5 // pred_fallthru
        _
      %p699 = scmp.le.s32.totalorder 1, %s45
      %p700 = scmp.lt.s32.totalorder %s45, 5
      %p701 = pnand %p699, %p700
      %p702 = pneg %p701
      // Predicated region
      $region73: #{transformer_forward.1} parent=5 // pred_check
        _
      $region74: #{transformer_forward.1} parent=5 // pred_check_branch
        %704 = sbr.rel (%p701) target = $region76
      $region75: #{transformer_forward.1} parent=5 // pred_region
        %s705 = ssub.s32 %s45, 1
        %s706 = sand.u32 %s70, 1
        %s707 = scalar_lea.sflag [#allocation3], %s706
        %s708 = sand.u32 %s70, 1
        %s709 = smul.addr %s708, 8
        %s710 = scalar_lea.vmem [#allocation2], %s709
        // Predicated region
        $region77: #{transformer_forward.1} parent=75 // pred_check
          %p711 = pneg %p83
        $region78: #{transformer_forward.1} parent=75 // pred_check_branch
          %713 = sbr.rel (%p711) target = $region80
        $region79: #{transformer_forward.1} parent=75 // pred_region
          %714 = dma.done %s707, 128
        $region80: #{transformer_forward.1} parent=75 // pred_fallthru
          _
        // Predicated region
        $region81: #{transformer_forward.1} parent=75 // pred_check
          %p715 = pneg %p104
        $region82: #{transformer_forward.1} parent=75 // pred_check_branch
          %717 = sbr.rel (%p715) target = $region84
        $region83: #{transformer_forward.1} parent=75 // pred_region
          %718 = dma.done [#allocation6], 16
        $region84: #{transformer_forward.1} parent=75 // pred_fallthru
          _
        // Predicated region
        $region85: #{transformer_forward.1} parent=75 // pred_check
          %p719 = pneg %p125
        $region86: #{transformer_forward.1} parent=75 // pred_check_branch
          %721 = sbr.rel (%p719) target = $region88
        $region87: #{transformer_forward.1} parent=75 // pred_region
          %722 = dma.done [#allocation6], 16
        $region88: #{transformer_forward.1} parent=75 // pred_fallthru
          _
        %s723 = sand.u32 %s50, 1
        %s724 = scalar_lea.sflag [#allocation9], %s723
        %s725 = sand.u32 %s138, 1
        %s726 = scalar_lea.vmem [#allocation8], %s725
        // Predicated region
        $region89: #{transformer_forward.1} parent=75 // pred_check
          %p727 = pneg %p151
        $region90: #{transformer_forward.1} parent=75 // pred_check_branch
          %729 = sbr.rel (%p727) target = $region92
        $region91: #{transformer_forward.1} parent=75 // pred_region
          %730 = dma.done %s724, 16
        $region92: #{transformer_forward.1} parent=75 // pred_fallthru
          _
        %s731 = sand.u32 %s50, 1
        %s732 = scalar_lea.sflag [#allocation9], %s731
        %s733 = sand.u32 %s164, 1
        %s734 = scalar_lea.vmem [#allocation10], %s733
        // Predicated region
        $region93: #{transformer_forward.1} parent=75 // pred_check
          %p735 = pneg %p177
        $region94: #{transformer_forward.1} parent=75 // pred_check_branch
          %737 = sbr.rel (%p735) target = $region96
        $region95: #{transformer_forward.1} parent=75 // pred_region
          %738 = dma.done %s732, 16
        $region96: #{transformer_forward.1} parent=75 // pred_fallthru
          _
        %s739 = sand.u32 %s50, 1
        %s740 = scalar_lea.sflag [#allocation12], %s739
        %s741 = sand.u32 %s190, 1
        %s742 = smul.addr %s741, 32
        %s743 = scalar_lea.vmem [#allocation11], %s742
        // Predicated region
        $region97: #{transformer_forward.1} parent=75 // pred_check
          %p744 = pneg %p203
        $region98: #{transformer_forward.1} parent=75 // pred_check_branch
          %746 = sbr.rel (%p744) target = $region100
        $region99: #{transformer_forward.1} parent=75 // pred_region
          %747 = dma.done %s740, 512
        $region100: #{transformer_forward.1} parent=75 // pred_fallthru
          _
        %s748 = sand.u32 %s50, 1
        %s749 = scalar_lea.sflag [#allocation12], %s748
        %s750 = sand.u32 %s216, 1
        %s751 = smul.addr %s750, 32
        %s752 = scalar_lea.vmem [#allocation13], %s751
        // Predicated region
        $region101: #{transformer_forward.1} parent=75 // pred_check
          %p753 = pneg %p229
        $region102: #{transformer_forward.1} parent=75 // pred_check_branch
          %755 = sbr.rel (%p753) target = $region104
        $region103: #{transformer_forward.1} parent=75 // pred_region
          %756 = dma.done %s749, 512
        $region104: #{transformer_forward.1} parent=75 // pred_fallthru
          _
        %s757 = sand.u32 %s50, 1
        %s758 = scalar_lea.sflag [#allocation15], %s757
        %s759 = sand.u32 %s242, 1
        %s760 = scalar_lea.vmem [#allocation14], %s759
        // Predicated region
        $region105: #{transformer_forward.1} parent=75 // pred_check
          %p761 = pneg %p255
        $region106: #{transformer_forward.1} parent=75 // pred_check_branch
          %763 = sbr.rel (%p761) target = $region108
        $region107: #{transformer_forward.1} parent=75 // pred_region
          %764 = dma.done %s758, 16
        $region108: #{transformer_forward.1} parent=75 // pred_fallthru
          _
        %s765 = sand.u32 %s50, 1
        %s766 = scalar_lea.sflag [#allocation15], %s765
        %s767 = sand.u32 %s268, 1
        %s768 = scalar_lea.vmem [#allocation16], %s767
        // Predicated region
        $region109: #{transformer_forward.1} parent=75 // pred_check
          %p769 = pneg %p281
        $region110: #{transformer_forward.1} parent=75 // pred_check_branch
          %771 = sbr.rel (%p769) target = $region112
        $region111: #{transformer_forward.1} parent=75 // pred_region
          %772 = dma.done %s766, 16
        $region112: #{transformer_forward.1} parent=75 // pred_fallthru
          _
        %s773 = sand.u32 %s50, 1
        %s774 = scalar_lea.sflag [#allocation18], %s773
        %s775 = sand.u32 %s294, 1
        %s776 = scalar_lea.vmem [#allocation17], %s775
        // Predicated region
        $region113: #{transformer_forward.1} parent=75 // pred_check
          %p777 = pneg %p307
        $region114: #{transformer_forward.1} parent=75 // pred_check_branch
          %779 = sbr.rel (%p777) target = $region116
        $region115: #{transformer_forward.1} parent=75 // pred_region
          %780 = dma.done %s774, 16
        $region116: #{transformer_forward.1} parent=75 // pred_fallthru
          _
        %s781 = sand.u32 %s50, 1
        %s782 = scalar_lea.sflag [#allocation18], %s781
        %s783 = sand.u32 %s320, 1
        %s784 = smul.addr %s783, 32
        %s785 = scalar_lea.vmem [#allocation19], %s784
        // Predicated region
        $region117: #{transformer_forward.1} parent=75 // pred_check
          %p786 = pneg %p333
        $region118: #{transformer_forward.1} parent=75 // pred_check_branch
          %788 = sbr.rel (%p786) target = $region120
        $region119: #{transformer_forward.1} parent=75 // pred_region
          %789 = dma.done %s782, 512
        $region120: #{transformer_forward.1} parent=75 // pred_fallthru
          _
        %s790 = sand.u32 %s50, 1
        %s791 = scalar_lea.sflag [#allocation21], %s790
        %s792 = sand.u32 %s346, 1
        %s793 = scalar_lea.vmem [#allocation20], %s792
        // Predicated region
        $region121: #{transformer_forward.1} parent=75 // pred_check
          %p794 = pneg %p359
        $region122: #{transformer_forward.1} parent=75 // pred_check_branch
          %796 = sbr.rel (%p794) target = $region124
        $region123: #{transformer_forward.1} parent=75 // pred_region
          %797 = dma.done %s791, 16
        $region124: #{transformer_forward.1} parent=75 // pred_fallthru
          _
        %s798 = sand.u32 %s50, 1
        %s799 = scalar_lea.sflag [#allocation21], %s798
        %s800 = sand.u32 %s372, 1
        %s801 = smul.addr %s800, 64
        %s802 = scalar_lea.vmem [#allocation22], %s801
        // Predicated region
        $region125: #{transformer_forward.1} parent=75 // pred_check
          %p803 = pneg %p385
        $region126: #{transformer_forward.1} parent=75 // pred_check_branch
          %805 = sbr.rel (%p803) target = $region128
        $region127: #{transformer_forward.1} parent=75 // pred_region
          %806 = dma.done %s799, 1024
        $region128: #{transformer_forward.1} parent=75 // pred_fallthru
          _
        %s807 = sand.u32 %s398, 1
        %s808 = scalar_lea.sflag [#allocation24], %s807
        %s809 = sand.u32 %s398, 1
        %s810 = scalar_lea.vmem [#allocation23], %s809
        // Predicated region
        $region129: #{transformer_forward.1} parent=75 // pred_check
          %p811 = pneg %p411
        $region130: #{transformer_forward.1} parent=75 // pred_check_branch
          %813 = sbr.rel (%p811) target = $region132
        $region131: #{transformer_forward.1} parent=75 // pred_region
          %814 = dma.done %s808, 16
        $region132: #{transformer_forward.1} parent=75 // pred_fallthru
          _
        %s815 = sand.u32 %s70, 1
        %s816 = scalar_lea.sflag [#allocation3], %s815
        %s817 = sand.u32 %s70, 1
        %s818 = smul.addr %s817, 8
        %s819 = scalar_lea.vmem [#allocation2], %s818
        %p820 = pneg %p83
        %p821 = pneg %p80
        %p822 = pneg %p104
        %p823 = pneg %p101
        %p824 = pneg %p125
        %p825 = pneg %p122
        %s826 = sand.u32 %s50, 1
        %s827 = scalar_lea.sflag [#allocation9], %s826
        %s828 = sand.u32 %s138, 1
        %s829 = scalar_lea.vmem [#allocation8], %s828
        %p830 = pneg %p151
        %p831 = pneg %p148
        %s832 = sand.u32 %s50, 1
        %s833 = scalar_lea.sflag [#allocation9], %s832
        %s834 = sand.u32 %s164, 1
        %s835 = scalar_lea.vmem [#allocation10], %s834
        %p836 = pneg %p177
        %p837 = pneg %p174
        %s838 = sand.u32 %s50, 1
        %s839 = scalar_lea.sflag [#allocation12], %s838
        %s840 = sand.u32 %s190, 1
        %s841 = smul.addr %s840, 32
        %s842 = scalar_lea.vmem [#allocation11], %s841
        %p843 = pneg %p203
        %p844 = pneg %p200
        %s845 = sand.u32 %s50, 1
        %s846 = scalar_lea.sflag [#allocation12], %s845
        %s847 = sand.u32 %s216, 1
        %s848 = smul.addr %s847, 32
        %s849 = scalar_lea.vmem [#allocation13], %s848
        %p850 = pneg %p229
        %p851 = pneg %p226
        %s852 = sand.u32 %s50, 1
        %s853 = scalar_lea.sflag [#allocation15], %s852
        %s854 = sand.u32 %s242, 1
        %s855 = scalar_lea.vmem [#allocation14], %s854
        %p856 = pneg %p255
        %p857 = pneg %p252
        %s858 = sand.u32 %s50, 1
        %s859 = scalar_lea.sflag [#allocation15], %s858
        %s860 = sand.u32 %s268, 1
        %s861 = scalar_lea.vmem [#allocation16], %s860
        %p862 = pneg %p281
        %p863 = pneg %p278
        %s864 = sand.u32 %s50, 1
        %s865 = scalar_lea.sflag [#allocation18], %s864
        %s866 = sand.u32 %s294, 1
        %s867 = scalar_lea.vmem [#allocation17], %s866
        %p868 = pneg %p307
        %p869 = pneg %p304
        %s870 = sand.u32 %s50, 1
        %s871 = scalar_lea.sflag [#allocation18], %s870
        %s872 = sand.u32 %s320, 1
        %s873 = smul.addr %s872, 32
        %s874 = scalar_lea.vmem [#allocation19], %s873
        %p875 = pneg %p333
        %p876 = pneg %p330
        %s877 = sand.u32 %s50, 1
        %s878 = scalar_lea.sflag [#allocation21], %s877
        %s879 = sand.u32 %s346, 1
        %s880 = scalar_lea.vmem [#allocation20], %s879
        %p881 = pneg %p359
        %p882 = pneg %p356
        %s883 = sand.u32 %s50, 1
        %s884 = scalar_lea.sflag [#allocation21], %s883
        %s885 = sand.u32 %s372, 1
        %s886 = smul.addr %s885, 64
        %s887 = scalar_lea.vmem [#allocation22], %s886
        %p888 = pneg %p385
        %p889 = pneg %p382
        %s890 = sand.u32 %s398, 1
        %s891 = scalar_lea.sflag [#allocation24], %s890
        %s892 = sand.u32 %s398, 1
        %s893 = scalar_lea.vmem [#allocation23], %s892
        %p894 = pneg %p411
        %p895 = pneg %p408
        %p896 = pneg %p437
        %p897 = pneg %p434
        %s898 = sand.u32 %s424, 1
        %s899 = scalar_lea.sflag [#allocation4], %s898
        %s900 = sand.u32 %s424, 1
        %s901 = smul.addr %s900, 8
        %s902 = scalar_lea.vmem [#allocation25], %s901
        %p903 = scmp.eq.s32.totalorder %s55, 0
        // Predicated region
        $region133: #{transformer_forward.1} parent=75 // pred_check
          %p904 = pneg %p903
        $region134: #{transformer_forward.1} parent=75 // pred_check_branch
          %906 = sbr.rel (%p904) target = $region136
        $region135: #{transformer_forward.1} parent=75 // pred_region
          %v907 = vld [vmem:[%s710] sm:$0xff]
          %vm908 = vcmask 261120
          %909 = vst.msk [vmem:[%s902] sm:$0xff] %vm908, %v907
        $region136: #{transformer_forward.1} parent=75 // pred_fallthru
          _
        %v910 = vld [vmem:[%s902] sm:$0xff]
        %v911 = vld [vmem:[%s726] sm:$0x1]
        %v912 = vld [vmem:[%s734] sm:$0x1]
        %vm913 = vcmask 261120
        %v914 = vsel %vm913, %v910, 0.0
        %915 = vadd.xlane.f32.xlu0 %v914
        %v916 = vpop.xlane.xlu0 %915
        %v917 = vrcp.pop 32.0
        %v918 = vmul.f32 %v916, %v917
        %v919 = vsub.f32 %v910, %v918
        %v920 = vmul.f32 %v919, %v919
        %v921 = vsel %vm913, %v920, 0.0
        %922 = vadd.xlane.f32.xlu0 %v921
        %v923 = vpop.xlane.xlu0 %922
        %v924 = vmul.f32 %v923, %v917
        %v925 = vadd.f32 %v924, 1e-05
        %v926 = vrsqrt.pop %v925
        %v927 = vmul.f32 %v919, %v926
        %v929 = vlaneseq
        %v930 = vshrl.u32 %v929, 7
        %v931 = vsub.s32 0, %v930
        %v932 = vrot.slane %v911, %v931
        %v934 = vmul.f32 %v927, %v932
        %v936 = vlaneseq
        %v937 = vshrl.u32 %v936, 7
        %v938 = vsub.s32 0, %v937
        %v939 = vrot.slane %v912, %v938
        %v941 = vadd.f32 %v934, %v939
        %v942 = vld [vmem:[%s743] sm:$0xff]
        %v943 = vld [vmem:[%s743 + $0x8] sm:$0xff]
        %v944 = vld [vmem:[%s743 + $0x10] sm:$0xff]
        %v945 = vld [vmem:[%s743 + $0x18] sm:$0xff]
        %v947 = vsel %vm913, %v941, 0
        %949 = vmatprep.subr.mxu0 0.0
        %v950 = vand.u32 %v942, 4294901760
        %951 = vmatpush1.msra.mxu0 %v950
        %952 = vmatprep.subr.mxu0 0.0
        %v953 = vand.u32 %v943, 4294901760
        %954 = vmatpush1.msra.mxu0 %v953
        %955 = vmatprep.subr.mxu0 0.0
        %v956 = vand.u32 %v944, 4294901760
        %957 = vmatpush1.msra.mxu0 %v956
        %958 = vmatprep.subr.mxu0 0.0
        %v959 = vand.u32 %v945, 4294901760
        %960 = vmatpush1.msra.mxu0 %v959
        %961 = vmatprep.subr.mxu0 0.0
        %962 = vmatpush1.msra.mxu0 0.0
        %963 = vmatprep.subr.mxu0 0.0
        %964 = vmatpush1.msra.mxu0 0.0
        %965 = vmatprep.subr.mxu0 0.0
        %966 = vmatpush1.msra.mxu0 0.0
        %967 = vmatprep.subr.mxu0 0.0
        %968 = vmatpush1.msra.mxu0 0.0
        %969 = vmatprep.subr.mxu0 0.0
        %970 = vmatpush1.msra.mxu0 0.0
        %971 = vmatprep.subr.mxu0 0.0
        %972 = vmatpush1.msra.mxu0 0.0
        %973 = vmatprep.subr.mxu0 0.0
        %974 = vmatpush1.msra.mxu0 0.0
        %975 = vmatprep.subr.mxu0 0.0
        %976 = vmatpush1.msra.mxu0 0.0
        %977 = vmatprep.subr.mxu0 0.0
        %978 = vmatpush1.msra.mxu0 0.0
        %979 = vmatprep.subr.mxu0 0.0
        %980 = vmatpush1.msra.mxu0 0.0
        %981 = vmatprep.subr.mxu0 0.0
        %982 = vmatpush1.msra.mxu0 0.0
        %983 = vmatprep.subr.mxu0 0.0
        %984 = vmatpush1.msra.mxu0 0.0
        %985 = vmatprep.subr.mxu0 0.0
        %986 = vmatpush1.msra.mxu0 0.0
        %987 = vmatprep.subr.mxu0 0.0
        %988 = vmatpush1.msra.mxu0 0.0
        %989 = vmatprep.subr.mxu0 0.0
        %990 = vmatpush1.msra.mxu0 0.0
        %991 = vmatprep.subr.mxu0 0.0
        %992 = vmatpush1.msra.mxu0 0.0
        %993 = vmatprep.subr.mxu0 0.0
        %994 = vmatpush1.msra.mxu0 0.0
        %995 = vmatprep.subr.mxu0 0.0
        %996 = vmatpush1.msra.mxu0 0.0
        %997 = vmatprep.subr.mxu0 0.0
        %998 = vmatpush1.msra.mxu0 0.0
        %999 = vmatprep.subr.mxu0 0.0
        %1000 = vmatpush1.msra.mxu0 0.0
        %1001 = vmatprep.subr.mxu0 0.0
        %1002 = vmatpush1.msra.mxu0 0.0
        %1003 = vmatprep.subr.mxu0 0.0
        %1004 = vmatpush1.msra.mxu0 0.0
        %1005 = vmatprep.subr.mxu0 0.0
        %1006 = vmatpush1.msra.mxu0 0.0
        %1007 = vmatprep.subr.mxu0 0.0
        %1008 = vmatpush1.msra.mxu0 0.0
        %1009 = vmatprep.subr.mxu0 0.0
        %1010 = vmatpush1.msra.mxu0 0.0
        %1011 = vmatprep.subr.mxu0 0.0
        %1012 = vmatpush1.msra.mxu0 0.0
        %1013 = vmatprep.subr.mxu0 0.0
        %1014 = vmatpush1.msra.mxu0 0.0
        %1015 = vmatprep.subr.mxu0 0.0
        %1016 = vmatpush1.msra.mxu0 0.0
        %1017 = vmatprep.mubr.f32.mxu0 0.0
        %v1018 = vand.u32 %v947, 4294901760
        %v1019 = vsub.f32 %v947, %v1018
        %v1020 = vand.u32 %v1019, 4294901760
        %v1021 = vsub.f32 %v1019, %v1020
        %v1022 = vand.u32 %v1021, 4294901760
        %1023 = vmatmul.mubr.f32.gmra.mrb[0].mxu0 %v1022
        %v1024 = vpop.f32.mrb[0].mxu0
        %v1025 = vadd.f32 0.0, %v1024
        %v1026 = vpop.f32.mrb[0].mxu0
        %1027 = vdwg.mxu0
        %1028 = vmatprep.subr.mxu0 0.0
        %v1029 = vand.u32 %v942, 4294901760
        %v1030 = vsub.f32 %v942, %v1029
        %v1031 = vand.u32 %v1030, 4294901760
        %v1032 = vsub.f32 %v1030, %v1031
        %v1033 = vand.u32 %v1032, 4294901760
        %1034 = vmatpush1.msra.mxu0 %v1033
        %1035 = vmatprep.subr.mxu0 0.0
        %v1036 = vand.u32 %v943, 4294901760
        %v1037 = vsub.f32 %v943, %v1036
        %v1038 = vand.u32 %v1037, 4294901760
        %v1039 = vsub.f32 %v1037, %v1038
        %v1040 = vand.u32 %v1039, 4294901760
        %1041 = vmatpush1.msra.mxu0 %v1040
        %1042 = vmatprep.subr.mxu0 0.0
        %v1043 = vand.u32 %v944, 4294901760
        %v1044 = vsub.f32 %v944, %v1043
        %v1045 = vand.u32 %v1044, 4294901760
        %v1046 = vsub.f32 %v1044, %v1045
        %v1047 = vand.u32 %v1046, 4294901760
        %1048 = vmatpush1.msra.mxu0 %v1047
        %1049 = vmatprep.subr.mxu0 0.0
        %v1050 = vand.u32 %v945, 4294901760
        %v1051 = vsub.f32 %v945, %v1050
        %v1052 = vand.u32 %v1051, 4294901760
        %v1053 = vsub.f32 %v1051, %v1052
        %v1054 = vand.u32 %v1053, 4294901760
        %1055 = vmatpush1.msra.mxu0 %v1054
        %1056 = vmatprep.subr.mxu0 0.0
        %1057 = vmatpush1.msra.mxu0 0.0
        %1058 = vmatprep.subr.mxu0 0.0
        %1059 = vmatpush1.msra.mxu0 0.0
        %1060 = vmatprep.subr.mxu0 0.0
        %1061 = vmatpush1.msra.mxu0 0.0
        %1062 = vmatprep.subr.mxu0 0.0
        %1063 = vmatpush1.msra.mxu0 0.0
        %1064 = vmatprep.subr.mxu0 0.0
        %1065 = vmatpush1.msra.mxu0 0.0
        %1066 = vmatprep.subr.mxu0 0.0
        %1067 = vmatpush1.msra.mxu0 0.0
        %1068 = vmatprep.subr.mxu0 0.0
        %1069 = vmatpush1.msra.mxu0 0.0
        %1070 = vmatprep.subr.mxu0 0.0
        %1071 = vmatpush1.msra.mxu0 0.0
        %1072 = vmatprep.subr.mxu0 0.0
        %1073 = vmatpush1.msra.mxu0 0.0
        %1074 = vmatprep.subr.mxu0 0.0
        %1075 = vmatpush1.msra.mxu0 0.0
        %1076 = vmatprep.subr.mxu0 0.0
        %1077 = vmatpush1.msra.mxu0 0.0
        %1078 = vmatprep.subr.mxu0 0.0
        %1079 = vmatpush1.msra.mxu0 0.0
        %1080 = vmatprep.subr.mxu0 0.0
        %1081 = vmatpush1.msra.mxu0 0.0
        %1082 = vmatprep.subr.mxu0 0.0
        %1083 = vmatpush1.msra.mxu0 0.0
        %1084 = vmatprep.subr.mxu0 0.0
        %1085 = vmatpush1.msra.mxu0 0.0
        %1086 = vmatprep.subr.mxu0 0.0
        %1087 = vmatpush1.msra.mxu0 0.0
        %1088 = vmatprep.subr.mxu0 0.0
        %1089 = vmatpush1.msra.mxu0 0.0
        %1090 = vmatprep.subr.mxu0 0.0
        %1091 = vmatpush1.msra.mxu0 0.0
        %1092 = vmatprep.subr.mxu0 0.0
        %1093 = vmatpush1.msra.mxu0 0.0
        %1094 = vmatprep.subr.mxu0 0.0
        %1095 = vmatpush1.msra.mxu0 0.0
        %1096 = vmatprep.subr.mxu0 0.0
        %1097 = vmatpush1.msra.mxu0 0.0
        %1098 = vmatprep.subr.mxu0 0.0
        %1099 = vmatpush1.msra.mxu0 0.0
        %1100 = vmatprep.subr.mxu0 0.0
        %1101 = vmatpush1.msra.mxu0 0.0
        %1102 = vmatprep.subr.mxu0 0.0
        %1103 = vmatpush1.msra.mxu0 0.0
        %1104 = vmatprep.subr.mxu0 0.0
        %1105 = vmatpush1.msra.mxu0 0.0
        %1106 = vmatprep.subr.mxu0 0.0
        %1107 = vmatpush1.msra.mxu0 0.0
        %1108 = vmatprep.subr.mxu0 0.0
        %1109 = vmatpush1.msra.mxu0 0.0
        %1110 = vmatprep.subr.mxu0 0.0
        %1111 = vmatpush1.msra.mxu0 0.0
        %1112 = vmatprep.mubr.f32.mxu0 0.0
        %v1113 = vand.u32 %v947, 4294901760
        %1114 = vmatmul.mubr.f32.gmra.mrb[0].mxu0 %v1113
        %v1115 = vpop.f32.mrb[0].mxu0
        %v1116 = vadd.f32 %v1025, %v1115
        %v1117 = vpop.f32.mrb[0].mxu0
        %1118 = vdwg.mxu0
        %1119 = vmatprep.subr.mxu0 0.0
        %v1120 = vand.u32 %v942, 4294901760
        %v1121 = vsub.f32 %v942, %v1120
        %1122 = vmatpush1.msra.mxu0 %v1121
        %1123 = vmatprep.subr.mxu0 0.0
        %v1124 = vand.u32 %v943, 4294901760
        %v1125 = vsub.f32 %v943, %v1124
        %1126 = vmatpush1.msra.mxu0 %v1125
        %1127 = vmatprep.subr.mxu0 0.0
        %v1128 = vand.u32 %v944, 4294901760
        %v1129 = vsub.f32 %v944, %v1128
        %1130 = vmatpush1.msra.mxu0 %v1129
        %1131 = vmatprep.subr.mxu0 0.0
        %v1132 = vand.u32 %v945, 4294901760
        %v1133 = vsub.f32 %v945, %v1132
        %1134 = vmatpush1.msra.mxu0 %v1133
        %1135 = vmatprep.subr.mxu0 0.0
        %1136 = vmatpush1.msra.mxu0 0.0
        %1137 = vmatprep.subr.mxu0 0.0
        %1138 = vmatpush1.msra.mxu0 0.0
        %1139 = vmatprep.subr.mxu0 0.0
        %1140 = vmatpush1.msra.mxu0 0.0
        %1141 = vmatprep.subr.mxu0 0.0
        %1142 = vmatpush1.msra.mxu0 0.0
        %1143 = vmatprep.subr.mxu0 0.0
        %1144 = vmatpush1.msra.mxu0 0.0
        %1145 = vmatprep.subr.mxu0 0.0
        %1146 = vmatpush1.msra.mxu0 0.0
        %1147 = vmatprep.subr.mxu0 0.0
        %1148 = vmatpush1.msra.mxu0 0.0
        %1149 = vmatprep.subr.mxu0 0.0
        %1150 = vmatpush1.msra.mxu0 0.0
        %1151 = vmatprep.subr.mxu0 0.0
        %1152 = vmatpush1.msra.mxu0 0.0
        %1153 = vmatprep.subr.mxu0 0.0
        %1154 = vmatpush1.msra.mxu0 0.0
        %1155 = vmatprep.subr.mxu0 0.0
        %1156 = vmatpush1.msra.mxu0 0.0
        %1157 = vmatprep.subr.mxu0 0.0
        %1158 = vmatpush1.msra.mxu0 0.0
        %1159 = vmatprep.subr.mxu0 0.0
        %1160 = vmatpush1.msra.mxu0 0.0
        %1161 = vmatprep.subr.mxu0 0.0
        %1162 = vmatpush1.msra.mxu0 0.0
        %1163 = vmatprep.subr.mxu0 0.0
        %1164 = vmatpush1.msra.mxu0 0.0
        %1165 = vmatprep.subr.mxu0 0.0
        %1166 = vmatpush1.msra.mxu0 0.0
        %1167 = vmatprep.subr.mxu0 0.0
        %1168 = vmatpush1.msra.mxu0 0.0
        %1169 = vmatprep.subr.mxu0 0.0
        %1170 = vmatpush1.msra.mxu0 0.0
        %1171 = vmatprep.subr.mxu0 0.0
        %1172 = vmatpush1.msra.mxu0 0.0
        %1173 = vmatprep.subr.mxu0 0.0
        %1174 = vmatpush1.msra.mxu0 0.0
        %1175 = vmatprep.subr.mxu0 0.0
        %1176 = vmatpush1.msra.mxu0 0.0
        %1177 = vmatprep.subr.mxu0 0.0
        %1178 = vmatpush1.msra.mxu0 0.0
        %1179 = vmatprep.subr.mxu0 0.0
        %1180 = vmatpush1.msra.mxu0 0.0
        %1181 = vmatprep.subr.mxu0 0.0
        %1182 = vmatpush1.msra.mxu0 0.0
        %1183 = vmatprep.subr.mxu0 0.0
        %1184 = vmatpush1.msra.mxu0 0.0
        %1185 = vmatprep.subr.mxu0 0.0
        %1186 = vmatpush1.msra.mxu0 0.0
        %1187 = vmatprep.subr.mxu0 0.0
        %1188 = vmatpush1.msra.mxu0 0.0
        %1189 = vmatprep.subr.mxu0 0.0
        %1190 = vmatpush1.msra.mxu0 0.0
        %1191 = vmatprep.mubr.f32.mxu0 0.0
        %v1192 = vand.u32 %v947, 4294901760
        %v1193 = vsub.f32 %v947, %v1192
        %1194 = vmatmul.mubr.f32.gmra.mrb[0].mxu0 %v1193
        %v1195 = vpop.f32.mrb[0].mxu0
        %v1196 = vadd.f32 %v1116, %v1195
        %v1197 = vpop.f32.mrb[0].mxu0
        %1198 = vdwg.mxu0
        %1199 = vmatprep.subr.mxu0 0.0
        %v1200 = vand.u32 %v942, 4294901760
        %1201 = vmatpush1.msra.mxu0 %v1200
        %1202 = vmatprep.subr.mxu0 0.0
        %v1203 = vand.u32 %v943, 4294901760
        %1204 = vmatpush1.msra.mxu0 %v1203
        %1205 = vmatprep.subr.mxu0 0.0
        %v1206 = vand.u32 %v944, 4294901760
        %1207 = vmatpush1.msra.mxu0 %v1206
        %1208 = vmatprep.subr.mxu0 0.0
        %v1209 = vand.u32 %v945, 4294901760
        %1210 = vmatpush1.msra.mxu0 %v1209
        %1211 = vmatprep.subr.mxu0 0.0
        %1212 = vmatpush1.msra.mxu0 0.0
        %1213 = vmatprep.subr.mxu0 0.0
        %1214 = vmatpush1.msra.mxu0 0.0
        %1215 = vmatprep.subr.mxu0 0.0
        %1216 = vmatpush1.msra.mxu0 0.0
        %1217 = vmatprep.subr.mxu0 0.0
        %1218 = vmatpush1.msra.mxu0 0.0
        %1219 = vmatprep.subr.mxu0 0.0
        %1220 = vmatpush1.msra.mxu0 0.0
        %1221 = vmatprep.subr.mxu0 0.0
        %1222 = vmatpush1.msra.mxu0 0.0
        %1223 = vmatprep.subr.mxu0 0.0
        %1224 = vmatpush1.msra.mxu0 0.0
        %1225 = vmatprep.subr.mxu0 0.0
        %1226 = vmatpush1.msra.mxu0 0.0
        %1227 = vmatprep.subr.mxu0 0.0
        %1228 = vmatpush1.msra.mxu0 0.0
        %1229 = vmatprep.subr.mxu0 0.0
        %1230 = vmatpush1.msra.mxu0 0.0
        %1231 = vmatprep.subr.mxu0 0.0
        %1232 = vmatpush1.msra.mxu0 0.0
        %1233 = vmatprep.subr.mxu0 0.0
        %1234 = vmatpush1.msra.mxu0 0.0
        %1235 = vmatprep.subr.mxu0 0.0
        %1236 = vmatpush1.msra.mxu0 0.0
        %1237 = vmatprep.subr.mxu0 0.0
        %1238 = vmatpush1.msra.mxu0 0.0
        %1239 = vmatprep.subr.mxu0 0.0
        %1240 = vmatpush1.msra.mxu0 0.0
        %1241 = vmatprep.subr.mxu0 0.0
        %1242 = vmatpush1.msra.mxu0 0.0
        %1243 = vmatprep.subr.mxu0 0.0
        %1244 = vmatpush1.msra.mxu0 0.0
        %1245 = vmatprep.subr.mxu0 0.0
        %1246 = vmatpush1.msra.mxu0 0.0
        %1247 = vmatprep.subr.mxu0 0.0
        %1248 = vmatpush1.msra.mxu0 0.0
        %1249 = vmatprep.subr.mxu0 0.0
        %1250 = vmatpush1.msra.mxu0 0.0
        %1251 = vmatprep.subr.mxu0 0.0
        %1252 = vmatpush1.msra.mxu0 0.0
        %1253 = vmatprep.subr.mxu0 0.0
        %1254 = vmatpush1.msra.mxu0 0.0
        %1255 = vmatprep.subr.mxu0 0.0
        %1256 = vmatpush1.msra.mxu0 0.0
        %1257 = vmatprep.subr.mxu0 0.0
        %1258 = vmatpush1.msra.mxu0 0.0
        %1259 = vmatprep.subr.mxu0 0.0
        %1260 = vmatpush1.msra.mxu0 0.0
        %1261 = vmatprep.subr.mxu0 0.0
        %1262 = vmatpush1.msra.mxu0 0.0
        %1263 = vmatprep.subr.mxu0 0.0
        %1264 = vmatpush1.msra.mxu0 0.0
        %1265 = vmatprep.subr.mxu0 0.0
        %1266 = vmatpush1.msra.mxu0 0.0
        %1267 = vmatprep.mubr.f32.mxu0 0.0
        %v1268 = vand.u32 %v947, 4294901760
        %v1269 = vsub.f32 %v947, %v1268
        %v1270 = vand.u32 %v1269, 4294901760
        %1271 = vmatmul.mubr.f32.gmra.mrb[0].mxu0 %v1270
        %v1272 = vpop.f32.mrb[0].mxu0
        %v1273 = vadd.f32 %v1196, %v1272
        %v1274 = vpop.f32.mrb[0].mxu0
        %1275 = vdwg.mxu0
        %1276 = vmatprep.subr.mxu0 0.0
        %v1277 = vand.u32 %v942, 4294901760
        %v1278 = vsub.f32 %v942, %v1277
        %v1279 = vand.u32 %v1278, 4294901760
        %1280 = vmatpush1.msra.mxu0 %v1279
        %1281 = vmatprep.subr.mxu0 0.0
        %v1282 = vand.u32 %v943, 4294901760
        %v1283 = vsub.f32 %v943, %v1282
        %v1284 = vand.u32 %v1283, 4294901760
        %1285 = vmatpush1.msra.mxu0 %v1284
        %1286 = vmatprep.subr.mxu0 0.0
        %v1287 = vand.u32 %v944, 4294901760
        %v1288 = vsub.f32 %v944, %v1287
        %v1289 = vand.u32 %v1288, 4294901760
        %1290 = vmatpush1.msra.mxu0 %v1289
        %1291 = vmatprep.subr.mxu0 0.0
        %v1292 = vand.u32 %v945, 4294901760
        %v1293 = vsub.f32 %v945, %v1292
        %v1294 = vand.u32 %v1293, 4294901760
        %1295 = vmatpush1.msra.mxu0 %v1294
        %1296 = vmatprep.subr.mxu0 0.0
        %1297 = vmatpush1.msra.mxu0 0.0
        %1298 = vmatprep.subr.mxu0 0.0
        %1299 = vmatpush1.msra.mxu0 0.0
        %1300 = vmatprep.subr.mxu0 0.0
        %1301 = vmatpush1.msra.mxu0 0.0
        %1302 = vmatprep.subr.mxu0 0.0
        %1303 = vmatpush1.msra.mxu0 0.0
        %1304 = vmatprep.subr.mxu0 0.0
        %1305 = vmatpush1.msra.mxu0 0.0
        %1306 = vmatprep.subr.mxu0 0.0
        %1307 = vmatpush1.msra.mxu0 0.0
        %1308 = vmatprep.subr.mxu0 0.0
        %1309 = vmatpush1.msra.mxu0 0.0
        %1310 = vmatprep.subr.mxu0 0.0
        %1311 = vmatpush1.msra.mxu0 0.0
        %1312 = vmatprep.subr.mxu0 0.0
        %1313 = vmatpush1.msra.mxu0 0.0
        %1314 = vmatprep.subr.mxu0 0.0
        %1315 = vmatpush1.msra.mxu0 0.0
        %1316 = vmatprep.subr.mxu0 0.0
        %1317 = vmatpush1.msra.mxu0 0.0
        %1318 = vmatprep.subr.mxu0 0.0
        %1319 = vmatpush1.msra.mxu0 0.0
        %1320 = vmatprep.subr.mxu0 0.0
        %1321 = vmatpush1.msra.mxu0 0.0
        %1322 = vmatprep.subr.mxu0 0.0
        %1323 = vmatpush1.msra.mxu0 0.0
        %1324 = vmatprep.subr.mxu0 0.0
        %1325 = vmatpush1.msra.mxu0 0.0
        %1326 = vmatprep.subr.mxu0 0.0
        %1327 = vmatpush1.msra.mxu0 0.0
        %1328 = vmatprep.subr.mxu0 0.0
        %1329 = vmatpush1.msra.mxu0 0.0
        %1330 = vmatprep.subr.mxu0 0.0
        %1331 = vmatpush1.msra.mxu0 0.0
        %1332 = vmatprep.subr.mxu0 0.0
        %1333 = vmatpush1.msra.mxu0 0.0
        %1334 = vmatprep.subr.mxu0 0.0
        %1335 = vmatpush1.msra.mxu0 0.0
        %1336 = vmatprep.subr.mxu0 0.0
        %1337 = vmatpush1.msra.mxu0 0.0
        %1338 = vmatprep.subr.mxu0 0.0
        %1339 = vmatpush1.msra.mxu0 0.0
        %1340 = vmatprep.subr.mxu0 0.0
        %1341 = vmatpush1.msra.mxu0 0.0
        %1342 = vmatprep.subr.mxu0 0.0
        %1343 = vmatpush1.msra.mxu0 0.0
        %1344 = vmatprep.subr.mxu0 0.0
        %1345 = vmatpush1.msra.mxu0 0.0
        %1346 = vmatprep.subr.mxu0 0.0
        %1347 = vmatpush1.msra.mxu0 0.0
        %1348 = vmatprep.subr.mxu0 0.0
        %1349 = vmatpush1.msra.mxu0 0.0
        %1350 = vmatprep.subr.mxu0 0.0
        %1351 = vmatpush1.msra.mxu0 0.0
        %1352 = vmatprep.mubr.f32.mxu0 0.0
        %v1353 = vand.u32 %v947, 4294901760
        %1354 = vmatmul.mubr.f32.gmra.mrb[0].mxu0 %v1353
        %v1355 = vpop.f32.mrb[0].mxu0
        %v1356 = vadd.f32 %v1273, %v1355
        %v1357 = vpop.f32.mrb[0].mxu0
        %1358 = vdwg.mxu0
        %1359 = vmatprep.subr.mxu0 0.0
        %v1360 = vand.u32 %v942, 4294901760
        %1361 = vmatpush1.msra.mxu0 %v1360
        %1362 = vmatprep.subr.mxu0 0.0
        %v1363 = vand.u32 %v943, 4294901760
        %1364 = vmatpush1.msra.mxu0 %v1363
        %1365 = vmatprep.subr.mxu0 0.0
        %v1366 = vand.u32 %v944, 4294901760
        %1367 = vmatpush1.msra.mxu0 %v1366
        %1368 = vmatprep.subr.mxu0 0.0
        %v1369 = vand.u32 %v945, 4294901760
        %1370 = vmatpush1.msra.mxu0 %v1369
        %1371 = vmatprep.subr.mxu0 0.0
        %1372 = vmatpush1.msra.mxu0 0.0
        %1373 = vmatprep.subr.mxu0 0.0
        %1374 = vmatpush1.msra.mxu0 0.0
        %1375 = vmatprep.subr.mxu0 0.0
        %1376 = vmatpush1.msra.mxu0 0.0
        %1377 = vmatprep.subr.mxu0 0.0
        %1378 = vmatpush1.msra.mxu0 0.0
        %1379 = vmatprep.subr.mxu0 0.0
        %1380 = vmatpush1.msra.mxu0 0.0
        %1381 = vmatprep.subr.mxu0 0.0
        %1382 = vmatpush1.msra.mxu0 0.0
        %1383 = vmatprep.subr.mxu0 0.0
        %1384 = vmatpush1.msra.mxu0 0.0
        %1385 = vmatprep.subr.mxu0 0.0
        %1386 = vmatpush1.msra.mxu0 0.0
        %1387 = vmatprep.subr.mxu0 0.0
        %1388 = vmatpush1.msra.mxu0 0.0
        %1389 = vmatprep.subr.mxu0 0.0
        %1390 = vmatpush1.msra.mxu0 0.0
        %1391 = vmatprep.subr.mxu0 0.0
        %1392 = vmatpush1.msra.mxu0 0.0
        %1393 = vmatprep.subr.mxu0 0.0
        %1394 = vmatpush1.msra.mxu0 0.0
        %1395 = vmatprep.subr.mxu0 0.0
        %1396 = vmatpush1.msra.mxu0 0.0
        %1397 = vmatprep.subr.mxu0 0.0
        %1398 = vmatpush1.msra.mxu0 0.0
        %1399 = vmatprep.subr.mxu0 0.0
        %1400 = vmatpush1.msra.mxu0 0.0
        %1401 = vmatprep.subr.mxu0 0.0
        %1402 = vmatpush1.msra.mxu0 0.0
        %1403 = vmatprep.subr.mxu0 0.0
        %1404 = vmatpush1.msra.mxu0 0.0
        %1405 = vmatprep.subr.mxu0 0.0
        %1406 = vmatpush1.msra.mxu0 0.0
        %1407 = vmatprep.subr.mxu0 0.0
        %1408 = vmatpush1.msra.mxu0 0.0
        %1409 = vmatprep.subr.mxu0 0.0
        %1410 = vmatpush1.msra.mxu0 0.0
        %1411 = vmatprep.subr.mxu0 0.0
        %1412 = vmatpush1.msra.mxu0 0.0
        %1413 = vmatprep.subr.mxu0 0.0
        %1414 = vmatpush1.msra.mxu0 0.0
        %1415 = vmatprep.subr.mxu0 0.0
        %1416 = vmatpush1.msra.mxu0 0.0
        %1417 = vmatprep.subr.mxu0 0.0
        %1418 = vmatpush1.msra.mxu0 0.0
        %1419 = vmatprep.subr.mxu0 0.0
        %1420 = vmatpush1.msra.mxu0 0.0
        %1421 = vmatprep.subr.mxu0 0.0
        %1422 = vmatpush1.msra.mxu0 0.0
        %1423 = vmatprep.subr.mxu0 0.0
        %1424 = vmatpush1.msra.mxu0 0.0
        %1425 = vmatprep.subr.mxu0 0.0
        %1426 = vmatpush1.msra.mxu0 0.0
        %1427 = vmatprep.mubr.f32.mxu0 0.0
        %v1428 = vand.u32 %v947, 4294901760
        %1429 = vmatmul.mubr.f32.gmra.mrb[0].mxu0 %v1428
        %v1430 = vpop.f32.mrb[0].mxu0
        %v1431 = vadd.f32 %v1356, %v1430
        %v1432 = vpop.f32.mrb[0].mxu0
        %1433 = vdwg.mxu0
        %1435 = vrot.lane.b32.xlu0 %v1431, 120
        %v1436 = vpop.permute.xlu0 %1435
        %1438 = vrot.lane.b32.xlu0 %v1431, 112
        %v1439 = vpop.permute.xlu0 %1438
        %1441 = vrot.lane.b32.xlu0 %v1431, 104
        %v1442 = vpop.permute.xlu0 %1441
        %v1444 = vcombine.low %v1431, %v1439
        %v1445 = vcombine.high %v1431, %v1439
        %v1447 = vunpack.c.l.s4 1983009808
        %v1448 = vunpack.c.0.s8 %v1447
        %v1449 = vlaneseq
        %v1450 = vshrl.u32 %v1449, 7
        %v1451 = vsub.s32 %v1448, %v1450
        %v1452 = vrot.slane %v1444, %v1451
        %v1454 = vunpack.c.l.s4 1983009808
        %v1455 = vunpack.c.0.s8 %v1454
        %v1456 = vlaneseq
        %v1457 = vshrl.u32 %v1456, 7
        %v1458 = vsub.s32 %v1455, %v1457
        %v1459 = vrot.slane %v1445, %v1458
        %v1460 = vcombine.low %v1436, %v1442
        %v1461 = vcombine.high %v1436, %v1442
        %v1463 = vunpack.c.l.s4 1983009808
        %v1464 = vunpack.c.0.s8 %v1463
        %v1465 = vlaneseq
        %v1466 = vshrl.u32 %v1465, 7
        %v1467 = vsub.s32 %v1464, %v1466
        %v1468 = vrot.slane %v1460, %v1467
        %v1470 = vunpack.c.l.s4 1983009808
        %v1471 = vunpack.c.0.s8 %v1470
        %v1472 = vlaneseq
        %v1473 = vshrl.u32 %v1472, 7
        %v1474 = vsub.s32 %v1471, %v1473
        %v1475 = vrot.slane %v1461, %v1474
        %v1476 = vcombine.low %v1452, %v1468
        %v1477 = vcombine.high %v1452, %v1468
        %v1479 = vunpack.c.l.s4 1934713408
        %v1480 = vunpack.c.0.s8 %v1479
        %v1481 = vlaneseq
        %v1482 = vshrl.u32 %v1481, 7
        %v1483 = vsub.s32 %v1480, %v1482
        %v1484 = vrot.slane %v1476, %v1483
        %v1486 = vunpack.c.l.s4 1934713408
        %v1487 = vunpack.c.0.s8 %v1486
        %v1488 = vlaneseq
        %v1489 = vshrl.u32 %v1488, 7
        %v1490 = vsub.s32 %v1487, %v1489
        %v1491 = vrot.slane %v1477, %v1490
        %v1492 = vcombine.low %v1459, %v1475
        %v1493 = vcombine.high %v1459, %v1475
        %v1495 = vunpack.c.l.s4 1934713408
        %v1496 = vunpack.c.0.s8 %v1495
        %v1497 = vlaneseq
        %v1498 = vshrl.u32 %v1497, 7
        %v1499 = vsub.s32 %v1496, %v1498
        %v1500 = vrot.slane %v1492, %v1499
        %v1502 = vunpack.c.l.s4 1934713408
        %v1503 = vunpack.c.0.s8 %v1502
        %v1504 = vlaneseq
        %v1505 = vshrl.u32 %v1504, 7
        %v1506 = vsub.s32 %v1503, %v1505
        %v1507 = vrot.slane %v1493, %v1506
        %v1508 = vcombine.high %v1484, 0.0
        %v1509 = vcombine.high %v1491, 0.0
        %v1510 = vcombine.high %v1500, 0.0
        %v1511 = vcombine.high %v1507, 0.0
        %v1512 = vcombine.low %v1484, %v1491
        %v1514 = vunpack.c.l.s4 1983009808
        %v1515 = vunpack.c.0.s8 %v1514
        %v1516 = vlaneseq
        %v1517 = vshrl.u32 %v1516, 7
        %v1518 = vsub.s32 %v1515, %v1517
        %v1519 = vrot.slane %v1512, %v1518
        %v1520 = vcombine.low %v1508, %v1509
        %v1522 = vunpack.c.l.s4 1983009808
        %v1523 = vunpack.c.0.s8 %v1522
        %v1524 = vlaneseq
        %v1525 = vshrl.u32 %v1524, 7
        %v1526 = vsub.s32 %v1523, %v1525
        %v1527 = vrot.slane %v1520, %v1526
        %v1528 = vcombine.low %v1500, %v1507
        %v1530 = vunpack.c.l.s4 1983009808
        %v1531 = vunpack.c.0.s8 %v1530
        %v1532 = vlaneseq
        %v1533 = vshrl.u32 %v1532, 7
        %v1534 = vsub.s32 %v1531, %v1533
        %v1535 = vrot.slane %v1528, %v1534
        %v1536 = vcombine.low %v1510, %v1511
        %v1538 = vunpack.c.l.s4 1983009808
        %v1539 = vunpack.c.0.s8 %v1538
        %v1540 = vlaneseq
        %v1541 = vshrl.u32 %v1540, 7
        %v1542 = vsub.s32 %v1539, %v1541
        %v1543 = vrot.slane %v1536, %v1542
        %v1544 = vcombine.low %v1519, %v1527
        %v1545 = vcombine.high %v1519, %v1527
        %v1547 = vunpack.c.l.s4 1934713408
        %v1548 = vunpack.c.0.s8 %v1547
        %v1549 = vlaneseq
        %v1550 = vshrl.u32 %v1549, 7
        %v1551 = vsub.s32 %v1548, %v1550
        %v1552 = vrot.slane %v1544, %v1551
        %v1554 = vunpack.c.l.s4 1934713408
        %v1555 = vunpack.c.0.s8 %v1554
        %v1556 = vlaneseq
        %v1557 = vshrl.u32 %v1556, 7
        %v1558 = vsub.s32 %v1555, %v1557
        %v1559 = vrot.slane %v1545, %v1558
        %v1560 = vcombine.low %v1535, %v1543
        %v1561 = vcombine.high %v1535, %v1543
        %v1563 = vunpack.c.l.s4 1934713408
        %v1564 = vunpack.c.0.s8 %v1563
        %v1565 = vlaneseq
        %v1566 = vshrl.u32 %v1565, 7
        %v1567 = vsub.s32 %v1564, %v1566
        %v1568 = vrot.slane %v1560, %v1567
        %v1570 = vunpack.c.l.s4 1934713408
        %v1571 = vunpack.c.0.s8 %v1570
        %v1572 = vlaneseq
        %v1573 = vshrl.u32 %v1572, 7
        %v1574 = vsub.s32 %v1571, %v1573
        %v1575 = vrot.slane %v1561, %v1574
        %v1576 = vcombine.low %v1552, %v1568
        %v1577 = vcombine.high %v1552, %v1568
        %v1578 = vcombine.low %v1559, %v1575
        %v1579 = vcombine.high %v1559, %v1575
        %1580 = vrot.lane.b32.xlu0 %v1431, 96
        %v1581 = vpop.permute.xlu0 %1580
        %1582 = vrot.lane.b32.xlu0 %v1436, 96
        %v1583 = vpop.permute.xlu0 %1582
        %1584 = vrot.lane.b32.xlu0 %v1439, 96
        %v1585 = vpop.permute.xlu0 %1584
        %1586 = vrot.lane.b32.xlu0 %v1442, 96
        %v1587 = vpop.permute.xlu0 %1586
        %v1592 = vcombine.low %v1581, %v1585
        %v1593 = vcombine.high %v1581, %v1585
        %v1595 = vunpack.c.l.s4 1983009808
        %v1596 = vunpack.c.0.s8 %v1595
        %v1597 = vlaneseq
        %v1598 = vshrl.u32 %v1597, 7
        %v1599 = vsub.s32 %v1596, %v1598
        %v1600 = vrot.slane %v1592, %v1599
        %v1602 = vunpack.c.l.s4 1983009808
        %v1603 = vunpack.c.0.s8 %v1602
        %v1604 = vlaneseq
        %v1605 = vshrl.u32 %v1604, 7
        %v1606 = vsub.s32 %v1603, %v1605
        %v1607 = vrot.slane %v1593, %v1606
        %v1608 = vcombine.low %v1583, %v1587
        %v1609 = vcombine.high %v1583, %v1587
        %v1611 = vunpack.c.l.s4 1983009808
        %v1612 = vunpack.c.0.s8 %v1611
        %v1613 = vlaneseq
        %v1614 = vshrl.u32 %v1613, 7
        %v1615 = vsub.s32 %v1612, %v1614
        %v1616 = vrot.slane %v1608, %v1615
        %v1618 = vunpack.c.l.s4 1983009808
        %v1619 = vunpack.c.0.s8 %v1618
        %v1620 = vlaneseq
        %v1621 = vshrl.u32 %v1620, 7
        %v1622 = vsub.s32 %v1619, %v1621
        %v1623 = vrot.slane %v1609, %v1622
        %v1624 = vcombine.low %v1600, %v1616
        %v1625 = vcombine.high %v1600, %v1616
        %v1627 = vunpack.c.l.s4 1934713408
        %v1628 = vunpack.c.0.s8 %v1627
        %v1629 = vlaneseq
        %v1630 = vshrl.u32 %v1629, 7
        %v1631 = vsub.s32 %v1628, %v1630
        %v1632 = vrot.slane %v1624, %v1631
        %v1634 = vunpack.c.l.s4 1934713408
        %v1635 = vunpack.c.0.s8 %v1634
        %v1636 = vlaneseq
        %v1637 = vshrl.u32 %v1636, 7
        %v1638 = vsub.s32 %v1635, %v1637
        %v1639 = vrot.slane %v1625, %v1638
        %v1640 = vcombine.low %v1607, %v1623
        %v1641 = vcombine.high %v1607, %v1623
        %v1643 = vunpack.c.l.s4 1934713408
        %v1644 = vunpack.c.0.s8 %v1643
        %v1645 = vlaneseq
        %v1646 = vshrl.u32 %v1645, 7
        %v1647 = vsub.s32 %v1644, %v1646
        %v1648 = vrot.slane %v1640, %v1647
        %v1650 = vunpack.c.l.s4 1934713408
        %v1651 = vunpack.c.0.s8 %v1650
        %v1652 = vlaneseq
        %v1653 = vshrl.u32 %v1652, 7
        %v1654 = vsub.s32 %v1651, %v1653
        %v1655 = vrot.slane %v1641, %v1654
        %v1656 = vcombine.high %v1632, 0.0
        %v1657 = vcombine.high %v1639, 0.0
        %v1658 = vcombine.high %v1648, 0.0
        %v1659 = vcombine.high %v1655, 0.0
        %v1660 = vcombine.low %v1632, %v1639
        %v1662 = vunpack.c.l.s4 1983009808
        %v1663 = vunpack.c.0.s8 %v1662
        %v1664 = vlaneseq
        %v1665 = vshrl.u32 %v1664, 7
        %v1666 = vsub.s32 %v1663, %v1665
        %v1667 = vrot.slane %v1660, %v1666
        %v1668 = vcombine.low %v1656, %v1657
        %v1670 = vunpack.c.l.s4 1983009808
        %v1671 = vunpack.c.0.s8 %v1670
        %v1672 = vlaneseq
        %v1673 = vshrl.u32 %v1672, 7
        %v1674 = vsub.s32 %v1671, %v1673
        %v1675 = vrot.slane %v1668, %v1674
        %v1676 = vcombine.low %v1648, %v1655
        %v1678 = vunpack.c.l.s4 1983009808
        %v1679 = vunpack.c.0.s8 %v1678
        %v1680 = vlaneseq
        %v1681 = vshrl.u32 %v1680, 7
        %v1682 = vsub.s32 %v1679, %v1681
        %v1683 = vrot.slane %v1676, %v1682
        %v1684 = vcombine.low %v1658, %v1659
        %v1686 = vunpack.c.l.s4 1983009808
        %v1687 = vunpack.c.0.s8 %v1686
        %v1688 = vlaneseq
        %v1689 = vshrl.u32 %v1688, 7
        %v1690 = vsub.s32 %v1687, %v1689
        %v1691 = vrot.slane %v1684, %v1690
        %v1692 = vcombine.low %v1667, %v1675
        %v1693 = vcombine.high %v1667, %v1675
        %v1695 = vunpack.c.l.s4 1934713408
        %v1696 = vunpack.c.0.s8 %v1695
        %v1697 = vlaneseq
        %v1698 = vshrl.u32 %v1697, 7
        %v1699 = vsub.s32 %v1696, %v1698
        %v1700 = vrot.slane %v1692, %v1699
        %v1702 = vunpack.c.l.s4 1934713408
        %v1703 = vunpack.c.0.s8 %v1702
        %v1704 = vlaneseq
        %v1705 = vshrl.u32 %v1704, 7
        %v1706 = vsub.s32 %v1703, %v1705
        %v1707 = vrot.slane %v1693, %v1706
        %v1708 = vcombine.low %v1683, %v1691
        %v1709 = vcombine.high %v1683, %v1691
        %v1711 = vunpack.c.l.s4 1934713408
        %v1712 = vunpack.c.0.s8 %v1711
        %v1713 = vlaneseq
        %v1714 = vshrl.u32 %v1713, 7
        %v1715 = vsub.s32 %v1712, %v1714
        %v1716 = vrot.slane %v1708, %v1715
        %v1718 = vunpack.c.l.s4 1934713408
        %v1719 = vunpack.c.0.s8 %v1718
        %v1720 = vlaneseq
        %v1721 = vshrl.u32 %v1720, 7
        %v1722 = vsub.s32 %v1719, %v1721
        %v1723 = vrot.slane %v1709, %v1722
        %v1724 = vcombine.low %v1700, %v1716
        %v1725 = vcombine.high %v1700, %v1716
        %v1726 = vcombine.low %v1707, %v1723
        %v1727 = vcombine.high %v1707, %v1723
        %1728 = vrot.lane.b32.xlu0 %v1431, 64
        %v1729 = vpop.permute.xlu0 %1728
        %1730 = vrot.lane.b32.xlu0 %v1436, 64
        %v1731 = vpop.permute.xlu0 %1730
        %1732 = vrot.lane.b32.xlu0 %v1439, 64
        %v1733 = vpop.permute.xlu0 %1732
        %1734 = vrot.lane.b32.xlu0 %v1442, 64
        %v1735 = vpop.permute.xlu0 %1734
        %v1740 = vcombine.low %v1729, %v1733
        %v1741 = vcombine.high %v1729, %v1733
        %v1743 = vunpack.c.l.s4 1983009808
        %v1744 = vunpack.c.0.s8 %v1743
        %v1745 = vlaneseq
        %v1746 = vshrl.u32 %v1745, 7
        %v1747 = vsub.s32 %v1744, %v1746
        %v1748 = vrot.slane %v1740, %v1747
        %v1750 = vunpack.c.l.s4 1983009808
        %v1751 = vunpack.c.0.s8 %v1750
        %v1752 = vlaneseq
        %v1753 = vshrl.u32 %v1752, 7
        %v1754 = vsub.s32 %v1751, %v1753
        %v1755 = vrot.slane %v1741, %v1754
        %v1756 = vcombine.low %v1731, %v1735
        %v1757 = vcombine.high %v1731, %v1735
        %v1759 = vunpack.c.l.s4 1983009808
        %v1760 = vunpack.c.0.s8 %v1759
        %v1761 = vlaneseq
        %v1762 = vshrl.u32 %v1761, 7
        %v1763 = vsub.s32 %v1760, %v1762
        %v1764 = vrot.slane %v1756, %v1763
        %v1766 = vunpack.c.l.s4 1983009808
        %v1767 = vunpack.c.0.s8 %v1766
        %v1768 = vlaneseq
        %v1769 = vshrl.u32 %v1768, 7
        %v1770 = vsub.s32 %v1767, %v1769
        %v1771 = vrot.slane %v1757, %v1770
        %v1772 = vcombine.low %v1748, %v1764
        %v1773 = vcombine.high %v1748, %v1764
        %v1775 = vunpack.c.l.s4 1934713408
        %v1776 = vunpack.c.0.s8 %v1775
        %v1777 = vlaneseq
        %v1778 = vshrl.u32 %v1777, 7
        %v1779 = vsub.s32 %v1776, %v1778
        %v1780 = vrot.slane %v1772, %v1779
        %v1782 = vunpack.c.l.s4 1934713408
        %v1783 = vunpack.c.0.s8 %v1782
        %v1784 = vlaneseq
        %v1785 = vshrl.u32 %v1784, 7
        %v1786 = vsub.s32 %v1783, %v1785
        %v1787 = vrot.slane %v1773, %v1786
        %v1788 = vcombine.low %v1755, %v1771
        %v1789 = vcombine.high %v1755, %v1771
        %v1791 = vunpack.c.l.s4 1934713408
        %v1792 = vunpack.c.0.s8 %v1791
        %v1793 = vlaneseq
        %v1794 = vshrl.u32 %v1793, 7
        %v1795 = vsub.s32 %v1792, %v1794
        %v1796 = vrot.slane %v1788, %v1795
        %v1798 = vunpack.c.l.s4 1934713408
        %v1799 = vunpack.c.0.s8 %v1798
        %v1800 = vlaneseq
        %v1801 = vshrl.u32 %v1800, 7
        %v1802 = vsub.s32 %v1799, %v1801
        %v1803 = vrot.slane %v1789, %v1802
        %v1804 = vcombine.high %v1780, 0.0
        %v1805 = vcombine.high %v1787, 0.0
        %v1806 = vcombine.high %v1796, 0.0
        %v1807 = vcombine.high %v1803, 0.0
        %v1808 = vcombine.low %v1780, %v1787
        %v1810 = vunpack.c.l.s4 1983009808
        %v1811 = vunpack.c.0.s8 %v1810
        %v1812 = vlaneseq
        %v1813 = vshrl.u32 %v1812, 7
        %v1814 = vsub.s32 %v1811, %v1813
        %v1815 = vrot.slane %v1808, %v1814
        %v1816 = vcombine.low %v1804, %v1805
        %v1818 = vunpack.c.l.s4 1983009808
        %v1819 = vunpack.c.0.s8 %v1818
        %v1820 = vlaneseq
        %v1821 = vshrl.u32 %v1820, 7
        %v1822 = vsub.s32 %v1819, %v1821
        %v1823 = vrot.slane %v1816, %v1822
        %v1824 = vcombine.low %v1796, %v1803
        %v1826 = vunpack.c.l.s4 1983009808
        %v1827 = vunpack.c.0.s8 %v1826
        %v1828 = vlaneseq
        %v1829 = vshrl.u32 %v1828, 7
        %v1830 = vsub.s32 %v1827, %v1829
        %v1831 = vrot.slane %v1824, %v1830
        %v1832 = vcombine.low %v1806, %v1807
        %v1834 = vunpack.c.l.s4 1983009808
        %v1835 = vunpack.c.0.s8 %v1834
        %v1836 = vlaneseq
        %v1837 = vshrl.u32 %v1836, 7
        %v1838 = vsub.s32 %v1835, %v1837
        %v1839 = vrot.slane %v1832, %v1838
        %v1840 = vcombine.low %v1815, %v1823
        %v1841 = vcombine.high %v1815, %v1823
        %v1843 = vunpack.c.l.s4 1934713408
        %v1844 = vunpack.c.0.s8 %v1843
        %v1845 = vlaneseq
        %v1846 = vshrl.u32 %v1845, 7
        %v1847 = vsub.s32 %v1844, %v1846
        %v1848 = vrot.slane %v1840, %v1847
        %v1850 = vunpack.c.l.s4 1934713408
        %v1851 = vunpack.c.0.s8 %v1850
        %v1852 = vlaneseq
        %v1853 = vshrl.u32 %v1852, 7
        %v1854 = vsub.s32 %v1851, %v1853
        %v1855 = vrot.slane %v1841, %v1854
        %v1856 = vcombine.low %v1831, %v1839
        %v1857 = vcombine.high %v1831, %v1839
        %v1859 = vunpack.c.l.s4 1934713408
        %v1860 = vunpack.c.0.s8 %v1859
        %v1861 = vlaneseq
        %v1862 = vshrl.u32 %v1861, 7
        %v1863 = vsub.s32 %v1860, %v1862
        %v1864 = vrot.slane %v1856, %v1863
        %v1866 = vunpack.c.l.s4 1934713408
        %v1867 = vunpack.c.0.s8 %v1866
        %v1868 = vlaneseq
        %v1869 = vshrl.u32 %v1868, 7
        %v1870 = vsub.s32 %v1867, %v1869
        %v1871 = vrot.slane %v1857, %v1870
        %v1872 = vcombine.low %v1848, %v1864
        %v1873 = vcombine.high %v1848, %v1864
        %v1874 = vcombine.low %v1855, %v1871
        %v1875 = vcombine.high %v1855, %v1871
        %vm1876 = vcmask 64512
        %v1878 = vsel %vm1876, %v1576, 0
        %v1881 = vsel %vm1876, %v1724, 0
        %1883 = vmatprep.subr.mxu0 0.0
        %v1884 = vand.u32 %v1881, 4294901760
        %1885 = vmatpush1.xpose.msra.mxu0 %v1884
        %1886 = vmatprep.subr.mxu0 0.0
        %1887 = vmatpush1.xpose.msra.mxu0 0.0
        %1888 = vmatprep.subr.mxu0 0.0
        %1889 = vmatpush1.xpose.msra.mxu0 0.0
        %1890 = vmatprep.subr.mxu0 0.0
        %1891 = vmatpush1.xpose.msra.mxu0 0.0
        %1892 = vmatprep.subr.mxu0 0.0
        %1893 = vmatpush1.xpose.msra.mxu0 0.0
        %1894 = vmatprep.subr.mxu0 0.0
        %1895 = vmatpush1.xpose.msra.mxu0 0.0
        %1896 = vmatprep.subr.mxu0 0.0
        %1897 = vmatpush1.xpose.msra.mxu0 0.0
        %1898 = vmatprep.subr.mxu0 0.0
        %1899 = vmatpush1.xpose.msra.mxu0 0.0
        %1900 = vmatprep.subr.mxu0 0.0
        %1901 = vmatpush1.xpose.msra.mxu0 0.0
        %1902 = vmatprep.subr.mxu0 0.0
        %1903 = vmatpush1.xpose.msra.mxu0 0.0
        %1904 = vmatprep.subr.mxu0 0.0
        %1905 = vmatpush1.xpose.msra.mxu0 0.0
        %1906 = vmatprep.subr.mxu0 0.0
        %1907 = vmatpush1.xpose.msra.mxu0 0.0
        %1908 = vmatprep.subr.mxu0 0.0
        %1909 = vmatpush1.xpose.msra.mxu0 0.0
        %1910 = vmatprep.subr.mxu0 0.0
        %1911 = vmatpush1.xpose.msra.mxu0 0.0
        %1912 = vmatprep.subr.mxu0 0.0
        %1913 = vmatpush1.xpose.msra.mxu0 0.0
        %1914 = vmatprep.subr.mxu0 0.0
        %1915 = vmatpush1.xpose.msra.mxu0 0.0
        %1916 = vmatprep.subr.mxu0 0.0
        %1917 = vmatpush1.xpose.msra.mxu0 0.0
        %1918 = vmatprep.subr.mxu0 0.0
        %1919 = vmatpush1.xpose.msra.mxu0 0.0
        %1920 = vmatprep.subr.mxu0 0.0
        %1921 = vmatpush1.xpose.msra.mxu0 0.0
        %1922 = vmatprep.subr.mxu0 0.0
        %1923 = vmatpush1.xpose.msra.mxu0 0.0
        %1924 = vmatprep.subr.mxu0 0.0
        %1925 = vmatpush1.xpose.msra.mxu0 0.0
        %1926 = vmatprep.subr.mxu0 0.0
        %1927 = vmatpush1.xpose.msra.mxu0 0.0
        %1928 = vmatprep.subr.mxu0 0.0
        %1929 = vmatpush1.xpose.msra.mxu0 0.0
        %1930 = vmatprep.subr.mxu0 0.0
        %1931 = vmatpush1.xpose.msra.mxu0 0.0
        %1932 = vmatprep.subr.mxu0 0.0
        %1933 = vmatpush1.xpose.msra.mxu0 0.0
        %1934 = vmatprep.subr.mxu0 0.0
        %1935 = vmatpush1.xpose.msra.mxu0 0.0
        %1936 = vmatprep.subr.mxu0 0.0
        %1937 = vmatpush1.xpose.msra.mxu0 0.0
        %1938 = vmatprep.subr.mxu0 0.0
        %1939 = vmatpush1.xpose.msra.mxu0 0.0
        %1940 = vmatprep.subr.mxu0 0.0
        %1941 = vmatpush1.xpose.msra.mxu0 0.0
        %1942 = vmatprep.subr.mxu0 0.0
        %1943 = vmatpush1.xpose.msra.mxu0 0.0
        %1944 = vmatprep.subr.mxu0 0.0
        %1945 = vmatpush1.xpose.msra.mxu0 0.0
        %1946 = vmatprep.subr.mxu0 0.0
        %1947 = vmatpush1.xpose.msra.mxu0 0.0
        %1948 = vmatprep.mubr.f32.mxu0 0.0
        %v1949 = vand.u32 %v1878, 4294901760
        %v1950 = vsub.f32 %v1878, %v1949
        %v1951 = vand.u32 %v1950, 4294901760
        %v1952 = vsub.f32 %v1950, %v1951
        %v1953 = vand.u32 %v1952, 4294901760
        %1954 = vmatmul.mubr.f32.gmra.mrb[0].mxu0 %v1953
        %v1955 = vpop.f32.mrb[0].mxu0
        %v1956 = vadd.f32 0.0, %v1955
        %v1957 = vpop.f32.mrb[0].mxu0
        %1958 = vdwg.mxu0
        %1959 = vmatprep.subr.mxu0 0.0
        %v1960 = vand.u32 %v1881, 4294901760
        %v1961 = vsub.f32 %v1881, %v1960
        %v1962 = vand.u32 %v1961, 4294901760
        %v1963 = vsub.f32 %v1961, %v1962
        %v1964 = vand.u32 %v1963, 4294901760
        %1965 = vmatpush1.xpose.msra.mxu0 %v1964
        %1966 = vmatprep.subr.mxu0 0.0
        %1967 = vmatpush1.xpose.msra.mxu0 0.0
        %1968 = vmatprep.subr.mxu0 0.0
        %1969 = vmatpush1.xpose.msra.mxu0 0.0
        %1970 = vmatprep.subr.mxu0 0.0
        %1971 = vmatpush1.xpose.msra.mxu0 0.0
        %1972 = vmatprep.subr.mxu0 0.0
        %1973 = vmatpush1.xpose.msra.mxu0 0.0
        %1974 = vmatprep.subr.mxu0 0.0
        %1975 = vmatpush1.xpose.msra.mxu0 0.0
        %1976 = vmatprep.subr.mxu0 0.0
        %1977 = vmatpush1.xpose.msra.mxu0 0.0
        %1978 = vmatprep.subr.mxu0 0.0
        %1979 = vmatpush1.xpose.msra.mxu0 0.0
        %1980 = vmatprep.subr.mxu0 0.0
        %1981 = vmatpush1.xpose.msra.mxu0 0.0
        %1982 = vmatprep.subr.mxu0 0.0
        %1983 = vmatpush1.xpose.msra.mxu0 0.0
        %1984 = vmatprep.subr.mxu0 0.0
        %1985 = vmatpush1.xpose.msra.mxu0 0.0
        %1986 = vmatprep.subr.mxu0 0.0
        %1987 = vmatpush1.xpose.msra.mxu0 0.0
        %1988 = vmatprep.subr.mxu0 0.0
        %1989 = vmatpush1.xpose.msra.mxu0 0.0
        %1990 = vmatprep.subr.mxu0 0.0
        %1991 = vmatpush1.xpose.msra.mxu0 0.0
        %1992 = vmatprep.subr.mxu0 0.0
        %1993 = vmatpush1.xpose.msra.mxu0 0.0
        %1994 = vmatprep.subr.mxu0 0.0
        %1995 = vmatpush1.xpose.msra.mxu0 0.0
        %1996 = vmatprep.subr.mxu0 0.0
        %1997 = vmatpush1.xpose.msra.mxu0 0.0
        %1998 = vmatprep.subr.mxu0 0.0
        %1999 = vmatpush1.xpose.msra.mxu0 0.0
        %2000 = vmatprep.subr.mxu0 0.0
        %2001 = vmatpush1.xpose.msra.mxu0 0.0
        %2002 = vmatprep.subr.mxu0 0.0
        %2003 = vmatpush1.xpose.msra.mxu0 0.0
        %2004 = vmatprep.subr.mxu0 0.0
        %2005 = vmatpush1.xpose.msra.mxu0 0.0
        %2006 = vmatprep.subr.mxu0 0.0
        %2007 = vmatpush1.xpose.msra.mxu0 0.0
        %2008 = vmatprep.subr.mxu0 0.0
        %2009 = vmatpush1.xpose.msra.mxu0 0.0
        %2010 = vmatprep.subr.mxu0 0.0
        %2011 = vmatpush1.xpose.msra.mxu0 0.0
        %2012 = vmatprep.subr.mxu0 0.0
        %2013 = vmatpush1.xpose.msra.mxu0 0.0
        %2014 = vmatprep.subr.mxu0 0.0
        %2015 = vmatpush1.xpose.msra.mxu0 0.0
        %2016 = vmatprep.subr.mxu0 0.0
        %2017 = vmatpush1.xpose.msra.mxu0 0.0
        %2018 = vmatprep.subr.mxu0 0.0
        %2019 = vmatpush1.xpose.msra.mxu0 0.0
        %2020 = vmatprep.subr.mxu0 0.0
        %2021 = vmatpush1.xpose.msra.mxu0 0.0
        %2022 = vmatprep.subr.mxu0 0.0
        %2023 = vmatpush1.xpose.msra.mxu0 0.0
        %2024 = vmatprep.subr.mxu0 0.0
        %2025 = vmatpush1.xpose.msra.mxu0 0.0
        %2026 = vmatprep.subr.mxu0 0.0
        %2027 = vmatpush1.xpose.msra.mxu0 0.0
        %2028 = vmatprep.mubr.f32.mxu0 0.0
        %v2029 = vand.u32 %v1878, 4294901760
        %2030 = vmatmul.mubr.f32.gmra.mrb[0].mxu0 %v2029
        %v2031 = vpop.f32.mrb[0].mxu0
        %v2032 = vadd.f32 %v1956, %v2031
        %v2033 = vpop.f32.mrb[0].mxu0
        %2034 = vdwg.mxu0
        %2035 = vmatprep.subr.mxu0 0.0
        %v2036 = vand.u32 %v1881, 4294901760
        %v2037 = vsub.f32 %v1881, %v2036
        %2038 = vmatpush1.xpose.msra.mxu0 %v2037
        %2039 = vmatprep.subr.mxu0 0.0
        %2040 = vmatpush1.xpose.msra.mxu0 0.0
        %2041 = vmatprep.subr.mxu0 0.0
        %2042 = vmatpush1.xpose.msra.mxu0 0.0
        %2043 = vmatprep.subr.mxu0 0.0
        %2044 = vmatpush1.xpose.msra.mxu0 0.0
        %2045 = vmatprep.subr.mxu0 0.0
        %2046 = vmatpush1.xpose.msra.mxu0 0.0
        %2047 = vmatprep.subr.mxu0 0.0
        %2048 = vmatpush1.xpose.msra.mxu0 0.0
        %2049 = vmatprep.subr.mxu0 0.0
        %2050 = vmatpush1.xpose.msra.mxu0 0.0
        %2051 = vmatprep.subr.mxu0 0.0
        %2052 = vmatpush1.xpose.msra.mxu0 0.0
        %2053 = vmatprep.subr.mxu0 0.0
        %2054 = vmatpush1.xpose.msra.mxu0 0.0
        %2055 = vmatprep.subr.mxu0 0.0
        %2056 = vmatpush1.xpose.msra.mxu0 0.0
        %2057 = vmatprep.subr.mxu0 0.0
        %2058 = vmatpush1.xpose.msra.mxu0 0.0
        %2059 = vmatprep.subr.mxu0 0.0
        %2060 = vmatpush1.xpose.msra.mxu0 0.0
        %2061 = vmatprep.subr.mxu0 0.0
        %2062 = vmatpush1.xpose.msra.mxu0 0.0
        %2063 = vmatprep.subr.mxu0 0.0
        %2064 = vmatpush1.xpose.msra.mxu0 0.0
        %2065 = vmatprep.subr.mxu0 0.0
        %2066 = vmatpush1.xpose.msra.mxu0 0.0
        %2067 = vmatprep.subr.mxu0 0.0
        %2068 = vmatpush1.xpose.msra.mxu0 0.0
        %2069 = vmatprep.subr.mxu0 0.0
        %2070 = vmatpush1.xpose.msra.mxu0 0.0
        %2071 = vmatprep.subr.mxu0 0.0
        %2072 = vmatpush1.xpose.msra.mxu0 0.0
        %2073 = vmatprep.subr.mxu0 0.0
        %2074 = vmatpush1.xpose.msra.mxu0 0.0
        %2075 = vmatprep.subr.mxu0 0.0
        %2076 = vmatpush1.xpose.msra.mxu0 0.0
        %2077 = vmatprep.subr.mxu0 0.0
        %2078 = vmatpush1.xpose.msra.mxu0 0.0
        %2079 = vmatprep.subr.mxu0 0.0
        %2080 = vmatpush1.xpose.msra.mxu0 0.0
        %2081 = vmatprep.subr.mxu0 0.0
        %2082 = vmatpush1.xpose.msra.mxu0 0.0
        %2083 = vmatprep.subr.mxu0 0.0
        %2084 = vmatpush1.xpose.msra.mxu0 0.0
        %2085 = vmatprep.subr.mxu0 0.0
        %2086 = vmatpush1.xpose.msra.mxu0 0.0
        %2087 = vmatprep.subr.mxu0 0.0
        %2088 = vmatpush1.xpose.msra.mxu0 0.0
        %2089 = vmatprep.subr.mxu0 0.0
        %2090 = vmatpush1.xpose.msra.mxu0 0.0
        %2091 = vmatprep.subr.mxu0 0.0
        %2092 = vmatpush1.xpose.msra.mxu0 0.0
        %2093 = vmatprep.subr.mxu0 0.0
        %2094 = vmatpush1.xpose.msra.mxu0 0.0
        %2095 = vmatprep.subr.mxu0 0.0
        %2096 = vmatpush1.xpose.msra.mxu0 0.0
        %2097 = vmatprep.subr.mxu0 0.0
        %2098 = vmatpush1.xpose.msra.mxu0 0.0
        %2099 = vmatprep.subr.mxu0 0.0
        %2100 = vmatpush1.xpose.msra.mxu0 0.0
        %2101 = vmatprep.mubr.f32.mxu0 0.0
        %v2102 = vand.u32 %v1878, 4294901760
        %v2103 = vsub.f32 %v1878, %v2102
        %2104 = vmatmul.mubr.f32.gmra.mrb[0].mxu0 %v2103
        %v2105 = vpop.f32.mrb[0].mxu0
        %v2106 = vadd.f32 %v2032, %v2105
        %v2107 = vpop.f32.mrb[0].mxu0
        %2108 = vdwg.mxu0
        %2109 = vmatprep.subr.mxu0 0.0
        %v2110 = vand.u32 %v1881, 4294901760
        %2111 = vmatpush1.xpose.msra.mxu0 %v2110
        %2112 = vmatprep.subr.mxu0 0.0
        %2113 = vmatpush1.xpose.msra.mxu0 0.0
        %2114 = vmatprep.subr.mxu0 0.0
        %2115 = vmatpush1.xpose.msra.mxu0 0.0
        %2116 = vmatprep.subr.mxu0 0.0
        %2117 = vmatpush1.xpose.msra.mxu0 0.0
        %2118 = vmatprep.subr.mxu0 0.0
        %2119 = vmatpush1.xpose.msra.mxu0 0.0
        %2120 = vmatprep.subr.mxu0 0.0
        %2121 = vmatpush1.xpose.msra.mxu0 0.0
        %2122 = vmatprep.subr.mxu0 0.0
        %2123 = vmatpush1.xpose.msra.mxu0 0.0
        %2124 = vmatprep.subr.mxu0 0.0
        %2125 = vmatpush1.xpose.msra.mxu0 0.0
        %2126 = vmatprep.subr.mxu0 0.0
        %2127 = vmatpush1.xpose.msra.mxu0 0.0
        %2128 = vmatprep.subr.mxu0 0.0
        %2129 = vmatpush1.xpose.msra.mxu0 0.0
        %2130 = vmatprep.subr.mxu0 0.0
        %2131 = vmatpush1.xpose.msra.mxu0 0.0
        %2132 = vmatprep.subr.mxu0 0.0
        %2133 = vmatpush1.xpose.msra.mxu0 0.0
        %2134 = vmatprep.subr.mxu0 0.0
        %2135 = vmatpush1.xpose.msra.mxu0 0.0
        %2136 = vmatprep.subr.mxu0 0.0
        %2137 = vmatpush1.xpose.msra.mxu0 0.0
        %2138 = vmatprep.subr.mxu0 0.0
        %2139 = vmatpush1.xpose.msra.mxu0 0.0
        %2140 = vmatprep.subr.mxu0 0.0
        %2141 = vmatpush1.xpose.msra.mxu0 0.0
        %2142 = vmatprep.subr.mxu0 0.0
        %2143 = vmatpush1.xpose.msra.mxu0 0.0
        %2144 = vmatprep.subr.mxu0 0.0
        %2145 = vmatpush1.xpose.msra.mxu0 0.0
        %2146 = vmatprep.subr.mxu0 0.0
        %2147 = vmatpush1.xpose.msra.mxu0 0.0
        %2148 = vmatprep.subr.mxu0 0.0
        %2149 = vmatpush1.xpose.msra.mxu0 0.0
        %2150 = vmatprep.subr.mxu0 0.0
        %2151 = vmatpush1.xpose.msra.mxu0 0.0
        %2152 = vmatprep.subr.mxu0 0.0
        %2153 = vmatpush1.xpose.msra.mxu0 0.0
        %2154 = vmatprep.subr.mxu0 0.0
        %2155 = vmatpush1.xpose.msra.mxu0 0.0
        %2156 = vmatprep.subr.mxu0 0.0
        %2157 = vmatpush1.xpose.msra.mxu0 0.0
        %2158 = vmatprep.subr.mxu0 0.0
        %2159 = vmatpush1.xpose.msra.mxu0 0.0
        %2160 = vmatprep.subr.mxu0 0.0
        %2161 = vmatpush1.xpose.msra.mxu0 0.0
        %2162 = vmatprep.subr.mxu0 0.0
        %2163 = vmatpush1.xpose.msra.mxu0 0.0
        %2164 = vmatprep.subr.mxu0 0.0
        %2165 = vmatpush1.xpose.msra.mxu0 0.0
        %2166 = vmatprep.subr.mxu0 0.0
        %2167 = vmatpush1.xpose.msra.mxu0 0.0
        %2168 = vmatprep.subr.mxu0 0.0
        %2169 = vmatpush1.xpose.msra.mxu0 0.0
        %2170 = vmatprep.subr.mxu0 0.0
        %2171 = vmatpush1.xpose.msra.mxu0 0.0
        %2172 = vmatprep.subr.mxu0 0.0
        %2173 = vmatpush1.xpose.msra.mxu0 0.0
        %2174 = vmatprep.mubr.f32.mxu0 0.0
        %v2175 = vand.u32 %v1878, 4294901760
        %v2176 = vsub.f32 %v1878, %v2175
        %v2177 = vand.u32 %v2176, 4294901760
        %2178 = vmatmul.mubr.f32.gmra.mrb[0].mxu0 %v2177
        %v2179 = vpop.f32.mrb[0].mxu0
        %v2180 = vadd.f32 %v2106, %v2179
        %v2181 = vpop.f32.mrb[0].mxu0
        %2182 = vdwg.mxu0
        %2183 = vmatprep.subr.mxu0 0.0
        %v2184 = vand.u32 %v1881, 4294901760
        %v2185 = vsub.f32 %v1881, %v2184
        %v2186 = vand.u32 %v2185, 4294901760
        %2187 = vmatpush1.xpose.msra.mxu0 %v2186
        %2188 = vmatprep.subr.mxu0 0.0
        %2189 = vmatpush1.xpose.msra.mxu0 0.0
        %2190 = vmatprep.subr.mxu0 0.0
        %2191 = vmatpush1.xpose.msra.mxu0 0.0
        %2192 = vmatprep.subr.mxu0 0.0
        %2193 = vmatpush1.xpose.msra.mxu0 0.0
        %2194 = vmatprep.subr.mxu0 0.0
        %2195 = vmatpush1.xpose.msra.mxu0 0.0
        %2196 = vmatprep.subr.mxu0 0.0
        %2197 = vmatpush1.xpose.msra.mxu0 0.0
        %2198 = vmatprep.subr.mxu0 0.0
        %2199 = vmatpush1.xpose.msra.mxu0 0.0
        %2200 = vmatprep.subr.mxu0 0.0
        %2201 = vmatpush1.xpose.msra.mxu0 0.0
        %2202 = vmatprep.subr.mxu0 0.0
        %2203 = vmatpush1.xpose.msra.mxu0 0.0
        %2204 = vmatprep.subr.mxu0 0.0
        %2205 = vmatpush1.xpose.msra.mxu0 0.0
        %2206 = vmatprep.subr.mxu0 0.0
        %2207 = vmatpush1.xpose.msra.mxu0 0.0
        %2208 = vmatprep.subr.mxu0 0.0
        %2209 = vmatpush1.xpose.msra.mxu0 0.0
        %2210 = vmatprep.subr.mxu0 0.0
        %2211 = vmatpush1.xpose.msra.mxu0 0.0
        %2212 = vmatprep.subr.mxu0 0.0
        %2213 = vmatpush1.xpose.msra.mxu0 0.0
        %2214 = vmatprep.subr.mxu0 0.0
        %2215 = vmatpush1.xpose.msra.mxu0 0.0
        %2216 = vmatprep.subr.mxu0 0.0
        %2217 = vmatpush1.xpose.msra.mxu0 0.0
        %2218 = vmatprep.subr.mxu0 0.0
        %2219 = vmatpush1.xpose.msra.mxu0 0.0
        %2220 = vmatprep.subr.mxu0 0.0
        %2221 = vmatpush1.xpose.msra.mxu0 0.0
        %2222 = vmatprep.subr.mxu0 0.0
        %2223 = vmatpush1.xpose.msra.mxu0 0.0
        %2224 = vmatprep.subr.mxu0 0.0
        %2225 = vmatpush1.xpose.msra.mxu0 0.0
        %2226 = vmatprep.subr.mxu0 0.0
        %2227 = vmatpush1.xpose.msra.mxu0 0.0
        %2228 = vmatprep.subr.mxu0 0.0
        %2229 = vmatpush1.xpose.msra.mxu0 0.0
        %2230 = vmatprep.subr.mxu0 0.0
        %2231 = vmatpush1.xpose.msra.mxu0 0.0
        %2232 = vmatprep.subr.mxu0 0.0
        %2233 = vmatpush1.xpose.msra.mxu0 0.0
        %2234 = vmatprep.subr.mxu0 0.0
        %2235 = vmatpush1.xpose.msra.mxu0 0.0
        %2236 = vmatprep.subr.mxu0 0.0
        %2237 = vmatpush1.xpose.msra.mxu0 0.0
        %2238 = vmatprep.subr.mxu0 0.0
        %2239 = vmatpush1.xpose.msra.mxu0 0.0
        %2240 = vmatprep.subr.mxu0 0.0
        %2241 = vmatpush1.xpose.msra.mxu0 0.0
        %2242 = vmatprep.subr.mxu0 0.0
        %2243 = vmatpush1.xpose.msra.mxu0 0.0
        %2244 = vmatprep.subr.mxu0 0.0
        %2245 = vmatpush1.xpose.msra.mxu0 0.0
        %2246 = vmatprep.subr.mxu0 0.0
        %2247 = vmatpush1.xpose.msra.mxu0 0.0
        %2248 = vmatprep.subr.mxu0 0.0
        %2249 = vmatpush1.xpose.msra.mxu0 0.0
        %2250 = vmatprep.mubr.f32.mxu0 0.0
        %v2251 = vand.u32 %v1878, 4294901760
        %2252 = vmatmul.mubr.f32.gmra.mrb[0].mxu0 %v2251
        %v2253 = vpop.f32.mrb[0].mxu0
        %v2254 = vadd.f32 %v2180, %v2253
        %v2255 = vpop.f32.mrb[0].mxu0
        %2256 = vdwg.mxu0
        %2257 = vmatprep.subr.mxu0 0.0
        %v2258 = vand.u32 %v1881, 4294901760
        %2259 = vmatpush1.xpose.msra.mxu0 %v2258
        %2260 = vmatprep.subr.mxu0 0.0
        %2261 = vmatpush1.xpose.msra.mxu0 0.0
        %2262 = vmatprep.subr.mxu0 0.0
        %2263 = vmatpush1.xpose.msra.mxu0 0.0
        %2264 = vmatprep.subr.mxu0 0.0
        %2265 = vmatpush1.xpose.msra.mxu0 0.0
        %2266 = vmatprep.subr.mxu0 0.0
        %2267 = vmatpush1.xpose.msra.mxu0 0.0
        %2268 = vmatprep.subr.mxu0 0.0
        %2269 = vmatpush1.xpose.msra.mxu0 0.0
        %2270 = vmatprep.subr.mxu0 0.0
        %2271 = vmatpush1.xpose.msra.mxu0 0.0
        %2272 = vmatprep.subr.mxu0 0.0
        %2273 = vmatpush1.xpose.msra.mxu0 0.0
        %2274 = vmatprep.subr.mxu0 0.0
        %2275 = vmatpush1.xpose.msra.mxu0 0.0
        %2276 = vmatprep.subr.mxu0 0.0
        %2277 = vmatpush1.xpose.msra.mxu0 0.0
        %2278 = vmatprep.subr.mxu0 0.0
        %2279 = vmatpush1.xpose.msra.mxu0 0.0
        %2280 = vmatprep.subr.mxu0 0.0
        %2281 = vmatpush1.xpose.msra.mxu0 0.0
        %2282 = vmatprep.subr.mxu0 0.0
        %2283 = vmatpush1.xpose.msra.mxu0 0.0
        %2284 = vmatprep.subr.mxu0 0.0
        %2285 = vmatpush1.xpose.msra.mxu0 0.0
        %2286 = vmatprep.subr.mxu0 0.0
        %2287 = vmatpush1.xpose.msra.mxu0 0.0
        %2288 = vmatprep.subr.mxu0 0.0
        %2289 = vmatpush1.xpose.msra.mxu0 0.0
        %2290 = vmatprep.subr.mxu0 0.0
        %2291 = vmatpush1.xpose.msra.mxu0 0.0
        %2292 = vmatprep.subr.mxu0 0.0
        %2293 = vmatpush1.xpose.msra.mxu0 0.0
        %2294 = vmatprep.subr.mxu0 0.0
        %2295 = vmatpush1.xpose.msra.mxu0 0.0
        %2296 = vmatprep.subr.mxu0 0.0
        %2297 = vmatpush1.xpose.msra.mxu0 0.0
        %2298 = vmatprep.subr.mxu0 0.0
        %2299 = vmatpush1.xpose.msra.mxu0 0.0
        %2300 = vmatprep.subr.mxu0 0.0
        %2301 = vmatpush1.xpose.msra.mxu0 0.0
        %2302 = vmatprep.subr.mxu0 0.0
        %2303 = vmatpush1.xpose.msra.mxu0 0.0
        %2304 = vmatprep.subr.mxu0 0.0
        %2305 = vmatpush1.xpose.msra.mxu0 0.0
        %2306 = vmatprep.subr.mxu0 0.0
        %2307 = vmatpush1.xpose.msra.mxu0 0.0
        %2308 = vmatprep.subr.mxu0 0.0
        %2309 = vmatpush1.xpose.msra.mxu0 0.0
        %2310 = vmatprep.subr.mxu0 0.0
        %2311 = vmatpush1.xpose.msra.mxu0 0.0
        %2312 = vmatprep.subr.mxu0 0.0
        %2313 = vmatpush1.xpose.msra.mxu0 0.0
        %2314 = vmatprep.subr.mxu0 0.0
        %2315 = vmatpush1.xpose.msra.mxu0 0.0
        %2316 = vmatprep.subr.mxu0 0.0
        %2317 = vmatpush1.xpose.msra.mxu0 0.0
        %2318 = vmatprep.subr.mxu0 0.0
        %2319 = vmatpush1.xpose.msra.mxu0 0.0
        %2320 = vmatprep.subr.mxu0 0.0
        %2321 = vmatpush1.xpose.msra.mxu0 0.0
        %2322 = vmatprep.mubr.f32.mxu0 0.0
        %v2323 = vand.u32 %v1878, 4294901760
        %2324 = vmatmul.mubr.f32.gmra.mrb[0].mxu0 %v2323
        %v2325 = vpop.f32.mrb[0].mxu0
        %v2326 = vadd.f32 %v2254, %v2325
        %v2327 = vpop.f32.mrb[0].mxu0
        %2328 = vdwg.mxu0
        %v2330 = vsel %vm1876, %v1577, 0
        %v2333 = vsel %vm1876, %v1725, 0
        %2335 = vmatprep.subr.mxu0 0.0
        %v2336 = vand.u32 %v2333, 4294901760
        %2337 = vmatpush1.xpose.msra.mxu0 %v2336
        %2338 = vmatprep.subr.mxu0 0.0
        %2339 = vmatpush1.xpose.msra.mxu0 0.0
        %2340 = vmatprep.subr.mxu0 0.0
        %2341 = vmatpush1.xpose.msra.mxu0 0.0
        %2342 = vmatprep.subr.mxu0 0.0
        %2343 = vmatpush1.xpose.msra.mxu0 0.0
        %2344 = vmatprep.subr.mxu0 0.0
        %2345 = vmatpush1.xpose.msra.mxu0 0.0
        %2346 = vmatprep.subr.mxu0 0.0
        %2347 = vmatpush1.xpose.msra.mxu0 0.0
        %2348 = vmatprep.subr.mxu0 0.0
        %2349 = vmatpush1.xpose.msra.mxu0 0.0
        %2350 = vmatprep.subr.mxu0 0.0
        %2351 = vmatpush1.xpose.msra.mxu0 0.0
        %2352 = vmatprep.subr.mxu0 0.0
        %2353 = vmatpush1.xpose.msra.mxu0 0.0
        %2354 = vmatprep.subr.mxu0 0.0
        %2355 = vmatpush1.xpose.msra.mxu0 0.0
        %2356 = vmatprep.subr.mxu0 0.0
        %2357 = vmatpush1.xpose.msra.mxu0 0.0
        %2358 = vmatprep.subr.mxu0 0.0
        %2359 = vmatpush1.xpose.msra.mxu0 0.0
        %2360 = vmatprep.subr.mxu0 0.0
        %2361 = vmatpush1.xpose.msra.mxu0 0.0
        %2362 = vmatprep.subr.mxu0 0.0
        %2363 = vmatpush1.xpose.msra.mxu0 0.0
        %2364 = vmatprep.subr.mxu0 0.0
        %2365 = vmatpush1.xpose.msra.mxu0 0.0
        %2366 = vmatprep.subr.mxu0 0.0
        %2367 = vmatpush1.xpose.msra.mxu0 0.0
        %2368 = vmatprep.subr.mxu0 0.0
        %2369 = vmatpush1.xpose.msra.mxu0 0.0
        %2370 = vmatprep.subr.mxu0 0.0
        %2371 = vmatpush1.xpose.msra.mxu0 0.0
        %2372 = vmatprep.subr.mxu0 0.0
        %2373 = vmatpush1.xpose.msra.mxu0 0.0
        %2374 = vmatprep.subr.mxu0 0.0
        %2375 = vmatpush1.xpose.msra.mxu0 0.0
        %2376 = vmatprep.subr.mxu0 0.0
        %2377 = vmatpush1.xpose.msra.mxu0 0.0
        %2378 = vmatprep.subr.mxu0 0.0
        %2379 = vmatpush1.xpose.msra.mxu0 0.0
        %2380 = vmatprep.subr.mxu0 0.0
        %2381 = vmatpush1.xpose.msra.mxu0 0.0
        %2382 = vmatprep.subr.mxu0 0.0
        %2383 = vmatpush1.xpose.msra.mxu0 0.0
        %2384 = vmatprep.subr.mxu0 0.0
        %2385 = vmatpush1.xpose.msra.mxu0 0.0
        %2386 = vmatprep.subr.mxu0 0.0
        %2387 = vmatpush1.xpose.msra.mxu0 0.0
        %2388 = vmatprep.subr.mxu0 0.0
        %2389 = vmatpush1.xpose.msra.mxu0 0.0
        %2390 = vmatprep.subr.mxu0 0.0
        %2391 = vmatpush1.xpose.msra.mxu0 0.0
        %2392 = vmatprep.subr.mxu0 0.0
        %2393 = vmatpush1.xpose.msra.mxu0 0.0
        %2394 = vmatprep.subr.mxu0 0.0
        %2395 = vmatpush1.xpose.msra.mxu0 0.0
        %2396 = vmatprep.subr.mxu0 0.0
        %2397 = vmatpush1.xpose.msra.mxu0 0.0
        %2398 = vmatprep.subr.mxu0 0.0
        %2399 = vmatpush1.xpose.msra.mxu0 0.0
        %2400 = vmatprep.mubr.f32.mxu0 0.0
        %v2401 = vand.u32 %v2330, 4294901760
        %v2402 = vsub.f32 %v2330, %v2401
        %v2403 = vand.u32 %v2402, 4294901760
        %v2404 = vsub.f32 %v2402, %v2403
        %v2405 = vand.u32 %v2404, 4294901760
        %2406 = vmatmul.mubr.f32.gmra.mrb[0].mxu0 %v2405
        %v2407 = vpop.f32.mrb[0].mxu0
        %v2408 = vadd.f32 0.0, %v2407
        %v2409 = vpop.f32.mrb[0].mxu0
        %2410 = vdwg.mxu0
        %2411 = vmatprep.subr.mxu0 0.0
        %v2412 = vand.u32 %v2333, 4294901760
        %v2413 = vsub.f32 %v2333, %v2412
        %v2414 = vand.u32 %v2413, 4294901760
        %v2415 = vsub.f32 %v2413, %v2414
        %v2416 = vand.u32 %v2415, 4294901760
        %2417 = vmatpush1.xpose.msra.mxu0 %v2416
        %2418 = vmatprep.subr.mxu0 0.0
        %2419 = vmatpush1.xpose.msra.mxu0 0.0
        %2420 = vmatprep.subr.mxu0 0.0
        %2421 = vmatpush1.xpose.msra.mxu0 0.0
        %2422 = vmatprep.subr.mxu0 0.0
        %2423 = vmatpush1.xpose.msra.mxu0 0.0
        %2424 = vmatprep.subr.mxu0 0.0
        %2425 = vmatpush1.xpose.msra.mxu0 0.0
        %2426 = vmatprep.subr.mxu0 0.0
        %2427 = vmatpush1.xpose.msra.mxu0 0.0
        %2428 = vmatprep.subr.mxu0 0.0
        %2429 = vmatpush1.xpose.msra.mxu0 0.0
        %2430 = vmatprep.subr.mxu0 0.0
        %2431 = vmatpush1.xpose.msra.mxu0 0.0
        %2432 = vmatprep.subr.mxu0 0.0
        %2433 = vmatpush1.xpose.msra.mxu0 0.0
        %2434 = vmatprep.subr.mxu0 0.0
        %2435 = vmatpush1.xpose.msra.mxu0 0.0
        %2436 = vmatprep.subr.mxu0 0.0
        %2437 = vmatpush1.xpose.msra.mxu0 0.0
        %2438 = vmatprep.subr.mxu0 0.0
        %2439 = vmatpush1.xpose.msra.mxu0 0.0
        %2440 = vmatprep.subr.mxu0 0.0
        %2441 = vmatpush1.xpose.msra.mxu0 0.0
        %2442 = vmatprep.subr.mxu0 0.0
        %2443 = vmatpush1.xpose.msra.mxu0 0.0
        %2444 = vmatprep.subr.mxu0 0.0
        %2445 = vmatpush1.xpose.msra.mxu0 0.0
        %2446 = vmatprep.subr.mxu0 0.0
        %2447 = vmatpush1.xpose.msra.mxu0 0.0
        %2448 = vmatprep.subr.mxu0 0.0
        %2449 = vmatpush1.xpose.msra.mxu0 0.0
        %2450 = vmatprep.subr.mxu0 0.0
        %2451 = vmatpush1.xpose.msra.mxu0 0.0
        %2452 = vmatprep.subr.mxu0 0.0
        %2453 = vmatpush1.xpose.msra.mxu0 0.0
        %2454 = vmatprep.subr.mxu0 0.0
        %2455 = vmatpush1.xpose.msra.mxu0 0.0
        %2456 = vmatprep.subr.mxu0 0.0
        %2457 = vmatpush1.xpose.msra.mxu0 0.0
        %2458 = vmatprep.subr.mxu0 0.0
        %2459 = vmatpush1.xpose.msra.mxu0 0.0
        %2460 = vmatprep.subr.mxu0 0.0
        %2461 = vmatpush1.xpose.msra.mxu0 0.0
        %2462 = vmatprep.subr.mxu0 0.0
        %2463 = vmatpush1.xpose.msra.mxu0 0.0
        %2464 = vmatprep.subr.mxu0 0.0
        %2465 = vmatpush1.xpose.msra.mxu0 0.0
        %2466 = vmatprep.subr.mxu0 0.0
        %2467 = vmatpush1.xpose.msra.mxu0 0.0
        %2468 = vmatprep.subr.mxu0 0.0
        %2469 = vmatpush1.xpose.msra.mxu0 0.0
        %2470 = vmatprep.subr.mxu0 0.0
        %2471 = vmatpush1.xpose.msra.mxu0 0.0
        %2472 = vmatprep.subr.mxu0 0.0
        %2473 = vmatpush1.xpose.msra.mxu0 0.0
        %2474 = vmatprep.subr.mxu0 0.0
        %2475 = vmatpush1.xpose.msra.mxu0 0.0
        %2476 = vmatprep.subr.mxu0 0.0
        %2477 = vmatpush1.xpose.msra.mxu0 0.0
        %2478 = vmatprep.subr.mxu0 0.0
        %2479 = vmatpush1.xpose.msra.mxu0 0.0
        %2480 = vmatprep.mubr.f32.mxu0 0.0
        %v2481 = vand.u32 %v2330, 4294901760
        %2482 = vmatmul.mubr.f32.gmra.mrb[0].mxu0 %v2481
        %v2483 = vpop.f32.mrb[0].mxu0
        %v2484 = vadd.f32 %v2408, %v2483
        %v2485 = vpop.f32.mrb[0].mxu0
        %2486 = vdwg.mxu0
        %2487 = vmatprep.subr.mxu0 0.0
        %v2488 = vand.u32 %v2333, 4294901760
        %v2489 = vsub.f32 %v2333, %v2488
        %2490 = vmatpush1.xpose.msra.mxu0 %v2489
        %2491 = vmatprep.subr.mxu0 0.0
        %2492 = vmatpush1.xpose.msra.mxu0 0.0
        %2493 = vmatprep.subr.mxu0 0.0
        %2494 = vmatpush1.xpose.msra.mxu0 0.0
        %2495 = vmatprep.subr.mxu0 0.0
        %2496 = vmatpush1.xpose.msra.mxu0 0.0
        %2497 = vmatprep.subr.mxu0 0.0
        %2498 = vmatpush1.xpose.msra.mxu0 0.0
        %2499 = vmatprep.subr.mxu0 0.0
        %2500 = vmatpush1.xpose.msra.mxu0 0.0
        %2501 = vmatprep.subr.mxu0 0.0
        %2502 = vmatpush1.xpose.msra.mxu0 0.0
        %2503 = vmatprep.subr.mxu0 0.0
        %2504 = vmatpush1.xpose.msra.mxu0 0.0
        %2505 = vmatprep.subr.mxu0 0.0
        %2506 = vmatpush1.xpose.msra.mxu0 0.0
        %2507 = vmatprep.subr.mxu0 0.0
        %2508 = vmatpush1.xpose.msra.mxu0 0.0
        %2509 = vmatprep.subr.mxu0 0.0
        %2510 = vmatpush1.xpose.msra.mxu0 0.0
        %2511 = vmatprep.subr.mxu0 0.0
        %2512 = vmatpush1.xpose.msra.mxu0 0.0
        %2513 = vmatprep.subr.mxu0 0.0
        %2514 = vmatpush1.xpose.msra.mxu0 0.0
        %2515 = vmatprep.subr.mxu0 0.0
        %2516 = vmatpush1.xpose.msra.mxu0 0.0
        %2517 = vmatprep.subr.mxu0 0.0
        %2518 = vmatpush1.xpose.msra.mxu0 0.0
        %2519 = vmatprep.subr.mxu0 0.0
        %2520 = vmatpush1.xpose.msra.mxu0 0.0
        %2521 = vmatprep.subr.mxu0 0.0
        %2522 = vmatpush1.xpose.msra.mxu0 0.0
        %2523 = vmatprep.subr.mxu0 0.0
        %2524 = vmatpush1.xpose.msra.mxu0 0.0
        %2525 = vmatprep.subr.mxu0 0.0
        %2526 = vmatpush1.xpose.msra.mxu0 0.0
        %2527 = vmatprep.subr.mxu0 0.0
        %2528 = vmatpush1.xpose.msra.mxu0 0.0
        %2529 = vmatprep.subr.mxu0 0.0
        %2530 = vmatpush1.xpose.msra.mxu0 0.0
        %2531 = vmatprep.subr.mxu0 0.0
        %2532 = vmatpush1.xpose.msra.mxu0 0.0
        %2533 = vmatprep.subr.mxu0 0.0
        %2534 = vmatpush1.xpose.msra.mxu0 0.0
        %2535 = vmatprep.subr.mxu0 0.0
        %2536 = vmatpush1.xpose.msra.mxu0 0.0
        %2537 = vmatprep.subr.mxu0 0.0
        %2538 = vmatpush1.xpose.msra.mxu0 0.0
        %2539 = vmatprep.subr.mxu0 0.0
        %2540 = vmatpush1.xpose.msra.mxu0 0.0
        %2541 = vmatprep.subr.mxu0 0.0
        %2542 = vmatpush1.xpose.msra.mxu0 0.0
        %2543 = vmatprep.subr.mxu0 0.0
        %2544 = vmatpush1.xpose.msra.mxu0 0.0
        %2545 = vmatprep.subr.mxu0 0.0
        %2546 = vmatpush1.xpose.msra.mxu0 0.0
        %2547 = vmatprep.subr.mxu0 0.0
        %2548 = vmatpush1.xpose.msra.mxu0 0.0
        %2549 = vmatprep.subr.mxu0 0.0
        %2550 = vmatpush1.xpose.msra.mxu0 0.0
        %2551 = vmatprep.subr.mxu0 0.0
        %2552 = vmatpush1.xpose.msra.mxu0 0.0
        %2553 = vmatprep.mubr.f32.mxu0 0.0
        %v2554 = vand.u32 %v2330, 4294901760
        %v2555 = vsub.f32 %v2330, %v2554
        %2556 = vmatmul.mubr.f32.gmra.mrb[0].mxu0 %v2555
        %v2557 = vpop.f32.mrb[0].mxu0
        %v2558 = vadd.f32 %v2484, %v2557
        %v2559 = vpop.f32.mrb[0].mxu0
        %2560 = vdwg.mxu0
        %2561 = vmatprep.subr.mxu0 0.0
        %v2562 = vand.u32 %v2333, 4294901760
        %2563 = vmatpush1.xpose.msra.mxu0 %v2562
        %2564 = vmatprep.subr.mxu0 0.0
        %2565 = vmatpush1.xpose.msra.mxu0 0.0
        %2566 = vmatprep.subr.mxu0 0.0
        %2567 = vmatpush1.xpose.msra.mxu0 0.0
        %2568 = vmatprep.subr.mxu0 0.0
        %2569 = vmatpush1.xpose.msra.mxu0 0.0
        %2570 = vmatprep.subr.mxu0 0.0
        %2571 = vmatpush1.xpose.msra.mxu0 0.0
        %2572 = vmatprep.subr.mxu0 0.0
        %2573 = vmatpush1.xpose.msra.mxu0 0.0
        %2574 = vmatprep.subr.mxu0 0.0
        %2575 = vmatpush1.xpose.msra.mxu0 0.0
        %2576 = vmatprep.subr.mxu0 0.0
        %2577 = vmatpush1.xpose.msra.mxu0 0.0
        %2578 = vmatprep.subr.mxu0 0.0
        %2579 = vmatpush1.xpose.msra.mxu0 0.0
        %2580 = vmatprep.subr.mxu0 0.0
        %2581 = vmatpush1.xpose.msra.mxu0 0.0
        %2582 = vmatprep.subr.mxu0 0.0
        %2583 = vmatpush1.xpose.msra.mxu0 0.0
        %2584 = vmatprep.subr.mxu0 0.0
        %2585 = vmatpush1.xpose.msra.mxu0 0.0
        %2586 = vmatprep.subr.mxu0 0.0
        %2587 = vmatpush1.xpose.msra.mxu0 0.0
        %2588 = vmatprep.subr.mxu0 0.0
        %2589 = vmatpush1.xpose.msra.mxu0 0.0
        %2590 = vmatprep.subr.mxu0 0.0
        %2591 = vmatpush1.xpose.msra.mxu0 0.0
        %2592 = vmatprep.subr.mxu0 0.0
        %2593 = vmatpush1.xpose.msra.mxu0 0.0
        %2594 = vmatprep.subr.mxu0 0.0
        %2595 = vmatpush1.xpose.msra.mxu0 0.0
        %2596 = vmatprep.subr.mxu0 0.0
        %2597 = vmatpush1.xpose.msra.mxu0 0.0
        %2598 = vmatprep.subr.mxu0 0.0
        %2599 = vmatpush1.xpose.msra.mxu0 0.0
        %2600 = vmatprep.subr.mxu0 0.0
        %2601 = vmatpush1.xpose.msra.mxu0 0.0
        %2602 = vmatprep.subr.mxu0 0.0
        %2603 = vmatpush1.xpose.msra.mxu0 0.0
        %2604 = vmatprep.subr.mxu0 0.0
        %2605 = vmatpush1.xpose.msra.mxu0 0.0
        %2606 = vmatprep.subr.mxu0 0.0
        %2607 = vmatpush1.xpose.msra.mxu0 0.0
        %2608 = vmatprep.subr.mxu0 0.0
        %2609 = vmatpush1.xpose.msra.mxu0 0.0
        %2610 = vmatprep.subr.mxu0 0.0
        %2611 = vmatpush1.xpose.msra.mxu0 0.0
        %2612 = vmatprep.subr.mxu0 0.0
        %2613 = vmatpush1.xpose.msra.mxu0 0.0
        %2614 = vmatprep.subr.mxu0 0.0
        %2615 = vmatpush1.xpose.msra.mxu0 0.0
        %2616 = vmatprep.subr.mxu0 0.0
        %2617 = vmatpush1.xpose.msra.mxu0 0.0
        %2618 = vmatprep.subr.mxu0 0.0
        %2619 = vmatpush1.xpose.msra.mxu0 0.0
        %2620 = vmatprep.subr.mxu0 0.0
        %2621 = vmatpush1.xpose.msra.mxu0 0.0
        %2622 = vmatprep.subr.mxu0 0.0
        %2623 = vmatpush1.xpose.msra.mxu0 0.0
        %2624 = vmatprep.subr.mxu0 0.0
        %2625 = vmatpush1.xpose.msra.mxu0 0.0
        %2626 = vmatprep.mubr.f32.mxu0 0.0
        %v2627 = vand.u32 %v2330, 4294901760
        %v2628 = vsub.f32 %v2330, %v2627
        %v2629 = vand.u32 %v2628, 4294901760
        %2630 = vmatmul.mubr.f32.gmra.mrb[0].mxu0 %v2629
        %v2631 = vpop.f32.mrb[0].mxu0
        %v2632 = vadd.f32 %v2558, %v2631
        %v2633 = vpop.f32.mrb[0].mxu0
        %2634 = vdwg.mxu0
        %2635 = vmatprep.subr.mxu0 0.0
        %v2636 = vand.u32 %v2333, 4294901760
        %v2637 = vsub.f32 %v2333, %v2636
        %v2638 = vand.u32 %v2637, 4294901760
        %2639 = vmatpush1.xpose.msra.mxu0 %v2638
        %2640 = vmatprep.subr.mxu0 0.0
        %2641 = vmatpush1.xpose.msra.mxu0 0.0
        %2642 = vmatprep.subr.mxu0 0.0
        %2643 = vmatpush1.xpose.msra.mxu0 0.0
        %2644 = vmatprep.subr.mxu0 0.0
        %2645 = vmatpush1.xpose.msra.mxu0 0.0
        %2646 = vmatprep.subr.mxu0 0.0
        %2647 = vmatpush1.xpose.msra.mxu0 0.0
        %2648 = vmatprep.subr.mxu0 0.0
        %2649 = vmatpush1.xpose.msra.mxu0 0.0
        %2650 = vmatprep.subr.mxu0 0.0
        %2651 = vmatpush1.xpose.msra.mxu0 0.0
        %2652 = vmatprep.subr.mxu0 0.0
        %2653 = vmatpush1.xpose.msra.mxu0 0.0
        %2654 = vmatprep.subr.mxu0 0.0
        %2655 = vmatpush1.xpose.msra.mxu0 0.0
        %2656 = vmatprep.subr.mxu0 0.0
        %2657 = vmatpush1.xpose.msra.mxu0 0.0
        %2658 = vmatprep.subr.mxu0 0.0
        %2659 = vmatpush1.xpose.msra.mxu0 0.0
        %2660 = vmatprep.subr.mxu0 0.0
        %2661 = vmatpush1.xpose.msra.mxu0 0.0
        %2662 = vmatprep.subr.mxu0 0.0
        %2663 = vmatpush1.xpose.msra.mxu0 0.0
        %2664 = vmatprep.subr.mxu0 0.0
        %2665 = vmatpush1.xpose.msra.mxu0 0.0
        %2666 = vmatprep.subr.mxu0 0.0
        %2667 = vmatpush1.xpose.msra.mxu0 0.0
        %2668 = vmatprep.subr.mxu0 0.0
        %2669 = vmatpush1.xpose.msra.mxu0 0.0
        %2670 = vmatprep.subr.mxu0 0.0
        %2671 = vmatpush1.xpose.msra.mxu0 0.0
        %2672 = vmatprep.subr.mxu0 0.0
        %2673 = vmatpush1.xpose.msra.mxu0 0.0
        %2674 = vmatprep.subr.mxu0 0.0
        %2675 = vmatpush1.xpose.msra.mxu0 0.0
        %2676 = vmatprep.subr.mxu0 0.0
        %2677 = vmatpush1.xpose.msra.mxu0 0.0
        %2678 = vmatprep.subr.mxu0 0.0
        %2679 = vmatpush1.xpose.msra.mxu0 0.0
        %2680 = vmatprep.subr.mxu0 0.0
        %2681 = vmatpush1.xpose.msra.mxu0 0.0
        %2682 = vmatprep.subr.mxu0 0.0
        %2683 = vmatpush1.xpose.msra.mxu0 0.0
        %2684 = vmatprep.subr.mxu0 0.0
        %2685 = vmatpush1.xpose.msra.mxu0 0.0
        %2686 = vmatprep.subr.mxu0 0.0
        %2687 = vmatpush1.xpose.msra.mxu0 0.0
        %2688 = vmatprep.subr.mxu0 0.0
        %2689 = vmatpush1.xpose.msra.mxu0 0.0
        %2690 = vmatprep.subr.mxu0 0.0
        %2691 = vmatpush1.xpose.msra.mxu0 0.0
        %2692 = vmatprep.subr.mxu0 0.0
        %2693 = vmatpush1.xpose.msra.mxu0 0.0
        %2694 = vmatprep.subr.mxu0 0.0
        %2695 = vmatpush1.xpose.msra.mxu0 0.0
        %2696 = vmatprep.subr.mxu0 0.0
        %2697 = vmatpush1.xpose.msra.mxu0 0.0
        %2698 = vmatprep.subr.mxu0 0.0
        %2699 = vmatpush1.xpose.msra.mxu0 0.0
        %2700 = vmatprep.subr.mxu0 0.0
        %2701 = vmatpush1.xpose.msra.mxu0 0.0
        %2702 = vmatprep.mubr.f32.mxu0 0.0
        %v2703 = vand.u32 %v2330, 4294901760
        %2704 = vmatmul.mubr.f32.gmra.mrb[0].mxu0 %v2703
        %v2705 = vpop.f32.mrb[0].mxu0
        %v2706 = vadd.f32 %v2632, %v2705
        %v2707 = vpop.f32.mrb[0].mxu0
        %2708 = vdwg.mxu0
        %2709 = vmatprep.subr.mxu0 0.0
        %v2710 = vand.u32 %v2333, 4294901760
        %2711 = vmatpush1.xpose.msra.mxu0 %v2710
        %2712 = vmatprep.subr.mxu0 0.0
        %2713 = vmatpush1.xpose.msra.mxu0 0.0
        %2714 = vmatprep.subr.mxu0 0.0
        %2715 = vmatpush1.xpose.msra.mxu0 0.0
        %2716 = vmatprep.subr.mxu0 0.0
        %2717 = vmatpush1.xpose.msra.mxu0 0.0
        %2718 = vmatprep.subr.mxu0 0.0
        %2719 = vmatpush1.xpose.msra.mxu0 0.0
        %2720 = vmatprep.subr.mxu0 0.0
        %2721 = vmatpush1.xpose.msra.mxu0 0.0
        %2722 = vmatprep.subr.mxu0 0.0
        %2723 = vmatpush1.xpose.msra.mxu0 0.0
        %2724 = vmatprep.subr.mxu0 0.0
        %2725 = vmatpush1.xpose.msra.mxu0 0.0
        %2726 = vmatprep.subr.mxu0 0.0
        %2727 = vmatpush1.xpose.msra.mxu0 0.0
        %2728 = vmatprep.subr.mxu0 0.0
        %2729 = vmatpush1.xpose.msra.mxu0 0.0
        %2730 = vmatprep.subr.mxu0 0.0
        %2731 = vmatpush1.xpose.msra.mxu0 0.0
        %2732 = vmatprep.subr.mxu0 0.0
        %2733 = vmatpush1.xpose.msra.mxu0 0.0
        %2734 = vmatprep.subr.mxu0 0.0
        %2735 = vmatpush1.xpose.msra.mxu0 0.0
        %2736 = vmatprep.subr.mxu0 0.0
        %2737 = vmatpush1.xpose.msra.mxu0 0.0
        %2738 = vmatprep.subr.mxu0 0.0
        %2739 = vmatpush1.xpose.msra.mxu0 0.0
        %2740 = vmatprep.subr.mxu0 0.0
        %2741 = vmatpush1.xpose.msra.mxu0 0.0
        %2742 = vmatprep.subr.mxu0 0.0
        %2743 = vmatpush1.xpose.msra.mxu0 0.0
        %2744 = vmatprep.subr.mxu0 0.0
        %2745 = vmatpush1.xpose.msra.mxu0 0.0
        %2746 = vmatprep.subr.mxu0 0.0
        %2747 = vmatpush1.xpose.msra.mxu0 0.0
        %2748 = vmatprep.subr.mxu0 0.0
        %2749 = vmatpush1.xpose.msra.mxu0 0.0
        %2750 = vmatprep.subr.mxu0 0.0
        %2751 = vmatpush1.xpose.msra.mxu0 0.0
        %2752 = vmatprep.subr.mxu0 0.0
        %2753 = vmatpush1.xpose.msra.mxu0 0.0
        %2754 = vmatprep.subr.mxu0 0.0
        %2755 = vmatpush1.xpose.msra.mxu0 0.0
        %2756 = vmatprep.subr.mxu0 0.0
        %2757 = vmatpush1.xpose.msra.mxu0 0.0
        %2758 = vmatprep.subr.mxu0 0.0
        %2759 = vmatpush1.xpose.msra.mxu0 0.0
        %2760 = vmatprep.subr.mxu0 0.0
        %2761 = vmatpush1.xpose.msra.mxu0 0.0
        %2762 = vmatprep.subr.mxu0 0.0
        %2763 = vmatpush1.xpose.msra.mxu0 0.0
        %2764 = vmatprep.subr.mxu0 0.0
        %2765 = vmatpush1.xpose.msra.mxu0 0.0
        %2766 = vmatprep.subr.mxu0 0.0
        %2767 = vmatpush1.xpose.msra.mxu0 0.0
        %2768 = vmatprep.subr.mxu0 0.0
        %2769 = vmatpush1.xpose.msra.mxu0 0.0
        %2770 = vmatprep.subr.mxu0 0.0
        %2771 = vmatpush1.xpose.msra.mxu0 0.0
        %2772 = vmatprep.subr.mxu0 0.0
        %2773 = vmatpush1.xpose.msra.mxu0 0.0
        %2774 = vmatprep.mubr.f32.mxu0 0.0
        %v2775 = vand.u32 %v2330, 4294901760
        %2776 = vmatmul.mubr.f32.gmra.mrb[0].mxu0 %v2775
        %v2777 = vpop.f32.mrb[0].mxu0
        %v2778 = vadd.f32 %v2706, %v2777
        %v2779 = vpop.f32.mrb[0].mxu0
        %2780 = vdwg.mxu0
        %v2782 = vsel %vm1876, %v1578, 0
        %v2785 = vsel %vm1876, %v1726, 0
        %2787 = vmatprep.subr.mxu0 0.0
        %v2788 = vand.u32 %v2785, 4294901760
        %2789 = vmatpush1.xpose.msra.mxu0 %v2788
        %2790 = vmatprep.subr.mxu0 0.0
        %2791 = vmatpush1.xpose.msra.mxu0 0.0
        %2792 = vmatprep.subr.mxu0 0.0
        %2793 = vmatpush1.xpose.msra.mxu0 0.0
        %2794 = vmatprep.subr.mxu0 0.0
        %2795 = vmatpush1.xpose.msra.mxu0 0.0
        %2796 = vmatprep.subr.mxu0 0.0
        %2797 = vmatpush1.xpose.msra.mxu0 0.0
        %2798 = vmatprep.subr.mxu0 0.0
        %2799 = vmatpush1.xpose.msra.mxu0 0.0
        %2800 = vmatprep.subr.mxu0 0.0
        %2801 = vmatpush1.xpose.msra.mxu0 0.0
        %2802 = vmatprep.subr.mxu0 0.0
        %2803 = vmatpush1.xpose.msra.mxu0 0.0
        %2804 = vmatprep.subr.mxu0 0.0
        %2805 = vmatpush1.xpose.msra.mxu0 0.0
        %2806 = vmatprep.subr.mxu0 0.0
        %2807 = vmatpush1.xpose.msra.mxu0 0.0
        %2808 = vmatprep.subr.mxu0 0.0
        %2809 = vmatpush1.xpose.msra.mxu0 0.0
        %2810 = vmatprep.subr.mxu0 0.0
        %2811 = vmatpush1.xpose.msra.mxu0 0.0
        %2812 = vmatprep.subr.mxu0 0.0
        %2813 = vmatpush1.xpose.msra.mxu0 0.0
        %2814 = vmatprep.subr.mxu0 0.0
        %2815 = vmatpush1.xpose.msra.mxu0 0.0
        %2816 = vmatprep.subr.mxu0 0.0
        %2817 = vmatpush1.xpose.msra.mxu0 0.0
        %2818 = vmatprep.subr.mxu0 0.0
        %2819 = vmatpush1.xpose.msra.mxu0 0.0
        %2820 = vmatprep.subr.mxu0 0.0
        %2821 = vmatpush1.xpose.msra.mxu0 0.0
        %2822 = vmatprep.subr.mxu0 0.0
        %2823 = vmatpush1.xpose.msra.mxu0 0.0
        %2824 = vmatprep.subr.mxu0 0.0
        %2825 = vmatpush1.xpose.msra.mxu0 0.0
        %2826 = vmatprep.subr.mxu0 0.0
        %2827 = vmatpush1.xpose.msra.mxu0 0.0
        %2828 = vmatprep.subr.mxu0 0.0
        %2829 = vmatpush1.xpose.msra.mxu0 0.0
        %2830 = vmatprep.subr.mxu0 0.0
        %2831 = vmatpush1.xpose.msra.mxu0 0.0
        %2832 = vmatprep.subr.mxu0 0.0
        %2833 = vmatpush1.xpose.msra.mxu0 0.0
        %2834 = vmatprep.subr.mxu0 0.0
        %2835 = vmatpush1.xpose.msra.mxu0 0.0
        %2836 = vmatprep.subr.mxu0 0.0
        %2837 = vmatpush1.xpose.msra.mxu0 0.0
        %2838 = vmatprep.subr.mxu0 0.0
        %2839 = vmatpush1.xpose.msra.mxu0 0.0
        %2840 = vmatprep.subr.mxu0 0.0
        %2841 = vmatpush1.xpose.msra.mxu0 0.0
        %2842 = vmatprep.subr.mxu0 0.0
        %2843 = vmatpush1.xpose.msra.mxu0 0.0
        %2844 = vmatprep.subr.mxu0 0.0
        %2845 = vmatpush1.xpose.msra.mxu0 0.0
        %2846 = vmatprep.subr.mxu0 0.0
        %2847 = vmatpush1.xpose.msra.mxu0 0.0
        %2848 = vmatprep.subr.mxu0 0.0
        %2849 = vmatpush1.xpose.msra.mxu0 0.0
        %2850 = vmatprep.subr.mxu0 0.0
        %2851 = vmatpush1.xpose.msra.mxu0 0.0
        %2852 = vmatprep.mubr.f32.mxu0 0.0
        %v2853 = vand.u32 %v2782, 4294901760
        %v2854 = vsub.f32 %v2782, %v2853
        %v2855 = vand.u32 %v2854, 4294901760
        %v2856 = vsub.f32 %v2854, %v2855
        %v2857 = vand.u32 %v2856, 4294901760
        %2858 = vmatmul.mubr.f32.gmra.mrb[0].mxu0 %v2857
        %v2859 = vpop.f32.mrb[0].mxu0
        %v2860 = vadd.f32 0.0, %v2859
        %v2861 = vpop.f32.mrb[0].mxu0
        %2862 = vdwg.mxu0
        %2863 = vmatprep.subr.mxu0 0.0
        %v2864 = vand.u32 %v2785, 4294901760
        %v2865 = vsub.f32 %v2785, %v2864
        %v2866 = vand.u32 %v2865, 4294901760
        %v2867 = vsub.f32 %v2865, %v2866
        %v2868 = vand.u32 %v2867, 4294901760
        %2869 = vmatpush1.xpose.msra.mxu0 %v2868
        %2870 = vmatprep.subr.mxu0 0.0
        %2871 = vmatpush1.xpose.msra.mxu0 0.0
        %2872 = vmatprep.subr.mxu0 0.0
        %2873 = vmatpush1.xpose.msra.mxu0 0.0
        %2874 = vmatprep.subr.mxu0 0.0
        %2875 = vmatpush1.xpose.msra.mxu0 0.0
        %2876 = vmatprep.subr.mxu0 0.0
        %2877 = vmatpush1.xpose.msra.mxu0 0.0
        %2878 = vmatprep.subr.mxu0 0.0
        %2879 = vmatpush1.xpose.msra.mxu0 0.0
        %2880 = vmatprep.subr.mxu0 0.0
        %2881 = vmatpush1.xpose.msra.mxu0 0.0
        %2882 = vmatprep.subr.mxu0 0.0
        %2883 = vmatpush1.xpose.msra.mxu0 0.0
        %2884 = vmatprep.subr.mxu0 0.0
        %2885 = vmatpush1.xpose.msra.mxu0 0.0
        %2886 = vmatprep.subr.mxu0 0.0
        %2887 = vmatpush1.xpose.msra.mxu0 0.0
        %2888 = vmatprep.subr.mxu0 0.0
        %2889 = vmatpush1.xpose.msra.mxu0 0.0
        %2890 = vmatprep.subr.mxu0 0.0
        %2891 = vmatpush1.xpose.msra.mxu0 0.0
        %2892 = vmatprep.subr.mxu0 0.0
        %2893 = vmatpush1.xpose.msra.mxu0 0.0
        %2894 = vmatprep.subr.mxu0 0.0
        %2895 = vmatpush1.xpose.msra.mxu0 0.0
        %2896 = vmatprep.subr.mxu0 0.0
        %2897 = vmatpush1.xpose.msra.mxu0 0.0
        %2898 = vmatprep.subr.mxu0 0.0
        %2899 = vmatpush1.xpose.msra.mxu0 0.0
        %2900 = vmatprep.subr.mxu0 0.0
        %2901 = vmatpush1.xpose.msra.mxu0 0.0
        %2902 = vmatprep.subr.mxu0 0.0
        %2903 = vmatpush1.xpose.msra.mxu0 0.0
        %2904 = vmatprep.subr.mxu0 0.0
        %2905 = vmatpush1.xpose.msra.mxu0 0.0
        %2906 = vmatprep.subr.mxu0 0.0
        %2907 = vmatpush1.xpose.msra.mxu0 0.0
        %2908 = vmatprep.subr.mxu0 0.0
        %2909 = vmatpush1.xpose.msra.mxu0 0.0
        %2910 = vmatprep.subr.mxu0 0.0
        %2911 = vmatpush1.xpose.msra.mxu0 0.0
        %2912 = vmatprep.subr.mxu0 0.0
        %2913 = vmatpush1.xpose.msra.mxu0 0.0
        %2914 = vmatprep.subr.mxu0 0.0
        %2915 = vmatpush1.xpose.msra.mxu0 0.0
        %2916 = vmatprep.subr.mxu0 0.0
        %2917 = vmatpush1.xpose.msra.mxu0 0.0
        %2918 = vmatprep.subr.mxu0 0.0
        %2919 = vmatpush1.xpose.msra.mxu0 0.0
        %2920 = vmatprep.subr.mxu0 0.0
        %2921 = vmatpush1.xpose.msra.mxu0 0.0
        %2922 = vmatprep.subr.mxu0 0.0
        %2923 = vmatpush1.xpose.msra.mxu0 0.0
        %2924 = vmatprep.subr.mxu0 0.0
        %2925 = vmatpush1.xpose.msra.mxu0 0.0
        %2926 = vmatprep.subr.mxu0 0.0
        %2927 = vmatpush1.xpose.msra.mxu0 0.0
        %2928 = vmatprep.subr.mxu0 0.0
        %2929 = vmatpush1.xpose.msra.mxu0 0.0
        %2930 = vmatprep.subr.mxu0 0.0
        %2931 = vmatpush1.xpose.msra.mxu0 0.0
        %2932 = vmatprep.mubr.f32.mxu0 0.0
        %v2933 = vand.u32 %v2782, 4294901760
        %2934 = vmatmul.mubr.f32.gmra.mrb[0].mxu0 %v2933
        %v2935 = vpop.f32.mrb[0].mxu0
        %v2936 = vadd.f32 %v2860, %v2935
        %v2937 = vpop.f32.mrb[0].mxu0
        %2938 = vdwg.mxu0
        %2939 = vmatprep.subr.mxu0 0.0
        %v2940 = vand.u32 %v2785, 4294901760
        %v2941 = vsub.f32 %v2785, %v2940
        %2942 = vmatpush1.xpose.msra.mxu0 %v2941
        %2943 = vmatprep.subr.mxu0 0.0
        %2944 = vmatpush1.xpose.msra.mxu0 0.0
        %2945 = vmatprep.subr.mxu0 0.0
        %2946 = vmatpush1.xpose.msra.mxu0 0.0
        %2947 = vmatprep.subr.mxu0 0.0
        %2948 = vmatpush1.xpose.msra.mxu0 0.0
        %2949 = vmatprep.subr.mxu0 0.0
        %2950 = vmatpush1.xpose.msra.mxu0 0.0
        %2951 = vmatprep.subr.mxu0 0.0
        %2952 = vmatpush1.xpose.msra.mxu0 0.0
        %2953 = vmatprep.subr.mxu0 0.0
        %2954 = vmatpush1.xpose.msra.mxu0 0.0
        %2955 = vmatprep.subr.mxu0 0.0
        %2956 = vmatpush1.xpose.msra.mxu0 0.0
        %2957 = vmatprep.subr.mxu0 0.0
        %2958 = vmatpush1.xpose.msra.mxu0 0.0
        %2959 = vmatprep.subr.mxu0 0.0
        %2960 = vmatpush1.xpose.msra.mxu0 0.0
        %2961 = vmatprep.subr.mxu0 0.0
        %2962 = vmatpush1.xpose.msra.mxu0 0.0
        %2963 = vmatprep.subr.mxu0 0.0
        %2964 = vmatpush1.xpose.msra.mxu0 0.0
        %2965 = vmatprep.subr.mxu0 0.0
        %2966 = vmatpush1.xpose.msra.mxu0 0.0
        %2967 = vmatprep.subr.mxu0 0.0
        %2968 = vmatpush1.xpose.msra.mxu0 0.0
        %2969 = vmatprep.subr.mxu0 0.0
        %2970 = vmatpush1.xpose.msra.mxu0 0.0
        %2971 = vmatprep.subr.mxu0 0.0
        %2972 = vmatpush1.xpose.msra.mxu0 0.0
        %2973 = vmatprep.subr.mxu0 0.0
        %2974 = vmatpush1.xpose.msra.mxu0 0.0
        %2975 = vmatprep.subr.mxu0 0.0
        %2976 = vmatpush1.xpose.msra.mxu0 0.0
        %2977 = vmatprep.subr.mxu0 0.0
        %2978 = vmatpush1.xpose.msra.mxu0 0.0
        %2979 = vmatprep.subr.mxu0 0.0
        %2980 = vmatpush1.xpose.msra.mxu0 0.0
        %2981 = vmatprep.subr.mxu0 0.0
        %2982 = vmatpush1.xpose.msra.mxu0 0.0
        %2983 = vmatprep.subr.mxu0 0.0
        %2984 = vmatpush1.xpose.msra.mxu0 0.0
        %2985 = vmatprep.subr.mxu0 0.0
        %2986 = vmatpush1.xpose.msra.mxu0 0.0
        %2987 = vmatprep.subr.mxu0 0.0
        %2988 = vmatpush1.xpose.msra.mxu0 0.0
        %2989 = vmatprep.subr.mxu0 0.0
        %2990 = vmatpush1.xpose.msra.mxu0 0.0
        %2991 = vmatprep.subr.mxu0 0.0
        %2992 = vmatpush1.xpose.msra.mxu0 0.0
        %2993 = vmatprep.subr.mxu0 0.0
        %2994 = vmatpush1.xpose.msra.mxu0 0.0
        %2995 = vmatprep.subr.mxu0 0.0
        %2996 = vmatpush1.xpose.msra.mxu0 0.0
        %2997 = vmatprep.subr.mxu0 0.0
        %2998 = vmatpush1.xpose.msra.mxu0 0.0
        %2999 = vmatprep.subr.mxu0 0.0
        %3000 = vmatpush1.xpose.msra.mxu0 0.0
        %3001 = vmatprep.subr.mxu0 0.0
        %3002 = vmatpush1.xpose.msra.mxu0 0.0
        %3003 = vmatprep.subr.mxu0 0.0
        %3004 = vmatpush1.xpose.msra.mxu0 0.0
        %3005 = vmatprep.mubr.f32.mxu0 0.0
        %v3006 = vand.u32 %v2782, 4294901760
        %v3007 = vsub.f32 %v2782, %v3006
        %3008 = vmatmul.mubr.f32.gmra.mrb[0].mxu0 %v3007
        %v3009 = vpop.f32.mrb[0].mxu0
        %v3010 = vadd.f32 %v2936, %v3009
        %v3011 = vpop.f32.mrb[0].mxu0
        %3012 = vdwg.mxu0
        %3013 = vmatprep.subr.mxu0 0.0
        %v3014 = vand.u32 %v2785, 4294901760
        %3015 = vmatpush1.xpose.msra.mxu0 %v3014
        %3016 = vmatprep.subr.mxu0 0.0
        %3017 = vmatpush1.xpose.msra.mxu0 0.0
        %3018 = vmatprep.subr.mxu0 0.0
        %3019 = vmatpush1.xpose.msra.mxu0 0.0
        %3020 = vmatprep.subr.mxu0 0.0
        %3021 = vmatpush1.xpose.msra.mxu0 0.0
        %3022 = vmatprep.subr.mxu0 0.0
        %3023 = vmatpush1.xpose.msra.mxu0 0.0
        %3024 = vmatprep.subr.mxu0 0.0
        %3025 = vmatpush1.xpose.msra.mxu0 0.0
        %3026 = vmatprep.subr.mxu0 0.0
        %3027 = vmatpush1.xpose.msra.mxu0 0.0
        %3028 = vmatprep.subr.mxu0 0.0
        %3029 = vmatpush1.xpose.msra.mxu0 0.0
        %3030 = vmatprep.subr.mxu0 0.0
        %3031 = vmatpush1.xpose.msra.mxu0 0.0
        %3032 = vmatprep.subr.mxu0 0.0
        %3033 = vmatpush1.xpose.msra.mxu0 0.0
        %3034 = vmatprep.subr.mxu0 0.0
        %3035 = vmatpush1.xpose.msra.mxu0 0.0
        %3036 = vmatprep.subr.mxu0 0.0
        %3037 = vmatpush1.xpose.msra.mxu0 0.0
        %3038 = vmatprep.subr.mxu0 0.0
        %3039 = vmatpush1.xpose.msra.mxu0 0.0
        %3040 = vmatprep.subr.mxu0 0.0
        %3041 = vmatpush1.xpose.msra.mxu0 0.0
        %3042 = vmatprep.subr.mxu0 0.0
        %3043 = vmatpush1.xpose.msra.mxu0 0.0
        %3044 = vmatprep.subr.mxu0 0.0
        %3045 = vmatpush1.xpose.msra.mxu0 0.0
        %3046 = vmatprep.subr.mxu0 0.0
        %3047 = vmatpush1.xpose.msra.mxu0 0.0
        %3048 = vmatprep.subr.mxu0 0.0
        %3049 = vmatpush1.xpose.msra.mxu0 0.0
        %3050 = vmatprep.subr.mxu0 0.0
        %3051 = vmatpush1.xpose.msra.mxu0 0.0
        %3052 = vmatprep.subr.mxu0 0.0
        %3053 = vmatpush1.xpose.msra.mxu0 0.0
        %3054 = vmatprep.subr.mxu0 0.0
        %3055 = vmatpush1.xpose.msra.mxu0 0.0
        %3056 = vmatprep.subr.mxu0 0.0
        %3057 = vmatpush1.xpose.msra.mxu0 0.0
        %3058 = vmatprep.subr.mxu0 0.0
        %3059 = vmatpush1.xpose.msra.mxu0 0.0
        %3060 = vmatprep.subr.mxu0 0.0
        %3061 = vmatpush1.xpose.msra.mxu0 0.0
        %3062 = vmatprep.subr.mxu0 0.0
        %3063 = vmatpush1.xpose.msra.mxu0 0.0
        %3064 = vmatprep.subr.mxu0 0.0
        %3065 = vmatpush1.xpose.msra.mxu0 0.0
        %3066 = vmatprep.subr.mxu0 0.0
        %3067 = vmatpush1.xpose.msra.mxu0 0.0
        %3068 = vmatprep.subr.mxu0 0.0
        %3069 = vmatpush1.xpose.msra.mxu0 0.0
        %3070 = vmatprep.subr.mxu0 0.0
        %3071 = vmatpush1.xpose.msra.mxu0 0.0
        %3072 = vmatprep.subr.mxu0 0.0
        %3073 = vmatpush1.xpose.msra.mxu0 0.0
        %3074 = vmatprep.subr.mxu0 0.0
        %3075 = vmatpush1.xpose.msra.mxu0 0.0
        %3076 = vmatprep.subr.mxu0 0.0
        %3077 = vmatpush1.xpose.msra.mxu0 0.0
        %3078 = vmatprep.mubr.f32.mxu0 0.0
        %v3079 = vand.u32 %v2782, 4294901760
        %v3080 = vsub.f32 %v2782, %v3079
        %v3081 = vand.u32 %v3080, 4294901760
        %3082 = vmatmul.mubr.f32.gmra.mrb[0].mxu0 %v3081
        %v3083 = vpop.f32.mrb[0].mxu0
        %v3084 = vadd.f32 %v3010, %v3083
        %v3085 = vpop.f32.mrb[0].mxu0
        %3086 = vdwg.mxu0
        %3087 = vmatprep.subr.mxu0 0.0
        %v3088 = vand.u32 %v2785, 4294901760
        %v3089 = vsub.f32 %v2785, %v3088
        %v3090 = vand.u32 %v3089, 4294901760
        %3091 = vmatpush1.xpose.msra.mxu0 %v3090
        %3092 = vmatprep.subr.mxu0 0.0
        %3093 = vmatpush1.xpose.msra.mxu0 0.0
        %3094 = vmatprep.subr.mxu0 0.0
        %3095 = vmatpush1.xpose.msra.mxu0 0.0
        %3096 = vmatprep.subr.mxu0 0.0
        %3097 = vmatpush1.xpose.msra.mxu0 0.0
        %3098 = vmatprep.subr.mxu0 0.0
        %3099 = vmatpush1.xpose.msra.mxu0 0.0
        %3100 = vmatprep.subr.mxu0 0.0
        %3101 = vmatpush1.xpose.msra.mxu0 0.0
        %3102 = vmatprep.subr.mxu0 0.0
        %3103 = vmatpush1.xpose.msra.mxu0 0.0
        %3104 = vmatprep.subr.mxu0 0.0
        %3105 = vmatpush1.xpose.msra.mxu0 0.0
        %3106 = vmatprep.subr.mxu0 0.0
        %3107 = vmatpush1.xpose.msra.mxu0 0.0
        %3108 = vmatprep.subr.mxu0 0.0
        %3109 = vmatpush1.xpose.msra.mxu0 0.0
        %3110 = vmatprep.subr.mxu0 0.0
        %3111 = vmatpush1.xpose.msra.mxu0 0.0
        %3112 = vmatprep.subr.mxu0 0.0
        %3113 = vmatpush1.xpose.msra.mxu0 0.0
        %3114 = vmatprep.subr.mxu0 0.0
        %3115 = vmatpush1.xpose.msra.mxu0 0.0
        %3116 = vmatprep.subr.mxu0 0.0
        %3117 = vmatpush1.xpose.msra.mxu0 0.0
        %3118 = vmatprep.subr.mxu0 0.0
        %3119 = vmatpush1.xpose.msra.mxu0 0.0
        %3120 = vmatprep.subr.mxu0 0.0
        %3121 = vmatpush1.xpose.msra.mxu0 0.0
        %3122 = vmatprep.subr.mxu0 0.0
        %3123 = vmatpush1.xpose.msra.mxu0 0.0
        %3124 = vmatprep.subr.mxu0 0.0
        %3125 = vmatpush1.xpose.msra.mxu0 0.0
        %3126 = vmatprep.subr.mxu0 0.0
        %3127 = vmatpush1.xpose.msra.mxu0 0.0
        %3128 = vmatprep.subr.mxu0 0.0
        %3129 = vmatpush1.xpose.msra.mxu0 0.0
        %3130 = vmatprep.subr.mxu0 0.0
        %3131 = vmatpush1.xpose.msra.mxu0 0.0
        %3132 = vmatprep.subr.mxu0 0.0
        %3133 = vmatpush1.xpose.msra.mxu0 0.0
        %3134 = vmatprep.subr.mxu0 0.0
        %3135 = vmatpush1.xpose.msra.mxu0 0.0
        %3136 = vmatprep.subr.mxu0 0.0
        %3137 = vmatpush1.xpose.msra.mxu0 0.0
        %3138 = vmatprep.subr.mxu0 0.0
        %3139 = vmatpush1.xpose.msra.mxu0 0.0
        %3140 = vmatprep.subr.mxu0 0.0
        %3141 = vmatpush1.xpose.msra.mxu0 0.0
        %3142 = vmatprep.subr.mxu0 0.0
        %3143 = vmatpush1.xpose.msra.mxu0 0.0
        %3144 = vmatprep.subr.mxu0 0.0
        %3145 = vmatpush1.xpose.msra.mxu0 0.0
        %3146 = vmatprep.subr.mxu0 0.0
        %3147 = vmatpush1.xpose.msra.mxu0 0.0
        %3148 = vmatprep.subr.mxu0 0.0
        %3149 = vmatpush1.xpose.msra.mxu0 0.0
        %3150 = vmatprep.subr.mxu0 0.0
        %3151 = vmatpush1.xpose.msra.mxu0 0.0
        %3152 = vmatprep.subr.mxu0 0.0
        %3153 = vmatpush1.xpose.msra.mxu0 0.0
        %3154 = vmatprep.mubr.f32.mxu0 0.0
        %v3155 = vand.u32 %v2782, 4294901760
        %3156 = vmatmul.mubr.f32.gmra.mrb[0].mxu0 %v3155
        %v3157 = vpop.f32.mrb[0].mxu0
        %v3158 = vadd.f32 %v3084, %v3157
        %v3159 = vpop.f32.mrb[0].mxu0
        %3160 = vdwg.mxu0
        %3161 = vmatprep.subr.mxu0 0.0
        %v3162 = vand.u32 %v2785, 4294901760
        %3163 = vmatpush1.xpose.msra.mxu0 %v3162
        %3164 = vmatprep.subr.mxu0 0.0
        %3165 = vmatpush1.xpose.msra.mxu0 0.0
        %3166 = vmatprep.subr.mxu0 0.0
        %3167 = vmatpush1.xpose.msra.mxu0 0.0
        %3168 = vmatprep.subr.mxu0 0.0
        %3169 = vmatpush1.xpose.msra.mxu0 0.0
        %3170 = vmatprep.subr.mxu0 0.0
        %3171 = vmatpush1.xpose.msra.mxu0 0.0
        %3172 = vmatprep.subr.mxu0 0.0
        %3173 = vmatpush1.xpose.msra.mxu0 0.0
        %3174 = vmatprep.subr.mxu0 0.0
        %3175 = vmatpush1.xpose.msra.mxu0 0.0
        %3176 = vmatprep.subr.mxu0 0.0
        %3177 = vmatpush1.xpose.msra.mxu0 0.0
        %3178 = vmatprep.subr.mxu0 0.0
        %3179 = vmatpush1.xpose.msra.mxu0 0.0
        %3180 = vmatprep.subr.mxu0 0.0
        %3181 = vmatpush1.xpose.msra.mxu0 0.0
        %3182 = vmatprep.subr.mxu0 0.0
        %3183 = vmatpush1.xpose.msra.mxu0 0.0
        %3184 = vmatprep.subr.mxu0 0.0
        %3185 = vmatpush1.xpose.msra.mxu0 0.0
        %3186 = vmatprep.subr.mxu0 0.0
        %3187 = vmatpush1.xpose.msra.mxu0 0.0
        %3188 = vmatprep.subr.mxu0 0.0
        %3189 = vmatpush1.xpose.msra.mxu0 0.0
        %3190 = vmatprep.subr.mxu0 0.0
        %3191 = vmatpush1.xpose.msra.mxu0 0.0
        %3192 = vmatprep.subr.mxu0 0.0
        %3193 = vmatpush1.xpose.msra.mxu0 0.0
        %3194 = vmatprep.subr.mxu0 0.0
        %3195 = vmatpush1.xpose.msra.mxu0 0.0
        %3196 = vmatprep.subr.mxu0 0.0
        %3197 = vmatpush1.xpose.msra.mxu0 0.0
        %3198 = vmatprep.subr.mxu0 0.0
        %3199 = vmatpush1.xpose.msra.mxu0 0.0
        %3200 = vmatprep.subr.mxu0 0.0
        %3201 = vmatpush1.xpose.msra.mxu0 0.0
        %3202 = vmatprep.subr.mxu0 0.0
        %3203 = vmatpush1.xpose.msra.mxu0 0.0
        %3204 = vmatprep.subr.mxu0 0.0
        %3205 = vmatpush1.xpose.msra.mxu0 0.0
        %3206 = vmatprep.subr.mxu0 0.0
        %3207 = vmatpush1.xpose.msra.mxu0 0.0
        %3208 = vmatprep.subr.mxu0 0.0
        %3209 = vmatpush1.xpose.msra.mxu0 0.0
        %3210 = vmatprep.subr.mxu0 0.0
        %3211 = vmatpush1.xpose.msra.mxu0 0.0
        %3212 = vmatprep.subr.mxu0 0.0
        %3213 = vmatpush1.xpose.msra.mxu0 0.0
        %3214 = vmatprep.subr.mxu0 0.0
        %3215 = vmatpush1.xpose.msra.mxu0 0.0
        %3216 = vmatprep.subr.mxu0 0.0
        %3217 = vmatpush1.xpose.msra.mxu0 0.0
        %3218 = vmatprep.subr.mxu0 0.0
        %3219 = vmatpush1.xpose.msra.mxu0 0.0
        %3220 = vmatprep.subr.mxu0 0.0
        %3221 = vmatpush1.xpose.msra.mxu0 0.0
        %3222 = vmatprep.subr.mxu0 0.0
        %3223 = vmatpush1.xpose.msra.mxu0 0.0
        %3224 = vmatprep.subr.mxu0 0.0
        %3225 = vmatpush1.xpose.msra.mxu0 0.0
        %3226 = vmatprep.mubr.f32.mxu0 0.0
        %v3227 = vand.u32 %v2782, 4294901760
        %3228 = vmatmul.mubr.f32.gmra.mrb[0].mxu0 %v3227
        %v3229 = vpop.f32.mrb[0].mxu0
        %v3230 = vadd.f32 %v3158, %v3229
        %v3231 = vpop.f32.mrb[0].mxu0
        %3232 = vdwg.mxu0
        %v3234 = vsel %vm1876, %v1579, 0
        %v3237 = vsel %vm1876, %v1727, 0
        %3239 = vmatprep.subr.mxu0 0.0
        %v3240 = vand.u32 %v3237, 4294901760
        %3241 = vmatpush1.xpose.msra.mxu0 %v3240
        %3242 = vmatprep.subr.mxu0 0.0
        %3243 = vmatpush1.xpose.msra.mxu0 0.0
        %3244 = vmatprep.subr.mxu0 0.0
        %3245 = vmatpush1.xpose.msra.mxu0 0.0
        %3246 = vmatprep.subr.mxu0 0.0
        %3247 = vmatpush1.xpose.msra.mxu0 0.0
        %3248 = vmatprep.subr.mxu0 0.0
        %3249 = vmatpush1.xpose.msra.mxu0 0.0
        %3250 = vmatprep.subr.mxu0 0.0
        %3251 = vmatpush1.xpose.msra.mxu0 0.0
        %3252 = vmatprep.subr.mxu0 0.0
        %3253 = vmatpush1.xpose.msra.mxu0 0.0
        %3254 = vmatprep.subr.mxu0 0.0
        %3255 = vmatpush1.xpose.msra.mxu0 0.0
        %3256 = vmatprep.subr.mxu0 0.0
        %3257 = vmatpush1.xpose.msra.mxu0 0.0
        %3258 = vmatprep.subr.mxu0 0.0
        %3259 = vmatpush1.xpose.msra.mxu0 0.0
        %3260 = vmatprep.subr.mxu0 0.0
        %3261 = vmatpush1.xpose.msra.mxu0 0.0
        %3262 = vmatprep.subr.mxu0 0.0
        %3263 = vmatpush1.xpose.msra.mxu0 0.0
        %3264 = vmatprep.subr.mxu0 0.0
        %3265 = vmatpush1.xpose.msra.mxu0 0.0
        %3266 = vmatprep.subr.mxu0 0.0
        %3267 = vmatpush1.xpose.msra.mxu0 0.0
        %3268 = vmatprep.subr.mxu0 0.0
        %3269 = vmatpush1.xpose.msra.mxu0 0.0
        %3270 = vmatprep.subr.mxu0 0.0
        %3271 = vmatpush1.xpose.msra.mxu0 0.0
        %3272 = vmatprep.subr.mxu0 0.0
        %3273 = vmatpush1.xpose.msra.mxu0 0.0
        %3274 = vmatprep.subr.mxu0 0.0
        %3275 = vmatpush1.xpose.msra.mxu0 0.0
        %3276 = vmatprep.subr.mxu0 0.0
        %3277 = vmatpush1.xpose.msra.mxu0 0.0
        %3278 = vmatprep.subr.mxu0 0.0
        %3279 = vmatpush1.xpose.msra.mxu0 0.0
        %3280 = vmatprep.subr.mxu0 0.0
        %3281 = vmatpush1.xpose.msra.mxu0 0.0
        %3282 = vmatprep.subr.mxu0 0.0
        %3283 = vmatpush1.xpose.msra.mxu0 0.0
        %3284 = vmatprep.subr.mxu0 0.0
        %3285 = vmatpush1.xpose.msra.mxu0 0.0
        %3286 = vmatprep.subr.mxu0 0.0
        %3287 = vmatpush1.xpose.msra.mxu0 0.0
        %3288 = vmatprep.subr.mxu0 0.0
        %3289 = vmatpush1.xpose.msra.mxu0 0.0
        %3290 = vmatprep.subr.mxu0 0.0
        %3291 = vmatpush1.xpose.msra.mxu0 0.0
        %3292 = vmatprep.subr.mxu0 0.0
        %3293 = vmatpush1.xpose.msra.mxu0 0.0
        %3294 = vmatprep.subr.mxu0 0.0
        %3295 = vmatpush1.xpose.msra.mxu0 0.0
        %3296 = vmatprep.subr.mxu0 0.0
        %3297 = vmatpush1.xpose.msra.mxu0 0.0
        %3298 = vmatprep.subr.mxu0 0.0
        %3299 = vmatpush1.xpose.msra.mxu0 0.0
        %3300 = vmatprep.subr.mxu0 0.0
        %3301 = vmatpush1.xpose.msra.mxu0 0.0
        %3302 = vmatprep.subr.mxu0 0.0
        %3303 = vmatpush1.xpose.msra.mxu0 0.0
        %3304 = vmatprep.mubr.f32.mxu0 0.0
        %v3305 = vand.u32 %v3234, 4294901760
        %v3306 = vsub.f32 %v3234, %v3305
        %v3307 = vand.u32 %v3306, 4294901760
        %v3308 = vsub.f32 %v3306, %v3307
        %v3309 = vand.u32 %v3308, 4294901760
        %3310 = vmatmul.mubr.f32.gmra.mrb[0].mxu0 %v3309
        %v3311 = vpop.f32.mrb[0].mxu0
        %v3312 = vadd.f32 0.0, %v3311
        %v3313 = vpop.f32.mrb[0].mxu0
        %3314 = vdwg.mxu0
        %3315 = vmatprep.subr.mxu0 0.0
        %v3316 = vand.u32 %v3237, 4294901760
        %v3317 = vsub.f32 %v3237, %v3316
        %v3318 = vand.u32 %v3317, 4294901760
        %v3319 = vsub.f32 %v3317, %v3318
        %v3320 = vand.u32 %v3319, 4294901760
        %3321 = vmatpush1.xpose.msra.mxu0 %v3320
        %3322 = vmatprep.subr.mxu0 0.0
        %3323 = vmatpush1.xpose.msra.mxu0 0.0
        %3324 = vmatprep.subr.mxu0 0.0
        %3325 = vmatpush1.xpose.msra.mxu0 0.0
        %3326 = vmatprep.subr.mxu0 0.0
        %3327 = vmatpush1.xpose.msra.mxu0 0.0
        %3328 = vmatprep.subr.mxu0 0.0
        %3329 = vmatpush1.xpose.msra.mxu0 0.0
        %3330 = vmatprep.subr.mxu0 0.0
        %3331 = vmatpush1.xpose.msra.mxu0 0.0
        %3332 = vmatprep.subr.mxu0 0.0
        %3333 = vmatpush1.xpose.msra.mxu0 0.0
        %3334 = vmatprep.subr.mxu0 0.0
        %3335 = vmatpush1.xpose.msra.mxu0 0.0
        %3336 = vmatprep.subr.mxu0 0.0
        %3337 = vmatpush1.xpose.msra.mxu0 0.0
        %3338 = vmatprep.subr.mxu0 0.0
        %3339 = vmatpush1.xpose.msra.mxu0 0.0
        %3340 = vmatprep.subr.mxu0 0.0
        %3341 = vmatpush1.xpose.msra.mxu0 0.0
        %3342 = vmatprep.subr.mxu0 0.0
        %3343 = vmatpush1.xpose.msra.mxu0 0.0
        %3344 = vmatprep.subr.mxu0 0.0
        %3345 = vmatpush1.xpose.msra.mxu0 0.0
        %3346 = vmatprep.subr.mxu0 0.0
        %3347 = vmatpush1.xpose.msra.mxu0 0.0
        %3348 = vmatprep.subr.mxu0 0.0
        %3349 = vmatpush1.xpose.msra.mxu0 0.0
        %3350 = vmatprep.subr.mxu0 0.0
        %3351 = vmatpush1.xpose.msra.mxu0 0.0
        %3352 = vmatprep.subr.mxu0 0.0
        %3353 = vmatpush1.xpose.msra.mxu0 0.0
        %3354 = vmatprep.subr.mxu0 0.0
        %3355 = vmatpush1.xpose.msra.mxu0 0.0
        %3356 = vmatprep.subr.mxu0 0.0
        %3357 = vmatpush1.xpose.msra.mxu0 0.0
        %3358 = vmatprep.subr.mxu0 0.0
        %3359 = vmatpush1.xpose.msra.mxu0 0.0
        %3360 = vmatprep.subr.mxu0 0.0
        %3361 = vmatpush1.xpose.msra.mxu0 0.0
        %3362 = vmatprep.subr.mxu0 0.0
        %3363 = vmatpush1.xpose.msra.mxu0 0.0
        %3364 = vmatprep.subr.mxu0 0.0
        %3365 = vmatpush1.xpose.msra.mxu0 0.0
        %3366 = vmatprep.subr.mxu0 0.0
        %3367 = vmatpush1.xpose.msra.mxu0 0.0
        %3368 = vmatprep.subr.mxu0 0.0
        %3369 = vmatpush1.xpose.msra.mxu0 0.0
        %3370 = vmatprep.subr.mxu0 0.0
        %3371 = vmatpush1.xpose.msra.mxu0 0.0
        %3372 = vmatprep.subr.mxu0 0.0
        %3373 = vmatpush1.xpose.msra.mxu0 0.0
        %3374 = vmatprep.subr.mxu0 0.0
        %3375 = vmatpush1.xpose.msra.mxu0 0.0
        %3376 = vmatprep.subr.mxu0 0.0
        %3377 = vmatpush1.xpose.msra.mxu0 0.0
        %3378 = vmatprep.subr.mxu0 0.0
        %3379 = vmatpush1.xpose.msra.mxu0 0.0
        %3380 = vmatprep.subr.mxu0 0.0
        %3381 = vmatpush1.xpose.msra.mxu0 0.0
        %3382 = vmatprep.subr.mxu0 0.0
        %3383 = vmatpush1.xpose.msra.mxu0 0.0
        %3384 = vmatprep.mubr.f32.mxu0 0.0
        %v3385 = vand.u32 %v3234, 4294901760
        %3386 = vmatmul.mubr.f32.gmra.mrb[0].mxu0 %v3385
        %v3387 = vpop.f32.mrb[0].mxu0
        %v3388 = vadd.f32 %v3312, %v3387
        %v3389 = vpop.f32.mrb[0].mxu0
        %3390 = vdwg.mxu0
        %3391 = vmatprep.subr.mxu0 0.0
        %v3392 = vand.u32 %v3237, 4294901760
        %v3393 = vsub.f32 %v3237, %v3392
        %3394 = vmatpush1.xpose.msra.mxu0 %v3393
        %3395 = vmatprep.subr.mxu0 0.0
        %3396 = vmatpush1.xpose.msra.mxu0 0.0
        %3397 = vmatprep.subr.mxu0 0.0
        %3398 = vmatpush1.xpose.msra.mxu0 0.0
        %3399 = vmatprep.subr.mxu0 0.0
        %3400 = vmatpush1.xpose.msra.mxu0 0.0
        %3401 = vmatprep.subr.mxu0 0.0
        %3402 = vmatpush1.xpose.msra.mxu0 0.0
        %3403 = vmatprep.subr.mxu0 0.0
        %3404 = vmatpush1.xpose.msra.mxu0 0.0
        %3405 = vmatprep.subr.mxu0 0.0
        %3406 = vmatpush1.xpose.msra.mxu0 0.0
        %3407 = vmatprep.subr.mxu0 0.0
        %3408 = vmatpush1.xpose.msra.mxu0 0.0
        %3409 = vmatprep.subr.mxu0 0.0
        %3410 = vmatpush1.xpose.msra.mxu0 0.0
        %3411 = vmatprep.subr.mxu0 0.0
        %3412 = vmatpush1.xpose.msra.mxu0 0.0
        %3413 = vmatprep.subr.mxu0 0.0
        %3414 = vmatpush1.xpose.msra.mxu0 0.0
        %3415 = vmatprep.subr.mxu0 0.0
        %3416 = vmatpush1.xpose.msra.mxu0 0.0
        %3417 = vmatprep.subr.mxu0 0.0
        %3418 = vmatpush1.xpose.msra.mxu0 0.0
        %3419 = vmatprep.subr.mxu0 0.0
        %3420 = vmatpush1.xpose.msra.mxu0 0.0
        %3421 = vmatprep.subr.mxu0 0.0
        %3422 = vmatpush1.xpose.msra.mxu0 0.0
        %3423 = vmatprep.subr.mxu0 0.0
        %3424 = vmatpush1.xpose.msra.mxu0 0.0
        %3425 = vmatprep.subr.mxu0 0.0
        %3426 = vmatpush1.xpose.msra.mxu0 0.0
        %3427 = vmatprep.subr.mxu0 0.0
        %3428 = vmatpush1.xpose.msra.mxu0 0.0
        %3429 = vmatprep.subr.mxu0 0.0
        %3430 = vmatpush1.xpose.msra.mxu0 0.0
        %3431 = vmatprep.subr.mxu0 0.0
        %3432 = vmatpush1.xpose.msra.mxu0 0.0
        %3433 = vmatprep.subr.mxu0 0.0
        %3434 = vmatpush1.xpose.msra.mxu0 0.0
        %3435 = vmatprep.subr.mxu0 0.0
        %3436 = vmatpush1.xpose.msra.mxu0 0.0
        %3437 = vmatprep.subr.mxu0 0.0
        %3438 = vmatpush1.xpose.msra.mxu0 0.0
        %3439 = vmatprep.subr.mxu0 0.0
        %3440 = vmatpush1.xpose.msra.mxu0 0.0
        %3441 = vmatprep.subr.mxu0 0.0
        %3442 = vmatpush1.xpose.msra.mxu0 0.0
        %3443 = vmatprep.subr.mxu0 0.0
        %3444 = vmatpush1.xpose.msra.mxu0 0.0
        %3445 = vmatprep.subr.mxu0 0.0
        %3446 = vmatpush1.xpose.msra.mxu0 0.0
        %3447 = vmatprep.subr.mxu0 0.0
        %3448 = vmatpush1.xpose.msra.mxu0 0.0
        %3449 = vmatprep.subr.mxu0 0.0
        %3450 = vmatpush1.xpose.msra.mxu0 0.0
        %3451 = vmatprep.subr.mxu0 0.0
        %3452 = vmatpush1.xpose.msra.mxu0 0.0
        %3453 = vmatprep.subr.mxu0 0.0
        %3454 = vmatpush1.xpose.msra.mxu0 0.0
        %3455 = vmatprep.subr.mxu0 0.0
        %3456 = vmatpush1.xpose.msra.mxu0 0.0
        %3457 = vmatprep.mubr.f32.mxu0 0.0
        %v3458 = vand.u32 %v3234, 4294901760
        %v3459 = vsub.f32 %v3234, %v3458
        %3460 = vmatmul.mubr.f32.gmra.mrb[0].mxu0 %v3459
        %v3461 = vpop.f32.mrb[0].mxu0
        %v3462 = vadd.f32 %v3388, %v3461
        %v3463 = vpop.f32.mrb[0].mxu0
        %3464 = vdwg.mxu0
        %3465 = vmatprep.subr.mxu0 0.0
        %v3466 = vand.u32 %v3237, 4294901760
        %3467 = vmatpush1.xpose.msra.mxu0 %v3466
        %3468 = vmatprep.subr.mxu0 0.0
        %3469 = vmatpush1.xpose.msra.mxu0 0.0
        %3470 = vmatprep.subr.mxu0 0.0
        %3471 = vmatpush1.xpose.msra.mxu0 0.0
        %3472 = vmatprep.subr.mxu0 0.0
        %3473 = vmatpush1.xpose.msra.mxu0 0.0
        %3474 = vmatprep.subr.mxu0 0.0
        %3475 = vmatpush1.xpose.msra.mxu0 0.0
        %3476 = vmatprep.subr.mxu0 0.0
        %3477 = vmatpush1.xpose.msra.mxu0 0.0
        %3478 = vmatprep.subr.mxu0 0.0
        %3479 = vmatpush1.xpose.msra.mxu0 0.0
        %3480 = vmatprep.subr.mxu0 0.0
        %3481 = vmatpush1.xpose.msra.mxu0 0.0
        %3482 = vmatprep.subr.mxu0 0.0
        %3483 = vmatpush1.xpose.msra.mxu0 0.0
        %3484 = vmatprep.subr.mxu0 0.0
        %3485 = vmatpush1.xpose.msra.mxu0 0.0
        %3486 = vmatprep.subr.mxu0 0.0
        %3487 = vmatpush1.xpose.msra.mxu0 0.0
        %3488 = vmatprep.subr.mxu0 0.0
        %3489 = vmatpush1.xpose.msra.mxu0 0.0
        %3490 = vmatprep.subr.mxu0 0.0
        %3491 = vmatpush1.xpose.msra.mxu0 0.0
        %3492 = vmatprep.subr.mxu0 0.0
        %3493 = vmatpush1.xpose.msra.mxu0 0.0
        %3494 = vmatprep.subr.mxu0 0.0
        %3495 = vmatpush1.xpose.msra.mxu0 0.0
        %3496 = vmatprep.subr.mxu0 0.0
        %3497 = vmatpush1.xpose.msra.mxu0 0.0
        %3498 = vmatprep.subr.mxu0 0.0
        %3499 = vmatpush1.xpose.msra.mxu0 0.0
        %3500 = vmatprep.subr.mxu0 0.0
        %3501 = vmatpush1.xpose.msra.mxu0 0.0
        %3502 = vmatprep.subr.mxu0 0.0
        %3503 = vmatpush1.xpose.msra.mxu0 0.0
        %3504 = vmatprep.subr.mxu0 0.0
        %3505 = vmatpush1.xpose.msra.mxu0 0.0
        %3506 = vmatprep.subr.mxu0 0.0
        %3507 = vmatpush1.xpose.msra.mxu0 0.0
        %3508 = vmatprep.subr.mxu0 0.0
        %3509 = vmatpush1.xpose.msra.mxu0 0.0
        %3510 = vmatprep.subr.mxu0 0.0
        %3511 = vmatpush1.xpose.msra.mxu0 0.0
        %3512 = vmatprep.subr.mxu0 0.0
        %3513 = vmatpush1.xpose.msra.mxu0 0.0
        %3514 = vmatprep.subr.mxu0 0.0
        %3515 = vmatpush1.xpose.msra.mxu0 0.0
        %3516 = vmatprep.subr.mxu0 0.0
        %3517 = vmatpush1.xpose.msra.mxu0 0.0
        %3518 = vmatprep.subr.mxu0 0.0
        %3519 = vmatpush1.xpose.msra.mxu0 0.0
        %3520 = vmatprep.subr.mxu0 0.0
        %3521 = vmatpush1.xpose.msra.mxu0 0.0
        %3522 = vmatprep.subr.mxu0 0.0
        %3523 = vmatpush1.xpose.msra.mxu0 0.0
        %3524 = vmatprep.subr.mxu0 0.0
        %3525 = vmatpush1.xpose.msra.mxu0 0.0
        %3526 = vmatprep.subr.mxu0 0.0
        %3527 = vmatpush1.xpose.msra.mxu0 0.0
        %3528 = vmatprep.subr.mxu0 0.0
        %3529 = vmatpush1.xpose.msra.mxu0 0.0
        %3530 = vmatprep.mubr.f32.mxu0 0.0
        %v3531 = vand.u32 %v3234, 4294901760
        %v3532 = vsub.f32 %v3234, %v3531
        %v3533 = vand.u32 %v3532, 4294901760
        %3534 = vmatmul.mubr.f32.gmra.mrb[0].mxu0 %v3533
        %v3535 = vpop.f32.mrb[0].mxu0
        %v3536 = vadd.f32 %v3462, %v3535
        %v3537 = vpop.f32.mrb[0].mxu0
        %3538 = vdwg.mxu0
        %3539 = vmatprep.subr.mxu0 0.0
        %v3540 = vand.u32 %v3237, 4294901760
        %v3541 = vsub.f32 %v3237, %v3540
        %v3542 = vand.u32 %v3541, 4294901760
        %3543 = vmatpush1.xpose.msra.mxu0 %v3542
        %3544 = vmatprep.subr.mxu0 0.0
        %3545 = vmatpush1.xpose.msra.mxu0 0.0
        %3546 = vmatprep.subr.mxu0 0.0
        %3547 = vmatpush1.xpose.msra.mxu0 0.0
        %3548 = vmatprep.subr.mxu0 0.0
        %3549 = vmatpush1.xpose.msra.mxu0 0.0
        %3550 = vmatprep.subr.mxu0 0.0
        %3551 = vmatpush1.xpose.msra.mxu0 0.0
        %3552 = vmatprep.subr.mxu0 0.0
        %3553 = vmatpush1.xpose.msra.mxu0 0.0
        %3554 = vmatprep.subr.mxu0 0.0
        %3555 = vmatpush1.xpose.msra.mxu0 0.0
        %3556 = vmatprep.subr.mxu0 0.0
        %3557 = vmatpush1.xpose.msra.mxu0 0.0
        %3558 = vmatprep.subr.mxu0 0.0
        %3559 = vmatpush1.xpose.msra.mxu0 0.0
        %3560 = vmatprep.subr.mxu0 0.0
        %3561 = vmatpush1.xpose.msra.mxu0 0.0
        %3562 = vmatprep.subr.mxu0 0.0
        %3563 = vmatpush1.xpose.msra.mxu0 0.0
        %3564 = vmatprep.subr.mxu0 0.0
        %3565 = vmatpush1.xpose.msra.mxu0 0.0
        %3566 = vmatprep.subr.mxu0 0.0
        %3567 = vmatpush1.xpose.msra.mxu0 0.0
        %3568 = vmatprep.subr.mxu0 0.0
        %3569 = vmatpush1.xpose.msra.mxu0 0.0
        %3570 = vmatprep.subr.mxu0 0.0
        %3571 = vmatpush1.xpose.msra.mxu0 0.0
        %3572 = vmatprep.subr.mxu0 0.0
        %3573 = vmatpush1.xpose.msra.mxu0 0.0
        %3574 = vmatprep.subr.mxu0 0.0
        %3575 = vmatpush1.xpose.msra.mxu0 0.0
        %3576 = vmatprep.subr.mxu0 0.0
        %3577 = vmatpush1.xpose.msra.mxu0 0.0
        %3578 = vmatprep.subr.mxu0 0.0
        %3579 = vmatpush1.xpose.msra.mxu0 0.0
        %3580 = vmatprep.subr.mxu0 0.0
        %3581 = vmatpush1.xpose.msra.mxu0 0.0
        %3582 = vmatprep.subr.mxu0 0.0
        %3583 = vmatpush1.xpose.msra.mxu0 0.0
        %3584 = vmatprep.subr.mxu0 0.0
        %3585 = vmatpush1.xpose.msra.mxu0 0.0
        %3586 = vmatprep.subr.mxu0 0.0
        %3587 = vmatpush1.xpose.msra.mxu0 0.0
        %3588 = vmatprep.subr.mxu0 0.0
        %3589 = vmatpush1.xpose.msra.mxu0 0.0
        %3590 = vmatprep.subr.mxu0 0.0
        %3591 = vmatpush1.xpose.msra.mxu0 0.0
        %3592 = vmatprep.subr.mxu0 0.0
        %3593 = vmatpush1.xpose.msra.mxu0 0.0
        %3594 = vmatprep.subr.mxu0 0.0
        %3595 = vmatpush1.xpose.msra.mxu0 0.0
        %3596 = vmatprep.subr.mxu0 0.0
        %3597 = vmatpush1.xpose.msra.mxu0 0.0
        %3598 = vmatprep.subr.mxu0 0.0
        %3599 = vmatpush1.xpose.msra.mxu0 0.0
        %3600 = vmatprep.subr.mxu0 0.0
        %3601 = vmatpush1.xpose.msra.mxu0 0.0
        %3602 = vmatprep.subr.mxu0 0.0
        %3603 = vmatpush1.xpose.msra.mxu0 0.0
        %3604 = vmatprep.subr.mxu0 0.0
        %3605 = vmatpush1.xpose.msra.mxu0 0.0
        %3606 = vmatprep.mubr.f32.mxu0 0.0
        %v3607 = vand.u32 %v3234, 4294901760
        %3608 = vmatmul.mubr.f32.gmra.mrb[0].mxu0 %v3607
        %v3609 = vpop.f32.mrb[0].mxu0
        %v3610 = vadd.f32 %v3536, %v3609
        %v3611 = vpop.f32.mrb[0].mxu0
        %3612 = vdwg.mxu0
        %3613 = vmatprep.subr.mxu0 0.0
        %v3614 = vand.u32 %v3237, 4294901760
        %3615 = vmatpush1.xpose.msra.mxu0 %v3614
        %3616 = vmatprep.subr.mxu0 0.0
        %3617 = vmatpush1.xpose.msra.mxu0 0.0
        %3618 = vmatprep.subr.mxu0 0.0
        %3619 = vmatpush1.xpose.msra.mxu0 0.0
        %3620 = vmatprep.subr.mxu0 0.0
        %3621 = vmatpush1.xpose.msra.mxu0 0.0
        %3622 = vmatprep.subr.mxu0 0.0
        %3623 = vmatpush1.xpose.msra.mxu0 0.0
        %3624 = vmatprep.subr.mxu0 0.0
        %3625 = vmatpush1.xpose.msra.mxu0 0.0
        %3626 = vmatprep.subr.mxu0 0.0
        %3627 = vmatpush1.xpose.msra.mxu0 0.0
        %3628 = vmatprep.subr.mxu0 0.0
        %3629 = vmatpush1.xpose.msra.mxu0 0.0
        %3630 = vmatprep.subr.mxu0 0.0
        %3631 = vmatpush1.xpose.msra.mxu0 0.0
        %3632 = vmatprep.subr.mxu0 0.0
        %3633 = vmatpush1.xpose.msra.mxu0 0.0
        %3634 = vmatprep.subr.mxu0 0.0
        %3635 = vmatpush1.xpose.msra.mxu0 0.0
        %3636 = vmatprep.subr.mxu0 0.0
        %3637 = vmatpush1.xpose.msra.mxu0 0.0
        %3638 = vmatprep.subr.mxu0 0.0
        %3639 = vmatpush1.xpose.msra.mxu0 0.0
        %3640 = vmatprep.subr.mxu0 0.0
        %3641 = vmatpush1.xpose.msra.mxu0 0.0
        %3642 = vmatprep.subr.mxu0 0.0
        %3643 = vmatpush1.xpose.msra.mxu0 0.0
        %3644 = vmatprep.subr.mxu0 0.0
        %3645 = vmatpush1.xpose.msra.mxu0 0.0
        %3646 = vmatprep.subr.mxu0 0.0
        %3647 = vmatpush1.xpose.msra.mxu0 0.0
        %3648 = vmatprep.subr.mxu0 0.0
        %3649 = vmatpush1.xpose.msra.mxu0 0.0
        %3650 = vmatprep.subr.mxu0 0.0
        %3651 = vmatpush1.xpose.msra.mxu0 0.0
        %3652 = vmatprep.subr.mxu0 0.0
        %3653 = vmatpush1.xpose.msra.mxu0 0.0
        %3654 = vmatprep.subr.mxu0 0.0
        %3655 = vmatpush1.xpose.msra.mxu0 0.0
        %3656 = vmatprep.subr.mxu0 0.0
        %3657 = vmatpush1.xpose.msra.mxu0 0.0
        %3658 = vmatprep.subr.mxu0 0.0
        %3659 = vmatpush1.xpose.msra.mxu0 0.0
        %3660 = vmatprep.subr.mxu0 0.0
        %3661 = vmatpush1.xpose.msra.mxu0 0.0
        %3662 = vmatprep.subr.mxu0 0.0
        %3663 = vmatpush1.xpose.msra.mxu0 0.0
        %3664 = vmatprep.subr.mxu0 0.0
        %3665 = vmatpush1.xpose.msra.mxu0 0.0
        %3666 = vmatprep.subr.mxu0 0.0
        %3667 = vmatpush1.xpose.msra.mxu0 0.0
        %3668 = vmatprep.subr.mxu0 0.0
        %3669 = vmatpush1.xpose.msra.mxu0 0.0
        %3670 = vmatprep.subr.mxu0 0.0
        %3671 = vmatpush1.xpose.msra.mxu0 0.0
        %3672 = vmatprep.subr.mxu0 0.0
        %3673 = vmatpush1.xpose.msra.mxu0 0.0
        %3674 = vmatprep.subr.mxu0 0.0
        %3675 = vmatpush1.xpose.msra.mxu0 0.0
        %3676 = vmatprep.subr.mxu0 0.0
        %3677 = vmatpush1.xpose.msra.mxu0 0.0
        %3678 = vmatprep.mubr.f32.mxu0 0.0
        %v3679 = vand.u32 %v3234, 4294901760
        %3680 = vmatmul.mubr.f32.gmra.mrb[0].mxu0 %v3679
        %v3681 = vpop.f32.mrb[0].mxu0
        %v3682 = vadd.f32 %v3610, %v3681
        %v3683 = vpop.f32.mrb[0].mxu0
        %3684 = vdwg.mxu0
        %v3685 = vsel %vm1876, %v2326, -inf
        %3686 = vmax.xlane.f32.xlu0 %v3685
        %v3687 = vpop.xlane.xlu0 %3686
        %v3688 = vsel %vm1876, %v2778, -inf
        %3689 = vmax.xlane.f32.xlu0 %v3688
        %v3690 = vpop.xlane.xlu0 %3689
        %v3691 = vsel %vm1876, %v3230, -inf
        %3692 = vmax.xlane.f32.xlu0 %v3691
        %v3693 = vpop.xlane.xlu0 %3692
        %v3694 = vsel %vm1876, %v3682, -inf
        %3695 = vmax.xlane.f32.xlu0 %v3694
        %v3696 = vpop.xlane.xlu0 %3695
        %v3697 = vsub.f32 %v2326, %v3687
        %v3698 = vsub.f32 %v2778, %v3690
        %v3699 = vsub.f32 %v3230, %v3693
        %v3700 = vsub.f32 %v3682, %v3696
        %v3701 = vmul.f32 %v3697, 1.442695
        %v3702 = vpow.pop %v3701
        %v3703 = vmul.f32 %v3698, 1.442695
        %v3704 = vpow.pop %v3703
        %v3705 = vmul.f32 %v3699, 1.442695
        %v3706 = vpow.pop %v3705
        %v3707 = vmul.f32 %v3700, 1.442695
        %v3708 = vpow.pop %v3707
        %v3709 = vsel %vm1876, %v3702, 0.0
        %3710 = vadd.xlane.f32.xlu0 %v3709
        %v3711 = vpop.xlane.xlu0 %3710
        %v3712 = vsel %vm1876, %v3704, 0.0
        %3713 = vadd.xlane.f32.xlu0 %v3712
        %v3714 = vpop.xlane.xlu0 %3713
        %v3715 = vsel %vm1876, %v3706, 0.0
        %3716 = vadd.xlane.f32.xlu0 %v3715
        %v3717 = vpop.xlane.xlu0 %3716
        %v3718 = vsel %vm1876, %v3708, 0.0
        %3719 = vadd.xlane.f32.xlu0 %v3718
        %v3720 = vpop.xlane.xlu0 %3719
        %v3722 = vsel %vm1876, %v3702, 0
        %3724 = vmatprep.subr.mxu0 0.0
        %v3725 = vand.u32 %v1872, 4294901760
        %3726 = vmatpush1.msra.mxu0 %v3725
        %3727 = vmatprep.subr.mxu0 0.0
        %3728 = vmatpush1.msra.mxu0 0.0
        %3729 = vmatprep.subr.mxu0 0.0
        %3730 = vmatpush1.msra.mxu0 0.0
        %3731 = vmatprep.subr.mxu0 0.0
        %3732 = vmatpush1.msra.mxu0 0.0
        %3733 = vmatprep.subr.mxu0 0.0
        %3734 = vmatpush1.msra.mxu0 0.0
        %3735 = vmatprep.subr.mxu0 0.0
        %3736 = vmatpush1.msra.mxu0 0.0
        %3737 = vmatprep.subr.mxu0 0.0
        %3738 = vmatpush1.msra.mxu0 0.0
        %3739 = vmatprep.subr.mxu0 0.0
        %3740 = vmatpush1.msra.mxu0 0.0
        %3741 = vmatprep.subr.mxu0 0.0
        %3742 = vmatpush1.msra.mxu0 0.0
        %3743 = vmatprep.subr.mxu0 0.0
        %3744 = vmatpush1.msra.mxu0 0.0
        %3745 = vmatprep.subr.mxu0 0.0
        %3746 = vmatpush1.msra.mxu0 0.0
        %3747 = vmatprep.subr.mxu0 0.0
        %3748 = vmatpush1.msra.mxu0 0.0
        %3749 = vmatprep.subr.mxu0 0.0
        %3750 = vmatpush1.msra.mxu0 0.0
        %3751 = vmatprep.subr.mxu0 0.0
        %3752 = vmatpush1.msra.mxu0 0.0
        %3753 = vmatprep.subr.mxu0 0.0
        %3754 = vmatpush1.msra.mxu0 0.0
        %3755 = vmatprep.subr.mxu0 0.0
        %3756 = vmatpush1.msra.mxu0 0.0
        %3757 = vmatprep.subr.mxu0 0.0
        %3758 = vmatpush1.msra.mxu0 0.0
        %3759 = vmatprep.subr.mxu0 0.0
        %3760 = vmatpush1.msra.mxu0 0.0
        %3761 = vmatprep.subr.mxu0 0.0
        %3762 = vmatpush1.msra.mxu0 0.0
        %3763 = vmatprep.subr.mxu0 0.0
        %3764 = vmatpush1.msra.mxu0 0.0
        %3765 = vmatprep.subr.mxu0 0.0
        %3766 = vmatpush1.msra.mxu0 0.0
        %3767 = vmatprep.subr.mxu0 0.0
        %3768 = vmatpush1.msra.mxu0 0.0
        %3769 = vmatprep.subr.mxu0 0.0
        %3770 = vmatpush1.msra.mxu0 0.0
        %3771 = vmatprep.subr.mxu0 0.0
        %3772 = vmatpush1.msra.mxu0 0.0
        %3773 = vmatprep.subr.mxu0 0.0
        %3774 = vmatpush1.msra.mxu0 0.0
        %3775 = vmatprep.subr.mxu0 0.0
        %3776 = vmatpush1.msra.mxu0 0.0
        %3777 = vmatprep.subr.mxu0 0.0
        %3778 = vmatpush1.msra.mxu0 0.0
        %3779 = vmatprep.subr.mxu0 0.0
        %3780 = vmatpush1.msra.mxu0 0.0
        %3781 = vmatprep.subr.mxu0 0.0
        %3782 = vmatpush1.msra.mxu0 0.0
        %3783 = vmatprep.subr.mxu0 0.0
        %3784 = vmatpush1.msra.mxu0 0.0
        %3785 = vmatprep.subr.mxu0 0.0
        %3786 = vmatpush1.msra.mxu0 0.0
        %3787 = vmatprep.subr.mxu0 0.0
        %3788 = vmatpush1.msra.mxu0 0.0
        %3789 = vmatprep.mubr.f32.mxu0 0.0
        %v3790 = vand.u32 %v3722, 4294901760
        %v3791 = vsub.f32 %v3722, %v3790
        %v3792 = vand.u32 %v3791, 4294901760
        %v3793 = vsub.f32 %v3791, %v3792
        %v3794 = vand.u32 %v3793, 4294901760
        %3795 = vmatmul.mubr.f32.gmra.mrb[0].mxu0 %v3794
        %v3796 = vpop.f32.mrb[0].mxu0
        %v3797 = vadd.f32 0.0, %v3796
        %v3798 = vpop.f32.mrb[0].mxu0
        %3799 = vdwg.mxu0
        %3800 = vmatprep.subr.mxu0 0.0
        %v3801 = vand.u32 %v1872, 4294901760
        %v3802 = vsub.f32 %v1872, %v3801
        %v3803 = vand.u32 %v3802, 4294901760
        %v3804 = vsub.f32 %v3802, %v3803
        %v3805 = vand.u32 %v3804, 4294901760
        %3806 = vmatpush1.msra.mxu0 %v3805
        %3807 = vmatprep.subr.mxu0 0.0
        %3808 = vmatpush1.msra.mxu0 0.0
        %3809 = vmatprep.subr.mxu0 0.0
        %3810 = vmatpush1.msra.mxu0 0.0
        %3811 = vmatprep.subr.mxu0 0.0
        %3812 = vmatpush1.msra.mxu0 0.0
        %3813 = vmatprep.subr.mxu0 0.0
        %3814 = vmatpush1.msra.mxu0 0.0
        %3815 = vmatprep.subr.mxu0 0.0
        %3816 = vmatpush1.msra.mxu0 0.0
        %3817 = vmatprep.subr.mxu0 0.0
        %3818 = vmatpush1.msra.mxu0 0.0
        %3819 = vmatprep.subr.mxu0 0.0
        %3820 = vmatpush1.msra.mxu0 0.0
        %3821 = vmatprep.subr.mxu0 0.0
        %3822 = vmatpush1.msra.mxu0 0.0
        %3823 = vmatprep.subr.mxu0 0.0
        %3824 = vmatpush1.msra.mxu0 0.0
        %3825 = vmatprep.subr.mxu0 0.0
        %3826 = vmatpush1.msra.mxu0 0.0
        %3827 = vmatprep.subr.mxu0 0.0
        %3828 = vmatpush1.msra.mxu0 0.0
        %3829 = vmatprep.subr.mxu0 0.0
        %3830 = vmatpush1.msra.mxu0 0.0
        %3831 = vmatprep.subr.mxu0 0.0
        %3832 = vmatpush1.msra.mxu0 0.0
        %3833 = vmatprep.subr.mxu0 0.0
        %3834 = vmatpush1.msra.mxu0 0.0
        %3835 = vmatprep.subr.mxu0 0.0
        %3836 = vmatpush1.msra.mxu0 0.0
        %3837 = vmatprep.subr.mxu0 0.0
        %3838 = vmatpush1.msra.mxu0 0.0
        %3839 = vmatprep.subr.mxu0 0.0
        %3840 = vmatpush1.msra.mxu0 0.0
        %3841 = vmatprep.subr.mxu0 0.0
        %3842 = vmatpush1.msra.mxu0 0.0
        %3843 = vmatprep.subr.mxu0 0.0
        %3844 = vmatpush1.msra.mxu0 0.0
        %3845 = vmatprep.subr.mxu0 0.0
        %3846 = vmatpush1.msra.mxu0 0.0
        %3847 = vmatprep.subr.mxu0 0.0
        %3848 = vmatpush1.msra.mxu0 0.0
        %3849 = vmatprep.subr.mxu0 0.0
        %3850 = vmatpush1.msra.mxu0 0.0
        %3851 = vmatprep.subr.mxu0 0.0
        %3852 = vmatpush1.msra.mxu0 0.0
        %3853 = vmatprep.subr.mxu0 0.0
        %3854 = vmatpush1.msra.mxu0 0.0
        %3855 = vmatprep.subr.mxu0 0.0
        %3856 = vmatpush1.msra.mxu0 0.0
        %3857 = vmatprep.subr.mxu0 0.0
        %3858 = vmatpush1.msra.mxu0 0.0
        %3859 = vmatprep.subr.mxu0 0.0
        %3860 = vmatpush1.msra.mxu0 0.0
        %3861 = vmatprep.subr.mxu0 0.0
        %3862 = vmatpush1.msra.mxu0 0.0
        %3863 = vmatprep.subr.mxu0 0.0
        %3864 = vmatpush1.msra.mxu0 0.0
        %3865 = vmatprep.subr.mxu0 0.0
        %3866 = vmatpush1.msra.mxu0 0.0
        %3867 = vmatprep.subr.mxu0 0.0
        %3868 = vmatpush1.msra.mxu0 0.0
        %3869 = vmatprep.mubr.f32.mxu0 0.0
        %v3870 = vand.u32 %v3722, 4294901760
        %3871 = vmatmul.mubr.f32.gmra.mrb[0].mxu0 %v3870
        %v3872 = vpop.f32.mrb[0].mxu0
        %v3873 = vadd.f32 %v3797, %v3872
        %v3874 = vpop.f32.mrb[0].mxu0
        %3875 = vdwg.mxu0
        %3876 = vmatprep.subr.mxu0 0.0
        %v3877 = vand.u32 %v1872, 4294901760
        %v3878 = vsub.f32 %v1872, %v3877
        %3879 = vmatpush1.msra.mxu0 %v3878
        %3880 = vmatprep.subr.mxu0 0.0
        %3881 = vmatpush1.msra.mxu0 0.0
        %3882 = vmatprep.subr.mxu0 0.0
        %3883 = vmatpush1.msra.mxu0 0.0
        %3884 = vmatprep.subr.mxu0 0.0
        %3885 = vmatpush1.msra.mxu0 0.0
        %3886 = vmatprep.subr.mxu0 0.0
        %3887 = vmatpush1.msra.mxu0 0.0
        %3888 = vmatprep.subr.mxu0 0.0
        %3889 = vmatpush1.msra.mxu0 0.0
        %3890 = vmatprep.subr.mxu0 0.0
        %3891 = vmatpush1.msra.mxu0 0.0
        %3892 = vmatprep.subr.mxu0 0.0
        %3893 = vmatpush1.msra.mxu0 0.0
        %3894 = vmatprep.subr.mxu0 0.0
        %3895 = vmatpush1.msra.mxu0 0.0
        %3896 = vmatprep.subr.mxu0 0.0
        %3897 = vmatpush1.msra.mxu0 0.0
        %3898 = vmatprep.subr.mxu0 0.0
        %3899 = vmatpush1.msra.mxu0 0.0
        %3900 = vmatprep.subr.mxu0 0.0
        %3901 = vmatpush1.msra.mxu0 0.0
        %3902 = vmatprep.subr.mxu0 0.0
        %3903 = vmatpush1.msra.mxu0 0.0
        %3904 = vmatprep.subr.mxu0 0.0
        %3905 = vmatpush1.msra.mxu0 0.0
        %3906 = vmatprep.subr.mxu0 0.0
        %3907 = vmatpush1.msra.mxu0 0.0
        %3908 = vmatprep.subr.mxu0 0.0
        %3909 = vmatpush1.msra.mxu0 0.0
        %3910 = vmatprep.subr.mxu0 0.0
        %3911 = vmatpush1.msra.mxu0 0.0
        %3912 = vmatprep.subr.mxu0 0.0
        %3913 = vmatpush1.msra.mxu0 0.0
        %3914 = vmatprep.subr.mxu0 0.0
        %3915 = vmatpush1.msra.mxu0 0.0
        %3916 = vmatprep.subr.mxu0 0.0
        %3917 = vmatpush1.msra.mxu0 0.0
        %3918 = vmatprep.subr.mxu0 0.0
        %3919 = vmatpush1.msra.mxu0 0.0
        %3920 = vmatprep.subr.mxu0 0.0
        %3921 = vmatpush1.msra.mxu0 0.0
        %3922 = vmatprep.subr.mxu0 0.0
        %3923 = vmatpush1.msra.mxu0 0.0
        %3924 = vmatprep.subr.mxu0 0.0
        %3925 = vmatpush1.msra.mxu0 0.0
        %3926 = vmatprep.subr.mxu0 0.0
        %3927 = vmatpush1.msra.mxu0 0.0
        %3928 = vmatprep.subr.mxu0 0.0
        %3929 = vmatpush1.msra.mxu0 0.0
        %3930 = vmatprep.subr.mxu0 0.0
        %3931 = vmatpush1.msra.mxu0 0.0
        %3932 = vmatprep.subr.mxu0 0.0
        %3933 = vmatpush1.msra.mxu0 0.0
        %3934 = vmatprep.subr.mxu0 0.0
        %3935 = vmatpush1.msra.mxu0 0.0
        %3936 = vmatprep.subr.mxu0 0.0
        %3937 = vmatpush1.msra.mxu0 0.0
        %3938 = vmatprep.subr.mxu0 0.0
        %3939 = vmatpush1.msra.mxu0 0.0
        %3940 = vmatprep.subr.mxu0 0.0
        %3941 = vmatpush1.msra.mxu0 0.0
        %3942 = vmatprep.mubr.f32.mxu0 0.0
        %v3943 = vand.u32 %v3722, 4294901760
        %v3944 = vsub.f32 %v3722, %v3943
        %3945 = vmatmul.mubr.f32.gmra.mrb[0].mxu0 %v3944
        %v3946 = vpop.f32.mrb[0].mxu0
        %v3947 = vadd.f32 %v3873, %v3946
        %v3948 = vpop.f32.mrb[0].mxu0
        %3949 = vdwg.mxu0
        %3950 = vmatprep.subr.mxu0 0.0
        %v3951 = vand.u32 %v1872, 4294901760
        %3952 = vmatpush1.msra.mxu0 %v3951
        %3953 = vmatprep.subr.mxu0 0.0
        %3954 = vmatpush1.msra.mxu0 0.0
        %3955 = vmatprep.subr.mxu0 0.0
        %3956 = vmatpush1.msra.mxu0 0.0
        %3957 = vmatprep.subr.mxu0 0.0
        %3958 = vmatpush1.msra.mxu0 0.0
        %3959 = vmatprep.subr.mxu0 0.0
        %3960 = vmatpush1.msra.mxu0 0.0
        %3961 = vmatprep.subr.mxu0 0.0
        %3962 = vmatpush1.msra.mxu0 0.0
        %3963 = vmatprep.subr.mxu0 0.0
        %3964 = vmatpush1.msra.mxu0 0.0
        %3965 = vmatprep.subr.mxu0 0.0
        %3966 = vmatpush1.msra.mxu0 0.0
        %3967 = vmatprep.subr.mxu0 0.0
        %3968 = vmatpush1.msra.mxu0 0.0
        %3969 = vmatprep.subr.mxu0 0.0
        %3970 = vmatpush1.msra.mxu0 0.0
        %3971 = vmatprep.subr.mxu0 0.0
        %3972 = vmatpush1.msra.mxu0 0.0
        %3973 = vmatprep.subr.mxu0 0.0
        %3974 = vmatpush1.msra.mxu0 0.0
        %3975 = vmatprep.subr.mxu0 0.0
        %3976 = vmatpush1.msra.mxu0 0.0
        %3977 = vmatprep.subr.mxu0 0.0
        %3978 = vmatpush1.msra.mxu0 0.0
        %3979 = vmatprep.subr.mxu0 0.0
        %3980 = vmatpush1.msra.mxu0 0.0
        %3981 = vmatprep.subr.mxu0 0.0
        %3982 = vmatpush1.msra.mxu0 0.0
        %3983 = vmatprep.subr.mxu0 0.0
        %3984 = vmatpush1.msra.mxu0 0.0
        %3985 = vmatprep.subr.mxu0 0.0
        %3986 = vmatpush1.msra.mxu0 0.0
        %3987 = vmatprep.subr.mxu0 0.0
        %3988 = vmatpush1.msra.mxu0 0.0
        %3989 = vmatprep.subr.mxu0 0.0
        %3990 = vmatpush1.msra.mxu0 0.0
        %3991 = vmatprep.subr.mxu0 0.0
        %3992 = vmatpush1.msra.mxu0 0.0
        %3993 = vmatprep.subr.mxu0 0.0
        %3994 = vmatpush1.msra.mxu0 0.0
        %3995 = vmatprep.subr.mxu0 0.0
        %3996 = vmatpush1.msra.mxu0 0.0
        %3997 = vmatprep.subr.mxu0 0.0
        %3998 = vmatpush1.msra.mxu0 0.0
        %3999 = vmatprep.subr.mxu0 0.0
        %4000 = vmatpush1.msra.mxu0 0.0
        %4001 = vmatprep.subr.mxu0 0.0
        %4002 = vmatpush1.msra.mxu0 0.0
        %4003 = vmatprep.subr.mxu0 0.0
        %4004 = vmatpush1.msra.mxu0 0.0
        %4005 = vmatprep.subr.mxu0 0.0
        %4006 = vmatpush1.msra.mxu0 0.0
        %4007 = vmatprep.subr.mxu0 0.0
        %4008 = vmatpush1.msra.mxu0 0.0
        %4009 = vmatprep.subr.mxu0 0.0
        %4010 = vmatpush1.msra.mxu0 0.0
        %4011 = vmatprep.subr.mxu0 0.0
        %4012 = vmatpush1.msra.mxu0 0.0
        %4013 = vmatprep.subr.mxu0 0.0
        %4014 = vmatpush1.msra.mxu0 0.0
        %4015 = vmatprep.mubr.f32.mxu0 0.0
        %v4016 = vand.u32 %v3722, 4294901760
        %v4017 = vsub.f32 %v3722, %v4016
        %v4018 = vand.u32 %v4017, 4294901760
        %4019 = vmatmul.mubr.f32.gmra.mrb[0].mxu0 %v4018
        %v4020 = vpop.f32.mrb[0].mxu0
        %v4021 = vadd.f32 %v3947, %v4020
        %v4022 = vpop.f32.mrb[0].mxu0
        %4023 = vdwg.mxu0
        %4024 = vmatprep.subr.mxu0 0.0
        %v4025 = vand.u32 %v1872, 4294901760
        %v4026 = vsub.f32 %v1872, %v4025
        %v4027 = vand.u32 %v4026, 4294901760
        %4028 = vmatpush1.msra.mxu0 %v4027
        %4029 = vmatprep.subr.mxu0 0.0
        %4030 = vmatpush1.msra.mxu0 0.0
        %4031 = vmatprep.subr.mxu0 0.0
        %4032 = vmatpush1.msra.mxu0 0.0
        %4033 = vmatprep.subr.mxu0 0.0
        %4034 = vmatpush1.msra.mxu0 0.0
        %4035 = vmatprep.subr.mxu0 0.0
        %4036 = vmatpush1.msra.mxu0 0.0
        %4037 = vmatprep.subr.mxu0 0.0
        %4038 = vmatpush1.msra.mxu0 0.0
        %4039 = vmatprep.subr.mxu0 0.0
        %4040 = vmatpush1.msra.mxu0 0.0
        %4041 = vmatprep.subr.mxu0 0.0
        %4042 = vmatpush1.msra.mxu0 0.0
        %4043 = vmatprep.subr.mxu0 0.0
        %4044 = vmatpush1.msra.mxu0 0.0
        %4045 = vmatprep.subr.mxu0 0.0
        %4046 = vmatpush1.msra.mxu0 0.0
        %4047 = vmatprep.subr.mxu0 0.0
        %4048 = vmatpush1.msra.mxu0 0.0
        %4049 = vmatprep.subr.mxu0 0.0
        %4050 = vmatpush1.msra.mxu0 0.0
        %4051 = vmatprep.subr.mxu0 0.0
        %4052 = vmatpush1.msra.mxu0 0.0
        %4053 = vmatprep.subr.mxu0 0.0
        %4054 = vmatpush1.msra.mxu0 0.0
        %4055 = vmatprep.subr.mxu0 0.0
        %4056 = vmatpush1.msra.mxu0 0.0
        %4057 = vmatprep.subr.mxu0 0.0
        %4058 = vmatpush1.msra.mxu0 0.0
        %4059 = vmatprep.subr.mxu0 0.0
        %4060 = vmatpush1.msra.mxu0 0.0
        %4061 = vmatprep.subr.mxu0 0.0
        %4062 = vmatpush1.msra.mxu0 0.0
        %4063 = vmatprep.subr.mxu0 0.0
        %4064 = vmatpush1.msra.mxu0 0.0
        %4065 = vmatprep.subr.mxu0 0.0
        %4066 = vmatpush1.msra.mxu0 0.0
        %4067 = vmatprep.subr.mxu0 0.0
        %4068 = vmatpush1.msra.mxu0 0.0
        %4069 = vmatprep.subr.mxu0 0.0
        %4070 = vmatpush1.msra.mxu0 0.0
        %4071 = vmatprep.subr.mxu0 0.0
        %4072 = vmatpush1.msra.mxu0 0.0
        %4073 = vmatprep.subr.mxu0 0.0
        %4074 = vmatpush1.msra.mxu0 0.0
        %4075 = vmatprep.subr.mxu0 0.0
        %4076 = vmatpush1.msra.mxu0 0.0
        %4077 = vmatprep.subr.mxu0 0.0
        %4078 = vmatpush1.msra.mxu0 0.0
        %4079 = vmatprep.subr.mxu0 0.0
        %4080 = vmatpush1.msra.mxu0 0.0
        %4081 = vmatprep.subr.mxu0 0.0
        %4082 = vmatpush1.msra.mxu0 0.0
        %4083 = vmatprep.subr.mxu0 0.0
        %4084 = vmatpush1.msra.mxu0 0.0
        %4085 = vmatprep.subr.mxu0 0.0
        %4086 = vmatpush1.msra.mxu0 0.0
        %4087 = vmatprep.subr.mxu0 0.0
        %4088 = vmatpush1.msra.mxu0 0.0
        %4089 = vmatprep.subr.mxu0 0.0
        %4090 = vmatpush1.msra.mxu0 0.0
        %4091 = vmatprep.mubr.f32.mxu0 0.0
        %v4092 = vand.u32 %v3722, 4294901760
        %4093 = vmatmul.mubr.f32.gmra.mrb[0].mxu0 %v4092
        %v4094 = vpop.f32.mrb[0].mxu0
        %v4095 = vadd.f32 %v4021, %v4094
        %v4096 = vpop.f32.mrb[0].mxu0
        %4097 = vdwg.mxu0
        %4098 = vmatprep.subr.mxu0 0.0
        %v4099 = vand.u32 %v1872, 4294901760
        %4100 = vmatpush1.msra.mxu0 %v4099
        %4101 = vmatprep.subr.mxu0 0.0
        %4102 = vmatpush1.msra.mxu0 0.0
        %4103 = vmatprep.subr.mxu0 0.0
        %4104 = vmatpush1.msra.mxu0 0.0
        %4105 = vmatprep.subr.mxu0 0.0
        %4106 = vmatpush1.msra.mxu0 0.0
        %4107 = vmatprep.subr.mxu0 0.0
        %4108 = vmatpush1.msra.mxu0 0.0
        %4109 = vmatprep.subr.mxu0 0.0
        %4110 = vmatpush1.msra.mxu0 0.0
        %4111 = vmatprep.subr.mxu0 0.0
        %4112 = vmatpush1.msra.mxu0 0.0
        %4113 = vmatprep.subr.mxu0 0.0
        %4114 = vmatpush1.msra.mxu0 0.0
        %4115 = vmatprep.subr.mxu0 0.0
        %4116 = vmatpush1.msra.mxu0 0.0
        %4117 = vmatprep.subr.mxu0 0.0
        %4118 = vmatpush1.msra.mxu0 0.0
        %4119 = vmatprep.subr.mxu0 0.0
        %4120 = vmatpush1.msra.mxu0 0.0
        %4121 = vmatprep.subr.mxu0 0.0
        %4122 = vmatpush1.msra.mxu0 0.0
        %4123 = vmatprep.subr.mxu0 0.0
        %4124 = vmatpush1.msra.mxu0 0.0
        %4125 = vmatprep.subr.mxu0 0.0
        %4126 = vmatpush1.msra.mxu0 0.0
        %4127 = vmatprep.subr.mxu0 0.0
        %4128 = vmatpush1.msra.mxu0 0.0
        %4129 = vmatprep.subr.mxu0 0.0
        %4130 = vmatpush1.msra.mxu0 0.0
        %4131 = vmatprep.subr.mxu0 0.0
        %4132 = vmatpush1.msra.mxu0 0.0
        %4133 = vmatprep.subr.mxu0 0.0
        %4134 = vmatpush1.msra.mxu0 0.0
        %4135 = vmatprep.subr.mxu0 0.0
        %4136 = vmatpush1.msra.mxu0 0.0
        %4137 = vmatprep.subr.mxu0 0.0
        %4138 = vmatpush1.msra.mxu0 0.0
        %4139 = vmatprep.subr.mxu0 0.0
        %4140 = vmatpush1.msra.mxu0 0.0
        %4141 = vmatprep.subr.mxu0 0.0
        %4142 = vmatpush1.msra.mxu0 0.0
        %4143 = vmatprep.subr.mxu0 0.0
        %4144 = vmatpush1.msra.mxu0 0.0
        %4145 = vmatprep.subr.mxu0 0.0
        %4146 = vmatpush1.msra.mxu0 0.0
        %4147 = vmatprep.subr.mxu0 0.0
        %4148 = vmatpush1.msra.mxu0 0.0
        %4149 = vmatprep.subr.mxu0 0.0
        %4150 = vmatpush1.msra.mxu0 0.0
        %4151 = vmatprep.subr.mxu0 0.0
        %4152 = vmatpush1.msra.mxu0 0.0
        %4153 = vmatprep.subr.mxu0 0.0
        %4154 = vmatpush1.msra.mxu0 0.0
        %4155 = vmatprep.subr.mxu0 0.0
        %4156 = vmatpush1.msra.mxu0 0.0
        %4157 = vmatprep.subr.mxu0 0.0
        %4158 = vmatpush1.msra.mxu0 0.0
        %4159 = vmatprep.subr.mxu0 0.0
        %4160 = vmatpush1.msra.mxu0 0.0
        %4161 = vmatprep.subr.mxu0 0.0
        %4162 = vmatpush1.msra.mxu0 0.0
        %4163 = vmatprep.mubr.f32.mxu0 0.0
        %v4164 = vand.u32 %v3722, 4294901760
        %4165 = vmatmul.mubr.f32.gmra.mrb[0].mxu0 %v4164
        %v4166 = vpop.f32.mrb[0].mxu0
        %v4167 = vadd.f32 %v4095, %v4166
        %v4168 = vpop.f32.mrb[0].mxu0
        %4169 = vdwg.mxu0
        %v4171 = vsel %vm1876, %v3704, 0
        %4173 = vmatprep.subr.mxu0 0.0
        %v4174 = vand.u32 %v1873, 4294901760
        %4175 = vmatpush1.msra.mxu0 %v4174
        %4176 = vmatprep.subr.mxu0 0.0
        %4177 = vmatpush1.msra.mxu0 0.0
        %4178 = vmatprep.subr.mxu0 0.0
        %4179 = vmatpush1.msra.mxu0 0.0
        %4180 = vmatprep.subr.mxu0 0.0
        %4181 = vmatpush1.msra.mxu0 0.0
        %4182 = vmatprep.subr.mxu0 0.0
        %4183 = vmatpush1.msra.mxu0 0.0
        %4184 = vmatprep.subr.mxu0 0.0
        %4185 = vmatpush1.msra.mxu0 0.0
        %4186 = vmatprep.subr.mxu0 0.0
        %4187 = vmatpush1.msra.mxu0 0.0
        %4188 = vmatprep.subr.mxu0 0.0
        %4189 = vmatpush1.msra.mxu0 0.0
        %4190 = vmatprep.subr.mxu0 0.0
        %4191 = vmatpush1.msra.mxu0 0.0
        %4192 = vmatprep.subr.mxu0 0.0
        %4193 = vmatpush1.msra.mxu0 0.0
        %4194 = vmatprep.subr.mxu0 0.0
        %4195 = vmatpush1.msra.mxu0 0.0
        %4196 = vmatprep.subr.mxu0 0.0
        %4197 = vmatpush1.msra.mxu0 0.0
        %4198 = vmatprep.subr.mxu0 0.0
        %4199 = vmatpush1.msra.mxu0 0.0
        %4200 = vmatprep.subr.mxu0 0.0
        %4201 = vmatpush1.msra.mxu0 0.0
        %4202 = vmatprep.subr.mxu0 0.0
        %4203 = vmatpush1.msra.mxu0 0.0
        %4204 = vmatprep.subr.mxu0 0.0
        %4205 = vmatpush1.msra.mxu0 0.0
        %4206 = vmatprep.subr.mxu0 0.0
        %4207 = vmatpush1.msra.mxu0 0.0
        %4208 = vmatprep.subr.mxu0 0.0
        %4209 = vmatpush1.msra.mxu0 0.0
        %4210 = vmatprep.subr.mxu0 0.0
        %4211 = vmatpush1.msra.mxu0 0.0
        %4212 = vmatprep.subr.mxu0 0.0
        %4213 = vmatpush1.msra.mxu0 0.0
        %4214 = vmatprep.subr.mxu0 0.0
        %4215 = vmatpush1.msra.mxu0 0.0
        %4216 = vmatprep.subr.mxu0 0.0
        %4217 = vmatpush1.msra.mxu0 0.0
        %4218 = vmatprep.subr.mxu0 0.0
        %4219 = vmatpush1.msra.mxu0 0.0
        %4220 = vmatprep.subr.mxu0 0.0
        %4221 = vmatpush1.msra.mxu0 0.0
        %4222 = vmatprep.subr.mxu0 0.0
        %4223 = vmatpush1.msra.mxu0 0.0
        %4224 = vmatprep.subr.mxu0 0.0
        %4225 = vmatpush1.msra.mxu0 0.0
        %4226 = vmatprep.subr.mxu0 0.0
        %4227 = vmatpush1.msra.mxu0 0.0
        %4228 = vmatprep.subr.mxu0 0.0
        %4229 = vmatpush1.msra.mxu0 0.0
        %4230 = vmatprep.subr.mxu0 0.0
        %4231 = vmatpush1.msra.mxu0 0.0
        %4232 = vmatprep.subr.mxu0 0.0
        %4233 = vmatpush1.msra.mxu0 0.0
        %4234 = vmatprep.subr.mxu0 0.0
        %4235 = vmatpush1.msra.mxu0 0.0
        %4236 = vmatprep.subr.mxu0 0.0
        %4237 = vmatpush1.msra.mxu0 0.0
        %4238 = vmatprep.mubr.f32.mxu0 0.0
        %v4239 = vand.u32 %v4171, 4294901760
        %v4240 = vsub.f32 %v4171, %v4239
        %v4241 = vand.u32 %v4240, 4294901760
        %v4242 = vsub.f32 %v4240, %v4241
        %v4243 = vand.u32 %v4242, 4294901760
        %4244 = vmatmul.mubr.f32.gmra.mrb[0].mxu0 %v4243
        %v4245 = vpop.f32.mrb[0].mxu0
        %v4246 = vadd.f32 0.0, %v4245
        %v4247 = vpop.f32.mrb[0].mxu0
        %4248 = vdwg.mxu0
        %4249 = vmatprep.subr.mxu0 0.0
        %v4250 = vand.u32 %v1873, 4294901760
        %v4251 = vsub.f32 %v1873, %v4250
        %v4252 = vand.u32 %v4251, 4294901760
        %v4253 = vsub.f32 %v4251, %v4252
        %v4254 = vand.u32 %v4253, 4294901760
        %4255 = vmatpush1.msra.mxu0 %v4254
        %4256 = vmatprep.subr.mxu0 0.0
        %4257 = vmatpush1.msra.mxu0 0.0
        %4258 = vmatprep.subr.mxu0 0.0
        %4259 = vmatpush1.msra.mxu0 0.0
        %4260 = vmatprep.subr.mxu0 0.0
        %4261 = vmatpush1.msra.mxu0 0.0
        %4262 = vmatprep.subr.mxu0 0.0
        %4263 = vmatpush1.msra.mxu0 0.0
        %4264 = vmatprep.subr.mxu0 0.0
        %4265 = vmatpush1.msra.mxu0 0.0
        %4266 = vmatprep.subr.mxu0 0.0
        %4267 = vmatpush1.msra.mxu0 0.0
        %4268 = vmatprep.subr.mxu0 0.0
        %4269 = vmatpush1.msra.mxu0 0.0
        %4270 = vmatprep.subr.mxu0 0.0
        %4271 = vmatpush1.msra.mxu0 0.0
        %4272 = vmatprep.subr.mxu0 0.0
        %4273 = vmatpush1.msra.mxu0 0.0
        %4274 = vmatprep.subr.mxu0 0.0
        %4275 = vmatpush1.msra.mxu0 0.0
        %4276 = vmatprep.subr.mxu0 0.0
        %4277 = vmatpush1.msra.mxu0 0.0
        %4278 = vmatprep.subr.mxu0 0.0
        %4279 = vmatpush1.msra.mxu0 0.0
        %4280 = vmatprep.subr.mxu0 0.0
        %4281 = vmatpush1.msra.mxu0 0.0
        %4282 = vmatprep.subr.mxu0 0.0
        %4283 = vmatpush1.msra.mxu0 0.0
        %4284 = vmatprep.subr.mxu0 0.0
        %4285 = vmatpush1.msra.mxu0 0.0
        %4286 = vmatprep.subr.mxu0 0.0
        %4287 = vmatpush1.msra.mxu0 0.0
        %4288 = vmatprep.subr.mxu0 0.0
        %4289 = vmatpush1.msra.mxu0 0.0
        %4290 = vmatprep.subr.mxu0 0.0
        %4291 = vmatpush1.msra.mxu0 0.0
        %4292 = vmatprep.subr.mxu0 0.0
        %4293 = vmatpush1.msra.mxu0 0.0
        %4294 = vmatprep.subr.mxu0 0.0
        %4295 = vmatpush1.msra.mxu0 0.0
        %4296 = vmatprep.subr.mxu0 0.0
        %4297 = vmatpush1.msra.mxu0 0.0
        %4298 = vmatprep.subr.mxu0 0.0
        %4299 = vmatpush1.msra.mxu0 0.0
        %4300 = vmatprep.subr.mxu0 0.0
        %4301 = vmatpush1.msra.mxu0 0.0
        %4302 = vmatprep.subr.mxu0 0.0
        %4303 = vmatpush1.msra.mxu0 0.0
        %4304 = vmatprep.subr.mxu0 0.0
        %4305 = vmatpush1.msra.mxu0 0.0
        %4306 = vmatprep.subr.mxu0 0.0
        %4307 = vmatpush1.msra.mxu0 0.0
        %4308 = vmatprep.subr.mxu0 0.0
        %4309 = vmatpush1.msra.mxu0 0.0
        %4310 = vmatprep.subr.mxu0 0.0
        %4311 = vmatpush1.msra.mxu0 0.0
        %4312 = vmatprep.subr.mxu0 0.0
        %4313 = vmatpush1.msra.mxu0 0.0
        %4314 = vmatprep.subr.mxu0 0.0
        %4315 = vmatpush1.msra.mxu0 0.0
        %4316 = vmatprep.subr.mxu0 0.0
        %4317 = vmatpush1.msra.mxu0 0.0
        %4318 = vmatprep.mubr.f32.mxu0 0.0
        %v4319 = vand.u32 %v4171, 4294901760
        %4320 = vmatmul.mubr.f32.gmra.mrb[0].mxu0 %v4319
        %v4321 = vpop.f32.mrb[0].mxu0
        %v4322 = vadd.f32 %v4246, %v4321
        %v4323 = vpop.f32.mrb[0].mxu0
        %4324 = vdwg.mxu0
        %4325 = vmatprep.subr.mxu0 0.0
        %v4326 = vand.u32 %v1873, 4294901760
        %v4327 = vsub.f32 %v1873, %v4326
        %4328 = vmatpush1.msra.mxu0 %v4327
        %4329 = vmatprep.subr.mxu0 0.0
        %4330 = vmatpush1.msra.mxu0 0.0
        %4331 = vmatprep.subr.mxu0 0.0
        %4332 = vmatpush1.msra.mxu0 0.0
        %4333 = vmatprep.subr.mxu0 0.0
        %4334 = vmatpush1.msra.mxu0 0.0
        %4335 = vmatprep.subr.mxu0 0.0
        %4336 = vmatpush1.msra.mxu0 0.0
        %4337 = vmatprep.subr.mxu0 0.0
        %4338 = vmatpush1.msra.mxu0 0.0
        %4339 = vmatprep.subr.mxu0 0.0
        %4340 = vmatpush1.msra.mxu0 0.0
        %4341 = vmatprep.subr.mxu0 0.0
        %4342 = vmatpush1.msra.mxu0 0.0
        %4343 = vmatprep.subr.mxu0 0.0
        %4344 = vmatpush1.msra.mxu0 0.0
        %4345 = vmatprep.subr.mxu0 0.0
        %4346 = vmatpush1.msra.mxu0 0.0
        %4347 = vmatprep.subr.mxu0 0.0
        %4348 = vmatpush1.msra.mxu0 0.0
        %4349 = vmatprep.subr.mxu0 0.0
        %4350 = vmatpush1.msra.mxu0 0.0
        %4351 = vmatprep.subr.mxu0 0.0
        %4352 = vmatpush1.msra.mxu0 0.0
        %4353 = vmatprep.subr.mxu0 0.0
        %4354 = vmatpush1.msra.mxu0 0.0
        %4355 = vmatprep.subr.mxu0 0.0
        %4356 = vmatpush1.msra.mxu0 0.0
        %4357 = vmatprep.subr.mxu0 0.0
        %4358 = vmatpush1.msra.mxu0 0.0
        %4359 = vmatprep.subr.mxu0 0.0
        %4360 = vmatpush1.msra.mxu0 0.0
        %4361 = vmatprep.subr.mxu0 0.0
        %4362 = vmatpush1.msra.mxu0 0.0
        %4363 = vmatprep.subr.mxu0 0.0
        %4364 = vmatpush1.msra.mxu0 0.0
        %4365 = vmatprep.subr.mxu0 0.0
        %4366 = vmatpush1.msra.mxu0 0.0
        %4367 = vmatprep.subr.mxu0 0.0
        %4368 = vmatpush1.msra.mxu0 0.0
        %4369 = vmatprep.subr.mxu0 0.0
        %4370 = vmatpush1.msra.mxu0 0.0
        %4371 = vmatprep.subr.mxu0 0.0
        %4372 = vmatpush1.msra.mxu0 0.0
        %4373 = vmatprep.subr.mxu0 0.0
        %4374 = vmatpush1.msra.mxu0 0.0
        %4375 = vmatprep.subr.mxu0 0.0
        %4376 = vmatpush1.msra.mxu0 0.0
        %4377 = vmatprep.subr.mxu0 0.0
        %4378 = vmatpush1.msra.mxu0 0.0
        %4379 = vmatprep.subr.mxu0 0.0
        %4380 = vmatpush1.msra.mxu0 0.0
        %4381 = vmatprep.subr.mxu0 0.0
        %4382 = vmatpush1.msra.mxu0 0.0
        %4383 = vmatprep.subr.mxu0 0.0
        %4384 = vmatpush1.msra.mxu0 0.0
        %4385 = vmatprep.subr.mxu0 0.0
        %4386 = vmatpush1.msra.mxu0 0.0
        %4387 = vmatprep.subr.mxu0 0.0
        %4388 = vmatpush1.msra.mxu0 0.0
        %4389 = vmatprep.subr.mxu0 0.0
        %4390 = vmatpush1.msra.mxu0 0.0
        %4391 = vmatprep.mubr.f32.mxu0 0.0
        %v4392 = vand.u32 %v4171, 4294901760
        %v4393 = vsub.f32 %v4171, %v4392
        %4394 = vmatmul.mubr.f32.gmra.mrb[0].mxu0 %v4393
        %v4395 = vpop.f32.mrb[0].mxu0
        %v4396 = vadd.f32 %v4322, %v4395
        %v4397 = vpop.f32.mrb[0].mxu0
        %4398 = vdwg.mxu0
        %4399 = vmatprep.subr.mxu0 0.0
        %v4400 = vand.u32 %v1873, 4294901760
        %4401 = vmatpush1.msra.mxu0 %v4400
        %4402 = vmatprep.subr.mxu0 0.0
        %4403 = vmatpush1.msra.mxu0 0.0
        %4404 = vmatprep.subr.mxu0 0.0
        %4405 = vmatpush1.msra.mxu0 0.0
        %4406 = vmatprep.subr.mxu0 0.0
        %4407 = vmatpush1.msra.mxu0 0.0
        %4408 = vmatprep.subr.mxu0 0.0
        %4409 = vmatpush1.msra.mxu0 0.0
        %4410 = vmatprep.subr.mxu0 0.0
        %4411 = vmatpush1.msra.mxu0 0.0
        %4412 = vmatprep.subr.mxu0 0.0
        %4413 = vmatpush1.msra.mxu0 0.0
        %4414 = vmatprep.subr.mxu0 0.0
        %4415 = vmatpush1.msra.mxu0 0.0
        %4416 = vmatprep.subr.mxu0 0.0
        %4417 = vmatpush1.msra.mxu0 0.0
        %4418 = vmatprep.subr.mxu0 0.0
        %4419 = vmatpush1.msra.mxu0 0.0
        %4420 = vmatprep.subr.mxu0 0.0
        %4421 = vmatpush1.msra.mxu0 0.0
        %4422 = vmatprep.subr.mxu0 0.0
        %4423 = vmatpush1.msra.mxu0 0.0
        %4424 = vmatprep.subr.mxu0 0.0
        %4425 = vmatpush1.msra.mxu0 0.0
        %4426 = vmatprep.subr.mxu0 0.0
        %4427 = vmatpush1.msra.mxu0 0.0
        %4428 = vmatprep.subr.mxu0 0.0
        %4429 = vmatpush1.msra.mxu0 0.0
        %4430 = vmatprep.subr.mxu0 0.0
        %4431 = vmatpush1.msra.mxu0 0.0
        %4432 = vmatprep.subr.mxu0 0.0
        %4433 = vmatpush1.msra.mxu0 0.0
        %4434 = vmatprep.subr.mxu0 0.0
        %4435 = vmatpush1.msra.mxu0 0.0
        %4436 = vmatprep.subr.mxu0 0.0
        %4437 = vmatpush1.msra.mxu0 0.0
        %4438 = vmatprep.subr.mxu0 0.0
        %4439 = vmatpush1.msra.mxu0 0.0
        %4440 = vmatprep.subr.mxu0 0.0
        %4441 = vmatpush1.msra.mxu0 0.0
        %4442 = vmatprep.subr.mxu0 0.0
        %4443 = vmatpush1.msra.mxu0 0.0
        %4444 = vmatprep.subr.mxu0 0.0
        %4445 = vmatpush1.msra.mxu0 0.0
        %4446 = vmatprep.subr.mxu0 0.0
        %4447 = vmatpush1.msra.mxu0 0.0
        %4448 = vmatprep.subr.mxu0 0.0
        %4449 = vmatpush1.msra.mxu0 0.0
        %4450 = vmatprep.subr.mxu0 0.0
        %4451 = vmatpush1.msra.mxu0 0.0
        %4452 = vmatprep.subr.mxu0 0.0
        %4453 = vmatpush1.msra.mxu0 0.0
        %4454 = vmatprep.subr.mxu0 0.0
        %4455 = vmatpush1.msra.mxu0 0.0
        %4456 = vmatprep.subr.mxu0 0.0
        %4457 = vmatpush1.msra.mxu0 0.0
        %4458 = vmatprep.subr.mxu0 0.0
        %4459 = vmatpush1.msra.mxu0 0.0
        %4460 = vmatprep.subr.mxu0 0.0
        %4461 = vmatpush1.msra.mxu0 0.0
        %4462 = vmatprep.subr.mxu0 0.0
        %4463 = vmatpush1.msra.mxu0 0.0
        %4464 = vmatprep.mubr.f32.mxu0 0.0
        %v4465 = vand.u32 %v4171, 4294901760
        %v4466 = vsub.f32 %v4171, %v4465
        %v4467 = vand.u32 %v4466, 4294901760
        %4468 = vmatmul.mubr.f32.gmra.mrb[0].mxu0 %v4467
        %v4469 = vpop.f32.mrb[0].mxu0
        %v4470 = vadd.f32 %v4396, %v4469
        %v4471 = vpop.f32.mrb[0].mxu0
        %4472 = vdwg.mxu0
        %4473 = vmatprep.subr.mxu0 0.0
        %v4474 = vand.u32 %v1873, 4294901760
        %v4475 = vsub.f32 %v1873, %v4474
        %v4476 = vand.u32 %v4475, 4294901760
        %4477 = vmatpush1.msra.mxu0 %v4476
        %4478 = vmatprep.subr.mxu0 0.0
        %4479 = vmatpush1.msra.mxu0 0.0
        %4480 = vmatprep.subr.mxu0 0.0
        %4481 = vmatpush1.msra.mxu0 0.0
        %4482 = vmatprep.subr.mxu0 0.0
        %4483 = vmatpush1.msra.mxu0 0.0
        %4484 = vmatprep.subr.mxu0 0.0
        %4485 = vmatpush1.msra.mxu0 0.0
        %4486 = vmatprep.subr.mxu0 0.0
        %4487 = vmatpush1.msra.mxu0 0.0
        %4488 = vmatprep.subr.mxu0 0.0
        %4489 = vmatpush1.msra.mxu0 0.0
        %4490 = vmatprep.subr.mxu0 0.0
        %4491 = vmatpush1.msra.mxu0 0.0
        %4492 = vmatprep.subr.mxu0 0.0
        %4493 = vmatpush1.msra.mxu0 0.0
        %4494 = vmatprep.subr.mxu0 0.0
        %4495 = vmatpush1.msra.mxu0 0.0
        %4496 = vmatprep.subr.mxu0 0.0
        %4497 = vmatpush1.msra.mxu0 0.0
        %4498 = vmatprep.subr.mxu0 0.0
        %4499 = vmatpush1.msra.mxu0 0.0
        %4500 = vmatprep.subr.mxu0 0.0
        %4501 = vmatpush1.msra.mxu0 0.0
        %4502 = vmatprep.subr.mxu0 0.0
        %4503 = vmatpush1.msra.mxu0 0.0
        %4504 = vmatprep.subr.mxu0 0.0
        %4505 = vmatpush1.msra.mxu0 0.0
        %4506 = vmatprep.subr.mxu0 0.0
        %4507 = vmatpush1.msra.mxu0 0.0
        %4508 = vmatprep.subr.mxu0 0.0
        %4509 = vmatpush1.msra.mxu0 0.0
        %4510 = vmatprep.subr.mxu0 0.0
        %4511 = vmatpush1.msra.mxu0 0.0
        %4512 = vmatprep.subr.mxu0 0.0
        %4513 = vmatpush1.msra.mxu0 0.0
        %4514 = vmatprep.subr.mxu0 0.0
        %4515 = vmatpush1.msra.mxu0 0.0
        %4516 = vmatprep.subr.mxu0 0.0
        %4517 = vmatpush1.msra.mxu0 0.0
        %4518 = vmatprep.subr.mxu0 0.0
        %4519 = vmatpush1.msra.mxu0 0.0
        %4520 = vmatprep.subr.mxu0 0.0
        %4521 = vmatpush1.msra.mxu0 0.0
        %4522 = vmatprep.subr.mxu0 0.0
        %4523 = vmatpush1.msra.mxu0 0.0
        %4524 = vmatprep.subr.mxu0 0.0
        %4525 = vmatpush1.msra.mxu0 0.0
        %4526 = vmatprep.subr.mxu0 0.0
        %4527 = vmatpush1.msra.mxu0 0.0
        %4528 = vmatprep.subr.mxu0 0.0
        %4529 = vmatpush1.msra.mxu0 0.0
        %4530 = vmatprep.subr.mxu0 0.0
        %4531 = vmatpush1.msra.mxu0 0.0
        %4532 = vmatprep.subr.mxu0 0.0
        %4533 = vmatpush1.msra.mxu0 0.0
        %4534 = vmatprep.subr.mxu0 0.0
        %4535 = vmatpush1.msra.mxu0 0.0
        %4536 = vmatprep.subr.mxu0 0.0
        %4537 = vmatpush1.msra.mxu0 0.0
        %4538 = vmatprep.subr.mxu0 0.0
        %4539 = vmatpush1.msra.mxu0 0.0
        %4540 = vmatprep.mubr.f32.mxu0 0.0
        %v4541 = vand.u32 %v4171, 4294901760
        %4542 = vmatmul.mubr.f32.gmra.mrb[0].mxu0 %v4541
        %v4543 = vpop.f32.mrb[0].mxu0
        %v4544 = vadd.f32 %v4470, %v4543
        %v4545 = vpop.f32.mrb[0].mxu0
        %4546 = vdwg.mxu0
        %4547 = vmatprep.subr.mxu0 0.0
        %v4548 = vand.u32 %v1873, 4294901760
        %4549 = vmatpush1.msra.mxu0 %v4548
        %4550 = vmatprep.subr.mxu0 0.0
        %4551 = vmatpush1.msra.mxu0 0.0
        %4552 = vmatprep.subr.mxu0 0.0
        %4553 = vmatpush1.msra.mxu0 0.0
        %4554 = vmatprep.subr.mxu0 0.0
        %4555 = vmatpush1.msra.mxu0 0.0
        %4556 = vmatprep.subr.mxu0 0.0
        %4557 = vmatpush1.msra.mxu0 0.0
        %4558 = vmatprep.subr.mxu0 0.0
        %4559 = vmatpush1.msra.mxu0 0.0
        %4560 = vmatprep.subr.mxu0 0.0
        %4561 = vmatpush1.msra.mxu0 0.0
        %4562 = vmatprep.subr.mxu0 0.0
        %4563 = vmatpush1.msra.mxu0 0.0
        %4564 = vmatprep.subr.mxu0 0.0
        %4565 = vmatpush1.msra.mxu0 0.0
        %4566 = vmatprep.subr.mxu0 0.0
        %4567 = vmatpush1.msra.mxu0 0.0
        %4568 = vmatprep.subr.mxu0 0.0
        %4569 = vmatpush1.msra.mxu0 0.0
        %4570 = vmatprep.subr.mxu0 0.0
        %4571 = vmatpush1.msra.mxu0 0.0
        %4572 = vmatprep.subr.mxu0 0.0
        %4573 = vmatpush1.msra.mxu0 0.0
        %4574 = vmatprep.subr.mxu0 0.0
        %4575 = vmatpush1.msra.mxu0 0.0
        %4576 = vmatprep.subr.mxu0 0.0
        %4577 = vmatpush1.msra.mxu0 0.0
        %4578 = vmatprep.subr.mxu0 0.0
        %4579 = vmatpush1.msra.mxu0 0.0
        %4580 = vmatprep.subr.mxu0 0.0
        %4581 = vmatpush1.msra.mxu0 0.0
        %4582 = vmatprep.subr.mxu0 0.0
        %4583 = vmatpush1.msra.mxu0 0.0
        %4584 = vmatprep.subr.mxu0 0.0
        %4585 = vmatpush1.msra.mxu0 0.0
        %4586 = vmatprep.subr.mxu0 0.0
        %4587 = vmatpush1.msra.mxu0 0.0
        %4588 = vmatprep.subr.mxu0 0.0
        %4589 = vmatpush1.msra.mxu0 0.0
        %4590 = vmatprep.subr.mxu0 0.0
        %4591 = vmatpush1.msra.mxu0 0.0
        %4592 = vmatprep.subr.mxu0 0.0
        %4593 = vmatpush1.msra.mxu0 0.0
        %4594 = vmatprep.subr.mxu0 0.0
        %4595 = vmatpush1.msra.mxu0 0.0
        %4596 = vmatprep.subr.mxu0 0.0
        %4597 = vmatpush1.msra.mxu0 0.0
        %4598 = vmatprep.subr.mxu0 0.0
        %4599 = vmatpush1.msra.mxu0 0.0
        %4600 = vmatprep.subr.mxu0 0.0
        %4601 = vmatpush1.msra.mxu0 0.0
        %4602 = vmatprep.subr.mxu0 0.0
        %4603 = vmatpush1.msra.mxu0 0.0
        %4604 = vmatprep.subr.mxu0 0.0
        %4605 = vmatpush1.msra.mxu0 0.0
        %4606 = vmatprep.subr.mxu0 0.0
        %4607 = vmatpush1.msra.mxu0 0.0
        %4608 = vmatprep.subr.mxu0 0.0
        %4609 = vmatpush1.msra.mxu0 0.0
        %4610 = vmatprep.subr.mxu0 0.0
        %4611 = vmatpush1.msra.mxu0 0.0
        %4612 = vmatprep.mubr.f32.mxu0 0.0
        %v4613 = vand.u32 %v4171, 4294901760
        %4614 = vmatmul.mubr.f32.gmra.mrb[0].mxu0 %v4613
        %v4615 = vpop.f32.mrb[0].mxu0
        %v4616 = vadd.f32 %v4544, %v4615
        %v4617 = vpop.f32.mrb[0].mxu0
        %4618 = vdwg.mxu0
        %v4620 = vsel %vm1876, %v3706, 0
        %4622 = vmatprep.subr.mxu0 0.0
        %v4623 = vand.u32 %v1874, 4294901760
        %4624 = vmatpush1.msra.mxu0 %v4623
        %4625 = vmatprep.subr.mxu0 0.0
        %4626 = vmatpush1.msra.mxu0 0.0
        %4627 = vmatprep.subr.mxu0 0.0
        %4628 = vmatpush1.msra.mxu0 0.0
        %4629 = vmatprep.subr.mxu0 0.0
        %4630 = vmatpush1.msra.mxu0 0.0
        %4631 = vmatprep.subr.mxu0 0.0
        %4632 = vmatpush1.msra.mxu0 0.0
        %4633 = vmatprep.subr.mxu0 0.0
        %4634 = vmatpush1.msra.mxu0 0.0
        %4635 = vmatprep.subr.mxu0 0.0
        %4636 = vmatpush1.msra.mxu0 0.0
        %4637 = vmatprep.subr.mxu0 0.0
        %4638 = vmatpush1.msra.mxu0 0.0
        %4639 = vmatprep.subr.mxu0 0.0
        %4640 = vmatpush1.msra.mxu0 0.0
        %4641 = vmatprep.subr.mxu0 0.0
        %4642 = vmatpush1.msra.mxu0 0.0
        %4643 = vmatprep.subr.mxu0 0.0
        %4644 = vmatpush1.msra.mxu0 0.0
        %4645 = vmatprep.subr.mxu0 0.0
        %4646 = vmatpush1.msra.mxu0 0.0
        %4647 = vmatprep.subr.mxu0 0.0
        %4648 = vmatpush1.msra.mxu0 0.0
        %4649 = vmatprep.subr.mxu0 0.0
        %4650 = vmatpush1.msra.mxu0 0.0
        %4651 = vmatprep.subr.mxu0 0.0
        %4652 = vmatpush1.msra.mxu0 0.0
        %4653 = vmatprep.subr.mxu0 0.0
        %4654 = vmatpush1.msra.mxu0 0.0
        %4655 = vmatprep.subr.mxu0 0.0
        %4656 = vmatpush1.msra.mxu0 0.0
        %4657 = vmatprep.subr.mxu0 0.0
        %4658 = vmatpush1.msra.mxu0 0.0
        %4659 = vmatprep.subr.mxu0 0.0
        %4660 = vmatpush1.msra.mxu0 0.0
        %4661 = vmatprep.subr.mxu0 0.0
        %4662 = vmatpush1.msra.mxu0 0.0
        %4663 = vmatprep.subr.mxu0 0.0
        %4664 = vmatpush1.msra.mxu0 0.0
        %4665 = vmatprep.subr.mxu0 0.0
        %4666 = vmatpush1.msra.mxu0 0.0
        %4667 = vmatprep.subr.mxu0 0.0
        %4668 = vmatpush1.msra.mxu0 0.0
        %4669 = vmatprep.subr.mxu0 0.0
        %4670 = vmatpush1.msra.mxu0 0.0
        %4671 = vmatprep.subr.mxu0 0.0
        %4672 = vmatpush1.msra.mxu0 0.0
        %4673 = vmatprep.subr.mxu0 0.0
        %4674 = vmatpush1.msra.mxu0 0.0
        %4675 = vmatprep.subr.mxu0 0.0
        %4676 = vmatpush1.msra.mxu0 0.0
        %4677 = vmatprep.subr.mxu0 0.0
        %4678 = vmatpush1.msra.mxu0 0.0
        %4679 = vmatprep.subr.mxu0 0.0
        %4680 = vmatpush1.msra.mxu0 0.0
        %4681 = vmatprep.subr.mxu0 0.0
        %4682 = vmatpush1.msra.mxu0 0.0
        %4683 = vmatprep.subr.mxu0 0.0
        %4684 = vmatpush1.msra.mxu0 0.0
        %4685 = vmatprep.subr.mxu0 0.0
        %4686 = vmatpush1.msra.mxu0 0.0
        %4687 = vmatprep.mubr.f32.mxu0 0.0
        %v4688 = vand.u32 %v4620, 4294901760
        %v4689 = vsub.f32 %v4620, %v4688
        %v4690 = vand.u32 %v4689, 4294901760
        %v4691 = vsub.f32 %v4689, %v4690
        %v4692 = vand.u32 %v4691, 4294901760
        %4693 = vmatmul.mubr.f32.gmra.mrb[0].mxu0 %v4692
        %v4694 = vpop.f32.mrb[0].mxu0
        %v4695 = vadd.f32 0.0, %v4694
        %v4696 = vpop.f32.mrb[0].mxu0
        %4697 = vdwg.mxu0
        %4698 = vmatprep.subr.mxu0 0.0
        %v4699 = vand.u32 %v1874, 4294901760
        %v4700 = vsub.f32 %v1874, %v4699
        %v4701 = vand.u32 %v4700, 4294901760
        %v4702 = vsub.f32 %v4700, %v4701
        %v4703 = vand.u32 %v4702, 4294901760
        %4704 = vmatpush1.msra.mxu0 %v4703
        %4705 = vmatprep.subr.mxu0 0.0
        %4706 = vmatpush1.msra.mxu0 0.0
        %4707 = vmatprep.subr.mxu0 0.0
        %4708 = vmatpush1.msra.mxu0 0.0
        %4709 = vmatprep.subr.mxu0 0.0
        %4710 = vmatpush1.msra.mxu0 0.0
        %4711 = vmatprep.subr.mxu0 0.0
        %4712 = vmatpush1.msra.mxu0 0.0
        %4713 = vmatprep.subr.mxu0 0.0
        %4714 = vmatpush1.msra.mxu0 0.0
        %4715 = vmatprep.subr.mxu0 0.0
        %4716 = vmatpush1.msra.mxu0 0.0
        %4717 = vmatprep.subr.mxu0 0.0
        %4718 = vmatpush1.msra.mxu0 0.0
        %4719 = vmatprep.subr.mxu0 0.0
        %4720 = vmatpush1.msra.mxu0 0.0
        %4721 = vmatprep.subr.mxu0 0.0
        %4722 = vmatpush1.msra.mxu0 0.0
        %4723 = vmatprep.subr.mxu0 0.0
        %4724 = vmatpush1.msra.mxu0 0.0
        %4725 = vmatprep.subr.mxu0 0.0
        %4726 = vmatpush1.msra.mxu0 0.0
        %4727 = vmatprep.subr.mxu0 0.0
        %4728 = vmatpush1.msra.mxu0 0.0
        %4729 = vmatprep.subr.mxu0 0.0
        %4730 = vmatpush1.msra.mxu0 0.0
        %4731 = vmatprep.subr.mxu0 0.0
        %4732 = vmatpush1.msra.mxu0 0.0
        %4733 = vmatprep.subr.mxu0 0.0
        %4734 = vmatpush1.msra.mxu0 0.0
        %4735 = vmatprep.subr.mxu0 0.0
        %4736 = vmatpush1.msra.mxu0 0.0
        %4737 = vmatprep.subr.mxu0 0.0
        %4738 = vmatpush1.msra.mxu0 0.0
        %4739 = vmatprep.subr.mxu0 0.0
        %4740 = vmatpush1.msra.mxu0 0.0
        %4741 = vmatprep.subr.mxu0 0.0
        %4742 = vmatpush1.msra.mxu0 0.0
        %4743 = vmatprep.subr.mxu0 0.0
        %4744 = vmatpush1.msra.mxu0 0.0
        %4745 = vmatprep.subr.mxu0 0.0
        %4746 = vmatpush1.msra.mxu0 0.0
        %4747 = vmatprep.subr.mxu0 0.0
        %4748 = vmatpush1.msra.mxu0 0.0
        %4749 = vmatprep.subr.mxu0 0.0
        %4750 = vmatpush1.msra.mxu0 0.0
        %4751 = vmatprep.subr.mxu0 0.0
        %4752 = vmatpush1.msra.mxu0 0.0
        %4753 = vmatprep.subr.mxu0 0.0
        %4754 = vmatpush1.msra.mxu0 0.0
        %4755 = vmatprep.subr.mxu0 0.0
        %4756 = vmatpush1.msra.mxu0 0.0
        %4757 = vmatprep.subr.mxu0 0.0
        %4758 = vmatpush1.msra.mxu0 0.0
        %4759 = vmatprep.subr.mxu0 0.0
        %4760 = vmatpush1.msra.mxu0 0.0
        %4761 = vmatprep.subr.mxu0 0.0
        %4762 = vmatpush1.msra.mxu0 0.0
        %4763 = vmatprep.subr.mxu0 0.0
        %4764 = vmatpush1.msra.mxu0 0.0
        %4765 = vmatprep.subr.mxu0 0.0
        %4766 = vmatpush1.msra.mxu0 0.0
        %4767 = vmatprep.mubr.f32.mxu0 0.0
        %v4768 = vand.u32 %v4620, 4294901760
        %4769 = vmatmul.mubr.f32.gmra.mrb[0].mxu0 %v4768
        %v4770 = vpop.f32.mrb[0].mxu0
        %v4771 = vadd.f32 %v4695, %v4770
        %v4772 = vpop.f32.mrb[0].mxu0
        %4773 = vdwg.mxu0
        %4774 = vmatprep.subr.mxu0 0.0
        %v4775 = vand.u32 %v1874, 4294901760
        %v4776 = vsub.f32 %v1874, %v4775
        %4777 = vmatpush1.msra.mxu0 %v4776
        %4778 = vmatprep.subr.mxu0 0.0
        %4779 = vmatpush1.msra.mxu0 0.0
        %4780 = vmatprep.subr.mxu0 0.0
        %4781 = vmatpush1.msra.mxu0 0.0
        %4782 = vmatprep.subr.mxu0 0.0
        %4783 = vmatpush1.msra.mxu0 0.0
        %4784 = vmatprep.subr.mxu0 0.0
        %4785 = vmatpush1.msra.mxu0 0.0
        %4786 = vmatprep.subr.mxu0 0.0
        %4787 = vmatpush1.msra.mxu0 0.0
        %4788 = vmatprep.subr.mxu0 0.0
        %4789 = vmatpush1.msra.mxu0 0.0
        %4790 = vmatprep.subr.mxu0 0.0
        %4791 = vmatpush1.msra.mxu0 0.0
        %4792 = vmatprep.subr.mxu0 0.0
        %4793 = vmatpush1.msra.mxu0 0.0
        %4794 = vmatprep.subr.mxu0 0.0
        %4795 = vmatpush1.msra.mxu0 0.0
        %4796 = vmatprep.subr.mxu0 0.0
        %4797 = vmatpush1.msra.mxu0 0.0
        %4798 = vmatprep.subr.mxu0 0.0
        %4799 = vmatpush1.msra.mxu0 0.0
        %4800 = vmatprep.subr.mxu0 0.0
        %4801 = vmatpush1.msra.mxu0 0.0
        %4802 = vmatprep.subr.mxu0 0.0
        %4803 = vmatpush1.msra.mxu0 0.0
        %4804 = vmatprep.subr.mxu0 0.0
        %4805 = vmatpush1.msra.mxu0 0.0
        %4806 = vmatprep.subr.mxu0 0.0
        %4807 = vmatpush1.msra.mxu0 0.0
        %4808 = vmatprep.subr.mxu0 0.0
        %4809 = vmatpush1.msra.mxu0 0.0
        %4810 = vmatprep.subr.mxu0 0.0
        %4811 = vmatpush1.msra.mxu0 0.0
        %4812 = vmatprep.subr.mxu0 0.0
        %4813 = vmatpush1.msra.mxu0 0.0
        %4814 = vmatprep.subr.mxu0 0.0
        %4815 = vmatpush1.msra.mxu0 0.0
        %4816 = vmatprep.subr.mxu0 0.0
        %4817 = vmatpush1.msra.mxu0 0.0
        %4818 = vmatprep.subr.mxu0 0.0
        %4819 = vmatpush1.msra.mxu0 0.0
        %4820 = vmatprep.subr.mxu0 0.0
        %4821 = vmatpush1.msra.mxu0 0.0
        %4822 = vmatprep.subr.mxu0 0.0
        %4823 = vmatpush1.msra.mxu0 0.0
        %4824 = vmatprep.subr.mxu0 0.0
        %4825 = vmatpush1.msra.mxu0 0.0
        %4826 = vmatprep.subr.mxu0 0.0
        %4827 = vmatpush1.msra.mxu0 0.0
        %4828 = vmatprep.subr.mxu0 0.0
        %4829 = vmatpush1.msra.mxu0 0.0
        %4830 = vmatprep.subr.mxu0 0.0
        %4831 = vmatpush1.msra.mxu0 0.0
        %4832 = vmatprep.subr.mxu0 0.0
        %4833 = vmatpush1.msra.mxu0 0.0
        %4834 = vmatprep.subr.mxu0 0.0
        %4835 = vmatpush1.msra.mxu0 0.0
        %4836 = vmatprep.subr.mxu0 0.0
        %4837 = vmatpush1.msra.mxu0 0.0
        %4838 = vmatprep.subr.mxu0 0.0
        %4839 = vmatpush1.msra.mxu0 0.0
        %4840 = vmatprep.mubr.f32.mxu0 0.0
        %v4841 = vand.u32 %v4620, 4294901760
        %v4842 = vsub.f32 %v4620, %v4841
        %4843 = vmatmul.mubr.f32.gmra.mrb[0].mxu0 %v4842
        %v4844 = vpop.f32.mrb[0].mxu0
        %v4845 = vadd.f32 %v4771, %v4844
        %v4846 = vpop.f32.mrb[0].mxu0
        %4847 = vdwg.mxu0
        %4848 = vmatprep.subr.mxu0 0.0
        %v4849 = vand.u32 %v1874, 4294901760
        %4850 = vmatpush1.msra.mxu0 %v4849
        %4851 = vmatprep.subr.mxu0 0.0
        %4852 = vmatpush1.msra.mxu0 0.0
        %4853 = vmatprep.subr.mxu0 0.0
        %4854 = vmatpush1.msra.mxu0 0.0
        %4855 = vmatprep.subr.mxu0 0.0
        %4856 = vmatpush1.msra.mxu0 0.0
        %4857 = vmatprep.subr.mxu0 0.0
        %4858 = vmatpush1.msra.mxu0 0.0
        %4859 = vmatprep.subr.mxu0 0.0
        %4860 = vmatpush1.msra.mxu0 0.0
        %4861 = vmatprep.subr.mxu0 0.0
        %4862 = vmatpush1.msra.mxu0 0.0
        %4863 = vmatprep.subr.mxu0 0.0
        %4864 = vmatpush1.msra.mxu0 0.0
        %4865 = vmatprep.subr.mxu0 0.0
        %4866 = vmatpush1.msra.mxu0 0.0
        %4867 = vmatprep.subr.mxu0 0.0
        %4868 = vmatpush1.msra.mxu0 0.0
        %4869 = vmatprep.subr.mxu0 0.0
        %4870 = vmatpush1.msra.mxu0 0.0
        %4871 = vmatprep.subr.mxu0 0.0
        %4872 = vmatpush1.msra.mxu0 0.0
        %4873 = vmatprep.subr.mxu0 0.0
        %4874 = vmatpush1.msra.mxu0 0.0
        %4875 = vmatprep.subr.mxu0 0.0
        %4876 = vmatpush1.msra.mxu0 0.0
        %4877 = vmatprep.subr.mxu0 0.0
        %4878 = vmatpush1.msra.mxu0 0.0
        %4879 = vmatprep.subr.mxu0 0.0
        %4880 = vmatpush1.msra.mxu0 0.0
        %4881 = vmatprep.subr.mxu0 0.0
        %4882 = vmatpush1.msra.mxu0 0.0
        %4883 = vmatprep.subr.mxu0 0.0
        %4884 = vmatpush1.msra.mxu0 0.0
        %4885 = vmatprep.subr.mxu0 0.0
        %4886 = vmatpush1.msra.mxu0 0.0
        %4887 = vmatprep.subr.mxu0 0.0
        %4888 = vmatpush1.msra.mxu0 0.0
        %4889 = vmatprep.subr.mxu0 0.0
        %4890 = vmatpush1.msra.mxu0 0.0
        %4891 = vmatprep.subr.mxu0 0.0
        %4892 = vmatpush1.msra.mxu0 0.0
        %4893 = vmatprep.subr.mxu0 0.0
        %4894 = vmatpush1.msra.mxu0 0.0
        %4895 = vmatprep.subr.mxu0 0.0
        %4896 = vmatpush1.msra.mxu0 0.0
        %4897 = vmatprep.subr.mxu0 0.0
        %4898 = vmatpush1.msra.mxu0 0.0
        %4899 = vmatprep.subr.mxu0 0.0
        %4900 = vmatpush1.msra.mxu0 0.0
        %4901 = vmatprep.subr.mxu0 0.0
        %4902 = vmatpush1.msra.mxu0 0.0
        %4903 = vmatprep.subr.mxu0 0.0
        %4904 = vmatpush1.msra.mxu0 0.0
        %4905 = vmatprep.subr.mxu0 0.0
        %4906 = vmatpush1.msra.mxu0 0.0
        %4907 = vmatprep.subr.mxu0 0.0
        %4908 = vmatpush1.msra.mxu0 0.0
        %4909 = vmatprep.subr.mxu0 0.0
        %4910 = vmatpush1.msra.mxu0 0.0
        %4911 = vmatprep.subr.mxu0 0.0
        %4912 = vmatpush1.msra.mxu0 0.0
        %4913 = vmatprep.mubr.f32.mxu0 0.0
        %v4914 = vand.u32 %v4620, 4294901760
        %v4915 = vsub.f32 %v4620, %v4914
        %v4916 = vand.u32 %v4915, 4294901760
        %4917 = vmatmul.mubr.f32.gmra.mrb[0].mxu0 %v4916
        %v4918 = vpop.f32.mrb[0].mxu0
        %v4919 = vadd.f32 %v4845, %v4918
        %v4920 = vpop.f32.mrb[0].mxu0
        %4921 = vdwg.mxu0
        %4922 = vmatprep.subr.mxu0 0.0
        %v4923 = vand.u32 %v1874, 4294901760
        %v4924 = vsub.f32 %v1874, %v4923
        %v4925 = vand.u32 %v4924, 4294901760
        %4926 = vmatpush1.msra.mxu0 %v4925
        %4927 = vmatprep.subr.mxu0 0.0
        %4928 = vmatpush1.msra.mxu0 0.0
        %4929 = vmatprep.subr.mxu0 0.0
        %4930 = vmatpush1.msra.mxu0 0.0
        %4931 = vmatprep.subr.mxu0 0.0
        %4932 = vmatpush1.msra.mxu0 0.0
        %4933 = vmatprep.subr.mxu0 0.0
        %4934 = vmatpush1.msra.mxu0 0.0
        %4935 = vmatprep.subr.mxu0 0.0
        %4936 = vmatpush1.msra.mxu0 0.0
        %4937 = vmatprep.subr.mxu0 0.0
        %4938 = vmatpush1.msra.mxu0 0.0
        %4939 = vmatprep.subr.mxu0 0.0
        %4940 = vmatpush1.msra.mxu0 0.0
        %4941 = vmatprep.subr.mxu0 0.0
        %4942 = vmatpush1.msra.mxu0 0.0
        %4943 = vmatprep.subr.mxu0 0.0
        %4944 = vmatpush1.msra.mxu0 0.0
        %4945 = vmatprep.subr.mxu0 0.0
        %4946 = vmatpush1.msra.mxu0 0.0
        %4947 = vmatprep.subr.mxu0 0.0
        %4948 = vmatpush1.msra.mxu0 0.0
        %4949 = vmatprep.subr.mxu0 0.0
        %4950 = vmatpush1.msra.mxu0 0.0
        %4951 = vmatprep.subr.mxu0 0.0
        %4952 = vmatpush1.msra.mxu0 0.0
        %4953 = vmatprep.subr.mxu0 0.0
        %4954 = vmatpush1.msra.mxu0 0.0
        %4955 = vmatprep.subr.mxu0 0.0
        %4956 = vmatpush1.msra.mxu0 0.0
        %4957 = vmatprep.subr.mxu0 0.0
        %4958 = vmatpush1.msra.mxu0 0.0
        %4959 = vmatprep.subr.mxu0 0.0
        %4960 = vmatpush1.msra.mxu0 0.0
        %4961 = vmatprep.subr.mxu0 0.0
        %4962 = vmatpush1.msra.mxu0 0.0
        %4963 = vmatprep.subr.mxu0 0.0
        %4964 = vmatpush1.msra.mxu0 0.0
        %4965 = vmatprep.subr.mxu0 0.0
        %4966 = vmatpush1.msra.mxu0 0.0
        %4967 = vmatprep.subr.mxu0 0.0
        %4968 = vmatpush1.msra.mxu0 0.0
        %4969 = vmatprep.subr.mxu0 0.0
        %4970 = vmatpush1.msra.mxu0 0.0
        %4971 = vmatprep.subr.mxu0 0.0
        %4972 = vmatpush1.msra.mxu0 0.0
        %4973 = vmatprep.subr.mxu0 0.0
        %4974 = vmatpush1.msra.mxu0 0.0
        %4975 = vmatprep.subr.mxu0 0.0
        %4976 = vmatpush1.msra.mxu0 0.0
        %4977 = vmatprep.subr.mxu0 0.0
        %4978 = vmatpush1.msra.mxu0 0.0
        %4979 = vmatprep.subr.mxu0 0.0
        %4980 = vmatpush1.msra.mxu0 0.0
        %4981 = vmatprep.subr.mxu0 0.0
        %4982 = vmatpush1.msra.mxu0 0.0
        %4983 = vmatprep.subr.mxu0 0.0
        %4984 = vmatpush1.msra.mxu0 0.0
        %4985 = vmatprep.subr.mxu0 0.0
        %4986 = vmatpush1.msra.mxu0 0.0
        %4987 = vmatprep.subr.mxu0 0.0
        %4988 = vmatpush1.msra.mxu0 0.0
        %4989 = vmatprep.mubr.f32.mxu0 0.0
        %v4990 = vand.u32 %v4620, 4294901760
        %4991 = vmatmul.mubr.f32.gmra.mrb[0].mxu0 %v4990
        %v4992 = vpop.f32.mrb[0].mxu0
        %v4993 = vadd.f32 %v4919, %v4992
        %v4994 = vpop.f32.mrb[0].mxu0
        %4995 = vdwg.mxu0
        %4996 = vmatprep.subr.mxu0 0.0
        %v4997 = vand.u32 %v1874, 4294901760
        %4998 = vmatpush1.msra.mxu0 %v4997
        %4999 = vmatprep.subr.mxu0 0.0
        %5000 = vmatpush1.msra.mxu0 0.0
        %5001 = vmatprep.subr.mxu0 0.0
        %5002 = vmatpush1.msra.mxu0 0.0
        %5003 = vmatprep.subr.mxu0 0.0
        %5004 = vmatpush1.msra.mxu0 0.0
        %5005 = vmatprep.subr.mxu0 0.0
        %5006 = vmatpush1.msra.mxu0 0.0
        %5007 = vmatprep.subr.mxu0 0.0
        %5008 = vmatpush1.msra.mxu0 0.0
        %5009 = vmatprep.subr.mxu0 0.0
        %5010 = vmatpush1.msra.mxu0 0.0
        %5011 = vmatprep.subr.mxu0 0.0
        %5012 = vmatpush1.msra.mxu0 0.0
        %5013 = vmatprep.subr.mxu0 0.0
        %5014 = vmatpush1.msra.mxu0 0.0
        %5015 = vmatprep.subr.mxu0 0.0
        %5016 = vmatpush1.msra.mxu0 0.0
        %5017 = vmatprep.subr.mxu0 0.0
        %5018 = vmatpush1.msra.mxu0 0.0
        %5019 = vmatprep.subr.mxu0 0.0
        %5020 = vmatpush1.msra.mxu0 0.0
        %5021 = vmatprep.subr.mxu0 0.0
        %5022 = vmatpush1.msra.mxu0 0.0
        %5023 = vmatprep.subr.mxu0 0.0
        %5024 = vmatpush1.msra.mxu0 0.0
        %5025 = vmatprep.subr.mxu0 0.0
        %5026 = vmatpush1.msra.mxu0 0.0
        %5027 = vmatprep.subr.mxu0 0.0
        %5028 = vmatpush1.msra.mxu0 0.0
        %5029 = vmatprep.subr.mxu0 0.0
        %5030 = vmatpush1.msra.mxu0 0.0
        %5031 = vmatprep.subr.mxu0 0.0
        %5032 = vmatpush1.msra.mxu0 0.0
        %5033 = vmatprep.subr.mxu0 0.0
        %5034 = vmatpush1.msra.mxu0 0.0
        %5035 = vmatprep.subr.mxu0 0.0
        %5036 = vmatpush1.msra.mxu0 0.0
        %5037 = vmatprep.subr.mxu0 0.0
        %5038 = vmatpush1.msra.mxu0 0.0
        %5039 = vmatprep.subr.mxu0 0.0
        %5040 = vmatpush1.msra.mxu0 0.0
        %5041 = vmatprep.subr.mxu0 0.0
        %5042 = vmatpush1.msra.mxu0 0.0
        %5043 = vmatprep.subr.mxu0 0.0
        %5044 = vmatpush1.msra.mxu0 0.0
        %5045 = vmatprep.subr.mxu0 0.0
        %5046 = vmatpush1.msra.mxu0 0.0
        %5047 = vmatprep.subr.mxu0 0.0
        %5048 = vmatpush1.msra.mxu0 0.0
        %5049 = vmatprep.subr.mxu0 0.0
        %5050 = vmatpush1.msra.mxu0 0.0
        %5051 = vmatprep.subr.mxu0 0.0
        %5052 = vmatpush1.msra.mxu0 0.0
        %5053 = vmatprep.subr.mxu0 0.0
        %5054 = vmatpush1.msra.mxu0 0.0
        %5055 = vmatprep.subr.mxu0 0.0
        %5056 = vmatpush1.msra.mxu0 0.0
        %5057 = vmatprep.subr.mxu0 0.0
        %5058 = vmatpush1.msra.mxu0 0.0
        %5059 = vmatprep.subr.mxu0 0.0
        %5060 = vmatpush1.msra.mxu0 0.0
        %5061 = vmatprep.mubr.f32.mxu0 0.0
        %v5062 = vand.u32 %v4620, 4294901760
        %5063 = vmatmul.mubr.f32.gmra.mrb[0].mxu0 %v5062
        %v5064 = vpop.f32.mrb[0].mxu0
        %v5065 = vadd.f32 %v4993, %v5064
        %v5066 = vpop.f32.mrb[0].mxu0
        %5067 = vdwg.mxu0
        %v5069 = vsel %vm1876, %v3708, 0
        %5071 = vmatprep.subr.mxu0 0.0
        %v5072 = vand.u32 %v1875, 4294901760
        %5073 = vmatpush1.msra.mxu0 %v5072
        %5074 = vmatprep.subr.mxu0 0.0
        %5075 = vmatpush1.msra.mxu0 0.0
        %5076 = vmatprep.subr.mxu0 0.0
        %5077 = vmatpush1.msra.mxu0 0.0
        %5078 = vmatprep.subr.mxu0 0.0
        %5079 = vmatpush1.msra.mxu0 0.0
        %5080 = vmatprep.subr.mxu0 0.0
        %5081 = vmatpush1.msra.mxu0 0.0
        %5082 = vmatprep.subr.mxu0 0.0
        %5083 = vmatpush1.msra.mxu0 0.0
        %5084 = vmatprep.subr.mxu0 0.0
        %5085 = vmatpush1.msra.mxu0 0.0
        %5086 = vmatprep.subr.mxu0 0.0
        %5087 = vmatpush1.msra.mxu0 0.0
        %5088 = vmatprep.subr.mxu0 0.0
        %5089 = vmatpush1.msra.mxu0 0.0
        %5090 = vmatprep.subr.mxu0 0.0
        %5091 = vmatpush1.msra.mxu0 0.0
        %5092 = vmatprep.subr.mxu0 0.0
        %5093 = vmatpush1.msra.mxu0 0.0
        %5094 = vmatprep.subr.mxu0 0.0
        %5095 = vmatpush1.msra.mxu0 0.0
        %5096 = vmatprep.subr.mxu0 0.0
        %5097 = vmatpush1.msra.mxu0 0.0
        %5098 = vmatprep.subr.mxu0 0.0
        %5099 = vmatpush1.msra.mxu0 0.0
        %5100 = vmatprep.subr.mxu0 0.0
        %5101 = vmatpush1.msra.mxu0 0.0
        %5102 = vmatprep.subr.mxu0 0.0
        %5103 = vmatpush1.msra.mxu0 0.0
        %5104 = vmatprep.subr.mxu0 0.0
        %5105 = vmatpush1.msra.mxu0 0.0
        %5106 = vmatprep.subr.mxu0 0.0
        %5107 = vmatpush1.msra.mxu0 0.0
        %5108 = vmatprep.subr.mxu0 0.0
        %5109 = vmatpush1.msra.mxu0 0.0
        %5110 = vmatprep.subr.mxu0 0.0
        %5111 = vmatpush1.msra.mxu0 0.0
        %5112 = vmatprep.subr.mxu0 0.0
        %5113 = vmatpush1.msra.mxu0 0.0
        %5114 = vmatprep.subr.mxu0 0.0
        %5115 = vmatpush1.msra.mxu0 0.0
        %5116 = vmatprep.subr.mxu0 0.0
        %5117 = vmatpush1.msra.mxu0 0.0
        %5118 = vmatprep.subr.mxu0 0.0
        %5119 = vmatpush1.msra.mxu0 0.0
        %5120 = vmatprep.subr.mxu0 0.0
        %5121 = vmatpush1.msra.mxu0 0.0
        %5122 = vmatprep.subr.mxu0 0.0
        %5123 = vmatpush1.msra.mxu0 0.0
        %5124 = vmatprep.subr.mxu0 0.0
        %5125 = vmatpush1.msra.mxu0 0.0
        %5126 = vmatprep.subr.mxu0 0.0
        %5127 = vmatpush1.msra.mxu0 0.0
        %5128 = vmatprep.subr.mxu0 0.0
        %5129 = vmatpush1.msra.mxu0 0.0
        %5130 = vmatprep.subr.mxu0 0.0
        %5131 = vmatpush1.msra.mxu0 0.0
        %5132 = vmatprep.subr.mxu0 0.0
        %5133 = vmatpush1.msra.mxu0 0.0
        %5134 = vmatprep.subr.mxu0 0.0
        %5135 = vmatpush1.msra.mxu0 0.0
        %5136 = vmatprep.mubr.f32.mxu0 0.0
        %v5137 = vand.u32 %v5069, 4294901760
        %v5138 = vsub.f32 %v5069, %v5137
        %v5139 = vand.u32 %v5138, 4294901760
        %v5140 = vsub.f32 %v5138, %v5139
        %v5141 = vand.u32 %v5140, 4294901760
        %5142 = vmatmul.mubr.f32.gmra.mrb[0].mxu0 %v5141
        %v5143 = vpop.f32.mrb[0].mxu0
        %v5144 = vadd.f32 0.0, %v5143
        %v5145 = vpop.f32.mrb[0].mxu0
        %5146 = vdwg.mxu0
        %5147 = vmatprep.subr.mxu0 0.0
        %v5148 = vand.u32 %v1875, 4294901760
        %v5149 = vsub.f32 %v1875, %v5148
        %v5150 = vand.u32 %v5149, 4294901760
        %v5151 = vsub.f32 %v5149, %v5150
        %v5152 = vand.u32 %v5151, 4294901760
        %5153 = vmatpush1.msra.mxu0 %v5152
        %5154 = vmatprep.subr.mxu0 0.0
        %5155 = vmatpush1.msra.mxu0 0.0
        %5156 = vmatprep.subr.mxu0 0.0
        %5157 = vmatpush1.msra.mxu0 0.0
        %5158 = vmatprep.subr.mxu0 0.0
        %5159 = vmatpush1.msra.mxu0 0.0
        %5160 = vmatprep.subr.mxu0 0.0
        %5161 = vmatpush1.msra.mxu0 0.0
        %5162 = vmatprep.subr.mxu0 0.0
        %5163 = vmatpush1.msra.mxu0 0.0
        %5164 = vmatprep.subr.mxu0 0.0
        %5165 = vmatpush1.msra.mxu0 0.0
        %5166 = vmatprep.subr.mxu0 0.0
        %5167 = vmatpush1.msra.mxu0 0.0
        %5168 = vmatprep.subr.mxu0 0.0
        %5169 = vmatpush1.msra.mxu0 0.0
        %5170 = vmatprep.subr.mxu0 0.0
        %5171 = vmatpush1.msra.mxu0 0.0
        %5172 = vmatprep.subr.mxu0 0.0
        %5173 = vmatpush1.msra.mxu0 0.0
        %5174 = vmatprep.subr.mxu0 0.0
        %5175 = vmatpush1.msra.mxu0 0.0
        %5176 = vmatprep.subr.mxu0 0.0
        %5177 = vmatpush1.msra.mxu0 0.0
        %5178 = vmatprep.subr.mxu0 0.0
        %5179 = vmatpush1.msra.mxu0 0.0
        %5180 = vmatprep.subr.mxu0 0.0
        %5181 = vmatpush1.msra.mxu0 0.0
        %5182 = vmatprep.subr.mxu0 0.0
        %5183 = vmatpush1.msra.mxu0 0.0
        %5184 = vmatprep.subr.mxu0 0.0
        %5185 = vmatpush1.msra.mxu0 0.0
        %5186 = vmatprep.subr.mxu0 0.0
        %5187 = vmatpush1.msra.mxu0 0.0
        %5188 = vmatprep.subr.mxu0 0.0
        %5189 = vmatpush1.msra.mxu0 0.0
        %5190 = vmatprep.subr.mxu0 0.0
        %5191 = vmatpush1.msra.mxu0 0.0
        %5192 = vmatprep.subr.mxu0 0.0
        %5193 = vmatpush1.msra.mxu0 0.0
        %5194 = vmatprep.subr.mxu0 0.0
        %5195 = vmatpush1.msra.mxu0 0.0
        %5196 = vmatprep.subr.mxu0 0.0
        %5197 = vmatpush1.msra.mxu0 0.0
        %5198 = vmatprep.subr.mxu0 0.0
        %5199 = vmatpush1.msra.mxu0 0.0
        %5200 = vmatprep.subr.mxu0 0.0
        %5201 = vmatpush1.msra.mxu0 0.0
        %5202 = vmatprep.subr.mxu0 0.0
        %5203 = vmatpush1.msra.mxu0 0.0
        %5204 = vmatprep.subr.mxu0 0.0
        %5205 = vmatpush1.msra.mxu0 0.0
        %5206 = vmatprep.subr.mxu0 0.0
        %5207 = vmatpush1.msra.mxu0 0.0
        %5208 = vmatprep.subr.mxu0 0.0
        %5209 = vmatpush1.msra.mxu0 0.0
        %5210 = vmatprep.subr.mxu0 0.0
        %5211 = vmatpush1.msra.mxu0 0.0
        %5212 = vmatprep.subr.mxu0 0.0
        %5213 = vmatpush1.msra.mxu0 0.0
        %5214 = vmatprep.subr.mxu0 0.0
        %5215 = vmatpush1.msra.mxu0 0.0
        %5216 = vmatprep.mubr.f32.mxu0 0.0
        %v5217 = vand.u32 %v5069, 4294901760
        %5218 = vmatmul.mubr.f32.gmra.mrb[0].mxu0 %v5217
        %v5219 = vpop.f32.mrb[0].mxu0
        %v5220 = vadd.f32 %v5144, %v5219
        %v5221 = vpop.f32.mrb[0].mxu0
        %5222 = vdwg.mxu0
        %5223 = vmatprep.subr.mxu0 0.0
        %v5224 = vand.u32 %v1875, 4294901760
        %v5225 = vsub.f32 %v1875, %v5224
        %5226 = vmatpush1.msra.mxu0 %v5225
        %5227 = vmatprep.subr.mxu0 0.0
        %5228 = vmatpush1.msra.mxu0 0.0
        %5229 = vmatprep.subr.mxu0 0.0
        %5230 = vmatpush1.msra.mxu0 0.0
        %5231 = vmatprep.subr.mxu0 0.0
        %5232 = vmatpush1.msra.mxu0 0.0
        %5233 = vmatprep.subr.mxu0 0.0
        %5234 = vmatpush1.msra.mxu0 0.0
        %5235 = vmatprep.subr.mxu0 0.0
        %5236 = vmatpush1.msra.mxu0 0.0
        %5237 = vmatprep.subr.mxu0 0.0
        %5238 = vmatpush1.msra.mxu0 0.0
        %5239 = vmatprep.subr.mxu0 0.0
        %5240 = vmatpush1.msra.mxu0 0.0
        %5241 = vmatprep.subr.mxu0 0.0
        %5242 = vmatpush1.msra.mxu0 0.0
        %5243 = vmatprep.subr.mxu0 0.0
        %5244 = vmatpush1.msra.mxu0 0.0
        %5245 = vmatprep.subr.mxu0 0.0
        %5246 = vmatpush1.msra.mxu0 0.0
        %5247 = vmatprep.subr.mxu0 0.0
        %5248 = vmatpush1.msra.mxu0 0.0
        %5249 = vmatprep.subr.mxu0 0.0
        %5250 = vmatpush1.msra.mxu0 0.0
        %5251 = vmatprep.subr.mxu0 0.0
        %5252 = vmatpush1.msra.mxu0 0.0
        %5253 = vmatprep.subr.mxu0 0.0
        %5254 = vmatpush1.msra.mxu0 0.0
        %5255 = vmatprep.subr.mxu0 0.0
        %5256 = vmatpush1.msra.mxu0 0.0
        %5257 = vmatprep.subr.mxu0 0.0
        %5258 = vmatpush1.msra.mxu0 0.0
        %5259 = vmatprep.subr.mxu0 0.0
        %5260 = vmatpush1.msra.mxu0 0.0
        %5261 = vmatprep.subr.mxu0 0.0
        %5262 = vmatpush1.msra.mxu0 0.0
        %5263 = vmatprep.subr.mxu0 0.0
        %5264 = vmatpush1.msra.mxu0 0.0
        %5265 = vmatprep.subr.mxu0 0.0
        %5266 = vmatpush1.msra.mxu0 0.0
        %5267 = vmatprep.subr.mxu0 0.0
        %5268 = vmatpush1.msra.mxu0 0.0
        %5269 = vmatprep.subr.mxu0 0.0
        %5270 = vmatpush1.msra.mxu0 0.0
        %5271 = vmatprep.subr.mxu0 0.0
        %5272 = vmatpush1.msra.mxu0 0.0
        %5273 = vmatprep.subr.mxu0 0.0
        %5274 = vmatpush1.msra.mxu0 0.0
        %5275 = vmatprep.subr.mxu0 0.0
        %5276 = vmatpush1.msra.mxu0 0.0
        %5277 = vmatprep.subr.mxu0 0.0
        %5278 = vmatpush1.msra.mxu0 0.0
        %5279 = vmatprep.subr.mxu0 0.0
        %5280 = vmatpush1.msra.mxu0 0.0
        %5281 = vmatprep.subr.mxu0 0.0
        %5282 = vmatpush1.msra.mxu0 0.0
        %5283 = vmatprep.subr.mxu0 0.0
        %5284 = vmatpush1.msra.mxu0 0.0
        %5285 = vmatprep.subr.mxu0 0.0
        %5286 = vmatpush1.msra.mxu0 0.0
        %5287 = vmatprep.subr.mxu0 0.0
        %5288 = vmatpush1.msra.mxu0 0.0
        %5289 = vmatprep.mubr.f32.mxu0 0.0
        %v5290 = vand.u32 %v5069, 4294901760
        %v5291 = vsub.f32 %v5069, %v5290
        %5292 = vmatmul.mubr.f32.gmra.mrb[0].mxu0 %v5291
        %v5293 = vpop.f32.mrb[0].mxu0
        %v5294 = vadd.f32 %v5220, %v5293
        %v5295 = vpop.f32.mrb[0].mxu0
        %5296 = vdwg.mxu0
        %5297 = vmatprep.subr.mxu0 0.0
        %v5298 = vand.u32 %v1875, 4294901760
        %5299 = vmatpush1.msra.mxu0 %v5298
        %5300 = vmatprep.subr.mxu0 0.0
        %5301 = vmatpush1.msra.mxu0 0.0
        %5302 = vmatprep.subr.mxu0 0.0
        %5303 = vmatpush1.msra.mxu0 0.0
        %5304 = vmatprep.subr.mxu0 0.0
        %5305 = vmatpush1.msra.mxu0 0.0
        %5306 = vmatprep.subr.mxu0 0.0
        %5307 = vmatpush1.msra.mxu0 0.0
        %5308 = vmatprep.subr.mxu0 0.0
        %5309 = vmatpush1.msra.mxu0 0.0
        %5310 = vmatprep.subr.mxu0 0.0
        %5311 = vmatpush1.msra.mxu0 0.0
        %5312 = vmatprep.subr.mxu0 0.0
        %5313 = vmatpush1.msra.mxu0 0.0
        %5314 = vmatprep.subr.mxu0 0.0
        %5315 = vmatpush1.msra.mxu0 0.0
        %5316 = vmatprep.subr.mxu0 0.0
        %5317 = vmatpush1.msra.mxu0 0.0
        %5318 = vmatprep.subr.mxu0 0.0
        %5319 = vmatpush1.msra.mxu0 0.0
        %5320 = vmatprep.subr.mxu0 0.0
        %5321 = vmatpush1.msra.mxu0 0.0
        %5322 = vmatprep.subr.mxu0 0.0
        %5323 = vmatpush1.msra.mxu0 0.0
        %5324 = vmatprep.subr.mxu0 0.0
        %5325 = vmatpush1.msra.mxu0 0.0
        %5326 = vmatprep.subr.mxu0 0.0
        %5327 = vmatpush1.msra.mxu0 0.0
        %5328 = vmatprep.subr.mxu0 0.0
        %5329 = vmatpush1.msra.mxu0 0.0
        %5330 = vmatprep.subr.mxu0 0.0
        %5331 = vmatpush1.msra.mxu0 0.0
        %5332 = vmatprep.subr.mxu0 0.0
        %5333 = vmatpush1.msra.mxu0 0.0
        %5334 = vmatprep.subr.mxu0 0.0
        %5335 = vmatpush1.msra.mxu0 0.0
        %5336 = vmatprep.subr.mxu0 0.0
        %5337 = vmatpush1.msra.mxu0 0.0
        %5338 = vmatprep.subr.mxu0 0.0
        %5339 = vmatpush1.msra.mxu0 0.0
        %5340 = vmatprep.subr.mxu0 0.0
        %5341 = vmatpush1.msra.mxu0 0.0
        %5342 = vmatprep.subr.mxu0 0.0
        %5343 = vmatpush1.msra.mxu0 0.0
        %5344 = vmatprep.subr.mxu0 0.0
        %5345 = vmatpush1.msra.mxu0 0.0
        %5346 = vmatprep.subr.mxu0 0.0
        %5347 = vmatpush1.msra.mxu0 0.0
        %5348 = vmatprep.subr.mxu0 0.0
        %5349 = vmatpush1.msra.mxu0 0.0
        %5350 = vmatprep.subr.mxu0 0.0
        %5351 = vmatpush1.msra.mxu0 0.0
        %5352 = vmatprep.subr.mxu0 0.0
        %5353 = vmatpush1.msra.mxu0 0.0
        %5354 = vmatprep.subr.mxu0 0.0
        %5355 = vmatpush1.msra.mxu0 0.0
        %5356 = vmatprep.subr.mxu0 0.0
        %5357 = vmatpush1.msra.mxu0 0.0
        %5358 = vmatprep.subr.mxu0 0.0
        %5359 = vmatpush1.msra.mxu0 0.0
        %5360 = vmatprep.subr.mxu0 0.0
        %5361 = vmatpush1.msra.mxu0 0.0
        %5362 = vmatprep.mubr.f32.mxu0 0.0
        %v5363 = vand.u32 %v5069, 4294901760
        %v5364 = vsub.f32 %v5069, %v5363
        %v5365 = vand.u32 %v5364, 4294901760
        %5366 = vmatmul.mubr.f32.gmra.mrb[0].mxu0 %v5365
        %v5367 = vpop.f32.mrb[0].mxu0
        %v5368 = vadd.f32 %v5294, %v5367
        %v5369 = vpop.f32.mrb[0].mxu0
        %5370 = vdwg.mxu0
        %5371 = vmatprep.subr.mxu0 0.0
        %v5372 = vand.u32 %v1875, 4294901760
        %v5373 = vsub.f32 %v1875, %v5372
        %v5374 = vand.u32 %v5373, 4294901760
        %5375 = vmatpush1.msra.mxu0 %v5374
        %5376 = vmatprep.subr.mxu0 0.0
        %5377 = vmatpush1.msra.mxu0 0.0
        %5378 = vmatprep.subr.mxu0 0.0
        %5379 = vmatpush1.msra.mxu0 0.0
        %5380 = vmatprep.subr.mxu0 0.0
        %5381 = vmatpush1.msra.mxu0 0.0
        %5382 = vmatprep.subr.mxu0 0.0
        %5383 = vmatpush1.msra.mxu0 0.0
        %5384 = vmatprep.subr.mxu0 0.0
        %5385 = vmatpush1.msra.mxu0 0.0
        %5386 = vmatprep.subr.mxu0 0.0
        %5387 = vmatpush1.msra.mxu0 0.0
        %5388 = vmatprep.subr.mxu0 0.0
        %5389 = vmatpush1.msra.mxu0 0.0
        %5390 = vmatprep.subr.mxu0 0.0
        %5391 = vmatpush1.msra.mxu0 0.0
        %5392 = vmatprep.subr.mxu0 0.0
        %5393 = vmatpush1.msra.mxu0 0.0
        %5394 = vmatprep.subr.mxu0 0.0
        %5395 = vmatpush1.msra.mxu0 0.0
        %5396 = vmatprep.subr.mxu0 0.0
        %5397 = vmatpush1.msra.mxu0 0.0
        %5398 = vmatprep.subr.mxu0 0.0
        %5399 = vmatpush1.msra.mxu0 0.0
        %5400 = vmatprep.subr.mxu0 0.0
        %5401 = vmatpush1.msra.mxu0 0.0
        %5402 = vmatprep.subr.mxu0 0.0
        %5403 = vmatpush1.msra.mxu0 0.0
        %5404 = vmatprep.subr.mxu0 0.0
        %5405 = vmatpush1.msra.mxu0 0.0
        %5406 = vmatprep.subr.mxu0 0.0
        %5407 = vmatpush1.msra.mxu0 0.0
        %5408 = vmatprep.subr.mxu0 0.0
        %5409 = vmatpush1.msra.mxu0 0.0
        %5410 = vmatprep.subr.mxu0 0.0
        %5411 = vmatpush1.msra.mxu0 0.0
        %5412 = vmatprep.subr.mxu0 0.0
        %5413 = vmatpush1.msra.mxu0 0.0
        %5414 = vmatprep.subr.mxu0 0.0
        %5415 = vmatpush1.msra.mxu0 0.0
        %5416 = vmatprep.subr.mxu0 0.0
        %5417 = vmatpush1.msra.mxu0 0.0
        %5418 = vmatprep.subr.mxu0 0.0
        %5419 = vmatpush1.msra.mxu0 0.0
        %5420 = vmatprep.subr.mxu0 0.0
        %5421 = vmatpush1.msra.mxu0 0.0
        %5422 = vmatprep.subr.mxu0 0.0
        %5423 = vmatpush1.msra.mxu0 0.0
        %5424 = vmatprep.subr.mxu0 0.0
        %5425 = vmatpush1.msra.mxu0 0.0
        %5426 = vmatprep.subr.mxu0 0.0
        %5427 = vmatpush1.msra.mxu0 0.0
        %5428 = vmatprep.subr.mxu0 0.0
        %5429 = vmatpush1.msra.mxu0 0.0
        %5430 = vmatprep.subr.mxu0 0.0
        %5431 = vmatpush1.msra.mxu0 0.0
        %5432 = vmatprep.subr.mxu0 0.0
        %5433 = vmatpush1.msra.mxu0 0.0
        %5434 = vmatprep.subr.mxu0 0.0
        %5435 = vmatpush1.msra.mxu0 0.0
        %5436 = vmatprep.subr.mxu0 0.0
        %5437 = vmatpush1.msra.mxu0 0.0
        %5438 = vmatprep.mubr.f32.mxu0 0.0
        %v5439 = vand.u32 %v5069, 4294901760
        %5440 = vmatmul.mubr.f32.gmra.mrb[0].mxu0 %v5439
        %v5441 = vpop.f32.mrb[0].mxu0
        %v5442 = vadd.f32 %v5368, %v5441
        %v5443 = vpop.f32.mrb[0].mxu0
        %5444 = vdwg.mxu0
        %5445 = vmatprep.subr.mxu0 0.0
        %v5446 = vand.u32 %v1875, 4294901760
        %5447 = vmatpush1.msra.mxu0 %v5446
        %5448 = vmatprep.subr.mxu0 0.0
        %5449 = vmatpush1.msra.mxu0 0.0
        %5450 = vmatprep.subr.mxu0 0.0
        %5451 = vmatpush1.msra.mxu0 0.0
        %5452 = vmatprep.subr.mxu0 0.0
        %5453 = vmatpush1.msra.mxu0 0.0
        %5454 = vmatprep.subr.mxu0 0.0
        %5455 = vmatpush1.msra.mxu0 0.0
        %5456 = vmatprep.subr.mxu0 0.0
        %5457 = vmatpush1.msra.mxu0 0.0
        %5458 = vmatprep.subr.mxu0 0.0
        %5459 = vmatpush1.msra.mxu0 0.0
        %5460 = vmatprep.subr.mxu0 0.0
        %5461 = vmatpush1.msra.mxu0 0.0
        %5462 = vmatprep.subr.mxu0 0.0
        %5463 = vmatpush1.msra.mxu0 0.0
        %5464 = vmatprep.subr.mxu0 0.0
        %5465 = vmatpush1.msra.mxu0 0.0
        %5466 = vmatprep.subr.mxu0 0.0
        %5467 = vmatpush1.msra.mxu0 0.0
        %5468 = vmatprep.subr.mxu0 0.0
        %5469 = vmatpush1.msra.mxu0 0.0
        %5470 = vmatprep.subr.mxu0 0.0
        %5471 = vmatpush1.msra.mxu0 0.0
        %5472 = vmatprep.subr.mxu0 0.0
        %5473 = vmatpush1.msra.mxu0 0.0
        %5474 = vmatprep.subr.mxu0 0.0
        %5475 = vmatpush1.msra.mxu0 0.0
        %5476 = vmatprep.subr.mxu0 0.0
        %5477 = vmatpush1.msra.mxu0 0.0
        %5478 = vmatprep.subr.mxu0 0.0
        %5479 = vmatpush1.msra.mxu0 0.0
        %5480 = vmatprep.subr.mxu0 0.0
        %5481 = vmatpush1.msra.mxu0 0.0
        %5482 = vmatprep.subr.mxu0 0.0
        %5483 = vmatpush1.msra.mxu0 0.0
        %5484 = vmatprep.subr.mxu0 0.0
        %5485 = vmatpush1.msra.mxu0 0.0
        %5486 = vmatprep.subr.mxu0 0.0
        %5487 = vmatpush1.msra.mxu0 0.0
        %5488 = vmatprep.subr.mxu0 0.0
        %5489 = vmatpush1.msra.mxu0 0.0
        %5490 = vmatprep.subr.mxu0 0.0
        %5491 = vmatpush1.msra.mxu0 0.0
        %5492 = vmatprep.subr.mxu0 0.0
        %5493 = vmatpush1.msra.mxu0 0.0
        %5494 = vmatprep.subr.mxu0 0.0
        %5495 = vmatpush1.msra.mxu0 0.0
        %5496 = vmatprep.subr.mxu0 0.0
        %5497 = vmatpush1.msra.mxu0 0.0
        %5498 = vmatprep.subr.mxu0 0.0
        %5499 = vmatpush1.msra.mxu0 0.0
        %5500 = vmatprep.subr.mxu0 0.0
        %5501 = vmatpush1.msra.mxu0 0.0
        %5502 = vmatprep.subr.mxu0 0.0
        %5503 = vmatpush1.msra.mxu0 0.0
        %5504 = vmatprep.subr.mxu0 0.0
        %5505 = vmatpush1.msra.mxu0 0.0
        %5506 = vmatprep.subr.mxu0 0.0
        %5507 = vmatpush1.msra.mxu0 0.0
        %5508 = vmatprep.subr.mxu0 0.0
        %5509 = vmatpush1.msra.mxu0 0.0
        %5510 = vmatprep.mubr.f32.mxu0 0.0
        %v5511 = vand.u32 %v5069, 4294901760
        %5512 = vmatmul.mubr.f32.gmra.mrb[0].mxu0 %v5511
        %v5513 = vpop.f32.mrb[0].mxu0
        %v5514 = vadd.f32 %v5442, %v5513
        %v5515 = vpop.f32.mrb[0].mxu0
        %5516 = vdwg.mxu0
        %v5517 = vrcp.pop %v3711
        %v5518 = vrcp.pop %v3714
        %v5519 = vrcp.pop %v3717
        %v5520 = vrcp.pop %v3720
        %v5521 = vmul.f32 %v4167, %v5517
        %v5522 = vmul.f32 %v4616, %v5518
        %v5523 = vmul.f32 %v5065, %v5519
        %v5524 = vmul.f32 %v5514, %v5520
        %v5525 = vcombine.low %v5521, %v5523
        %v5526 = vcombine.high %v5521, %v5523
        %v5528 = vunpack.c.l.s4 1983009808
        %v5529 = vunpack.c.0.s8 %v5528
        %v5530 = vlaneseq
        %v5531 = vshrl.u32 %v5530, 7
        %v5532 = vsub.s32 %v5529, %v5531
        %v5533 = vrot.slane %v5525, %v5532
        %v5535 = vunpack.c.l.s4 1983009808
        %v5536 = vunpack.c.0.s8 %v5535
        %v5537 = vlaneseq
        %v5538 = vshrl.u32 %v5537, 7
        %v5539 = vsub.s32 %v5536, %v5538
        %v5540 = vrot.slane %v5526, %v5539
        %v5541 = vcombine.low %v5522, %v5524
        %v5542 = vcombine.high %v5522, %v5524
        %v5544 = vunpack.c.l.s4 1983009808
        %v5545 = vunpack.c.0.s8 %v5544
        %v5546 = vlaneseq
        %v5547 = vshrl.u32 %v5546, 7
        %v5548 = vsub.s32 %v5545, %v5547
        %v5549 = vrot.slane %v5541, %v5548
        %v5551 = vunpack.c.l.s4 1983009808
        %v5552 = vunpack.c.0.s8 %v5551
        %v5553 = vlaneseq
        %v5554 = vshrl.u32 %v5553, 7
        %v5555 = vsub.s32 %v5552, %v5554
        %v5556 = vrot.slane %v5542, %v5555
        %v5557 = vcombine.low %v5533, %v5549
        %v5558 = vcombine.high %v5533, %v5549
        %v5560 = vunpack.c.l.s4 1934713408
        %v5561 = vunpack.c.0.s8 %v5560
        %v5562 = vlaneseq
        %v5563 = vshrl.u32 %v5562, 7
        %v5564 = vsub.s32 %v5561, %v5563
        %v5565 = vrot.slane %v5557, %v5564
        %v5567 = vunpack.c.l.s4 1934713408
        %v5568 = vunpack.c.0.s8 %v5567
        %v5569 = vlaneseq
        %v5570 = vshrl.u32 %v5569, 7
        %v5571 = vsub.s32 %v5568, %v5570
        %v5572 = vrot.slane %v5558, %v5571
        %v5573 = vcombine.low %v5540, %v5556
        %v5574 = vcombine.high %v5540, %v5556
        %v5576 = vunpack.c.l.s4 1934713408
        %v5577 = vunpack.c.0.s8 %v5576
        %v5578 = vlaneseq
        %v5579 = vshrl.u32 %v5578, 7
        %v5580 = vsub.s32 %v5577, %v5579
        %v5581 = vrot.slane %v5573, %v5580
        %v5583 = vunpack.c.l.s4 1934713408
        %v5584 = vunpack.c.0.s8 %v5583
        %v5585 = vlaneseq
        %v5586 = vshrl.u32 %v5585, 7
        %v5587 = vsub.s32 %v5584, %v5586
        %v5588 = vrot.slane %v5574, %v5587
        %v5589 = vcombine.high %v5565, 0.0
        %v5590 = vcombine.high %v5572, 0.0
        %v5591 = vcombine.high %v5581, 0.0
        %v5592 = vcombine.high %v5588, 0.0
        %v5593 = vcombine.low %v5565, %v5572
        %v5595 = vunpack.c.l.s4 1983009808
        %v5596 = vunpack.c.0.s8 %v5595
        %v5597 = vlaneseq
        %v5598 = vshrl.u32 %v5597, 7
        %v5599 = vsub.s32 %v5596, %v5598
        %v5600 = vrot.slane %v5593, %v5599
        %v5601 = vcombine.low %v5589, %v5590
        %v5603 = vunpack.c.l.s4 1983009808
        %v5604 = vunpack.c.0.s8 %v5603
        %v5605 = vlaneseq
        %v5606 = vshrl.u32 %v5605, 7
        %v5607 = vsub.s32 %v5604, %v5606
        %v5608 = vrot.slane %v5601, %v5607
        %v5609 = vcombine.low %v5581, %v5588
        %v5611 = vunpack.c.l.s4 1983009808
        %v5612 = vunpack.c.0.s8 %v5611
        %v5613 = vlaneseq
        %v5614 = vshrl.u32 %v5613, 7
        %v5615 = vsub.s32 %v5612, %v5614
        %v5616 = vrot.slane %v5609, %v5615
        %v5617 = vcombine.low %v5591, %v5592
        %v5619 = vunpack.c.l.s4 1983009808
        %v5620 = vunpack.c.0.s8 %v5619
        %v5621 = vlaneseq
        %v5622 = vshrl.u32 %v5621, 7
        %v5623 = vsub.s32 %v5620, %v5622
        %v5624 = vrot.slane %v5617, %v5623
        %v5625 = vcombine.low %v5600, %v5608
        %v5626 = vcombine.high %v5600, %v5608
        %v5628 = vunpack.c.l.s4 1934713408
        %v5629 = vunpack.c.0.s8 %v5628
        %v5630 = vlaneseq
        %v5631 = vshrl.u32 %v5630, 7
        %v5632 = vsub.s32 %v5629, %v5631
        %v5633 = vrot.slane %v5625, %v5632
        %v5635 = vunpack.c.l.s4 1934713408
        %v5636 = vunpack.c.0.s8 %v5635
        %v5637 = vlaneseq
        %v5638 = vshrl.u32 %v5637, 7
        %v5639 = vsub.s32 %v5636, %v5638
        %v5640 = vrot.slane %v5626, %v5639
        %v5641 = vcombine.low %v5616, %v5624
        %v5642 = vcombine.high %v5616, %v5624
        %v5644 = vunpack.c.l.s4 1934713408
        %v5645 = vunpack.c.0.s8 %v5644
        %v5646 = vlaneseq
        %v5647 = vshrl.u32 %v5646, 7
        %v5648 = vsub.s32 %v5645, %v5647
        %v5649 = vrot.slane %v5641, %v5648
        %v5651 = vunpack.c.l.s4 1934713408
        %v5652 = vunpack.c.0.s8 %v5651
        %v5653 = vlaneseq
        %v5654 = vshrl.u32 %v5653, 7
        %v5655 = vsub.s32 %v5652, %v5654
        %v5656 = vrot.slane %v5642, %v5655
        %v5657 = vcombine.low %v5633, %v5649
        %v5658 = vcombine.high %v5633, %v5649
        %v5659 = vcombine.low %v5640, %v5656
        %v5660 = vcombine.high %v5640, %v5656
        %5662 = vrot.lane.b32.xlu0 %v5658, 8
        %v5663 = vpop.permute.xlu0 %5662
        %5666 = vrot.lane.b32.xlu0 %v5659, 16
        %v5667 = vpop.permute.xlu0 %5666
        %5670 = vrot.lane.b32.xlu0 %v5660, 24
        %v5671 = vpop.permute.xlu0 %5670
        %v5673 = vsel %vm1876, %v5657, %v5663
        %vm5674 = vcmask 130048
        %v5675 = vsel %vm5674, %v5673, %v5667
        %vm5676 = vcmask 195584
        %v5677 = vsel %vm5676, %v5675, %v5671
        %v5678 = vld [vmem:[%s752] sm:$0xff]
        %v5679 = vld [vmem:[%s752 + $0x8] sm:$0xff]
        %v5680 = vld [vmem:[%s752 + $0x10] sm:$0xff]
        %v5681 = vld [vmem:[%s752 + $0x18] sm:$0xff]
        %v5682 = vld [vmem:[%s760] sm:$0x1]
        %v5684 = vlaneseq
        %v5685 = vshrl.u32 %v5684, 7
        %v5686 = vsub.s32 0, %v5685
        %v5687 = vrot.slane %v5682, %v5686
        %v5690 = vsel %vm913, %v5677, 0
        %5692 = vmatprep.subr.mxu0 0.0
        %v5693 = vand.u32 %v5678, 4294901760
        %5694 = vmatpush1.msra.mxu0 %v5693
        %5695 = vmatprep.subr.mxu0 0.0
        %v5696 = vand.u32 %v5679, 4294901760
        %5697 = vmatpush1.msra.mxu0 %v5696
        %5698 = vmatprep.subr.mxu0 0.0
        %v5699 = vand.u32 %v5680, 4294901760
        %5700 = vmatpush1.msra.mxu0 %v5699
        %5701 = vmatprep.subr.mxu0 0.0
        %v5702 = vand.u32 %v5681, 4294901760
        %5703 = vmatpush1.msra.mxu0 %v5702
        %5704 = vmatprep.subr.mxu0 0.0
        %5705 = vmatpush1.msra.mxu0 0.0
        %5706 = vmatprep.subr.mxu0 0.0
        %5707 = vmatpush1.msra.mxu0 0.0
        %5708 = vmatprep.subr.mxu0 0.0
        %5709 = vmatpush1.msra.mxu0 0.0
        %5710 = vmatprep.subr.mxu0 0.0
        %5711 = vmatpush1.msra.mxu0 0.0
        %5712 = vmatprep.subr.mxu0 0.0
        %5713 = vmatpush1.msra.mxu0 0.0
        %5714 = vmatprep.subr.mxu0 0.0
        %5715 = vmatpush1.msra.mxu0 0.0
        %5716 = vmatprep.subr.mxu0 0.0
        %5717 = vmatpush1.msra.mxu0 0.0
        %5718 = vmatprep.subr.mxu0 0.0
        %5719 = vmatpush1.msra.mxu0 0.0
        %5720 = vmatprep.subr.mxu0 0.0
        %5721 = vmatpush1.msra.mxu0 0.0
        %5722 = vmatprep.subr.mxu0 0.0
        %5723 = vmatpush1.msra.mxu0 0.0
        %5724 = vmatprep.subr.mxu0 0.0
        %5725 = vmatpush1.msra.mxu0 0.0
        %5726 = vmatprep.subr.mxu0 0.0
        %5727 = vmatpush1.msra.mxu0 0.0
        %5728 = vmatprep.subr.mxu0 0.0
        %5729 = vmatpush1.msra.mxu0 0.0
        %5730 = vmatprep.subr.mxu0 0.0
        %5731 = vmatpush1.msra.mxu0 0.0
        %5732 = vmatprep.subr.mxu0 0.0
        %5733 = vmatpush1.msra.mxu0 0.0
        %5734 = vmatprep.subr.mxu0 0.0
        %5735 = vmatpush1.msra.mxu0 0.0
        %5736 = vmatprep.subr.mxu0 0.0
        %5737 = vmatpush1.msra.mxu0 0.0
        %5738 = vmatprep.subr.mxu0 0.0
        %5739 = vmatpush1.msra.mxu0 0.0
        %5740 = vmatprep.subr.mxu0 0.0
        %5741 = vmatpush1.msra.mxu0 0.0
        %5742 = vmatprep.subr.mxu0 0.0
        %5743 = vmatpush1.msra.mxu0 0.0
        %5744 = vmatprep.subr.mxu0 0.0
        %5745 = vmatpush1.msra.mxu0 0.0
        %5746 = vmatprep.subr.mxu0 0.0
        %5747 = vmatpush1.msra.mxu0 0.0
        %5748 = vmatprep.subr.mxu0 0.0
        %5749 = vmatpush1.msra.mxu0 0.0
        %5750 = vmatprep.subr.mxu0 0.0
        %5751 = vmatpush1.msra.mxu0 0.0
        %5752 = vmatprep.subr.mxu0 0.0
        %5753 = vmatpush1.msra.mxu0 0.0
        %5754 = vmatprep.subr.mxu0 0.0
        %5755 = vmatpush1.msra.mxu0 0.0
        %5756 = vmatprep.subr.mxu0 0.0
        %5757 = vmatpush1.msra.mxu0 0.0
        %5758 = vmatprep.subr.mxu0 0.0
        %5759 = vmatpush1.msra.mxu0 0.0
        %5760 = vmatprep.mubr.f32.mxu0 0.0
        %v5761 = vand.u32 %v5690, 4294901760
        %v5762 = vsub.f32 %v5690, %v5761
        %v5763 = vand.u32 %v5762, 4294901760
        %v5764 = vsub.f32 %v5762, %v5763
        %v5765 = vand.u32 %v5764, 4294901760
        %5766 = vmatmul.mubr.f32.gmra.mrb[0].mxu0 %v5765
        %v5767 = vpop.f32.mrb[0].mxu0
        %v5768 = vadd.f32 %v5687, %v5767
        %v5769 = vpop.f32.mrb[0].mxu0
        %5770 = vdwg.mxu0
        %5771 = vmatprep.subr.mxu0 0.0
        %v5772 = vand.u32 %v5678, 4294901760
        %v5773 = vsub.f32 %v5678, %v5772
        %v5774 = vand.u32 %v5773, 4294901760
        %v5775 = vsub.f32 %v5773, %v5774
        %v5776 = vand.u32 %v5775, 4294901760
        %5777 = vmatpush1.msra.mxu0 %v5776
        %5778 = vmatprep.subr.mxu0 0.0
        %v5779 = vand.u32 %v5679, 4294901760
        %v5780 = vsub.f32 %v5679, %v5779
        %v5781 = vand.u32 %v5780, 4294901760
        %v5782 = vsub.f32 %v5780, %v5781
        %v5783 = vand.u32 %v5782, 4294901760
        %5784 = vmatpush1.msra.mxu0 %v5783
        %5785 = vmatprep.subr.mxu0 0.0
        %v5786 = vand.u32 %v5680, 4294901760
        %v5787 = vsub.f32 %v5680, %v5786
        %v5788 = vand.u32 %v5787, 4294901760
        %v5789 = vsub.f32 %v5787, %v5788
        %v5790 = vand.u32 %v5789, 4294901760
        %5791 = vmatpush1.msra.mxu0 %v5790
        %5792 = vmatprep.subr.mxu0 0.0
        %v5793 = vand.u32 %v5681, 4294901760
        %v5794 = vsub.f32 %v5681, %v5793
        %v5795 = vand.u32 %v5794, 4294901760
        %v5796 = vsub.f32 %v5794, %v5795
        %v5797 = vand.u32 %v5796, 4294901760
        %5798 = vmatpush1.msra.mxu0 %v5797
        %5799 = vmatprep.subr.mxu0 0.0
        %5800 = vmatpush1.msra.mxu0 0.0
        %5801 = vmatprep.subr.mxu0 0.0
        %5802 = vmatpush1.msra.mxu0 0.0
        %5803 = vmatprep.subr.mxu0 0.0
        %5804 = vmatpush1.msra.mxu0 0.0
        %5805 = vmatprep.subr.mxu0 0.0
        %5806 = vmatpush1.msra.mxu0 0.0
        %5807 = vmatprep.subr.mxu0 0.0
        %5808 = vmatpush1.msra.mxu0 0.0
        %5809 = vmatprep.subr.mxu0 0.0
        %5810 = vmatpush1.msra.mxu0 0.0
        %5811 = vmatprep.subr.mxu0 0.0
        %5812 = vmatpush1.msra.mxu0 0.0
        %5813 = vmatprep.subr.mxu0 0.0
        %5814 = vmatpush1.msra.mxu0 0.0
        %5815 = vmatprep.subr.mxu0 0.0
        %5816 = vmatpush1.msra.mxu0 0.0
        %5817 = vmatprep.subr.mxu0 0.0
        %5818 = vmatpush1.msra.mxu0 0.0
        %5819 = vmatprep.subr.mxu0 0.0
        %5820 = vmatpush1.msra.mxu0 0.0
        %5821 = vmatprep.subr.mxu0 0.0
        %5822 = vmatpush1.msra.mxu0 0.0
        %5823 = vmatprep.subr.mxu0 0.0
        %5824 = vmatpush1.msra.mxu0 0.0
        %5825 = vmatprep.subr.mxu0 0.0
        %5826 = vmatpush1.msra.mxu0 0.0
        %5827 = vmatprep.subr.mxu0 0.0
        %5828 = vmatpush1.msra.mxu0 0.0
        %5829 = vmatprep.subr.mxu0 0.0
        %5830 = vmatpush1.msra.mxu0 0.0
        %5831 = vmatprep.subr.mxu0 0.0
        %5832 = vmatpush1.msra.mxu0 0.0
        %5833 = vmatprep.subr.mxu0 0.0
        %5834 = vmatpush1.msra.mxu0 0.0
        %5835 = vmatprep.subr.mxu0 0.0
        %5836 = vmatpush1.msra.mxu0 0.0
        %5837 = vmatprep.subr.mxu0 0.0
        %5838 = vmatpush1.msra.mxu0 0.0
        %5839 = vmatprep.subr.mxu0 0.0
        %5840 = vmatpush1.msra.mxu0 0.0
        %5841 = vmatprep.subr.mxu0 0.0
        %5842 = vmatpush1.msra.mxu0 0.0
        %5843 = vmatprep.subr.mxu0 0.0
        %5844 = vmatpush1.msra.mxu0 0.0
        %5845 = vmatprep.subr.mxu0 0.0
        %5846 = vmatpush1.msra.mxu0 0.0
        %5847 = vmatprep.subr.mxu0 0.0
        %5848 = vmatpush1.msra.mxu0 0.0
        %5849 = vmatprep.subr.mxu0 0.0
        %5850 = vmatpush1.msra.mxu0 0.0
        %5851 = vmatprep.subr.mxu0 0.0
        %5852 = vmatpush1.msra.mxu0 0.0
        %5853 = vmatprep.subr.mxu0 0.0
        %5854 = vmatpush1.msra.mxu0 0.0
        %5855 = vmatprep.mubr.f32.mxu0 0.0
        %v5856 = vand.u32 %v5690, 4294901760
        %5857 = vmatmul.mubr.f32.gmra.mrb[0].mxu0 %v5856
        %v5858 = vpop.f32.mrb[0].mxu0
        %v5859 = vadd.f32 %v5768, %v5858
        %v5860 = vpop.f32.mrb[0].mxu0
        %5861 = vdwg.mxu0
        %5862 = vmatprep.subr.mxu0 0.0
        %v5863 = vand.u32 %v5678, 4294901760
        %v5864 = vsub.f32 %v5678, %v5863
        %5865 = vmatpush1.msra.mxu0 %v5864
        %5866 = vmatprep.subr.mxu0 0.0
        %v5867 = vand.u32 %v5679, 4294901760
        %v5868 = vsub.f32 %v5679, %v5867
        %5869 = vmatpush1.msra.mxu0 %v5868
        %5870 = vmatprep.subr.mxu0 0.0
        %v5871 = vand.u32 %v5680, 4294901760
        %v5872 = vsub.f32 %v5680, %v5871
        %5873 = vmatpush1.msra.mxu0 %v5872
        %5874 = vmatprep.subr.mxu0 0.0
        %v5875 = vand.u32 %v5681, 4294901760
        %v5876 = vsub.f32 %v5681, %v5875
        %5877 = vmatpush1.msra.mxu0 %v5876
        %5878 = vmatprep.subr.mxu0 0.0
        %5879 = vmatpush1.msra.mxu0 0.0
        %5880 = vmatprep.subr.mxu0 0.0
        %5881 = vmatpush1.msra.mxu0 0.0
        %5882 = vmatprep.subr.mxu0 0.0
        %5883 = vmatpush1.msra.mxu0 0.0
        %5884 = vmatprep.subr.mxu0 0.0
        %5885 = vmatpush1.msra.mxu0 0.0
        %5886 = vmatprep.subr.mxu0 0.0
        %5887 = vmatpush1.msra.mxu0 0.0
        %5888 = vmatprep.subr.mxu0 0.0
        %5889 = vmatpush1.msra.mxu0 0.0
        %5890 = vmatprep.subr.mxu0 0.0
        %5891 = vmatpush1.msra.mxu0 0.0
        %5892 = vmatprep.subr.mxu0 0.0
        %5893 = vmatpush1.msra.mxu0 0.0
        %5894 = vmatprep.subr.mxu0 0.0
        %5895 = vmatpush1.msra.mxu0 0.0
        %5896 = vmatprep.subr.mxu0 0.0
        %5897 = vmatpush1.msra.mxu0 0.0
        %5898 = vmatprep.subr.mxu0 0.0
        %5899 = vmatpush1.msra.mxu0 0.0
        %5900 = vmatprep.subr.mxu0 0.0
        %5901 = vmatpush1.msra.mxu0 0.0
        %5902 = vmatprep.subr.mxu0 0.0
        %5903 = vmatpush1.msra.mxu0 0.0
        %5904 = vmatprep.subr.mxu0 0.0
        %5905 = vmatpush1.msra.mxu0 0.0
        %5906 = vmatprep.subr.mxu0 0.0
        %5907 = vmatpush1.msra.mxu0 0.0
        %5908 = vmatprep.subr.mxu0 0.0
        %5909 = vmatpush1.msra.mxu0 0.0
        %5910 = vmatprep.subr.mxu0 0.0
        %5911 = vmatpush1.msra.mxu0 0.0
        %5912 = vmatprep.subr.mxu0 0.0
        %5913 = vmatpush1.msra.mxu0 0.0
        %5914 = vmatprep.subr.mxu0 0.0
        %5915 = vmatpush1.msra.mxu0 0.0
        %5916 = vmatprep.subr.mxu0 0.0
        %5917 = vmatpush1.msra.mxu0 0.0
        %5918 = vmatprep.subr.mxu0 0.0
        %5919 = vmatpush1.msra.mxu0 0.0
        %5920 = vmatprep.subr.mxu0 0.0
        %5921 = vmatpush1.msra.mxu0 0.0
        %5922 = vmatprep.subr.mxu0 0.0
        %5923 = vmatpush1.msra.mxu0 0.0
        %5924 = vmatprep.subr.mxu0 0.0
        %5925 = vmatpush1.msra.mxu0 0.0
        %5926 = vmatprep.subr.mxu0 0.0
        %5927 = vmatpush1.msra.mxu0 0.0
        %5928 = vmatprep.subr.mxu0 0.0
        %5929 = vmatpush1.msra.mxu0 0.0
        %5930 = vmatprep.subr.mxu0 0.0
        %5931 = vmatpush1.msra.mxu0 0.0
        %5932 = vmatprep.subr.mxu0 0.0
        %5933 = vmatpush1.msra.mxu0 0.0
        %5934 = vmatprep.mubr.f32.mxu0 0.0
        %v5935 = vand.u32 %v5690, 4294901760
        %v5936 = vsub.f32 %v5690, %v5935
        %5937 = vmatmul.mubr.f32.gmra.mrb[0].mxu0 %v5936
        %v5938 = vpop.f32.mrb[0].mxu0
        %v5939 = vadd.f32 %v5859, %v5938
        %v5940 = vpop.f32.mrb[0].mxu0
        %5941 = vdwg.mxu0
        %5942 = vmatprep.subr.mxu0 0.0
        %v5943 = vand.u32 %v5678, 4294901760
        %5944 = vmatpush1.msra.mxu0 %v5943
        %5945 = vmatprep.subr.mxu0 0.0
        %v5946 = vand.u32 %v5679, 4294901760
        %5947 = vmatpush1.msra.mxu0 %v5946
        %5948 = vmatprep.subr.mxu0 0.0
        %v5949 = vand.u32 %v5680, 4294901760
        %5950 = vmatpush1.msra.mxu0 %v5949
        %5951 = vmatprep.subr.mxu0 0.0
        %v5952 = vand.u32 %v5681, 4294901760
        %5953 = vmatpush1.msra.mxu0 %v5952
        %5954 = vmatprep.subr.mxu0 0.0
        %5955 = vmatpush1.msra.mxu0 0.0
        %5956 = vmatprep.subr.mxu0 0.0
        %5957 = vmatpush1.msra.mxu0 0.0
        %5958 = vmatprep.subr.mxu0 0.0
        %5959 = vmatpush1.msra.mxu0 0.0
        %5960 = vmatprep.subr.mxu0 0.0
        %5961 = vmatpush1.msra.mxu0 0.0
        %5962 = vmatprep.subr.mxu0 0.0
        %5963 = vmatpush1.msra.mxu0 0.0
        %5964 = vmatprep.subr.mxu0 0.0
        %5965 = vmatpush1.msra.mxu0 0.0
        %5966 = vmatprep.subr.mxu0 0.0
        %5967 = vmatpush1.msra.mxu0 0.0
        %5968 = vmatprep.subr.mxu0 0.0
        %5969 = vmatpush1.msra.mxu0 0.0
        %5970 = vmatprep.subr.mxu0 0.0
        %5971 = vmatpush1.msra.mxu0 0.0
        %5972 = vmatprep.subr.mxu0 0.0
        %5973 = vmatpush1.msra.mxu0 0.0
        %5974 = vmatprep.subr.mxu0 0.0
        %5975 = vmatpush1.msra.mxu0 0.0
        %5976 = vmatprep.subr.mxu0 0.0
        %5977 = vmatpush1.msra.mxu0 0.0
        %5978 = vmatprep.subr.mxu0 0.0
        %5979 = vmatpush1.msra.mxu0 0.0
        %5980 = vmatprep.subr.mxu0 0.0
        %5981 = vmatpush1.msra.mxu0 0.0
        %5982 = vmatprep.subr.mxu0 0.0
        %5983 = vmatpush1.msra.mxu0 0.0
        %5984 = vmatprep.subr.mxu0 0.0
        %5985 = vmatpush1.msra.mxu0 0.0
        %5986 = vmatprep.subr.mxu0 0.0
        %5987 = vmatpush1.msra.mxu0 0.0
        %5988 = vmatprep.subr.mxu0 0.0
        %5989 = vmatpush1.msra.mxu0 0.0
        %5990 = vmatprep.subr.mxu0 0.0
        %5991 = vmatpush1.msra.mxu0 0.0
        %5992 = vmatprep.subr.mxu0 0.0
        %5993 = vmatpush1.msra.mxu0 0.0
        %5994 = vmatprep.subr.mxu0 0.0
        %5995 = vmatpush1.msra.mxu0 0.0
        %5996 = vmatprep.subr.mxu0 0.0
        %5997 = vmatpush1.msra.mxu0 0.0
        %5998 = vmatprep.subr.mxu0 0.0
        %5999 = vmatpush1.msra.mxu0 0.0
        %6000 = vmatprep.subr.mxu0 0.0
        %6001 = vmatpush1.msra.mxu0 0.0
        %6002 = vmatprep.subr.mxu0 0.0
        %6003 = vmatpush1.msra.mxu0 0.0
        %6004 = vmatprep.subr.mxu0 0.0
        %6005 = vmatpush1.msra.mxu0 0.0
        %6006 = vmatprep.subr.mxu0 0.0
        %6007 = vmatpush1.msra.mxu0 0.0
        %6008 = vmatprep.subr.mxu0 0.0
        %6009 = vmatpush1.msra.mxu0 0.0
        %6010 = vmatprep.mubr.f32.mxu0 0.0
        %v6011 = vand.u32 %v5690, 4294901760
        %v6012 = vsub.f32 %v5690, %v6011
        %v6013 = vand.u32 %v6012, 4294901760
        %6014 = vmatmul.mubr.f32.gmra.mrb[0].mxu0 %v6013
        %v6015 = vpop.f32.mrb[0].mxu0
        %v6016 = vadd.f32 %v5939, %v6015
        %v6017 = vpop.f32.mrb[0].mxu0
        %6018 = vdwg.mxu0
        %6019 = vmatprep.subr.mxu0 0.0
        %v6020 = vand.u32 %v5678, 4294901760
        %v6021 = vsub.f32 %v5678, %v6020
        %v6022 = vand.u32 %v6021, 4294901760
        %6023 = vmatpush1.msra.mxu0 %v6022
        %6024 = vmatprep.subr.mxu0 0.0
        %v6025 = vand.u32 %v5679, 4294901760
        %v6026 = vsub.f32 %v5679, %v6025
        %v6027 = vand.u32 %v6026, 4294901760
        %6028 = vmatpush1.msra.mxu0 %v6027
        %6029 = vmatprep.subr.mxu0 0.0
        %v6030 = vand.u32 %v5680, 4294901760
        %v6031 = vsub.f32 %v5680, %v6030
        %v6032 = vand.u32 %v6031, 4294901760
        %6033 = vmatpush1.msra.mxu0 %v6032
        %6034 = vmatprep.subr.mxu0 0.0
        %v6035 = vand.u32 %v5681, 4294901760
        %v6036 = vsub.f32 %v5681, %v6035
        %v6037 = vand.u32 %v6036, 4294901760
        %6038 = vmatpush1.msra.mxu0 %v6037
        %6039 = vmatprep.subr.mxu0 0.0
        %6040 = vmatpush1.msra.mxu0 0.0
        %6041 = vmatprep.subr.mxu0 0.0
        %6042 = vmatpush1.msra.mxu0 0.0
        %6043 = vmatprep.subr.mxu0 0.0
        %6044 = vmatpush1.msra.mxu0 0.0
        %6045 = vmatprep.subr.mxu0 0.0
        %6046 = vmatpush1.msra.mxu0 0.0
        %6047 = vmatprep.subr.mxu0 0.0
        %6048 = vmatpush1.msra.mxu0 0.0
        %6049 = vmatprep.subr.mxu0 0.0
        %6050 = vmatpush1.msra.mxu0 0.0
        %6051 = vmatprep.subr.mxu0 0.0
        %6052 = vmatpush1.msra.mxu0 0.0
        %6053 = vmatprep.subr.mxu0 0.0
        %6054 = vmatpush1.msra.mxu0 0.0
        %6055 = vmatprep.subr.mxu0 0.0
        %6056 = vmatpush1.msra.mxu0 0.0
        %6057 = vmatprep.subr.mxu0 0.0
        %6058 = vmatpush1.msra.mxu0 0.0
        %6059 = vmatprep.subr.mxu0 0.0
        %6060 = vmatpush1.msra.mxu0 0.0
        %6061 = vmatprep.subr.mxu0 0.0
        %6062 = vmatpush1.msra.mxu0 0.0
        %6063 = vmatprep.subr.mxu0 0.0
        %6064 = vmatpush1.msra.mxu0 0.0
        %6065 = vmatprep.subr.mxu0 0.0
        %6066 = vmatpush1.msra.mxu0 0.0
        %6067 = vmatprep.subr.mxu0 0.0
        %6068 = vmatpush1.msra.mxu0 0.0
        %6069 = vmatprep.subr.mxu0 0.0
        %6070 = vmatpush1.msra.mxu0 0.0
        %6071 = vmatprep.subr.mxu0 0.0
        %6072 = vmatpush1.msra.mxu0 0.0
        %6073 = vmatprep.subr.mxu0 0.0
        %6074 = vmatpush1.msra.mxu0 0.0
        %6075 = vmatprep.subr.mxu0 0.0
        %6076 = vmatpush1.msra.mxu0 0.0
        %6077 = vmatprep.subr.mxu0 0.0
        %6078 = vmatpush1.msra.mxu0 0.0
        %6079 = vmatprep.subr.mxu0 0.0
        %6080 = vmatpush1.msra.mxu0 0.0
        %6081 = vmatprep.subr.mxu0 0.0
        %6082 = vmatpush1.msra.mxu0 0.0
        %6083 = vmatprep.subr.mxu0 0.0
        %6084 = vmatpush1.msra.mxu0 0.0
        %6085 = vmatprep.subr.mxu0 0.0
        %6086 = vmatpush1.msra.mxu0 0.0
        %6087 = vmatprep.subr.mxu0 0.0
        %6088 = vmatpush1.msra.mxu0 0.0
        %6089 = vmatprep.subr.mxu0 0.0
        %6090 = vmatpush1.msra.mxu0 0.0
        %6091 = vmatprep.subr.mxu0 0.0
        %6092 = vmatpush1.msra.mxu0 0.0
        %6093 = vmatprep.subr.mxu0 0.0
        %6094 = vmatpush1.msra.mxu0 0.0
        %6095 = vmatprep.mubr.f32.mxu0 0.0
        %v6096 = vand.u32 %v5690, 4294901760
        %6097 = vmatmul.mubr.f32.gmra.mrb[0].mxu0 %v6096
        %v6098 = vpop.f32.mrb[0].mxu0
        %v6099 = vadd.f32 %v6016, %v6098
        %v6100 = vpop.f32.mrb[0].mxu0
        %6101 = vdwg.mxu0
        %6102 = vmatprep.subr.mxu0 0.0
        %v6103 = vand.u32 %v5678, 4294901760
        %6104 = vmatpush1.msra.mxu0 %v6103
        %6105 = vmatprep.subr.mxu0 0.0
        %v6106 = vand.u32 %v5679, 4294901760
        %6107 = vmatpush1.msra.mxu0 %v6106
        %6108 = vmatprep.subr.mxu0 0.0
        %v6109 = vand.u32 %v5680, 4294901760
        %6110 = vmatpush1.msra.mxu0 %v6109
        %6111 = vmatprep.subr.mxu0 0.0
        %v6112 = vand.u32 %v5681, 4294901760
        %6113 = vmatpush1.msra.mxu0 %v6112
        %6114 = vmatprep.subr.mxu0 0.0
        %6115 = vmatpush1.msra.mxu0 0.0
        %6116 = vmatprep.subr.mxu0 0.0
        %6117 = vmatpush1.msra.mxu0 0.0
        %6118 = vmatprep.subr.mxu0 0.0
        %6119 = vmatpush1.msra.mxu0 0.0
        %6120 = vmatprep.subr.mxu0 0.0
        %6121 = vmatpush1.msra.mxu0 0.0
        %6122 = vmatprep.subr.mxu0 0.0
        %6123 = vmatpush1.msra.mxu0 0.0
        %6124 = vmatprep.subr.mxu0 0.0
        %6125 = vmatpush1.msra.mxu0 0.0
        %6126 = vmatprep.subr.mxu0 0.0
        %6127 = vmatpush1.msra.mxu0 0.0
        %6128 = vmatprep.subr.mxu0 0.0
        %6129 = vmatpush1.msra.mxu0 0.0
        %6130 = vmatprep.subr.mxu0 0.0
        %6131 = vmatpush1.msra.mxu0 0.0
        %6132 = vmatprep.subr.mxu0 0.0
        %6133 = vmatpush1.msra.mxu0 0.0
        %6134 = vmatprep.subr.mxu0 0.0
        %6135 = vmatpush1.msra.mxu0 0.0
        %6136 = vmatprep.subr.mxu0 0.0
        %6137 = vmatpush1.msra.mxu0 0.0
        %6138 = vmatprep.subr.mxu0 0.0
        %6139 = vmatpush1.msra.mxu0 0.0
        %6140 = vmatprep.subr.mxu0 0.0
        %6141 = vmatpush1.msra.mxu0 0.0
        %6142 = vmatprep.subr.mxu0 0.0
        %6143 = vmatpush1.msra.mxu0 0.0
        %6144 = vmatprep.subr.mxu0 0.0
        %6145 = vmatpush1.msra.mxu0 0.0
        %6146 = vmatprep.subr.mxu0 0.0
        %6147 = vmatpush1.msra.mxu0 0.0
        %6148 = vmatprep.subr.mxu0 0.0
        %6149 = vmatpush1.msra.mxu0 0.0
        %6150 = vmatprep.subr.mxu0 0.0
        %6151 = vmatpush1.msra.mxu0 0.0
        %6152 = vmatprep.subr.mxu0 0.0
        %6153 = vmatpush1.msra.mxu0 0.0
        %6154 = vmatprep.subr.mxu0 0.0
        %6155 = vmatpush1.msra.mxu0 0.0
        %6156 = vmatprep.subr.mxu0 0.0
        %6157 = vmatpush1.msra.mxu0 0.0
        %6158 = vmatprep.subr.mxu0 0.0
        %6159 = vmatpush1.msra.mxu0 0.0
        %6160 = vmatprep.subr.mxu0 0.0
        %6161 = vmatpush1.msra.mxu0 0.0
        %6162 = vmatprep.subr.mxu0 0.0
        %6163 = vmatpush1.msra.mxu0 0.0
        %6164 = vmatprep.subr.mxu0 0.0
        %6165 = vmatpush1.msra.mxu0 0.0
        %6166 = vmatprep.subr.mxu0 0.0
        %6167 = vmatpush1.msra.mxu0 0.0
        %6168 = vmatprep.subr.mxu0 0.0
        %6169 = vmatpush1.msra.mxu0 0.0
        %6170 = vmatprep.mubr.f32.mxu0 0.0
        %v6171 = vand.u32 %v5690, 4294901760
        %6172 = vmatmul.mubr.f32.gmra.mrb[0].mxu0 %v6171
        %v6173 = vpop.f32.mrb[0].mxu0
        %v6174 = vadd.f32 %v6099, %v6173
        %v6175 = vpop.f32.mrb[0].mxu0
        %6176 = vdwg.mxu0
        %v6177 = vadd.f32 %v910, %v6174
        %v6178 = vld [vmem:[%s768] sm:$0x1]
        %v6179 = vld [vmem:[%s776] sm:$0x1]
        %v6180 = vsel %vm913, %v6177, 0.0
        %6181 = vadd.xlane.f32.xlu0 %v6180
        %v6182 = vpop.xlane.xlu0 %6181
        %v6183 = vmul.f32 %v6182, %v917
        %v6184 = vsub.f32 %v6177, %v6183
        %v6185 = vmul.f32 %v6184, %v6184
        %v6186 = vsel %vm913, %v6185, 0.0
        %6187 = vadd.xlane.f32.xlu0 %v6186
        %v6188 = vpop.xlane.xlu0 %6187
        %v6189 = vmul.f32 %v6188, %v917
        %v6190 = vadd.f32 %v6189, 1e-05
        %v6191 = vrsqrt.pop %v6190
        %v6192 = vmul.f32 %v6184, %v6191
        %v6194 = vlaneseq
        %v6195 = vshrl.u32 %v6194, 7
        %v6196 = vsub.s32 0, %v6195
        %v6197 = vrot.slane %v6178, %v6196
        %v6199 = vmul.f32 %v6192, %v6197
        %v6201 = vlaneseq
        %v6202 = vshrl.u32 %v6201, 7
        %v6203 = vsub.s32 0, %v6202
        %v6204 = vrot.slane %v6179, %v6203
        %v6206 = vadd.f32 %v6199, %v6204
        %v6207 = vld [vmem:[%s785] sm:$0xff]
        %v6208 = vld [vmem:[%s785 + $0x8] sm:$0xff]
        %v6209 = vld [vmem:[%s785 + $0x10] sm:$0xff]
        %v6210 = vld [vmem:[%s785 + $0x18] sm:$0xff]
        %v6211 = vld [vmem:[%s793] sm:$0x1]
        %v6213 = vlaneseq
        %v6214 = vshrl.u32 %v6213, 7
        %v6215 = vsub.s32 0, %v6214
        %v6216 = vrot.slane %v6211, %v6215
        %v6219 = vsel %vm913, %v6206, 0
        %6221 = vmatprep.subr.mxu0 0.0
        %v6222 = vand.u32 %v6207, 4294901760
        %6223 = vmatpush1.msra.mxu0 %v6222
        %6224 = vmatprep.subr.mxu0 0.0
        %v6225 = vand.u32 %v6208, 4294901760
        %6226 = vmatpush1.msra.mxu0 %v6225
        %6227 = vmatprep.subr.mxu0 0.0
        %v6228 = vand.u32 %v6209, 4294901760
        %6229 = vmatpush1.msra.mxu0 %v6228
        %6230 = vmatprep.subr.mxu0 0.0
        %v6231 = vand.u32 %v6210, 4294901760
        %6232 = vmatpush1.msra.mxu0 %v6231
        %6233 = vmatprep.subr.mxu0 0.0
        %6234 = vmatpush1.msra.mxu0 0.0
        %6235 = vmatprep.subr.mxu0 0.0
        %6236 = vmatpush1.msra.mxu0 0.0
        %6237 = vmatprep.subr.mxu0 0.0
        %6238 = vmatpush1.msra.mxu0 0.0
        %6239 = vmatprep.subr.mxu0 0.0
        %6240 = vmatpush1.msra.mxu0 0.0
        %6241 = vmatprep.subr.mxu0 0.0
        %6242 = vmatpush1.msra.mxu0 0.0
        %6243 = vmatprep.subr.mxu0 0.0
        %6244 = vmatpush1.msra.mxu0 0.0
        %6245 = vmatprep.subr.mxu0 0.0
        %6246 = vmatpush1.msra.mxu0 0.0
        %6247 = vmatprep.subr.mxu0 0.0
        %6248 = vmatpush1.msra.mxu0 0.0
        %6249 = vmatprep.subr.mxu0 0.0
        %6250 = vmatpush1.msra.mxu0 0.0
        %6251 = vmatprep.subr.mxu0 0.0
        %6252 = vmatpush1.msra.mxu0 0.0
        %6253 = vmatprep.subr.mxu0 0.0
        %6254 = vmatpush1.msra.mxu0 0.0
        %6255 = vmatprep.subr.mxu0 0.0
        %6256 = vmatpush1.msra.mxu0 0.0
        %6257 = vmatprep.subr.mxu0 0.0
        %6258 = vmatpush1.msra.mxu0 0.0
        %6259 = vmatprep.subr.mxu0 0.0
        %6260 = vmatpush1.msra.mxu0 0.0
        %6261 = vmatprep.subr.mxu0 0.0
        %6262 = vmatpush1.msra.mxu0 0.0
        %6263 = vmatprep.subr.mxu0 0.0
        %6264 = vmatpush1.msra.mxu0 0.0
        %6265 = vmatprep.subr.mxu0 0.0
        %6266 = vmatpush1.msra.mxu0 0.0
        %6267 = vmatprep.subr.mxu0 0.0
        %6268 = vmatpush1.msra.mxu0 0.0
        %6269 = vmatprep.subr.mxu0 0.0
        %6270 = vmatpush1.msra.mxu0 0.0
        %6271 = vmatprep.subr.mxu0 0.0
        %6272 = vmatpush1.msra.mxu0 0.0
        %6273 = vmatprep.subr.mxu0 0.0
        %6274 = vmatpush1.msra.mxu0 0.0
        %6275 = vmatprep.subr.mxu0 0.0
        %6276 = vmatpush1.msra.mxu0 0.0
        %6277 = vmatprep.subr.mxu0 0.0
        %6278 = vmatpush1.msra.mxu0 0.0
        %6279 = vmatprep.subr.mxu0 0.0
        %6280 = vmatpush1.msra.mxu0 0.0
        %6281 = vmatprep.subr.mxu0 0.0
        %6282 = vmatpush1.msra.mxu0 0.0
        %6283 = vmatprep.subr.mxu0 0.0
        %6284 = vmatpush1.msra.mxu0 0.0
        %6285 = vmatprep.subr.mxu0 0.0
        %6286 = vmatpush1.msra.mxu0 0.0
        %6287 = vmatprep.subr.mxu0 0.0
        %6288 = vmatpush1.msra.mxu0 0.0
        %6289 = vmatprep.mubr.f32.mxu0 0.0
        %v6290 = vand.u32 %v6219, 4294901760
        %v6291 = vsub.f32 %v6219, %v6290
        %v6292 = vand.u32 %v6291, 4294901760
        %v6293 = vsub.f32 %v6291, %v6292
        %v6294 = vand.u32 %v6293, 4294901760
        %6295 = vmatmul.mubr.f32.gmra.mrb[0].mxu0 %v6294
        %v6296 = vpop.f32.mrb[0].mxu0
        %v6297 = vadd.f32 %v6216, %v6296
        %v6298 = vpop.f32.mrb[0].mxu0
        %6299 = vdwg.mxu0
        %6300 = vmatprep.subr.mxu0 0.0
        %v6301 = vand.u32 %v6207, 4294901760
        %v6302 = vsub.f32 %v6207, %v6301
        %v6303 = vand.u32 %v6302, 4294901760
        %v6304 = vsub.f32 %v6302, %v6303
        %v6305 = vand.u32 %v6304, 4294901760
        %6306 = vmatpush1.msra.mxu0 %v6305
        %6307 = vmatprep.subr.mxu0 0.0
        %v6308 = vand.u32 %v6208, 4294901760
        %v6309 = vsub.f32 %v6208, %v6308
        %v6310 = vand.u32 %v6309, 4294901760
        %v6311 = vsub.f32 %v6309, %v6310
        %v6312 = vand.u32 %v6311, 4294901760
        %6313 = vmatpush1.msra.mxu0 %v6312
        %6314 = vmatprep.subr.mxu0 0.0
        %v6315 = vand.u32 %v6209, 4294901760
        %v6316 = vsub.f32 %v6209, %v6315
        %v6317 = vand.u32 %v6316, 4294901760
        %v6318 = vsub.f32 %v6316, %v6317
        %v6319 = vand.u32 %v6318, 4294901760
        %6320 = vmatpush1.msra.mxu0 %v6319
        %6321 = vmatprep.subr.mxu0 0.0
        %v6322 = vand.u32 %v6210, 4294901760
        %v6323 = vsub.f32 %v6210, %v6322
        %v6324 = vand.u32 %v6323, 4294901760
        %v6325 = vsub.f32 %v6323, %v6324
        %v6326 = vand.u32 %v6325, 4294901760
        %6327 = vmatpush1.msra.mxu0 %v6326
        %6328 = vmatprep.subr.mxu0 0.0
        %6329 = vmatpush1.msra.mxu0 0.0
        %6330 = vmatprep.subr.mxu0 0.0
        %6331 = vmatpush1.msra.mxu0 0.0
        %6332 = vmatprep.subr.mxu0 0.0
        %6333 = vmatpush1.msra.mxu0 0.0
        %6334 = vmatprep.subr.mxu0 0.0
        %6335 = vmatpush1.msra.mxu0 0.0
        %6336 = vmatprep.subr.mxu0 0.0
        %6337 = vmatpush1.msra.mxu0 0.0
        %6338 = vmatprep.subr.mxu0 0.0
        %6339 = vmatpush1.msra.mxu0 0.0
        %6340 = vmatprep.subr.mxu0 0.0
        %6341 = vmatpush1.msra.mxu0 0.0
        %6342 = vmatprep.subr.mxu0 0.0
        %6343 = vmatpush1.msra.mxu0 0.0
        %6344 = vmatprep.subr.mxu0 0.0
        %6345 = vmatpush1.msra.mxu0 0.0
        %6346 = vmatprep.subr.mxu0 0.0
        %6347 = vmatpush1.msra.mxu0 0.0
        %6348 = vmatprep.subr.mxu0 0.0
        %6349 = vmatpush1.msra.mxu0 0.0
        %6350 = vmatprep.subr.mxu0 0.0
        %6351 = vmatpush1.msra.mxu0 0.0
        %6352 = vmatprep.subr.mxu0 0.0
        %6353 = vmatpush1.msra.mxu0 0.0
        %6354 = vmatprep.subr.mxu0 0.0
        %6355 = vmatpush1.msra.mxu0 0.0
        %6356 = vmatprep.subr.mxu0 0.0
        %6357 = vmatpush1.msra.mxu0 0.0
        %6358 = vmatprep.subr.mxu0 0.0
        %6359 = vmatpush1.msra.mxu0 0.0
        %6360 = vmatprep.subr.mxu0 0.0
        %6361 = vmatpush1.msra.mxu0 0.0
        %6362 = vmatprep.subr.mxu0 0.0
        %6363 = vmatpush1.msra.mxu0 0.0
        %6364 = vmatprep.subr.mxu0 0.0
        %6365 = vmatpush1.msra.mxu0 0.0
        %6366 = vmatprep.subr.mxu0 0.0
        %6367 = vmatpush1.msra.mxu0 0.0
        %6368 = vmatprep.subr.mxu0 0.0
        %6369 = vmatpush1.msra.mxu0 0.0
        %6370 = vmatprep.subr.mxu0 0.0
        %6371 = vmatpush1.msra.mxu0 0.0
        %6372 = vmatprep.subr.mxu0 0.0
        %6373 = vmatpush1.msra.mxu0 0.0
        %6374 = vmatprep.subr.mxu0 0.0
        %6375 = vmatpush1.msra.mxu0 0.0
        %6376 = vmatprep.subr.mxu0 0.0
        %6377 = vmatpush1.msra.mxu0 0.0
        %6378 = vmatprep.subr.mxu0 0.0
        %6379 = vmatpush1.msra.mxu0 0.0
        %6380 = vmatprep.subr.mxu0 0.0
        %6381 = vmatpush1.msra.mxu0 0.0
        %6382 = vmatprep.subr.mxu0 0.0
        %6383 = vmatpush1.msra.mxu0 0.0
        %6384 = vmatprep.mubr.f32.mxu0 0.0
        %v6385 = vand.u32 %v6219, 4294901760
        %6386 = vmatmul.mubr.f32.gmra.mrb[0].mxu0 %v6385
        %v6387 = vpop.f32.mrb[0].mxu0
        %v6388 = vadd.f32 %v6297, %v6387
        %v6389 = vpop.f32.mrb[0].mxu0
        %6390 = vdwg.mxu0
        %6391 = vmatprep.subr.mxu0 0.0
        %v6392 = vand.u32 %v6207, 4294901760
        %v6393 = vsub.f32 %v6207, %v6392
        %6394 = vmatpush1.msra.mxu0 %v6393
        %6395 = vmatprep.subr.mxu0 0.0
        %v6396 = vand.u32 %v6208, 4294901760
        %v6397 = vsub.f32 %v6208, %v6396
        %6398 = vmatpush1.msra.mxu0 %v6397
        %6399 = vmatprep.subr.mxu0 0.0
        %v6400 = vand.u32 %v6209, 4294901760
        %v6401 = vsub.f32 %v6209, %v6400
        %6402 = vmatpush1.msra.mxu0 %v6401
        %6403 = vmatprep.subr.mxu0 0.0
        %v6404 = vand.u32 %v6210, 4294901760
        %v6405 = vsub.f32 %v6210, %v6404
        %6406 = vmatpush1.msra.mxu0 %v6405
        %6407 = vmatprep.subr.mxu0 0.0
        %6408 = vmatpush1.msra.mxu0 0.0
        %6409 = vmatprep.subr.mxu0 0.0
        %6410 = vmatpush1.msra.mxu0 0.0
        %6411 = vmatprep.subr.mxu0 0.0
        %6412 = vmatpush1.msra.mxu0 0.0
        %6413 = vmatprep.subr.mxu0 0.0
        %6414 = vmatpush1.msra.mxu0 0.0
        %6415 = vmatprep.subr.mxu0 0.0
        %6416 = vmatpush1.msra.mxu0 0.0
        %6417 = vmatprep.subr.mxu0 0.0
        %6418 = vmatpush1.msra.mxu0 0.0
        %6419 = vmatprep.subr.mxu0 0.0
        %6420 = vmatpush1.msra.mxu0 0.0
        %6421 = vmatprep.subr.mxu0 0.0
        %6422 = vmatpush1.msra.mxu0 0.0
        %6423 = vmatprep.subr.mxu0 0.0
        %6424 = vmatpush1.msra.mxu0 0.0
        %6425 = vmatprep.subr.mxu0 0.0
        %6426 = vmatpush1.msra.mxu0 0.0
        %6427 = vmatprep.subr.mxu0 0.0
        %6428 = vmatpush1.msra.mxu0 0.0
        %6429 = vmatprep.subr.mxu0 0.0
        %6430 = vmatpush1.msra.mxu0 0.0
        %6431 = vmatprep.subr.mxu0 0.0
        %6432 = vmatpush1.msra.mxu0 0.0
        %6433 = vmatprep.subr.mxu0 0.0
        %6434 = vmatpush1.msra.mxu0 0.0
        %6435 = vmatprep.subr.mxu0 0.0
        %6436 = vmatpush1.msra.mxu0 0.0
        %6437 = vmatprep.subr.mxu0 0.0
        %6438 = vmatpush1.msra.mxu0 0.0
        %6439 = vmatprep.subr.mxu0 0.0
        %6440 = vmatpush1.msra.mxu0 0.0
        %6441 = vmatprep.subr.mxu0 0.0
        %6442 = vmatpush1.msra.mxu0 0.0
        %6443 = vmatprep.subr.mxu0 0.0
        %6444 = vmatpush1.msra.mxu0 0.0
        %6445 = vmatprep.subr.mxu0 0.0
        %6446 = vmatpush1.msra.mxu0 0.0
        %6447 = vmatprep.subr.mxu0 0.0
        %6448 = vmatpush1.msra.mxu0 0.0
        %6449 = vmatprep.subr.mxu0 0.0
        %6450 = vmatpush1.msra.mxu0 0.0
        %6451 = vmatprep.subr.mxu0 0.0
        %6452 = vmatpush1.msra.mxu0 0.0
        %6453 = vmatprep.subr.mxu0 0.0
        %6454 = vmatpush1.msra.mxu0 0.0
        %6455 = vmatprep.subr.mxu0 0.0
        %6456 = vmatpush1.msra.mxu0 0.0
        %6457 = vmatprep.subr.mxu0 0.0
        %6458 = vmatpush1.msra.mxu0 0.0
        %6459 = vmatprep.subr.mxu0 0.0
        %6460 = vmatpush1.msra.mxu0 0.0
        %6461 = vmatprep.subr.mxu0 0.0
        %6462 = vmatpush1.msra.mxu0 0.0
        %6463 = vmatprep.mubr.f32.mxu0 0.0
        %v6464 = vand.u32 %v6219, 4294901760
        %v6465 = vsub.f32 %v6219, %v6464
        %6466 = vmatmul.mubr.f32.gmra.mrb[0].mxu0 %v6465
        %v6467 = vpop.f32.mrb[0].mxu0
        %v6468 = vadd.f32 %v6388, %v6467
        %v6469 = vpop.f32.mrb[0].mxu0
        %6470 = vdwg.mxu0
        %6471 = vmatprep.subr.mxu0 0.0
        %v6472 = vand.u32 %v6207, 4294901760
        %6473 = vmatpush1.msra.mxu0 %v6472
        %6474 = vmatprep.subr.mxu0 0.0
        %v6475 = vand.u32 %v6208, 4294901760
        %6476 = vmatpush1.msra.mxu0 %v6475
        %6477 = vmatprep.subr.mxu0 0.0
        %v6478 = vand.u32 %v6209, 4294901760
        %6479 = vmatpush1.msra.mxu0 %v6478
        %6480 = vmatprep.subr.mxu0 0.0
        %v6481 = vand.u32 %v6210, 4294901760
        %6482 = vmatpush1.msra.mxu0 %v6481
        %6483 = vmatprep.subr.mxu0 0.0
        %6484 = vmatpush1.msra.mxu0 0.0
        %6485 = vmatprep.subr.mxu0 0.0
        %6486 = vmatpush1.msra.mxu0 0.0
        %6487 = vmatprep.subr.mxu0 0.0
        %6488 = vmatpush1.msra.mxu0 0.0
        %6489 = vmatprep.subr.mxu0 0.0
        %6490 = vmatpush1.msra.mxu0 0.0
        %6491 = vmatprep.subr.mxu0 0.0
        %6492 = vmatpush1.msra.mxu0 0.0
        %6493 = vmatprep.subr.mxu0 0.0
        %6494 = vmatpush1.msra.mxu0 0.0
        %6495 = vmatprep.subr.mxu0 0.0
        %6496 = vmatpush1.msra.mxu0 0.0
        %6497 = vmatprep.subr.mxu0 0.0
        %6498 = vmatpush1.msra.mxu0 0.0
        %6499 = vmatprep.subr.mxu0 0.0
        %6500 = vmatpush1.msra.mxu0 0.0
        %6501 = vmatprep.subr.mxu0 0.0
        %6502 = vmatpush1.msra.mxu0 0.0
        %6503 = vmatprep.subr.mxu0 0.0
        %6504 = vmatpush1.msra.mxu0 0.0
        %6505 = vmatprep.subr.mxu0 0.0
        %6506 = vmatpush1.msra.mxu0 0.0
        %6507 = vmatprep.subr.mxu0 0.0
        %6508 = vmatpush1.msra.mxu0 0.0
        %6509 = vmatprep.subr.mxu0 0.0
        %6510 = vmatpush1.msra.mxu0 0.0
        %6511 = vmatprep.subr.mxu0 0.0
        %6512 = vmatpush1.msra.mxu0 0.0
        %6513 = vmatprep.subr.mxu0 0.0
        %6514 = vmatpush1.msra.mxu0 0.0
        %6515 = vmatprep.subr.mxu0 0.0
        %6516 = vmatpush1.msra.mxu0 0.0
        %6517 = vmatprep.subr.mxu0 0.0
        %6518 = vmatpush1.msra.mxu0 0.0
        %6519 = vmatprep.subr.mxu0 0.0
        %6520 = vmatpush1.msra.mxu0 0.0
        %6521 = vmatprep.subr.mxu0 0.0
        %6522 = vmatpush1.msra.mxu0 0.0
        %6523 = vmatprep.subr.mxu0 0.0
        %6524 = vmatpush1.msra.mxu0 0.0
        %6525 = vmatprep.subr.mxu0 0.0
        %6526 = vmatpush1.msra.mxu0 0.0
        %6527 = vmatprep.subr.mxu0 0.0
        %6528 = vmatpush1.msra.mxu0 0.0
        %6529 = vmatprep.subr.mxu0 0.0
        %6530 = vmatpush1.msra.mxu0 0.0
        %6531 = vmatprep.subr.mxu0 0.0
        %6532 = vmatpush1.msra.mxu0 0.0
        %6533 = vmatprep.subr.mxu0 0.0
        %6534 = vmatpush1.msra.mxu0 0.0
        %6535 = vmatprep.subr.mxu0 0.0
        %6536 = vmatpush1.msra.mxu0 0.0
        %6537 = vmatprep.subr.mxu0 0.0
        %6538 = vmatpush1.msra.mxu0 0.0
        %6539 = vmatprep.mubr.f32.mxu0 0.0
        %v6540 = vand.u32 %v6219, 4294901760
        %v6541 = vsub.f32 %v6219, %v6540
        %v6542 = vand.u32 %v6541, 4294901760
        %6543 = vmatmul.mubr.f32.gmra.mrb[0].mxu0 %v6542
        %v6544 = vpop.f32.mrb[0].mxu0
        %v6545 = vadd.f32 %v6468, %v6544
        %v6546 = vpop.f32.mrb[0].mxu0
        %6547 = vdwg.mxu0
        %6548 = vmatprep.subr.mxu0 0.0
        %v6549 = vand.u32 %v6207, 4294901760
        %v6550 = vsub.f32 %v6207, %v6549
        %v6551 = vand.u32 %v6550, 4294901760
        %6552 = vmatpush1.msra.mxu0 %v6551
        %6553 = vmatprep.subr.mxu0 0.0
        %v6554 = vand.u32 %v6208, 4294901760
        %v6555 = vsub.f32 %v6208, %v6554
        %v6556 = vand.u32 %v6555, 4294901760
        %6557 = vmatpush1.msra.mxu0 %v6556
        %6558 = vmatprep.subr.mxu0 0.0
        %v6559 = vand.u32 %v6209, 4294901760
        %v6560 = vsub.f32 %v6209, %v6559
        %v6561 = vand.u32 %v6560, 4294901760
        %6562 = vmatpush1.msra.mxu0 %v6561
        %6563 = vmatprep.subr.mxu0 0.0
        %v6564 = vand.u32 %v6210, 4294901760
        %v6565 = vsub.f32 %v6210, %v6564
        %v6566 = vand.u32 %v6565, 4294901760
        %6567 = vmatpush1.msra.mxu0 %v6566
        %6568 = vmatprep.subr.mxu0 0.0
        %6569 = vmatpush1.msra.mxu0 0.0
        %6570 = vmatprep.subr.mxu0 0.0
        %6571 = vmatpush1.msra.mxu0 0.0
        %6572 = vmatprep.subr.mxu0 0.0
        %6573 = vmatpush1.msra.mxu0 0.0
        %6574 = vmatprep.subr.mxu0 0.0
        %6575 = vmatpush1.msra.mxu0 0.0
        %6576 = vmatprep.subr.mxu0 0.0
        %6577 = vmatpush1.msra.mxu0 0.0
        %6578 = vmatprep.subr.mxu0 0.0
        %6579 = vmatpush1.msra.mxu0 0.0
        %6580 = vmatprep.subr.mxu0 0.0
        %6581 = vmatpush1.msra.mxu0 0.0
        %6582 = vmatprep.subr.mxu0 0.0
        %6583 = vmatpush1.msra.mxu0 0.0
        %6584 = vmatprep.subr.mxu0 0.0
        %6585 = vmatpush1.msra.mxu0 0.0
        %6586 = vmatprep.subr.mxu0 0.0
        %6587 = vmatpush1.msra.mxu0 0.0
        %6588 = vmatprep.subr.mxu0 0.0
        %6589 = vmatpush1.msra.mxu0 0.0
        %6590 = vmatprep.subr.mxu0 0.0
        %6591 = vmatpush1.msra.mxu0 0.0
        %6592 = vmatprep.subr.mxu0 0.0
        %6593 = vmatpush1.msra.mxu0 0.0
        %6594 = vmatprep.subr.mxu0 0.0
        %6595 = vmatpush1.msra.mxu0 0.0
        %6596 = vmatprep.subr.mxu0 0.0
        %6597 = vmatpush1.msra.mxu0 0.0
        %6598 = vmatprep.subr.mxu0 0.0
        %6599 = vmatpush1.msra.mxu0 0.0
        %6600 = vmatprep.subr.mxu0 0.0
        %6601 = vmatpush1.msra.mxu0 0.0
        %6602 = vmatprep.subr.mxu0 0.0
        %6603 = vmatpush1.msra.mxu0 0.0
        %6604 = vmatprep.subr.mxu0 0.0
        %6605 = vmatpush1.msra.mxu0 0.0
        %6606 = vmatprep.subr.mxu0 0.0
        %6607 = vmatpush1.msra.mxu0 0.0
        %6608 = vmatprep.subr.mxu0 0.0
        %6609 = vmatpush1.msra.mxu0 0.0
        %6610 = vmatprep.subr.mxu0 0.0
        %6611 = vmatpush1.msra.mxu0 0.0
        %6612 = vmatprep.subr.mxu0 0.0
        %6613 = vmatpush1.msra.mxu0 0.0
        %6614 = vmatprep.subr.mxu0 0.0
        %6615 = vmatpush1.msra.mxu0 0.0
        %6616 = vmatprep.subr.mxu0 0.0
        %6617 = vmatpush1.msra.mxu0 0.0
        %6618 = vmatprep.subr.mxu0 0.0
        %6619 = vmatpush1.msra.mxu0 0.0
        %6620 = vmatprep.subr.mxu0 0.0
        %6621 = vmatpush1.msra.mxu0 0.0
        %6622 = vmatprep.subr.mxu0 0.0
        %6623 = vmatpush1.msra.mxu0 0.0
        %6624 = vmatprep.mubr.f32.mxu0 0.0
        %v6625 = vand.u32 %v6219, 4294901760
        %6626 = vmatmul.mubr.f32.gmra.mrb[0].mxu0 %v6625
        %v6627 = vpop.f32.mrb[0].mxu0
        %v6628 = vadd.f32 %v6545, %v6627
        %v6629 = vpop.f32.mrb[0].mxu0
        %6630 = vdwg.mxu0
        %6631 = vmatprep.subr.mxu0 0.0
        %v6632 = vand.u32 %v6207, 4294901760
        %6633 = vmatpush1.msra.mxu0 %v6632
        %6634 = vmatprep.subr.mxu0 0.0
        %v6635 = vand.u32 %v6208, 4294901760
        %6636 = vmatpush1.msra.mxu0 %v6635
        %6637 = vmatprep.subr.mxu0 0.0
        %v6638 = vand.u32 %v6209, 4294901760
        %6639 = vmatpush1.msra.mxu0 %v6638
        %6640 = vmatprep.subr.mxu0 0.0
        %v6641 = vand.u32 %v6210, 4294901760
        %6642 = vmatpush1.msra.mxu0 %v6641
        %6643 = vmatprep.subr.mxu0 0.0
        %6644 = vmatpush1.msra.mxu0 0.0
        %6645 = vmatprep.subr.mxu0 0.0
        %6646 = vmatpush1.msra.mxu0 0.0
        %6647 = vmatprep.subr.mxu0 0.0
        %6648 = vmatpush1.msra.mxu0 0.0
        %6649 = vmatprep.subr.mxu0 0.0
        %6650 = vmatpush1.msra.mxu0 0.0
        %6651 = vmatprep.subr.mxu0 0.0
        %6652 = vmatpush1.msra.mxu0 0.0
        %6653 = vmatprep.subr.mxu0 0.0
        %6654 = vmatpush1.msra.mxu0 0.0
        %6655 = vmatprep.subr.mxu0 0.0
        %6656 = vmatpush1.msra.mxu0 0.0
        %6657 = vmatprep.subr.mxu0 0.0
        %6658 = vmatpush1.msra.mxu0 0.0
        %6659 = vmatprep.subr.mxu0 0.0
        %6660 = vmatpush1.msra.mxu0 0.0
        %6661 = vmatprep.subr.mxu0 0.0
        %6662 = vmatpush1.msra.mxu0 0.0
        %6663 = vmatprep.subr.mxu0 0.0
        %6664 = vmatpush1.msra.mxu0 0.0
        %6665 = vmatprep.subr.mxu0 0.0
        %6666 = vmatpush1.msra.mxu0 0.0
        %6667 = vmatprep.subr.mxu0 0.0
        %6668 = vmatpush1.msra.mxu0 0.0
        %6669 = vmatprep.subr.mxu0 0.0
        %6670 = vmatpush1.msra.mxu0 0.0
        %6671 = vmatprep.subr.mxu0 0.0
        %6672 = vmatpush1.msra.mxu0 0.0
        %6673 = vmatprep.subr.mxu0 0.0
        %6674 = vmatpush1.msra.mxu0 0.0
        %6675 = vmatprep.subr.mxu0 0.0
        %6676 = vmatpush1.msra.mxu0 0.0
        %6677 = vmatprep.subr.mxu0 0.0
        %6678 = vmatpush1.msra.mxu0 0.0
        %6679 = vmatprep.subr.mxu0 0.0
        %6680 = vmatpush1.msra.mxu0 0.0
        %6681 = vmatprep.subr.mxu0 0.0
        %6682 = vmatpush1.msra.mxu0 0.0
        %6683 = vmatprep.subr.mxu0 0.0
        %6684 = vmatpush1.msra.mxu0 0.0
        %6685 = vmatprep.subr.mxu0 0.0
        %6686 = vmatpush1.msra.mxu0 0.0
        %6687 = vmatprep.subr.mxu0 0.0
        %6688 = vmatpush1.msra.mxu0 0.0
        %6689 = vmatprep.subr.mxu0 0.0
        %6690 = vmatpush1.msra.mxu0 0.0
        %6691 = vmatprep.subr.mxu0 0.0
        %6692 = vmatpush1.msra.mxu0 0.0
        %6693 = vmatprep.subr.mxu0 0.0
        %6694 = vmatpush1.msra.mxu0 0.0
        %6695 = vmatprep.subr.mxu0 0.0
        %6696 = vmatpush1.msra.mxu0 0.0
        %6697 = vmatprep.subr.mxu0 0.0
        %6698 = vmatpush1.msra.mxu0 0.0
        %6699 = vmatprep.mubr.f32.mxu0 0.0
        %v6700 = vand.u32 %v6219, 4294901760
        %6701 = vmatmul.mubr.f32.gmra.mrb[0].mxu0 %v6700
        %v6702 = vpop.f32.mrb[0].mxu0
        %v6703 = vadd.f32 %v6628, %v6702
        %v6704 = vpop.f32.mrb[0].mxu0
        %6705 = vdwg.mxu0
        %v6706 = vmul.f32 %v6703, 0.5
        %v6707 = vmul.f32 %v6703, 0.70710677
        %v6708 = verf.f32.pop %v6707
        %v6709 = vadd.f32 %v6708, 1.0
        %v6710 = vmul.f32 %v6706, %v6709
        %v6711 = vld [vmem:[%s802] sm:$0xff]
        %v6712 = vld [vmem:[%s802 + $0x8] sm:$0xff]
        %v6713 = vld [vmem:[%s802 + $0x10] sm:$0xff]
        %v6714 = vld [vmem:[%s802 + $0x18] sm:$0xff]
        %v6715 = vld [vmem:[%s802 + $0x20] sm:$0xff]
        %v6716 = vld [vmem:[%s802 + $0x28] sm:$0xff]
        %v6717 = vld [vmem:[%s802 + $0x30] sm:$0xff]
        %v6718 = vld [vmem:[%s802 + $0x38] sm:$0xff]
        %v6719 = vld [vmem:[%s810] sm:$0x1]
        %v6721 = vlaneseq
        %v6722 = vshrl.u32 %v6721, 7
        %v6723 = vsub.s32 0, %v6722
        %v6724 = vrot.slane %v6719, %v6723
        %vm6726 = vcmask 523264
        %v6728 = vsel %vm6726, %v6710, 0
        %6730 = vmatprep.subr.mxu0 0.0
        %v6731 = vand.u32 %v6711, 4294901760
        %6732 = vmatpush1.msra.mxu0 %v6731
        %6733 = vmatprep.subr.mxu0 0.0
        %v6734 = vand.u32 %v6712, 4294901760
        %6735 = vmatpush1.msra.mxu0 %v6734
        %6736 = vmatprep.subr.mxu0 0.0
        %v6737 = vand.u32 %v6713, 4294901760
        %6738 = vmatpush1.msra.mxu0 %v6737
        %6739 = vmatprep.subr.mxu0 0.0
        %v6740 = vand.u32 %v6714, 4294901760
        %6741 = vmatpush1.msra.mxu0 %v6740
        %6742 = vmatprep.subr.mxu0 0.0
        %v6743 = vand.u32 %v6715, 4294901760
        %6744 = vmatpush1.msra.mxu0 %v6743
        %6745 = vmatprep.subr.mxu0 0.0
        %v6746 = vand.u32 %v6716, 4294901760
        %6747 = vmatpush1.msra.mxu0 %v6746
        %6748 = vmatprep.subr.mxu0 0.0
        %v6749 = vand.u32 %v6717, 4294901760
        %6750 = vmatpush1.msra.mxu0 %v6749
        %6751 = vmatprep.subr.mxu0 0.0
        %v6752 = vand.u32 %v6718, 4294901760
        %6753 = vmatpush1.msra.mxu0 %v6752
        %6754 = vmatprep.subr.mxu0 0.0
        %6755 = vmatpush1.msra.mxu0 0.0
        %6756 = vmatprep.subr.mxu0 0.0
        %6757 = vmatpush1.msra.mxu0 0.0
        %6758 = vmatprep.subr.mxu0 0.0
        %6759 = vmatpush1.msra.mxu0 0.0
        %6760 = vmatprep.subr.mxu0 0.0
        %6761 = vmatpush1.msra.mxu0 0.0
        %6762 = vmatprep.subr.mxu0 0.0
        %6763 = vmatpush1.msra.mxu0 0.0
        %6764 = vmatprep.subr.mxu0 0.0
        %6765 = vmatpush1.msra.mxu0 0.0
        %6766 = vmatprep.subr.mxu0 0.0
        %6767 = vmatpush1.msra.mxu0 0.0
        %6768 = vmatprep.subr.mxu0 0.0
        %6769 = vmatpush1.msra.mxu0 0.0
        %6770 = vmatprep.subr.mxu0 0.0
        %6771 = vmatpush1.msra.mxu0 0.0
        %6772 = vmatprep.subr.mxu0 0.0
        %6773 = vmatpush1.msra.mxu0 0.0
        %6774 = vmatprep.subr.mxu0 0.0
        %6775 = vmatpush1.msra.mxu0 0.0
        %6776 = vmatprep.subr.mxu0 0.0
        %6777 = vmatpush1.msra.mxu0 0.0
        %6778 = vmatprep.subr.mxu0 0.0
        %6779 = vmatpush1.msra.mxu0 0.0
        %6780 = vmatprep.subr.mxu0 0.0
        %6781 = vmatpush1.msra.mxu0 0.0
        %6782 = vmatprep.subr.mxu0 0.0
        %6783 = vmatpush1.msra.mxu0 0.0
        %6784 = vmatprep.subr.mxu0 0.0
        %6785 = vmatpush1.msra.mxu0 0.0
        %6786 = vmatprep.subr.mxu0 0.0
        %6787 = vmatpush1.msra.mxu0 0.0
        %6788 = vmatprep.subr.mxu0 0.0
        %6789 = vmatpush1.msra.mxu0 0.0
        %6790 = vmatprep.subr.mxu0 0.0
        %6791 = vmatpush1.msra.mxu0 0.0
        %6792 = vmatprep.subr.mxu0 0.0
        %6793 = vmatpush1.msra.mxu0 0.0
        %6794 = vmatprep.subr.mxu0 0.0
        %6795 = vmatpush1.msra.mxu0 0.0
        %6796 = vmatprep.subr.mxu0 0.0
        %6797 = vmatpush1.msra.mxu0 0.0
        %6798 = vmatprep.subr.mxu0 0.0
        %6799 = vmatpush1.msra.mxu0 0.0
        %6800 = vmatprep.subr.mxu0 0.0
        %6801 = vmatpush1.msra.mxu0 0.0
        %6802 = vmatprep.mubr.f32.mxu0 0.0
        %v6803 = vand.u32 %v6728, 4294901760
        %v6804 = vsub.f32 %v6728, %v6803
        %v6805 = vand.u32 %v6804, 4294901760
        %v6806 = vsub.f32 %v6804, %v6805
        %v6807 = vand.u32 %v6806, 4294901760
        %6808 = vmatmul.mubr.f32.gmra.mrb[0].mxu0 %v6807
        %v6809 = vpop.f32.mrb[0].mxu0
        %v6810 = vadd.f32 %v6724, %v6809
        %v6811 = vpop.f32.mrb[0].mxu0
        %6812 = vdwg.mxu0
        %6813 = vmatprep.subr.mxu0 0.0
        %v6814 = vand.u32 %v6711, 4294901760
        %v6815 = vsub.f32 %v6711, %v6814
        %v6816 = vand.u32 %v6815, 4294901760
        %v6817 = vsub.f32 %v6815, %v6816
        %v6818 = vand.u32 %v6817, 4294901760
        %6819 = vmatpush1.msra.mxu0 %v6818
        %6820 = vmatprep.subr.mxu0 0.0
        %v6821 = vand.u32 %v6712, 4294901760
        %v6822 = vsub.f32 %v6712, %v6821
        %v6823 = vand.u32 %v6822, 4294901760
        %v6824 = vsub.f32 %v6822, %v6823
        %v6825 = vand.u32 %v6824, 4294901760
        %6826 = vmatpush1.msra.mxu0 %v6825
        %6827 = vmatprep.subr.mxu0 0.0
        %v6828 = vand.u32 %v6713, 4294901760
        %v6829 = vsub.f32 %v6713, %v6828
        %v6830 = vand.u32 %v6829, 4294901760
        %v6831 = vsub.f32 %v6829, %v6830
        %v6832 = vand.u32 %v6831, 4294901760
        %6833 = vmatpush1.msra.mxu0 %v6832
        %6834 = vmatprep.subr.mxu0 0.0
        %v6835 = vand.u32 %v6714, 4294901760
        %v6836 = vsub.f32 %v6714, %v6835
        %v6837 = vand.u32 %v6836, 4294901760
        %v6838 = vsub.f32 %v6836, %v6837
        %v6839 = vand.u32 %v6838, 4294901760
        %6840 = vmatpush1.msra.mxu0 %v6839
        %6841 = vmatprep.subr.mxu0 0.0
        %v6842 = vand.u32 %v6715, 4294901760
        %v6843 = vsub.f32 %v6715, %v6842
        %v6844 = vand.u32 %v6843, 4294901760
        %v6845 = vsub.f32 %v6843, %v6844
        %v6846 = vand.u32 %v6845, 4294901760
        %6847 = vmatpush1.msra.mxu0 %v6846
        %6848 = vmatprep.subr.mxu0 0.0
        %v6849 = vand.u32 %v6716, 4294901760
        %v6850 = vsub.f32 %v6716, %v6849
        %v6851 = vand.u32 %v6850, 4294901760
        %v6852 = vsub.f32 %v6850, %v6851
        %v6853 = vand.u32 %v6852, 4294901760
        %6854 = vmatpush1.msra.mxu0 %v6853
        %6855 = vmatprep.subr.mxu0 0.0
        %v6856 = vand.u32 %v6717, 4294901760
        %v6857 = vsub.f32 %v6717, %v6856
        %v6858 = vand.u32 %v6857, 4294901760
        %v6859 = vsub.f32 %v6857, %v6858
        %v6860 = vand.u32 %v6859, 4294901760
        %6861 = vmatpush1.msra.mxu0 %v6860
        %6862 = vmatprep.subr.mxu0 0.0
        %v6863 = vand.u32 %v6718, 4294901760
        %v6864 = vsub.f32 %v6718, %v6863
        %v6865 = vand.u32 %v6864, 4294901760
        %v6866 = vsub.f32 %v6864, %v6865
        %v6867 = vand.u32 %v6866, 4294901760
        %6868 = vmatpush1.msra.mxu0 %v6867
        %6869 = vmatprep.subr.mxu0 0.0
        %6870 = vmatpush1.msra.mxu0 0.0
        %6871 = vmatprep.subr.mxu0 0.0
        %6872 = vmatpush1.msra.mxu0 0.0
        %6873 = vmatprep.subr.mxu0 0.0
        %6874 = vmatpush1.msra.mxu0 0.0
        %6875 = vmatprep.subr.mxu0 0.0
        %6876 = vmatpush1.msra.mxu0 0.0
        %6877 = vmatprep.subr.mxu0 0.0
        %6878 = vmatpush1.msra.mxu0 0.0
        %6879 = vmatprep.subr.mxu0 0.0
        %6880 = vmatpush1.msra.mxu0 0.0
        %6881 = vmatprep.subr.mxu0 0.0
        %6882 = vmatpush1.msra.mxu0 0.0
        %6883 = vmatprep.subr.mxu0 0.0
        %6884 = vmatpush1.msra.mxu0 0.0
        %6885 = vmatprep.subr.mxu0 0.0
        %6886 = vmatpush1.msra.mxu0 0.0
        %6887 = vmatprep.subr.mxu0 0.0
        %6888 = vmatpush1.msra.mxu0 0.0
        %6889 = vmatprep.subr.mxu0 0.0
        %6890 = vmatpush1.msra.mxu0 0.0
        %6891 = vmatprep.subr.mxu0 0.0
        %6892 = vmatpush1.msra.mxu0 0.0
        %6893 = vmatprep.subr.mxu0 0.0
        %6894 = vmatpush1.msra.mxu0 0.0
        %6895 = vmatprep.subr.mxu0 0.0
        %6896 = vmatpush1.msra.mxu0 0.0
        %6897 = vmatprep.subr.mxu0 0.0
        %6898 = vmatpush1.msra.mxu0 0.0
        %6899 = vmatprep.subr.mxu0 0.0
        %6900 = vmatpush1.msra.mxu0 0.0
        %6901 = vmatprep.subr.mxu0 0.0
        %6902 = vmatpush1.msra.mxu0 0.0
        %6903 = vmatprep.subr.mxu0 0.0
        %6904 = vmatpush1.msra.mxu0 0.0
        %6905 = vmatprep.subr.mxu0 0.0
        %6906 = vmatpush1.msra.mxu0 0.0
        %6907 = vmatprep.subr.mxu0 0.0
        %6908 = vmatpush1.msra.mxu0 0.0
        %6909 = vmatprep.subr.mxu0 0.0
        %6910 = vmatpush1.msra.mxu0 0.0
        %6911 = vmatprep.subr.mxu0 0.0
        %6912 = vmatpush1.msra.mxu0 0.0
        %6913 = vmatprep.subr.mxu0 0.0
        %6914 = vmatpush1.msra.mxu0 0.0
        %6915 = vmatprep.subr.mxu0 0.0
        %6916 = vmatpush1.msra.mxu0 0.0
        %6917 = vmatprep.mubr.f32.mxu0 0.0
        %v6918 = vand.u32 %v6728, 4294901760
        %6919 = vmatmul.mubr.f32.gmra.mrb[0].mxu0 %v6918
        %v6920 = vpop.f32.mrb[0].mxu0
        %v6921 = vadd.f32 %v6810, %v6920
        %v6922 = vpop.f32.mrb[0].mxu0
        %6923 = vdwg.mxu0
        %6924 = vmatprep.subr.mxu0 0.0
        %v6925 = vand.u32 %v6711, 4294901760
        %v6926 = vsub.f32 %v6711, %v6925
        %6927 = vmatpush1.msra.mxu0 %v6926
        %6928 = vmatprep.subr.mxu0 0.0
        %v6929 = vand.u32 %v6712, 4294901760
        %v6930 = vsub.f32 %v6712, %v6929
        %6931 = vmatpush1.msra.mxu0 %v6930
        %6932 = vmatprep.subr.mxu0 0.0
        %v6933 = vand.u32 %v6713, 4294901760
        %v6934 = vsub.f32 %v6713, %v6933
        %6935 = vmatpush1.msra.mxu0 %v6934
        %6936 = vmatprep.subr.mxu0 0.0
        %v6937 = vand.u32 %v6714, 4294901760
        %v6938 = vsub.f32 %v6714, %v6937
        %6939 = vmatpush1.msra.mxu0 %v6938
        %6940 = vmatprep.subr.mxu0 0.0
        %v6941 = vand.u32 %v6715, 4294901760
        %v6942 = vsub.f32 %v6715, %v6941
        %6943 = vmatpush1.msra.mxu0 %v6942
        %6944 = vmatprep.subr.mxu0 0.0
        %v6945 = vand.u32 %v6716, 4294901760
        %v6946 = vsub.f32 %v6716, %v6945
        %6947 = vmatpush1.msra.mxu0 %v6946
        %6948 = vmatprep.subr.mxu0 0.0
        %v6949 = vand.u32 %v6717, 4294901760
        %v6950 = vsub.f32 %v6717, %v6949
        %6951 = vmatpush1.msra.mxu0 %v6950
        %6952 = vmatprep.subr.mxu0 0.0
        %v6953 = vand.u32 %v6718, 4294901760
        %v6954 = vsub.f32 %v6718, %v6953
        %6955 = vmatpush1.msra.mxu0 %v6954
        %6956 = vmatprep.subr.mxu0 0.0
        %6957 = vmatpush1.msra.mxu0 0.0
        %6958 = vmatprep.subr.mxu0 0.0
        %6959 = vmatpush1.msra.mxu0 0.0
        %6960 = vmatprep.subr.mxu0 0.0
        %6961 = vmatpush1.msra.mxu0 0.0
        %6962 = vmatprep.subr.mxu0 0.0
        %6963 = vmatpush1.msra.mxu0 0.0
        %6964 = vmatprep.subr.mxu0 0.0
        %6965 = vmatpush1.msra.mxu0 0.0
        %6966 = vmatprep.subr.mxu0 0.0
        %6967 = vmatpush1.msra.mxu0 0.0
        %6968 = vmatprep.subr.mxu0 0.0
        %6969 = vmatpush1.msra.mxu0 0.0
        %6970 = vmatprep.subr.mxu0 0.0
        %6971 = vmatpush1.msra.mxu0 0.0
        %6972 = vmatprep.subr.mxu0 0.0
        %6973 = vmatpush1.msra.mxu0 0.0
        %6974 = vmatprep.subr.mxu0 0.0
        %6975 = vmatpush1.msra.mxu0 0.0
        %6976 = vmatprep.subr.mxu0 0.0
        %6977 = vmatpush1.msra.mxu0 0.0
        %6978 = vmatprep.subr.mxu0 0.0
        %6979 = vmatpush1.msra.mxu0 0.0
        %6980 = vmatprep.subr.mxu0 0.0
        %6981 = vmatpush1.msra.mxu0 0.0
        %6982 = vmatprep.subr.mxu0 0.0
        %6983 = vmatpush1.msra.mxu0 0.0
        %6984 = vmatprep.subr.mxu0 0.0
        %6985 = vmatpush1.msra.mxu0 0.0
        %6986 = vmatprep.subr.mxu0 0.0
        %6987 = vmatpush1.msra.mxu0 0.0
        %6988 = vmatprep.subr.mxu0 0.0
        %6989 = vmatpush1.msra.mxu0 0.0
        %6990 = vmatprep.subr.mxu0 0.0
        %6991 = vmatpush1.msra.mxu0 0.0
        %6992 = vmatprep.subr.mxu0 0.0
        %6993 = vmatpush1.msra.mxu0 0.0
        %6994 = vmatprep.subr.mxu0 0.0
        %6995 = vmatpush1.msra.mxu0 0.0
        %6996 = vmatprep.subr.mxu0 0.0
        %6997 = vmatpush1.msra.mxu0 0.0
        %6998 = vmatprep.subr.mxu0 0.0
        %6999 = vmatpush1.msra.mxu0 0.0
        %7000 = vmatprep.subr.mxu0 0.0
        %7001 = vmatpush1.msra.mxu0 0.0
        %7002 = vmatprep.subr.mxu0 0.0
        %7003 = vmatpush1.msra.mxu0 0.0
        %7004 = vmatprep.mubr.f32.mxu0 0.0
        %v7005 = vand.u32 %v6728, 4294901760
        %v7006 = vsub.f32 %v6728, %v7005
        %7007 = vmatmul.mubr.f32.gmra.mrb[0].mxu0 %v7006
        %v7008 = vpop.f32.mrb[0].mxu0
        %v7009 = vadd.f32 %v6921, %v7008
        %v7010 = vpop.f32.mrb[0].mxu0
        %7011 = vdwg.mxu0
        %7012 = vmatprep.subr.mxu0 0.0
        %v7013 = vand.u32 %v6711, 4294901760
        %7014 = vmatpush1.msra.mxu0 %v7013
        %7015 = vmatprep.subr.mxu0 0.0
        %v7016 = vand.u32 %v6712, 4294901760
        %7017 = vmatpush1.msra.mxu0 %v7016
        %7018 = vmatprep.subr.mxu0 0.0
        %v7019 = vand.u32 %v6713, 4294901760
        %7020 = vmatpush1.msra.mxu0 %v7019
        %7021 = vmatprep.subr.mxu0 0.0
        %v7022 = vand.u32 %v6714, 4294901760
        %7023 = vmatpush1.msra.mxu0 %v7022
        %7024 = vmatprep.subr.mxu0 0.0
        %v7025 = vand.u32 %v6715, 4294901760
        %7026 = vmatpush1.msra.mxu0 %v7025
        %7027 = vmatprep.subr.mxu0 0.0
        %v7028 = vand.u32 %v6716, 4294901760
        %7029 = vmatpush1.msra.mxu0 %v7028
        %7030 = vmatprep.subr.mxu0 0.0
        %v7031 = vand.u32 %v6717, 4294901760
        %7032 = vmatpush1.msra.mxu0 %v7031
        %7033 = vmatprep.subr.mxu0 0.0
        %v7034 = vand.u32 %v6718, 4294901760
        %7035 = vmatpush1.msra.mxu0 %v7034
        %7036 = vmatprep.subr.mxu0 0.0
        %7037 = vmatpush1.msra.mxu0 0.0
        %7038 = vmatprep.subr.mxu0 0.0
        %7039 = vmatpush1.msra.mxu0 0.0
        %7040 = vmatprep.subr.mxu0 0.0
        %7041 = vmatpush1.msra.mxu0 0.0
        %7042 = vmatprep.subr.mxu0 0.0
        %7043 = vmatpush1.msra.mxu0 0.0
        %7044 = vmatprep.subr.mxu0 0.0
        %7045 = vmatpush1.msra.mxu0 0.0
        %7046 = vmatprep.subr.mxu0 0.0
        %7047 = vmatpush1.msra.mxu0 0.0
        %7048 = vmatprep.subr.mxu0 0.0
        %7049 = vmatpush1.msra.mxu0 0.0
        %7050 = vmatprep.subr.mxu0 0.0
        %7051 = vmatpush1.msra.mxu0 0.0
        %7052 = vmatprep.subr.mxu0 0.0
        %7053 = vmatpush1.msra.mxu0 0.0
        %7054 = vmatprep.subr.mxu0 0.0
        %7055 = vmatpush1.msra.mxu0 0.0
        %7056 = vmatprep.subr.mxu0 0.0
        %7057 = vmatpush1.msra.mxu0 0.0
        %7058 = vmatprep.subr.mxu0 0.0
        %7059 = vmatpush1.msra.mxu0 0.0
        %7060 = vmatprep.subr.mxu0 0.0
        %7061 = vmatpush1.msra.mxu0 0.0
        %7062 = vmatprep.subr.mxu0 0.0
        %7063 = vmatpush1.msra.mxu0 0.0
        %7064 = vmatprep.subr.mxu0 0.0
        %7065 = vmatpush1.msra.mxu0 0.0
        %7066 = vmatprep.subr.mxu0 0.0
        %7067 = vmatpush1.msra.mxu0 0.0
        %7068 = vmatprep.subr.mxu0 0.0
        %7069 = vmatpush1.msra.mxu0 0.0
        %7070 = vmatprep.subr.mxu0 0.0
        %7071 = vmatpush1.msra.mxu0 0.0
        %7072 = vmatprep.subr.mxu0 0.0
        %7073 = vmatpush1.msra.mxu0 0.0
        %7074 = vmatprep.subr.mxu0 0.0
        %7075 = vmatpush1.msra.mxu0 0.0
        %7076 = vmatprep.subr.mxu0 0.0
        %7077 = vmatpush1.msra.mxu0 0.0
        %7078 = vmatprep.subr.mxu0 0.0
        %7079 = vmatpush1.msra.mxu0 0.0
        %7080 = vmatprep.subr.mxu0 0.0
        %7081 = vmatpush1.msra.mxu0 0.0
        %7082 = vmatprep.subr.mxu0 0.0
        %7083 = vmatpush1.msra.mxu0 0.0
        %7084 = vmatprep.mubr.f32.mxu0 0.0
        %v7085 = vand.u32 %v6728, 4294901760
        %v7086 = vsub.f32 %v6728, %v7085
        %v7087 = vand.u32 %v7086, 4294901760
        %7088 = vmatmul.mubr.f32.gmra.mrb[0].mxu0 %v7087
        %v7089 = vpop.f32.mrb[0].mxu0
        %v7090 = vadd.f32 %v7009, %v7089
        %v7091 = vpop.f32.mrb[0].mxu0
        %7092 = vdwg.mxu0
        %7093 = vmatprep.subr.mxu0 0.0
        %v7094 = vand.u32 %v6711, 4294901760
        %v7095 = vsub.f32 %v6711, %v7094
        %v7096 = vand.u32 %v7095, 4294901760
        %7097 = vmatpush1.msra.mxu0 %v7096
        %7098 = vmatprep.subr.mxu0 0.0
        %v7099 = vand.u32 %v6712, 4294901760
        %v7100 = vsub.f32 %v6712, %v7099
        %v7101 = vand.u32 %v7100, 4294901760
        %7102 = vmatpush1.msra.mxu0 %v7101
        %7103 = vmatprep.subr.mxu0 0.0
        %v7104 = vand.u32 %v6713, 4294901760
        %v7105 = vsub.f32 %v6713, %v7104
        %v7106 = vand.u32 %v7105, 4294901760
        %7107 = vmatpush1.msra.mxu0 %v7106
        %7108 = vmatprep.subr.mxu0 0.0
        %v7109 = vand.u32 %v6714, 4294901760
        %v7110 = vsub.f32 %v6714, %v7109
        %v7111 = vand.u32 %v7110, 4294901760
        %7112 = vmatpush1.msra.mxu0 %v7111
        %7113 = vmatprep.subr.mxu0 0.0
        %v7114 = vand.u32 %v6715, 4294901760
        %v7115 = vsub.f32 %v6715, %v7114
        %v7116 = vand.u32 %v7115, 4294901760
        %7117 = vmatpush1.msra.mxu0 %v7116
        %7118 = vmatprep.subr.mxu0 0.0
        %v7119 = vand.u32 %v6716, 4294901760
        %v7120 = vsub.f32 %v6716, %v7119
        %v7121 = vand.u32 %v7120, 4294901760
        %7122 = vmatpush1.msra.mxu0 %v7121
        %7123 = vmatprep.subr.mxu0 0.0
        %v7124 = vand.u32 %v6717, 4294901760
        %v7125 = vsub.f32 %v6717, %v7124
        %v7126 = vand.u32 %v7125, 4294901760
        %7127 = vmatpush1.msra.mxu0 %v7126
        %7128 = vmatprep.subr.mxu0 0.0
        %v7129 = vand.u32 %v6718, 4294901760
        %v7130 = vsub.f32 %v6718, %v7129
        %v7131 = vand.u32 %v7130, 4294901760
        %7132 = vmatpush1.msra.mxu0 %v7131
        %7133 = vmatprep.subr.mxu0 0.0
        %7134 = vmatpush1.msra.mxu0 0.0
        %7135 = vmatprep.subr.mxu0 0.0
        %7136 = vmatpush1.msra.mxu0 0.0
        %7137 = vmatprep.subr.mxu0 0.0
        %7138 = vmatpush1.msra.mxu0 0.0
        %7139 = vmatprep.subr.mxu0 0.0
        %7140 = vmatpush1.msra.mxu0 0.0
        %7141 = vmatprep.subr.mxu0 0.0
        %7142 = vmatpush1.msra.mxu0 0.0
        %7143 = vmatprep.subr.mxu0 0.0
        %7144 = vmatpush1.msra.mxu0 0.0
        %7145 = vmatprep.subr.mxu0 0.0
        %7146 = vmatpush1.msra.mxu0 0.0
        %7147 = vmatprep.subr.mxu0 0.0
        %7148 = vmatpush1.msra.mxu0 0.0
        %7149 = vmatprep.subr.mxu0 0.0
        %7150 = vmatpush1.msra.mxu0 0.0
        %7151 = vmatprep.subr.mxu0 0.0
        %7152 = vmatpush1.msra.mxu0 0.0
        %7153 = vmatprep.subr.mxu0 0.0
        %7154 = vmatpush1.msra.mxu0 0.0
        %7155 = vmatprep.subr.mxu0 0.0
        %7156 = vmatpush1.msra.mxu0 0.0
        %7157 = vmatprep.subr.mxu0 0.0
        %7158 = vmatpush1.msra.mxu0 0.0
        %7159 = vmatprep.subr.mxu0 0.0
        %7160 = vmatpush1.msra.mxu0 0.0
        %7161 = vmatprep.subr.mxu0 0.0
        %7162 = vmatpush1.msra.mxu0 0.0
        %7163 = vmatprep.subr.mxu0 0.0
        %7164 = vmatpush1.msra.mxu0 0.0
        %7165 = vmatprep.subr.mxu0 0.0
        %7166 = vmatpush1.msra.mxu0 0.0
        %7167 = vmatprep.subr.mxu0 0.0
        %7168 = vmatpush1.msra.mxu0 0.0
        %7169 = vmatprep.subr.mxu0 0.0
        %7170 = vmatpush1.msra.mxu0 0.0
        %7171 = vmatprep.subr.mxu0 0.0
        %7172 = vmatpush1.msra.mxu0 0.0
        %7173 = vmatprep.subr.mxu0 0.0
        %7174 = vmatpush1.msra.mxu0 0.0
        %7175 = vmatprep.subr.mxu0 0.0
        %7176 = vmatpush1.msra.mxu0 0.0
        %7177 = vmatprep.subr.mxu0 0.0
        %7178 = vmatpush1.msra.mxu0 0.0
        %7179 = vmatprep.subr.mxu0 0.0
        %7180 = vmatpush1.msra.mxu0 0.0
        %7181 = vmatprep.mubr.f32.mxu0 0.0
        %v7182 = vand.u32 %v6728, 4294901760
        %7183 = vmatmul.mubr.f32.gmra.mrb[0].mxu0 %v7182
        %v7184 = vpop.f32.mrb[0].mxu0
        %v7185 = vadd.f32 %v7090, %v7184
        %v7186 = vpop.f32.mrb[0].mxu0
        %7187 = vdwg.mxu0
        %7188 = vmatprep.subr.mxu0 0.0
        %v7189 = vand.u32 %v6711, 4294901760
        %7190 = vmatpush1.msra.mxu0 %v7189
        %7191 = vmatprep.subr.mxu0 0.0
        %v7192 = vand.u32 %v6712, 4294901760
        %7193 = vmatpush1.msra.mxu0 %v7192
        %7194 = vmatprep.subr.mxu0 0.0
        %v7195 = vand.u32 %v6713, 4294901760
        %7196 = vmatpush1.msra.mxu0 %v7195
        %7197 = vmatprep.subr.mxu0 0.0
        %v7198 = vand.u32 %v6714, 4294901760
        %7199 = vmatpush1.msra.mxu0 %v7198
        %7200 = vmatprep.subr.mxu0 0.0
        %v7201 = vand.u32 %v6715, 4294901760
        %7202 = vmatpush1.msra.mxu0 %v7201
        %7203 = vmatprep.subr.mxu0 0.0
        %v7204 = vand.u32 %v6716, 4294901760
        %7205 = vmatpush1.msra.mxu0 %v7204
        %7206 = vmatprep.subr.mxu0 0.0
        %v7207 = vand.u32 %v6717, 4294901760
        %7208 = vmatpush1.msra.mxu0 %v7207
        %7209 = vmatprep.subr.mxu0 0.0
        %v7210 = vand.u32 %v6718, 4294901760
        %7211 = vmatpush1.msra.mxu0 %v7210
        %7212 = vmatprep.subr.mxu0 0.0
        %7213 = vmatpush1.msra.mxu0 0.0
        %7214 = vmatprep.subr.mxu0 0.0
        %7215 = vmatpush1.msra.mxu0 0.0
        %7216 = vmatprep.subr.mxu0 0.0
        %7217 = vmatpush1.msra.mxu0 0.0
        %7218 = vmatprep.subr.mxu0 0.0
        %7219 = vmatpush1.msra.mxu0 0.0
        %7220 = vmatprep.subr.mxu0 0.0
        %7221 = vmatpush1.msra.mxu0 0.0
        %7222 = vmatprep.subr.mxu0 0.0
        %7223 = vmatpush1.msra.mxu0 0.0
        %7224 = vmatprep.subr.mxu0 0.0
        %7225 = vmatpush1.msra.mxu0 0.0
        %7226 = vmatprep.subr.mxu0 0.0
        %7227 = vmatpush1.msra.mxu0 0.0
        %7228 = vmatprep.subr.mxu0 0.0
        %7229 = vmatpush1.msra.mxu0 0.0
        %7230 = vmatprep.subr.mxu0 0.0
        %7231 = vmatpush1.msra.mxu0 0.0
        %7232 = vmatprep.subr.mxu0 0.0
        %7233 = vmatpush1.msra.mxu0 0.0
        %7234 = vmatprep.subr.mxu0 0.0
        %7235 = vmatpush1.msra.mxu0 0.0
        %7236 = vmatprep.subr.mxu0 0.0
        %7237 = vmatpush1.msra.mxu0 0.0
        %7238 = vmatprep.subr.mxu0 0.0
        %7239 = vmatpush1.msra.mxu0 0.0
        %7240 = vmatprep.subr.mxu0 0.0
        %7241 = vmatpush1.msra.mxu0 0.0
        %7242 = vmatprep.subr.mxu0 0.0
        %7243 = vmatpush1.msra.mxu0 0.0
        %7244 = vmatprep.subr.mxu0 0.0
        %7245 = vmatpush1.msra.mxu0 0.0
        %7246 = vmatprep.subr.mxu0 0.0
        %7247 = vmatpush1.msra.mxu0 0.0
        %7248 = vmatprep.subr.mxu0 0.0
        %7249 = vmatpush1.msra.mxu0 0.0
        %7250 = vmatprep.subr.mxu0 0.0
        %7251 = vmatpush1.msra.mxu0 0.0
        %7252 = vmatprep.subr.mxu0 0.0
        %7253 = vmatpush1.msra.mxu0 0.0
        %7254 = vmatprep.subr.mxu0 0.0
        %7255 = vmatpush1.msra.mxu0 0.0
        %7256 = vmatprep.subr.mxu0 0.0
        %7257 = vmatpush1.msra.mxu0 0.0
        %7258 = vmatprep.subr.mxu0 0.0
        %7259 = vmatpush1.msra.mxu0 0.0
        %7260 = vmatprep.mubr.f32.mxu0 0.0
        %v7261 = vand.u32 %v6728, 4294901760
        %7262 = vmatmul.mubr.f32.gmra.mrb[0].mxu0 %v7261
        %v7263 = vpop.f32.mrb[0].mxu0
        %v7264 = vadd.f32 %v7185, %v7263
        %v7265 = vpop.f32.mrb[0].mxu0
        %7266 = vdwg.mxu0
        %v7267 = vadd.f32 %v6177, %v7264
        %p7268 = scmp.lt.s32.totalorder %s55, 1
        // Predicated region
        $region137: #{transformer_forward.1} parent=75 // pred_check
          %p7269 = pneg %p7268
        $region138: #{transformer_forward.1} parent=75 // pred_check_branch
          %7271 = sbr.rel (%p7269) target = $region140
        $region139: #{transformer_forward.1} parent=75 // pred_region
          %7272 = vst.msk [vmem:[%s902] sm:$0xff] %vm913, %v7267
        $region140: #{transformer_forward.1} parent=75 // pred_fallthru
          _
        %p7273 = scmp.eq.s32.totalorder %s55, 1
        // Predicated region
        $region141: #{transformer_forward.1} parent=75 // pred_check
          %p7274 = pneg %p7273
        $region142: #{transformer_forward.1} parent=75 // pred_check_branch
          %7276 = sbr.rel (%p7274) target = $region144
        $region143: #{transformer_forward.1} parent=75 // pred_region
          %v7277 = vld [vmem:[#allocation5] sm:$0x1]
          %v7278 = vld [vmem:[#allocation7] sm:$0x1]
          %v7279 = vsel %vm913, %v7267, 0.0
          %7280 = vadd.xlane.f32.xlu0 %v7279
          %v7281 = vpop.xlane.xlu0 %7280
          %v7282 = vmul.f32 %v7281, %v917
          %v7283 = vsub.f32 %v7267, %v7282
          %v7284 = vmul.f32 %v7283, %v7283
          %v7285 = vsel %vm913, %v7284, 0.0
          %7286 = vadd.xlane.f32.xlu0 %v7285
          %v7287 = vpop.xlane.xlu0 %7286
          %v7288 = vmul.f32 %v7287, %v917
          %v7289 = vadd.f32 %v7288, 1e-05
          %v7290 = vrsqrt.pop %v7289
          %v7291 = vmul.f32 %v7283, %v7290
          %v7293 = vlaneseq
          %v7294 = vshrl.u32 %v7293, 7
          %v7295 = vsub.s32 0, %v7294
          %v7296 = vrot.slane %v7277, %v7295
          %v7298 = vmul.f32 %v7291, %v7296
          %v7300 = vlaneseq
          %v7301 = vshrl.u32 %v7300, 7
          %v7302 = vsub.s32 0, %v7301
          %v7303 = vrot.slane %v7278, %v7302
          %v7305 = vadd.f32 %v7298, %v7303
          %7306 = vst.msk [vmem:[%s902] sm:$0xff] %vm913, %v7305
        $region144: #{transformer_forward.1} parent=75 // pred_fallthru
          _
        %s7307 = sand.u32 %s424, 1
        %s7308 = scalar_lea.sflag [#allocation4], %s7307
        %s7309 = sand.u32 %s424, 1
        %s7310 = smul.addr %s7309, 8
        %s7311 = scalar_lea.vmem [#allocation25], %s7310
        // Predicated region
        $region145: #{transformer_forward.1} parent=75 // pred_check
          %p7312 = pneg %p434
        $region146: #{transformer_forward.1} parent=75 // pred_check_branch
          %7314 = sbr.rel (%p7312) target = $region148
        $region147: #{transformer_forward.1} parent=75 // pred_region
          %s7316 = ssub.s32 128, 128
          %7317 = vsyncadd %s7308, %s7316
          %s7318 = smul.addr %s54, 128
          %s7319 = scalar_lea.hbm %s14, %s7318
          %s7321 = sshll.u32 %s7311, 4
          %s7322 = int_to_ptr.vmem [resolvable:$true] %s7321
          %7324 = dma.vmem_to_hbm [thread:$0]  %s7322, 128, %s7319, %s7308
        $region148: #{transformer_forward.1} parent=75 // pred_fallthru
          _
      $region76: #{transformer_forward.1} parent=5 // pred_fallthru
        _
      %p7325 = scmp.le.s32.totalorder 2, %s45
      // Predicated region
      $region149: #{transformer_forward.1} parent=5 // pred_check
        %p7326 = pneg %p7325
      $region150: #{transformer_forward.1} parent=5 // pred_check_branch
        %7328 = sbr.rel (%p7326) target = $region152
      $region151: #{transformer_forward.1} parent=5 // pred_region
        %s7329 = ssub.s32 %s45, 2
        // Predicated region
        $region153: #{transformer_forward.1} parent=151 // pred_check
          %p7330 = pneg %p440
        $region154: #{transformer_forward.1} parent=151 // pred_check_branch
          %7332 = sbr.rel (%p7330) target = $region156
        $region155: #{transformer_forward.1} parent=151 // pred_region
          %s7333 = sand.u32 %s425, 1
          %s7334 = scalar_lea.sflag [#allocation4], %s7333
          %s7335 = sand.u32 %s425, 1
          %s7336 = smul.addr %s7335, 8
          %s7337 = scalar_lea.vmem [#allocation25], %s7336
          %7338 = dma.done %s7334, 128
        $region156: #{transformer_forward.1} parent=151 // pred_fallthru
          _
      $region152: #{transformer_forward.1} parent=5 // pred_fallthru
        _
    $region6: #{transformer_forward.1} parent=1 // loop_footer
      %s49 = sadd.s32 1, %s45
    $region7: #{transformer_forward.1} parent=1 // loop_footer_branch
      %44 = sbr.rel target = $region3
    $region8: #{transformer_forward.1} parent=1 // loop_exit
      _
    %7339 = vsyncpa [#allocation3], 1
    %s7340 = scalar_lea.sflag [#allocation3], 1
    %7341 = vsyncpa %s7340, 1
    %7342 = vsyncpa [#allocation6], 1
    %7343 = vsyncpa [#allocation9], 1
    %s7344 = scalar_lea.sflag [#allocation9], 1
    %7345 = vsyncpa %s7344, 1
    %7346 = vsyncpa [#allocation12], 1
    %s7347 = scalar_lea.sflag [#allocation12], 1
    %7348 = vsyncpa %s7347, 1
    %7349 = vsyncpa [#allocation15], 1
    %s7350 = scalar_lea.sflag [#allocation15], 1
    %7351 = vsyncpa %s7350, 1
    %7352 = vsyncpa [#allocation18], 1
    %s7353 = scalar_lea.sflag [#allocation18], 1
    %7354 = vsyncpa %s7353, 1
    %7355 = vsyncpa [#allocation21], 1
    %s7356 = scalar_lea.sflag [#allocation21], 1
    %7357 = vsyncpa %s7356, 1
    %7358 = vsyncpa [#allocation24], 1
    %s7359 = scalar_lea.sflag [#allocation24], 1
    %7360 = vsyncpa %s7359, 1
    %7361 = vsyncpa [#allocation4], 1
    %s7362 = scalar_lea.sflag [#allocation4], 1
    %7363 = vsyncpa %s7362, 1

</llo_original>
